<compile_context>
chip_gen: v6e
topology: v6e:2x2x1
jax: 0.10.0
libtpu: 0.0.40
codegen_flags: <defaults>
</compile_context>

<pallas_src>
import math
from functools import partial

import numpy as np

import jax
import jax.numpy as jnp
from jax import lax
from jax.experimental import pallas as pl
from jax.experimental.pallas import tpu as pltpu


# ----------------------------------------------------------------------------
# Fused conv layer kernel: one matmul per (sample, group), fused bias +
# InstanceNorm (single pass) + activation.  Regular convs use groups=1;
# transposed convs use groups=4 (one group per output-pixel parity).
# ----------------------------------------------------------------------------
def _fused_conv_kernel(p_ref, w_ref, b_ref, o_ref, *, groups, norm, act):
    """p_ref: (1, G, HW, K) bf16 im2col patches (taps folded into K)
       w_ref: (G, K, Cout)  bf16 fused weights
       b_ref: (1, Cout)     f32 bias
       o_ref: (1, G, HW, Cout) f32 output."""
    hw = p_ref.shape[2]
    bias = b_ref[...]                                     # (1, Cout), hoisted once

    accs = []
    for g in range(groups):
        acc = jnp.dot(p_ref[0, g], w_ref[g],
                      preferred_element_type=jnp.float32) + bias
        accs.append(acc)

    if norm:
        # InstanceNorm2d (affine=False, eps=1e-5): per-sample / per-channel
        # stats over the FULL spatial extent (all groups x HW), single pass.
        cnt = float(groups * hw)
        s = accs[0].sum(axis=0, keepdims=True)
        ss = (accs[0] * accs[0]).sum(axis=0, keepdims=True)
        for g in range(1, groups):
            s = s + accs[g].sum(axis=0, keepdims=True)
            ss = ss + (accs[g] * accs[g]).sum(axis=0, keepdims=True)
        mean = s / cnt
        var = jnp.maximum(ss / cnt - mean * mean, 0.0)
        inv = lax.rsqrt(var + 1e-5)
        accs = [(a - mean) * inv for a in accs]

    for g in range(groups):
        a = accs[g]
        if act == "relu":
            a = jnp.maximum(a, 0.0)
        elif act == "tanh":
            a = jnp.tanh(a)
        o_ref[0, g] = a.astype(o_ref.dtype)


def _fused_conv_call(patches, wf, b, *, norm, act):
    """patches: (N, G, HW, K) bf16, wf: (G, K, Cout) bf16, b: (1, Cout) f32."""
    N, G, HW, K = patches.shape
    Cout = wf.shape[-1]
    return pl.pallas_call(
        partial(_fused_conv_kernel, groups=G, norm=norm, act=act),
        out_shape=jax.ShapeDtypeStruct((N, G, HW, Cout), jnp.float32),
        grid=(N,),
        in_specs=[
            pl.BlockSpec((1, G, HW, K), lambda n: (n, 0, 0, 0)),
            pl.BlockSpec((G, K, Cout), lambda n: (0, 0, 0)),
            pl.BlockSpec((1, Cout), lambda n: (0, 0)),
        ],
        out_specs=pl.BlockSpec((1, G, HW, Cout), lambda n: (n, 0, 0, 0)),
        compiler_params=pltpu.CompilerParams(
            dimension_semantics=("parallel",),
            vmem_limit_bytes=32 * 1024 * 1024),
    )(patches, wf, b)


# ----------------------------------------------------------------------------
# Wrapper glue: padding + im2col (taps folded into K, tap-major / channel-minor)
# ----------------------------------------------------------------------------
def _im2col(xp, KH, KW, stride, H_out, W_out):
    N, _, _, Cin = xp.shape
    cols = []
    for kh in range(KH):
        for kw in range(KW):
            sl = xp[:, kh:kh + stride * (H_out - 1) + 1:stride,
                       kw:kw + stride * (W_out - 1) + 1:stride, :]
            cols.append(sl)                               # (N, H_out, W_out, Cin)
    p = jnp.concatenate(cols, axis=-1)                    # (N, H_out, W_out, T*Cin)
    return p.reshape(N, H_out * W_out, KH * KW * Cin)


def conv2d(x, w, b, *, stride=1, pad=0, pad_mode="reflect", norm=False, act=None):
    """x: (N,H,W,Cin) f32, w: (KH,KW,Cin,Cout), b: (Cout,)."""
    KH, KW, Cin, Cout = w.shape
    xp = jnp.pad(x, ((0, 0), (pad, pad), (pad, pad), (0, 0)), mode=pad_mode) if pad else x
    N, Hp, Wp, _ = xp.shape
    H_out = (Hp - KH) // stride + 1
    W_out = (Wp - KW) // stride + 1

    patches = _im2col(xp, KH, KW, stride, H_out, W_out)[:, None]      # (N,1,HW,K)
    wf = w.reshape(KH * KW * Cin, Cout)[None]                         # (1,K,Cout)
    out = _fused_conv_call(patches.astype(jnp.bfloat16),
                           wf.astype(jnp.bfloat16),
                           b.reshape(1, Cout).astype(jnp.float32),
                           norm=norm, act=act)
    return out.reshape(N, H_out, W_out, Cout)


def conv_transpose2d(x, w_t, b, *, norm=False, act=None):
    """PyTorch ConvTranspose2d(k=3, stride=2, padding=1, output_padding=1),
    computed exactly via the 4-way sub-pixel (parity) decomposition:
      out[2m+ph, 2l+pw] = sum_{taps of (ph,pw)} x[m+dh, l+dw] * w[:, :, kh, kw]
    so no dilated zero-filled buffer is ever built."""
    Cin, Cout, KH, KW = w_t.shape
    N, H, W, _ = x.shape
    xe = jnp.pad(x, ((0, 0), (0, 1), (0, 1), (0, 0)))     # zero-pad bottom/right

    # parity -> list of (input offset, kernel index) along one spatial axis
    par_taps = {0: [(0, 1)], 1: [(0, 2), (1, 0)]}

    groups_p, groups_w = [], []
    for ph in (0, 1):
        for pw in (0, 1):
            taps = [(dh, dw, kh, kw)
                    for (dh, kh) in par_taps[ph] for (dw, kw) in par_taps[pw]]
            cols, wrows = [], []
            for (dh, dw, kh, kw) in taps:
                cols.append(xe[:, dh:dh + H, dw:dw + W, :])        # (N,H,W,Cin)
                wrows.append(w_t[:, :, kh, kw])                    # (Cin,Cout)
            while len(cols) < 4:                                   # pad to 4 taps
                cols.append(jnp.zeros_like(cols[0]))
                wrows.append(jnp.zeros_like(wrows[0]))
            p = jnp.concatenate(cols, axis=-1).reshape(N, H * W, 4 * Cin)
            groups_p.append(p)
            groups_w.append(jnp.concatenate(wrows, axis=0))        # (4*Cin,Cout)

    patches = jnp.stack(groups_p, axis=1)                          # (N,4,HW,4Cin)
    wf = jnp.stack(groups_w, axis=0)                               # (4,4Cin,Cout)
    out = _fused_conv_call(patches.astype(jnp.bfloat16),
                           wf.astype(jnp.bfloat16),
                           b.reshape(1, Cout).astype(jnp.float32),
                           norm=norm, act=act)                     # (N,4,HW,Cout)

    # Interleave the 4 parity sub-grids back into (N, 2H, 2W, Cout).
    out = out.reshape(N, 2, 2, H, W, Cout)
    out = jnp.transpose(out, (0, 3, 1, 4, 2, 5)).reshape(N, 2 * H, 2 * W, Cout)
    return out


# ----------------------------------------------------------------------------
# Fused residual stack: 9 x (conv3x3 reflect + ReLU, conv3x3 reflect) with
# SHARED weights, in ONE pallas_call.  The activation stays resident in the
# output VMEM block across the "arbitrary" residual grid axis; reflect padding
# + tap gathering are expressed as one-hot spatial gather matmuls so the whole
# step is plain MXU work.
# ----------------------------------------------------------------------------
def _residual_stack_kernel(x_ref, s_ref, w1_ref, b1_ref, w2_ref, b2_ref, o_ref,
                           *, taps):
    @pl.when(pl.program_id(1) == 0)
    def _():
        o_ref[0] = x_ref[0]                                # load activation once

    def conv3x3_reflect(a, wcat_ref, bias_ref):
        cout = bias_ref.shape[1]
        # One wide matmul: (HW, C) x (C, T*Cout) -- all taps' channel mixing at
        # once -- then per-tap one-hot reflect-gather matmuls accumulate.
        m = jnp.dot(a.astype(wcat_ref.dtype), wcat_ref[...],
                    preferred_element_type=jnp.float32)    # (HW, T*Cout)
        acc = jnp.dot(s_ref[0], m[:, 0:cout],
                      preferred_element_type=jnp.float32)
        for t in range(1, taps):
            acc = acc + jnp.dot(s_ref[t], m[:, t * cout:(t + 1) * cout],
                                preferred_element_type=jnp.float32)
        return acc + bias_ref[...]

    a = o_ref[0]                                           # (HW, C) resident
    h = jnp.maximum(conv3x3_reflect(a, w1_ref, b1_ref), 0.0)
    o_ref[0] = conv3x3_reflect(h, w2_ref, b2_ref).astype(o_ref.dtype)


def _reflect_gather_mats(H, W):
    """One-hot (HW, HW) matrices selecting the reflect-padded 3x3 neighbour of
    every pixel (PyTorch 'reflect', pad=1), one per tap."""
    def refl(i, n):
        if i < 0:
            return -i
        if i >= n:
            return 2 * n - 2 - i
        return i

    HW = H * W
    S = np.zeros((9, HW, HW), np.float32)
    for kh in range(3):
        for kw in range(3):
            t = kh * 3 + kw
            for i in range(H):
                for j in range(W):
                    src = refl(i + kh - 1, H) * W + refl(j + kw - 1, W)
                    S[t, i * W + j, src] = 1.0
    return jnp.asarray(S)


def residual_stack(x, w1, b1, w2, b2, residuals):
    """x: (N,H,W,C); w1,w2: (3,3,C,C) shared across all `residuals` iterations."""
    if residuals <= 0:
        return x
    N, H, W, C = x.shape
    HW, T = H * W, 9

    # TODO(synk): the one-hot gather matrices are O(HW^2); fine at the 4x-
    # downsampled residual resolution here, switch to in-kernel shifted-window
    # reads for large images.
    S = _reflect_gather_mats(H, W)

    # Weights laid out as (C, T*C): column block t holds w[kh, kw] (t = 3*kh+kw).
    w1cat = jnp.concatenate([w1[kh, kw] for kh in range(3) for kw in range(3)], axis=1)
    w2cat = jnp.concatenate([w2[kh, kw] for kh in range(3) for kw in range(3)], axis=1)

    out = pl.pallas_call(
        partial(_residual_stack_kernel, taps=T),
        out_shape=jax.ShapeDtypeStruct((N, HW, C), jnp.float32),
        grid=(N, residuals),
        in_specs=[
            pl.BlockSpec((1, HW, C), lambda n, r: (n, 0, 0)),
            pl.BlockSpec((T, HW, HW), lambda n, r: (0, 0, 0)),
            pl.BlockSpec((C, T * C), lambda n, r: (0, 0)),
            pl.BlockSpec((1, C), lambda n, r: (0, 0)),
            pl.BlockSpec((C, T * C), lambda n, r: (0, 0)),
            pl.BlockSpec((1, C), lambda n, r: (0, 0)),
        ],
        out_specs=pl.BlockSpec((1, HW, C), lambda n, r: (n, 0, 0)),
        compiler_params=pltpu.CompilerParams(
            dimension_semantics=("parallel", "arbitrary"),
            vmem_limit_bytes=32 * 1024 * 1024),
    )(x.reshape(N, HW, C), S,
      w1cat.astype(jnp.bfloat16), b1.reshape(1, C).astype(jnp.float32),
      w2cat.astype(jnp.bfloat16), b2.reshape(1, C).astype(jnp.float32))
    return out.reshape(N, H, W, C)


# ----------------------------------------------------------------------------
# Parameters + full forward pass
# ----------------------------------------------------------------------------
def init_params(key, img, k):
    """Deterministic synthetic parameters matching the PyTorch module's shapes."""
    keys = iter(jax.random.split(key, 16))

    def cw(cin, cout, ksz):
        w = jax.random.normal(next(keys), (ksz, ksz, cin, cout), jnp.float32)
        w = w / math.sqrt(cin * ksz * ksz)
        b = 0.01 * jax.random.normal(next(keys), (cout,), jnp.float32)
        return w, b

    def ctw(cin, cout, ksz):
        w = jax.random.normal(next(keys), (cin, cout, ksz, ksz), jnp.float32)
        w = w / math.sqrt(cin * ksz * ksz)
        b = 0.01 * jax.random.normal(next(keys), (cout,), jnp.float32)
        return w, b

    return {
        "c7s1kF": cw(img, k, 7),
        "dk1":    cw(k, 2 * k, 3),
        "dk2":    cw(2 * k, 4 * k, 3),
        "rk1":    cw(4 * k, 4 * k, 3),
        "rk2":    cw(4 * k, 4 * k, 3),
        "uk1":    ctw(4 * k, 2 * k, 3),
        "uk2":    ctw(2 * k, 1 * k, 3),
        "c7s1KL": cw(k, img, 7),
    }


def generator_forward(x_nchw, params, residuals=9):
    # NCHW (PyTorch) -> NHWC (kernel layout)
    x = jnp.transpose(x_nchw, (0, 2, 3, 1)).astype(jnp.float32)

    # c7s1kF: 7x7 reflect conv + InstanceNorm + ReLU
    w, b = params["c7s1kF"]
    x = conv2d(x, w, b, stride=1, pad=3, pad_mode="reflect", norm=True, act="relu")

    # DK: two stride-2 downsampling convs (reflect pad), each + IN + ReLU
    w, b = params["dk1"]
    x = conv2d(x, w, b, stride=2, pad=1, pad_mode="reflect", norm=True, act="relu")
    w, b = params["dk2"]
    x = conv2d(x, w, b, stride=2, pad=1, pad_mode="reflect", norm=True, act="relu")

    # RK applied `residuals` times with SHARED weights; as in the PyTorch
    # forward there is NO skip connection and NO norm: conv+ReLU then conv.
    (w1, b1) = params["rk1"]
    (w2, b2) = params["rk2"]
    x = residual_stack(x, w1, b1, w2, b2, residuals)

    # UK: two stride-2 transposed convs (sub-pixel decomposition), each + IN + ReLU
    w, b = params["uk1"]
    x = conv_transpose2d(x, w, b, norm=True, act="relu")
    w, b = params["uk2"]
    x = conv_transpose2d(x, w, b, norm=True, act="relu")

    # c7s1KL: 7x7 reflect conv + tanh
    w, b = params["c7s1KL"]
    x = conv2d(x, w, b, stride=1, pad=3, pad_mode="reflect", norm=False, act="tanh")

    # NHWC -> NCHW
    return jnp.transpose(x, (0, 3, 1, 2))


if __name__ == "__main__":
    key = jax.random.PRNGKey(0)
    kx, kp = jax.random.split(key)

    # Small shapes consistent with the module: img=4 channels, k=8, 16x16 images.
    img, k, residuals = 4, 8, 9
    x = jax.random.normal(kx, (2, img, 16, 16), jnp.float32)   # NCHW, like PyTorch
    params = init_params(kp, img, k)

    fwd = jax.jit(partial(generator_forward, residuals=residuals))
    y = fwd(x, params)
    jax.block_until_ready(y)

    assert y.shape == (2, img, 16, 16), y.shape
    assert bool(jnp.all(jnp.isfinite(y)))
    assert bool(jnp.all(jnp.abs(y) <= 1.0))   # tanh output range
    print("KERNEL_OK")
</pallas_src>

<mosaic_0001>
module attributes {stable_mosaic.version = 11 : i64} {
  func.func @_fused_conv_kernel(%arg0: i32, %arg1: memref<1x1x256x196xbf16, #tpu.memory_space<vmem>>, %arg2: memref<1x196x8xbf16, #tpu.memory_space<vmem>>, %arg3: memref<1x8xf32, #tpu.memory_space<vmem>>, %arg4: memref<1x1x256x8xf32, #tpu.memory_space<vmem>>) attributes {dimension_semantics = [#tpu.dimension_semantics<parallel>], iteration_bounds = array<i64: 2>, scalar_prefetch = 0 : i64, scratch_operands = 0 : i64, tpu.core_type = #tpu.core_type<tc>, window_params = [{transform_indices = @transform_0, window_bounds = array<i64: 1, 1, 256, 196>}, {pipeline_mode = #tpu.pipeline_mode<synchronous>, transform_indices = @transform_1, window_bounds = array<i64: 1, 196, 8>}, {pipeline_mode = #tpu.pipeline_mode<synchronous>, transform_indices = @transform_2, window_bounds = array<i64: 1, 8>}, {transform_indices = @transform_3, window_bounds = array<i64: 1, 1, 256, 8>}]} {
    %c0 = arith.constant 0 : index
    %c0_0 = arith.constant 0 : index
    %0 = vector.load %arg3[%c0, %c0_0] : memref<1x8xf32, #tpu.memory_space<vmem>>, vector<1x8xf32>
    %c0_1 = arith.constant 0 : index
    %c0_2 = arith.constant 0 : index
    %c0_3 = arith.constant 0 : index
    %c0_4 = arith.constant 0 : index
    %1 = vector.load %arg1[%c0_1, %c0_2, %c0_3, %c0_4] : memref<1x1x256x196xbf16, #tpu.memory_space<vmem>>, vector<1x1x256x196xbf16>
    %2 = vector.shape_cast %1 : vector<1x1x256x196xbf16> to vector<256x196xbf16>
    %c0_5 = arith.constant 0 : index
    %c0_6 = arith.constant 0 : index
    %c0_7 = arith.constant 0 : index
    %3 = vector.load %arg2[%c0_5, %c0_6, %c0_7] : memref<1x196x8xbf16, #tpu.memory_space<vmem>>, vector<1x196x8xbf16>
    %4 = vector.shape_cast %3 : vector<1x196x8xbf16> to vector<196x8xbf16>
    %cst = arith.constant dense<0.000000e+00> : vector<256x8xf32>
    %5 = tpu.matmul %2, %4, %cst {dimension_numbers = #tpu.dot_dimension_numbers<[1], [0], [0], [1], [0, 0, 1, 1], [], []>} : vector<256x196xbf16>, vector<196x8xbf16>, vector<256x8xf32> -> vector<256x8xf32>
    %6 = vector.broadcast %0 : vector<1x8xf32> to vector<256x8xf32>
    %7 = arith.addf %5, %6 : vector<256x8xf32>
    %cst_8 = arith.constant dense<0.000000e+00> : vector<8xf32>
    %8 = vector.multi_reduction <add>, %7, %cst_8 [0] : vector<256x8xf32> to vector<8xf32>
    %9 = vector.shape_cast %8 : vector<8xf32> to vector<1x8xf32>
    %10 = arith.mulf %7, %7 : vector<256x8xf32>
    %cst_9 = arith.constant dense<0.000000e+00> : vector<8xf32>
    %11 = vector.multi_reduction <add>, %10, %cst_9 [0] : vector<256x8xf32> to vector<8xf32>
    %12 = vector.shape_cast %11 : vector<8xf32> to vector<1x8xf32>
    %cst_10 = arith.constant 2.560000e+02 : f32
    %13 = vector.broadcast %cst_10 : f32 to vector<1x8xf32>
    %14 = arith.divf %9, %13 : vector<1x8xf32>
    %cst_11 = arith.constant 2.560000e+02 : f32
    %15 = vector.broadcast %cst_11 : f32 to vector<1x8xf32>
    %16 = arith.divf %12, %15 : vector<1x8xf32>
    %17 = arith.mulf %14, %14 : vector<1x8xf32>
    %18 = arith.subf %16, %17 : vector<1x8xf32>
    %cst_12 = arith.constant 0.000000e+00 : f32
    %19 = vector.broadcast %cst_12 : f32 to vector<1x8xf32>
    %20 = arith.maximumf %18, %19 : vector<1x8xf32>
    %cst_13 = arith.constant 9.99999974E-6 : f32
    %21 = vector.broadcast %cst_13 : f32 to vector<1x8xf32>
    %22 = arith.addf %20, %21 : vector<1x8xf32>
    %23 = math.rsqrt %22 : vector<1x8xf32>
    %24 = vector.broadcast %14 : vector<1x8xf32> to vector<256x8xf32>
    %25 = arith.subf %7, %24 : vector<256x8xf32>
    %26 = vector.broadcast %23 : vector<1x8xf32> to vector<256x8xf32>
    %27 = arith.mulf %25, %26 : vector<256x8xf32>
    %cst_14 = arith.constant 0.000000e+00 : f32
    %28 = vector.broadcast %cst_14 : f32 to vector<256x8xf32>
    %29 = arith.maximumf %27, %28 : vector<256x8xf32>
    %c0_15 = arith.constant 0 : index
    %c0_16 = arith.constant 0 : index
    %c0_17 = arith.constant 0 : index
    %c0_18 = arith.constant 0 : index
    %30 = vector.load %arg4[%c0_15, %c0_16, %c0_17, %c0_18] : memref<1x1x256x8xf32, #tpu.memory_space<vmem>>, vector<1x1x256x8xf32>
    %31 = vector.shape_cast %30 : vector<1x1x256x8xf32> to vector<256x8xf32>
    %32 = vector.shape_cast %29 : vector<256x8xf32> to vector<1x1x256x8xf32>
    tpu.vector_store %arg4[%c0_15, %c0_16, %c0_17, %c0_18], %32 {strides = array<i32>} : memref<1x1x256x8xf32, #tpu.memory_space<vmem>>, vector<1x1x256x8xf32>,
    return
  }
  func.func @transform_0(%arg0: i32) -> (i32, i32, i32, i32) {
    %c0_i32 = arith.constant 0 : i32
    %c0_i32_0 = arith.constant 0 : i32
    %c0_i32_1 = arith.constant 0 : i32
    %c0_i32_2 = arith.constant 0 : i32
    return %arg0, %c0_i32, %c0_i32_0, %c0_i32_1 : i32, i32, i32, i32
  }
  func.func @transform_1(%arg0: i32) -> (i32, i32, i32) {
    %c0_i32 = arith.constant 0 : i32
    %c0_i32_0 = arith.constant 0 : i32
    %c0_i32_1 = arith.constant 0 : i32
    %c0_i32_2 = arith.constant 0 : i32
    return %c0_i32, %c0_i32_0, %c0_i32_1 : i32, i32, i32
  }
  func.func @transform_2(%arg0: i32) -> (i32, i32) {
    %c0_i32 = arith.constant 0 : i32
    %c0_i32_0 = arith.constant 0 : i32
    %c0_i32_1 = arith.constant 0 : i32
    return %c0_i32, %c0_i32_0 : i32, i32
  }
  func.func @transform_3(%arg0: i32) -> (i32, i32, i32, i32) {
    %c0_i32 = arith.constant 0 : i32
    %c0_i32_0 = arith.constant 0 : i32
    %c0_i32_1 = arith.constant 0 : i32
    %c0_i32_2 = arith.constant 0 : i32
    return %arg0, %c0_i32, %c0_i32_0, %c0_i32_1 : i32, i32, i32, i32
  }
}

module attributes {stable_mosaic.version = 11 : i64} {
  func.func @_fused_conv_kernel(%arg0: i32, %arg1: memref<1x1x64x72xbf16, #tpu.memory_space<vmem>>, %arg2: memref<1x72x16xbf16, #tpu.memory_space<vmem>>, %arg3: memref<1x16xf32, #tpu.memory_space<vmem>>, %arg4: memref<1x1x64x16xf32, #tpu.memory_space<vmem>>) attributes {dimension_semantics = [#tpu.dimension_semantics<parallel>], iteration_bounds = array<i64: 2>, scalar_prefetch = 0 : i64, scratch_operands = 0 : i64, tpu.core_type = #tpu.core_type<tc>, window_params = [{transform_indices = @transform_0, window_bounds = array<i64: 1, 1, 64, 72>}, {pipeline_mode = #tpu.pipeline_mode<synchronous>, transform_indices = @transform_1, window_bounds = array<i64: 1, 72, 16>}, {pipeline_mode = #tpu.pipeline_mode<synchronous>, transform_indices = @transform_2, window_bounds = array<i64: 1, 16>}, {transform_indices = @transform_3, window_bounds = array<i64: 1, 1, 64, 16>}]} {
    %c0 = arith.constant 0 : index
    %c0_0 = arith.constant 0 : index
    %0 = vector.load %arg3[%c0, %c0_0] : memref<1x16xf32, #tpu.memory_space<vmem>>, vector<1x16xf32>
    %c0_1 = arith.constant 0 : index
    %c0_2 = arith.constant 0 : index
    %c0_3 = arith.constant 0 : index
    %c0_4 = arith.constant 0 : index
    %1 = vector.load %arg1[%c0_1, %c0_2, %c0_3, %c0_4] : memref<1x1x64x72xbf16, #tpu.memory_space<vmem>>, vector<1x1x64x72xbf16>
    %2 = vector.shape_cast %1 : vector<1x1x64x72xbf16> to vector<64x72xbf16>
    %c0_5 = arith.constant 0 : index
    %c0_6 = arith.constant 0 : index
    %c0_7 = arith.constant 0 : index
    %3 = vector.load %arg2[%c0_5, %c0_6, %c0_7] : memref<1x72x16xbf16, #tpu.memory_space<vmem>>, vector<1x72x16xbf16>
    %4 = vector.shape_cast %3 : vector<1x72x16xbf16> to vector<72x16xbf16>
    %cst = arith.constant dense<0.000000e+00> : vector<64x16xf32>
    %5 = tpu.matmul %2, %4, %cst {dimension_numbers = #tpu.dot_dimension_numbers<[1], [0], [0], [1], [0, 0, 1, 1], [], []>} : vector<64x72xbf16>, vector<72x16xbf16>, vector<64x16xf32> -> vector<64x16xf32>
    %6 = vector.broadcast %0 : vector<1x16xf32> to vector<64x16xf32>
    %7 = arith.addf %5, %6 : vector<64x16xf32>
    %cst_8 = arith.constant dense<0.000000e+00> : vector<16xf32>
    %8 = vector.multi_reduction <add>, %7, %cst_8 [0] : vector<64x16xf32> to vector<16xf32>
    %9 = vector.shape_cast %8 : vector<16xf32> to vector<1x16xf32>
    %10 = arith.mulf %7, %7 : vector<64x16xf32>
    %cst_9 = arith.constant dense<0.000000e+00> : vector<16xf32>
    %11 = vector.multi_reduction <add>, %10, %cst_9 [0] : vector<64x16xf32> to vector<16xf32>
    %12 = vector.shape_cast %11 : vector<16xf32> to vector<1x16xf32>
    %cst_10 = arith.constant 6.400000e+01 : f32
    %13 = vector.broadcast %cst_10 : f32 to vector<1x16xf32>
    %14 = arith.divf %9, %13 : vector<1x16xf32>
    %cst_11 = arith.constant 6.400000e+01 : f32
    %15 = vector.broadcast %cst_11 : f32 to vector<1x16xf32>
    %16 = arith.divf %12, %15 : vector<1x16xf32>
    %17 = arith.mulf %14, %14 : vector<1x16xf32>
    %18 = arith.subf %16, %17 : vector<1x16xf32>
    %cst_12 = arith.constant 0.000000e+00 : f32
    %19 = vector.broadcast %cst_12 : f32 to vector<1x16xf32>
    %20 = arith.maximumf %18, %19 : vector<1x16xf32>
    %cst_13 = arith.constant 9.99999974E-6 : f32
    %21 = vector.broadcast %cst_13 : f32 to vector<1x16xf32>
    %22 = arith.addf %20, %21 : vector<1x16xf32>
    %23 = math.rsqrt %22 : vector<1x16xf32>
    %24 = vector.broadcast %14 : vector<1x16xf32> to vector<64x16xf32>
    %25 = arith.subf %7, %24 : vector<64x16xf32>
    %26 = vector.broadcast %23 : vector<1x16xf32> to vector<64x16xf32>
    %27 = arith.mulf %25, %26 : vector<64x16xf32>
    %cst_14 = arith.constant 0.000000e+00 : f32
    %28 = vector.broadcast %cst_14 : f32 to vector<64x16xf32>
    %29 = arith.maximumf %27, %28 : vector<64x16xf32>
    %c0_15 = arith.constant 0 : index
    %c0_16 = arith.constant 0 : index
    %c0_17 = arith.constant 0 : index
    %c0_18 = arith.constant 0 : index
    %30 = vector.load %arg4[%c0_15, %c0_16, %c0_17, %c0_18] : memref<1x1x64x16xf32, #tpu.memory_space<vmem>>, vector<1x1x64x16xf32>
    %31 = vector.shape_cast %30 : vector<1x1x64x16xf32> to vector<64x16xf32>
    %32 = vector.shape_cast %29 : vector<64x16xf32> to vector<1x1x64x16xf32>
    tpu.vector_store %arg4[%c0_15, %c0_16, %c0_17, %c0_18], %32 {strides = array<i32>} : memref<1x1x64x16xf32, #tpu.memory_space<vmem>>, vector<1x1x64x16xf32>,
    return
  }
  func.func @transform_0(%arg0: i32) -> (i32, i32, i32, i32) {
    %c0_i32 = arith.constant 0 : i32
    %c0_i32_0 = arith.constant 0 : i32
    %c0_i32_1 = arith.constant 0 : i32
    %c0_i32_2 = arith.constant 0 : i32
    return %arg0, %c0_i32, %c0_i32_0, %c0_i32_1 : i32, i32, i32, i32
  }
  func.func @transform_1(%arg0: i32) -> (i32, i32, i32) {
    %c0_i32 = arith.constant 0 : i32
    %c0_i32_0 = arith.constant 0 : i32
    %c0_i32_1 = arith.constant 0 : i32
    %c0_i32_2 = arith.constant 0 : i32
    return %c0_i32, %c0_i32_0, %c0_i32_1 : i32, i32, i32
  }
  func.func @transform_2(%arg0: i32) -> (i32, i32) {
    %c0_i32 = arith.constant 0 : i32
    %c0_i32_0 = arith.constant 0 : i32
    %c0_i32_1 = arith.constant 0 : i32
    return %c0_i32, %c0_i32_0 : i32, i32
  }
  func.func @transform_3(%arg0: i32) -> (i32, i32, i32, i32) {
    %c0_i32 = arith.constant 0 : i32
    %c0_i32_0 = arith.constant 0 : i32
    %c0_i32_1 = arith.constant 0 : i32
    %c0_i32_2 = arith.constant 0 : i32
    return %arg0, %c0_i32, %c0_i32_0, %c0_i32_1 : i32, i32, i32, i32
  }
}

module attributes {stable_mosaic.version = 11 : i64} {
  func.func @_fused_conv_kernel(%arg0: i32, %arg1: memref<1x1x16x144xbf16, #tpu.memory_space<vmem>>, %arg2: memref<1x144x32xbf16, #tpu.memory_space<vmem>>, %arg3: memref<1x32xf32, #tpu.memory_space<vmem>>, %arg4: memref<1x1x16x32xf32, #tpu.memory_space<vmem>>) attributes {dimension_semantics = [#tpu.dimension_semantics<parallel>], iteration_bounds = array<i64: 2>, scalar_prefetch = 0 : i64, scratch_operands = 0 : i64, tpu.core_type = #tpu.core_type<tc>, window_params = [{transform_indices = @transform_0, window_bounds = array<i64: 1, 1, 16, 144>}, {pipeline_mode = #tpu.pipeline_mode<synchronous>, transform_indices = @transform_1, window_bounds = array<i64: 1, 144, 32>}, {pipeline_mode = #tpu.pipeline_mode<synchronous>, transform_indices = @transform_2, window_bounds = array<i64: 1, 32>}, {transform_indices = @transform_3, window_bounds = array<i64: 1, 1, 16, 32>}]} {
    %c0 = arith.constant 0 : index
    %c0_0 = arith.constant 0 : index
    %0 = vector.load %arg3[%c0, %c0_0] : memref<1x32xf32, #tpu.memory_space<vmem>>, vector<1x32xf32>
    %c0_1 = arith.constant 0 : index
    %c0_2 = arith.constant 0 : index
    %c0_3 = arith.constant 0 : index
    %c0_4 = arith.constant 0 : index
    %1 = vector.load %arg1[%c0_1, %c0_2, %c0_3, %c0_4] : memref<1x1x16x144xbf16, #tpu.memory_space<vmem>>, vector<1x1x16x144xbf16>
    %2 = vector.shape_cast %1 : vector<1x1x16x144xbf16> to vector<16x144xbf16>
    %c0_5 = arith.constant 0 : index
    %c0_6 = arith.constant 0 : index
    %c0_7 = arith.constant 0 : index
    %3 = vector.load %arg2[%c0_5, %c0_6, %c0_7] : memref<1x144x32xbf16, #tpu.memory_space<vmem>>, vector<1x144x32xbf16>
    %4 = vector.shape_cast %3 : vector<1x144x32xbf16> to vector<144x32xbf16>
    %cst = arith.constant dense<0.000000e+00> : vector<16x32xf32>
    %5 = tpu.matmul %2, %4, %cst {dimension_numbers = #tpu.dot_dimension_numbers<[1], [0], [0], [1], [0, 0, 1, 1], [], []>} : vector<16x144xbf16>, vector<144x32xbf16>, vector<16x32xf32> -> vector<16x32xf32>
    %6 = vector.broadcast %0 : vector<1x32xf32> to vector<16x32xf32>
    %7 = arith.addf %5, %6 : vector<16x32xf32>
    %cst_8 = arith.constant dense<0.000000e+00> : vector<32xf32>
    %8 = vector.multi_reduction <add>, %7, %cst_8 [0] : vector<16x32xf32> to vector<32xf32>
    %9 = vector.shape_cast %8 : vector<32xf32> to vector<1x32xf32>
    %10 = arith.mulf %7, %7 : vector<16x32xf32>
    %cst_9 = arith.constant dense<0.000000e+00> : vector<32xf32>
    %11 = vector.multi_reduction <add>, %10, %cst_9 [0] : vector<16x32xf32> to vector<32xf32>
    %12 = vector.shape_cast %11 : vector<32xf32> to vector<1x32xf32>
    %cst_10 = arith.constant 1.600000e+01 : f32
    %13 = vector.broadcast %cst_10 : f32 to vector<1x32xf32>
    %14 = arith.divf %9, %13 : vector<1x32xf32>
    %cst_11 = arith.constant 1.600000e+01 : f32
    %15 = vector.broadcast %cst_11 : f32 to vector<1x32xf32>
    %16 = arith.divf %12, %15 : vector<1x32xf32>
    %17 = arith.mulf %14, %14 : vector<1x32xf32>
    %18 = arith.subf %16, %17 : vector<1x32xf32>
    %cst_12 = arith.constant 0.000000e+00 : f32
    %19 = vector.broadcast %cst_12 : f32 to vector<1x32xf32>
    %20 = arith.maximumf %18, %19 : vector<1x32xf32>
    %cst_13 = arith.constant 9.99999974E-6 : f32
    %21 = vector.broadcast %cst_13 : f32 to vector<1x32xf32>
    %22 = arith.addf %20, %21 : vector<1x32xf32>
    %23 = math.rsqrt %22 : vector<1x32xf32>
    %24 = vector.broadcast %14 : vector<1x32xf32> to vector<16x32xf32>
    %25 = arith.subf %7, %24 : vector<16x32xf32>
    %26 = vector.broadcast %23 : vector<1x32xf32> to vector<16x32xf32>
    %27 = arith.mulf %25, %26 : vector<16x32xf32>
    %cst_14 = arith.constant 0.000000e+00 : f32
    %28 = vector.broadcast %cst_14 : f32 to vector<16x32xf32>
    %29 = arith.maximumf %27, %28 : vector<16x32xf32>
    %c0_15 = arith.constant 0 : index
    %c0_16 = arith.constant 0 : index
    %c0_17 = arith.constant 0 : index
    %c0_18 = arith.constant 0 : index
    %30 = vector.load %arg4[%c0_15, %c0_16, %c0_17, %c0_18] : memref<1x1x16x32xf32, #tpu.memory_space<vmem>>, vector<1x1x16x32xf32>
    %31 = vector.shape_cast %30 : vector<1x1x16x32xf32> to vector<16x32xf32>
    %32 = vector.shape_cast %29 : vector<16x32xf32> to vector<1x1x16x32xf32>
    tpu.vector_store %arg4[%c0_15, %c0_16, %c0_17, %c0_18], %32 {strides = array<i32>} : memref<1x1x16x32xf32, #tpu.memory_space<vmem>>, vector<1x1x16x32xf32>,
    return
  }
  func.func @transform_0(%arg0: i32) -> (i32, i32, i32, i32) {
    %c0_i32 = arith.constant 0 : i32
    %c0_i32_0 = arith.constant 0 : i32
    %c0_i32_1 = arith.constant 0 : i32
    %c0_i32_2 = arith.constant 0 : i32
    return %arg0, %c0_i32, %c0_i32_0, %c0_i32_1 : i32, i32, i32, i32
  }
  func.func @transform_1(%arg0: i32) -> (i32, i32, i32) {
    %c0_i32 = arith.constant 0 : i32
    %c0_i32_0 = arith.constant 0 : i32
    %c0_i32_1 = arith.constant 0 : i32
    %c0_i32_2 = arith.constant 0 : i32
    return %c0_i32, %c0_i32_0, %c0_i32_1 : i32, i32, i32
  }
  func.func @transform_2(%arg0: i32) -> (i32, i32) {
    %c0_i32 = arith.constant 0 : i32
    %c0_i32_0 = arith.constant 0 : i32
    %c0_i32_1 = arith.constant 0 : i32
    return %c0_i32, %c0_i32_0 : i32, i32
  }
  func.func @transform_3(%arg0: i32) -> (i32, i32, i32, i32) {
    %c0_i32 = arith.constant 0 : i32
    %c0_i32_0 = arith.constant 0 : i32
    %c0_i32_1 = arith.constant 0 : i32
    %c0_i32_2 = arith.constant 0 : i32
    return %arg0, %c0_i32, %c0_i32_0, %c0_i32_1 : i32, i32, i32, i32
  }
}

module attributes {stable_mosaic.version = 11 : i64} {
  func.func @_residual_stack_kernel(%arg0: i32, %arg1: i32, %arg2: memref<1x16x32xf32, #tpu.memory_space<vmem>>, %arg3: memref<9x16x16xf32, #tpu.memory_space<vmem>>, %arg4: memref<32x288xbf16, #tpu.memory_space<vmem>>, %arg5: memref<1x32xf32, #tpu.memory_space<vmem>>, %arg6: memref<32x288xbf16, #tpu.memory_space<vmem>>, %arg7: memref<1x32xf32, #tpu.memory_space<vmem>>, %arg8: memref<1x16x32xf32, #tpu.memory_space<vmem>>) attributes {dimension_semantics = [#tpu.dimension_semantics<parallel>, #tpu.dimension_semantics<arbitrary>], iteration_bounds = array<i64: 2, 9>, scalar_prefetch = 0 : i64, scratch_operands = 0 : i64, tpu.core_type = #tpu.core_type<tc>, window_params = [{transform_indices = @transform_0, window_bounds = array<i64: 1, 16, 32>}, {pipeline_mode = #tpu.pipeline_mode<synchronous>, transform_indices = @transform_1, window_bounds = array<i64: 9, 16, 16>}, {pipeline_mode = #tpu.pipeline_mode<synchronous>, transform_indices = @transform_2, window_bounds = array<i64: 32, 288>}, {pipeline_mode = #tpu.pipeline_mode<synchronous>, transform_indices = @transform_3, window_bounds = array<i64: 1, 32>}, {pipeline_mode = #tpu.pipeline_mode<synchronous>, transform_indices = @transform_4, window_bounds = array<i64: 32, 288>}, {pipeline_mode = #tpu.pipeline_mode<synchronous>, transform_indices = @transform_5, window_bounds = array<i64: 1, 32>}, {transform_indices = @transform_6, window_bounds = array<i64: 1, 16, 32>}]} {
    %c0_i32 = arith.constant 0 : i32
    %0 = arith.cmpi eq, %arg1, %c0_i32 : i32
    %1 = arith.extui %0 : i1 to i32
    %c0_i32_0 = arith.constant 0 : i32
    %2 = arith.cmpi ne, %1, %c0_i32_0 : i32
    scf.if %2 {
      %c0_80 = arith.constant 0 : index
      %c0_81 = arith.constant 0 : index
      %c0_82 = arith.constant 0 : index
      %110 = vector.load %arg2[%c0_80, %c0_81, %c0_82] : memref<1x16x32xf32, #tpu.memory_space<vmem>>, vector<1x16x32xf32>
      %111 = vector.shape_cast %110 : vector<1x16x32xf32> to vector<16x32xf32>
      %c0_83 = arith.constant 0 : index
      %c0_84 = arith.constant 0 : index
      %c0_85 = arith.constant 0 : index
      %112 = vector.load %arg8[%c0_83, %c0_84, %c0_85] : memref<1x16x32xf32, #tpu.memory_space<vmem>>, vector<1x16x32xf32>
      %113 = vector.shape_cast %112 : vector<1x16x32xf32> to vector<16x32xf32>
      %114 = vector.shape_cast %111 : vector<16x32xf32> to vector<1x16x32xf32>
      tpu.vector_store %arg8[%c0_83, %c0_84, %c0_85], %114 {strides = array<i32>} : memref<1x16x32xf32, #tpu.memory_space<vmem>>, vector<1x16x32xf32>,
    } else {
    }
    %c0 = arith.constant 0 : index
    %c0_1 = arith.constant 0 : index
    %c0_2 = arith.constant 0 : index
    %3 = vector.load %arg8[%c0, %c0_1, %c0_2] : memref<1x16x32xf32, #tpu.memory_space<vmem>>, vector<1x16x32xf32>
    %4 = vector.shape_cast %3 : vector<1x16x32xf32> to vector<16x32xf32>
    %5 = arith.truncf %4 : vector<16x32xf32> to vector<16x32xbf16>
    %c0_3 = arith.constant 0 : index
    %c0_4 = arith.constant 0 : index
    %6 = vector.load %arg4[%c0_3, %c0_4] : memref<32x288xbf16, #tpu.memory_space<vmem>>, vector<32x288xbf16>
    %cst = arith.constant dense<0.000000e+00> : vector<16x288xf32>
    %7 = tpu.matmul %5, %6, %cst {dimension_numbers = #tpu.dot_dimension_numbers<[1], [0], [0], [1], [0, 0, 1, 1], [], []>} : vector<16x32xbf16>, vector<32x288xbf16>, vector<16x288xf32> -> vector<16x288xf32>
    %c0_5 = arith.constant 0 : index
    %c0_6 = arith.constant 0 : index
    %c0_7 = arith.constant 0 : index
    %8 = vector.load %arg3[%c0_5, %c0_6, %c0_7] : memref<9x16x16xf32, #tpu.memory_space<vmem>>, vector<1x16x16xf32>
    %9 = vector.shape_cast %8 : vector<1x16x16xf32> to vector<16x16xf32>
    %10 = vector.extract_strided_slice %7 {offsets = [0, 0], sizes = [16, 32], strides = [1, 1]} : vector<16x288xf32> to vector<16x32xf32>
    %cst_8 = arith.constant dense<0.000000e+00> : vector<16x32xf32>
    %11 = tpu.matmul %9, %10, %cst_8 {dimension_numbers = #tpu.dot_dimension_numbers<[1], [0], [0], [1], [0, 0, 1, 1], [], []>} : vector<16x16xf32>, vector<16x32xf32>, vector<16x32xf32> -> vector<16x32xf32>
    %c1 = arith.constant 1 : index
    %c0_9 = arith.constant 0 : index
    %c0_10 = arith.constant 0 : index
    %12 = vector.load %arg3[%c1, %c0_9, %c0_10] : memref<9x16x16xf32, #tpu.memory_space<vmem>>, vector<1x16x16xf32>
    %13 = vector.shape_cast %12 : vector<1x16x16xf32> to vector<16x16xf32>
    %14 = vector.extract_strided_slice %7 {offsets = [0, 32], sizes = [16, 32], strides = [1, 1]} : vector<16x288xf32> to vector<16x32xf32>
    %cst_11 = arith.constant dense<0.000000e+00> : vector<16x32xf32>
    %15 = tpu.matmul %13, %14, %cst_11 {dimension_numbers = #tpu.dot_dimension_numbers<[1], [0], [0], [1], [0, 0, 1, 1], [], []>} : vector<16x16xf32>, vector<16x32xf32>, vector<16x32xf32> -> vector<16x32xf32>
    %16 = arith.addf %11, %15 : vector<16x32xf32>
    %c2 = arith.constant 2 : index
    %c0_12 = arith.constant 0 : index
    %c0_13 = arith.constant 0 : index
    %17 = vector.load %arg3[%c2, %c0_12, %c0_13] : memref<9x16x16xf32, #tpu.memory_space<vmem>>, vector<1x16x16xf32>
    %18 = vector.shape_cast %17 : vector<1x16x16xf32> to vector<16x16xf32>
    %19 = vector.extract_strided_slice %7 {offsets = [0, 64], sizes = [16, 32], strides = [1, 1]} : vector<16x288xf32> to vector<16x32xf32>
    %cst_14 = arith.constant dense<0.000000e+00> : vector<16x32xf32>
    %20 = tpu.matmul %18, %19, %cst_14 {dimension_numbers = #tpu.dot_dimension_numbers<[1], [0], [0], [1], [0, 0, 1, 1], [], []>} : vector<16x16xf32>, vector<16x32xf32>, vector<16x32xf32> -> vector<16x32xf32>
    %21 = arith.addf %16, %20 : vector<16x32xf32>
    %c3 = arith.constant 3 : index
    %c0_15 = arith.constant 0 : index
    %c0_16 = arith.constant 0 : index
    %22 = vector.load %arg3[%c3, %c0_15, %c0_16] : memref<9x16x16xf32, #tpu.memory_space<vmem>>, vector<1x16x16xf32>
    %23 = vector.shape_cast %22 : vector<1x16x16xf32> to vector<16x16xf32>
    %24 = vector.extract_strided_slice %7 {offsets = [0, 96], sizes = [16, 32], strides = [1, 1]} : vector<16x288xf32> to vector<16x32xf32>
    %cst_17 = arith.constant dense<0.000000e+00> : vector<16x32xf32>
    %25 = tpu.matmul %23, %24, %cst_17 {dimension_numbers = #tpu.dot_dimension_numbers<[1], [0], [0], [1], [0, 0, 1, 1], [], []>} : vector<16x16xf32>, vector<16x32xf32>, vector<16x32xf32> -> vector<16x32xf32>
    %26 = arith.addf %21, %25 : vector<16x32xf32>
    %c4 = arith.constant 4 : index
    %c0_18 = arith.constant 0 : index
    %c0_19 = arith.constant 0 : index
    %27 = vector.load %arg3[%c4, %c0_18, %c0_19] : memref<9x16x16xf32, #tpu.memory_space<vmem>>, vector<1x16x16xf32>
    %28 = vector.shape_cast %27 : vector<1x16x16xf32> to vector<16x16xf32>
    %29 = vector.extract_strided_slice %7 {offsets = [0, 128], sizes = [16, 32], strides = [1, 1]} : vector<16x288xf32> to vector<16x32xf32>
    %cst_20 = arith.constant dense<0.000000e+00> : vector<16x32xf32>
    %30 = tpu.matmul %28, %29, %cst_20 {dimension_numbers = #tpu.dot_dimension_numbers<[1], [0], [0], [1], [0, 0, 1, 1], [], []>} : vector<16x16xf32>, vector<16x32xf32>, vector<16x32xf32> -> vector<16x32xf32>
    %31 = arith.addf %26, %30 : vector<16x32xf32>
    %c5 = arith.constant 5 : index
    %c0_21 = arith.constant 0 : index
    %c0_22 = arith.constant 0 : index
    %32 = vector.load %arg3[%c5, %c0_21, %c0_22] : memref<9x16x16xf32, #tpu.memory_space<vmem>>, vector<1x16x16xf32>
    %33 = vector.shape_cast %32 : vector<1x16x16xf32> to vector<16x16xf32>
    %34 = vector.extract_strided_slice %7 {offsets = [0, 160], sizes = [16, 32], strides = [1, 1]} : vector<16x288xf32> to vector<16x32xf32>
    %cst_23 = arith.constant dense<0.000000e+00> : vector<16x32xf32>
    %35 = tpu.matmul %33, %34, %cst_23 {dimension_numbers = #tpu.dot_dimension_numbers<[1], [0], [0], [1], [0, 0, 1, 1], [], []>} : vector<16x16xf32>, vector<16x32xf32>, vector<16x32xf32> -> vector<16x32xf32>
    %36 = arith.addf %31, %35 : vector<16x32xf32>
    %c6 = arith.constant 6 : index
    %c0_24 = arith.constant 0 : index
    %c0_25 = arith.constant 0 : index
    %37 = vector.load %arg3[%c6, %c0_24, %c0_25] : memref<9x16x16xf32, #tpu.memory_space<vmem>>, vector<1x16x16xf32>
    %38 = vector.shape_cast %37 : vector<1x16x16xf32> to vector<16x16xf32>
    %39 = vector.extract_strided_slice %7 {offsets = [0, 192], sizes = [16, 32], strides = [1, 1]} : vector<16x288xf32> to vector<16x32xf32>
    %cst_26 = arith.constant dense<0.000000e+00> : vector<16x32xf32>
    %40 = tpu.matmul %38, %39, %cst_26 {dimension_numbers = #tpu.dot_dimension_numbers<[1], [0], [0], [1], [0, 0, 1, 1], [], []>} : vector<16x16xf32>, vector<16x32xf32>, vector<16x32xf32> -> vector<16x32xf32>
    %41 = arith.addf %36, %40 : vector<16x32xf32>
    %c7 = arith.constant 7 : index
    %c0_27 = arith.constant 0 : index
    %c0_28 = arith.constant 0 : index
    %42 = vector.load %arg3[%c7, %c0_27, %c0_28] : memref<9x16x16xf32, #tpu.memory_space<vmem>>, vector<1x16x16xf32>
    %43 = vector.shape_cast %42 : vector<1x16x16xf32> to vector<16x16xf32>
    %44 = vector.extract_strided_slice %7 {offsets = [0, 224], sizes = [16, 32], strides = [1, 1]} : vector<16x288xf32> to vector<16x32xf32>
    %cst_29 = arith.constant dense<0.000000e+00> : vector<16x32xf32>
    %45 = tpu.matmul %43, %44, %cst_29 {dimension_numbers = #tpu.dot_dimension_numbers<[1], [0], [0], [1], [0, 0, 1, 1], [], []>} : vector<16x16xf32>, vector<16x32xf32>, vector<16x32xf32> -> vector<16x32xf32>
    %46 = arith.addf %41, %45 : vector<16x32xf32>
    %c8 = arith.constant 8 : index
    %c0_30 = arith.constant 0 : index
    %c0_31 = arith.constant 0 : index
    %47 = vector.load %arg3[%c8, %c0_30, %c0_31] : memref<9x16x16xf32, #tpu.memory_space<vmem>>, vector<1x16x16xf32>
    %48 = vector.shape_cast %47 : vector<1x16x16xf32> to vector<16x16xf32>
    %49 = vector.extract_strided_slice %7 {offsets = [0, 256], sizes = [16, 32], strides = [1, 1]} : vector<16x288xf32> to vector<16x32xf32>
    %cst_32 = arith.constant dense<0.000000e+00> : vector<16x32xf32>
    %50 = tpu.matmul %48, %49, %cst_32 {dimension_numbers = #tpu.dot_dimension_numbers<[1], [0], [0], [1], [0, 0, 1, 1], [], []>} : vector<16x16xf32>, vector<16x32xf32>, vector<16x32xf32> -> vector<16x32xf32>
    %51 = arith.addf %46, %50 : vector<16x32xf32>
    %c0_33 = arith.constant 0 : index
    %c0_34 = arith.constant 0 : index
    %52 = vector.load %arg5[%c0_33, %c0_34] : memref<1x32xf32, #tpu.memory_space<vmem>>, vector<1x32xf32>
    %53 = vector.broadcast %52 : vector<1x32xf32> to vector<16x32xf32>
    %54 = arith.addf %51, %53 : vector<16x32xf32>
    %cst_35 = arith.constant 0.000000e+00 : f32
    %55 = vector.broadcast %cst_35 : f32 to vector<16x32xf32>
    %56 = arith.maximumf %54, %55 : vector<16x32xf32>
    %57 = arith.truncf %56 : vector<16x32xf32> to vector<16x32xbf16>
    %c0_36 = arith.constant 0 : index
    %c0_37 = arith.constant 0 : index
    %58 = vector.load %arg6[%c0_36, %c0_37] : memref<32x288xbf16, #tpu.memory_space<vmem>>, vector<32x288xbf16>
    %cst_38 = arith.constant dense<0.000000e+00> : vector<16x288xf32>
    %59 = tpu.matmul %57, %58, %cst_38 {dimension_numbers = #tpu.dot_dimension_numbers<[1], [0], [0], [1], [0, 0, 1, 1], [], []>} : vector<16x32xbf16>, vector<32x288xbf16>, vector<16x288xf32> -> vector<16x288xf32>
    %c0_39 = arith.constant 0 : index
    %c0_40 = arith.constant 0 : index
    %c0_41 = arith.constant 0 : index
    %60 = vector.load %arg3[%c0_39, %c0_40, %c0_41] : memref<9x16x16xf32, #tpu.memory_space<vmem>>, vector<1x16x16xf32>
    %61 = vector.shape_cast %60 : vector<1x16x16xf32> to vector<16x16xf32>
    %62 = vector.extract_strided_slice %59 {offsets = [0, 0], sizes = [16, 32], strides = [1, 1]} : vector<16x288xf32> to vector<16x32xf32>
    %cst_42 = arith.constant dense<0.000000e+00> : vector<16x32xf32>
    %63 = tpu.matmul %61, %62, %cst_42 {dimension_numbers = #tpu.dot_dimension_numbers<[1], [0], [0], [1], [0, 0, 1, 1], [], []>} : vector<16x16xf32>, vector<16x32xf32>, vector<16x32xf32> -> vector<16x32xf32>
    %c1_43 = arith.constant 1 : index
    %c0_44 = arith.constant 0 : index
    %c0_45 = arith.constant 0 : index
    %64 = vector.load %arg3[%c1_43, %c0_44, %c0_45] : memref<9x16x16xf32, #tpu.memory_space<vmem>>, vector<1x16x16xf32>
    %65 = vector.shape_cast %64 : vector<1x16x16xf32> to vector<16x16xf32>
    %66 = vector.extract_strided_slice %59 {offsets = [0, 32], sizes = [16, 32], strides = [1, 1]} : vector<16x288xf32> to vector<16x32xf32>
    %cst_46 = arith.constant dense<0.000000e+00> : vector<16x32xf32>
    %67 = tpu.matmul %65, %66, %cst_46 {dimension_numbers = #tpu.dot_dimension_numbers<[1], [0], [0], [1], [0, 0, 1, 1], [], []>} : vector<16x16xf32>, vector<16x32xf32>, vector<16x32xf32> -> vector<16x32xf32>
    %68 = arith.addf %63, %67 : vector<16x32xf32>
    %c2_47 = arith.constant 2 : index
    %c0_48 = arith.constant 0 : index
    %c0_49 = arith.constant 0 : index
    %69 = vector.load %arg3[%c2_47, %c0_48, %c0_49] : memref<9x16x16xf32, #tpu.memory_space<vmem>>, vector<1x16x16xf32>
    %70 = vector.shape_cast %69 : vector<1x16x16xf32> to vector<16x16xf32>
    %71 = vector.extract_strided_slice %59 {offsets = [0, 64], sizes = [16, 32], strides = [1, 1]} : vector<16x288xf32> to vector<16x32xf32>
    %cst_50 = arith.constant dense<0.000000e+00> : vector<16x32xf32>
    %72 = tpu.matmul %70, %71, %cst_50 {dimension_numbers = #tpu.dot_dimension_numbers<[1], [0], [0], [1], [0, 0, 1, 1], [], []>} : vector<16x16xf32>, vector<16x32xf32>, vector<16x32xf32> -> vector<16x32xf32>
    %73 = arith.addf %68, %72 : vector<16x32xf32>
    %c3_51 = arith.constant 3 : index
    %c0_52 = arith.constant 0 : index
    %c0_53 = arith.constant 0 : index
    %74 = vector.load %arg3[%c3_51, %c0_52, %c0_53] : memref<9x16x16xf32, #tpu.memory_space<vmem>>, vector<1x16x16xf32>
    %75 = vector.shape_cast %74 : vector<1x16x16xf32> to vector<16x16xf32>
    %76 = vector.extract_strided_slice %59 {offsets = [0, 96], sizes = [16, 32], strides = [1, 1]} : vector<16x288xf32> to vector<16x32xf32>
    %cst_54 = arith.constant dense<0.000000e+00> : vector<16x32xf32>
    %77 = tpu.matmul %75, %76, %cst_54 {dimension_numbers = #tpu.dot_dimension_numbers<[1], [0], [0], [1], [0, 0, 1, 1], [], []>} : vector<16x16xf32>, vector<16x32xf32>, vector<16x32xf32> -> vector<16x32xf32>
    %78 = arith.addf %73, %77 : vector<16x32xf32>
    %c4_55 = arith.constant 4 : index
    %c0_56 = arith.constant 0 : index
    %c0_57 = arith.constant 0 : index
    %79 = vector.load %arg3[%c4_55, %c0_56, %c0_57] : memref<9x16x16xf32, #tpu.memory_space<vmem>>, vector<1x16x16xf32>
    %80 = vector.shape_cast %79 : vector<1x16x16xf32> to vector<16x16xf32>
    %81 = vector.extract_strided_slice %59 {offsets = [0, 128], sizes = [16, 32], strides = [1, 1]} : vector<16x288xf32> to vector<16x32xf32>
    %cst_58 = arith.constant dense<0.000000e+00> : vector<16x32xf32>
    %82 = tpu.matmul %80, %81, %cst_58 {dimension_numbers = #tpu.dot_dimension_numbers<[1], [0], [0], [1], [0, 0, 1, 1], [], []>} : vector<16x16xf32>, vector<16x32xf32>, vector<16x32xf32> -> vector<16x32xf32>
    %83 = arith.addf %78, %82 : vector<16x32xf32>
    %c5_59 = arith.constant 5 : index
    %c0_60 = arith.constant 0 : index
    %c0_61 = arith.constant 0 : index
    %84 = vector.load %arg3[%c5_59, %c0_60, %c0_61] : memref<9x16x16xf32, #tpu.memory_space<vmem>>, vector<1x16x16xf32>
    %85 = vector.shape_cast %84 : vector<1x16x16xf32> to vector<16x16xf32>
    %86 = vector.extract_strided_slice %59 {offsets = [0, 160], sizes = [16, 32], strides = [1, 1]} : vector<16x288xf32> to vector<16x32xf32>
    %cst_62 = arith.constant dense<0.000000e+00> : vector<16x32xf32>
    %87 = tpu.matmul %85, %86, %cst_62 {dimension_numbers = #tpu.dot_dimension_numbers<[1], [0], [0], [1], [0, 0, 1, 1], [], []>} : vector<16x16xf32>, vector<16x32xf32>, vector<16x32xf32> -> vector<16x32xf32>
    %88 = arith.addf %83, %87 : vector<16x32xf32>
    %c6_63 = arith.constant 6 : index
    %c0_64 = arith.constant 0 : index
    %c0_65 = arith.constant 0 : index
    %89 = vector.load %arg3[%c6_63, %c0_64, %c0_65] : memref<9x16x16xf32, #tpu.memory_space<vmem>>, vector<1x16x16xf32>
    %90 = vector.shape_cast %89 : vector<1x16x16xf32> to vector<16x16xf32>
    %91 = vector.extract_strided_slice %59 {offsets = [0, 192], sizes = [16, 32], strides = [1, 1]} : vector<16x288xf32> to vector<16x32xf32>
    %cst_66 = arith.constant dense<0.000000e+00> : vector<16x32xf32>
    %92 = tpu.matmul %90, %91, %cst_66 {dimension_numbers = #tpu.dot_dimension_numbers<[1], [0], [0], [1], [0, 0, 1, 1], [], []>} : vector<16x16xf32>, vector<16x32xf32>, vector<16x32xf32> -> vector<16x32xf32>
    %93 = arith.addf %88, %92 : vector<16x32xf32>
    %c7_67 = arith.constant 7 : index
    %c0_68 = arith.constant 0 : index
    %c0_69 = arith.constant 0 : index
    %94 = vector.load %arg3[%c7_67, %c0_68, %c0_69] : memref<9x16x16xf32, #tpu.memory_space<vmem>>, vector<1x16x16xf32>
    %95 = vector.shape_cast %94 : vector<1x16x16xf32> to vector<16x16xf32>
    %96 = vector.extract_strided_slice %59 {offsets = [0, 224], sizes = [16, 32], strides = [1, 1]} : vector<16x288xf32> to vector<16x32xf32>
    %cst_70 = arith.constant dense<0.000000e+00> : vector<16x32xf32>
    %97 = tpu.matmul %95, %96, %cst_70 {dimension_numbers = #tpu.dot_dimension_numbers<[1], [0], [0], [1], [0, 0, 1, 1], [], []>} : vector<16x16xf32>, vector<16x32xf32>, vector<16x32xf32> -> vector<16x32xf32>
    %98 = arith.addf %93, %97 : vector<16x32xf32>
    %c8_71 = arith.constant 8 : index
    %c0_72 = arith.constant 0 : index
    %c0_73 = arith.constant 0 : index
    %99 = vector.load %arg3[%c8_71, %c0_72, %c0_73] : memref<9x16x16xf32, #tpu.memory_space<vmem>>, vector<1x16x16xf32>
    %100 = vector.shape_cast %99 : vector<1x16x16xf32> to vector<16x16xf32>
    %101 = vector.extract_strided_slice %59 {offsets = [0, 256], sizes = [16, 32], strides = [1, 1]} : vector<16x288xf32> to vector<16x32xf32>
    %cst_74 = arith.constant dense<0.000000e+00> : vector<16x32xf32>
    %102 = tpu.matmul %100, %101, %cst_74 {dimension_numbers = #tpu.dot_dimension_numbers<[1], [0], [0], [1], [0, 0, 1, 1], [], []>} : vector<16x16xf32>, vector<16x32xf32>, vector<16x32xf32> -> vector<16x32xf32>
    %103 = arith.addf %98, %102 : vector<16x32xf32>
    %c0_75 = arith.constant 0 : index
    %c0_76 = arith.constant 0 : index
    %104 = vector.load %arg7[%c0_75, %c0_76] : memref<1x32xf32, #tpu.memory_space<vmem>>, vector<1x32xf32>
    %105 = vector.broadcast %104 : vector<1x32xf32> to vector<16x32xf32>
    %106 = arith.addf %103, %105 : vector<16x32xf32>
    %c0_77 = arith.constant 0 : index
    %c0_78 = arith.constant 0 : index
    %c0_79 = arith.constant 0 : index
    %107 = vector.load %arg8[%c0_77, %c0_78, %c0_79] : memref<1x16x32xf32, #tpu.memory_space<vmem>>, vector<1x16x32xf32>
    %108 = vector.shape_cast %107 : vector<1x16x32xf32> to vector<16x32xf32>
    %109 = vector.shape_cast %106 : vector<16x32xf32> to vector<1x16x32xf32>
    tpu.vector_store %arg8[%c0_77, %c0_78, %c0_79], %109 {strides = array<i32>} : memref<1x16x32xf32, #tpu.memory_space<vmem>>, vector<1x16x32xf32>,
    return
  }
  func.func @transform_0(%arg0: i32, %arg1: i32) -> (i32, i32, i32) {
    %c0_i32 = arith.constant 0 : i32
    %c0_i32_0 = arith.constant 0 : i32
    %c0_i32_1 = arith.constant 0 : i32
    return %arg0, %c0_i32, %c0_i32_0 : i32, i32, i32
  }
  func.func @transform_1(%arg0: i32, %arg1: i32) -> (i32, i32, i32) {
    %c0_i32 = arith.constant 0 : i32
    %c0_i32_0 = arith.constant 0 : i32
    %c0_i32_1 = arith.constant 0 : i32
    %c0_i32_2 = arith.constant 0 : i32
    return %c0_i32, %c0_i32_0, %c0_i32_1 : i32, i32, i32
  }
  func.func @transform_2(%arg0: i32, %arg1: i32) -> (i32, i32) {
    %c0_i32 = arith.constant 0 : i32
    %c0_i32_0 = arith.constant 0 : i32
    %c0_i32_1 = arith.constant 0 : i32
    return %c0_i32, %c0_i32_0 : i32, i32
  }
  func.func @transform_3(%arg0: i32, %arg1: i32) -> (i32, i32) {
    %c0_i32 = arith.constant 0 : i32
    %c0_i32_0 = arith.constant 0 : i32
    %c0_i32_1 = arith.constant 0 : i32
    return %c0_i32, %c0_i32_0 : i32, i32
  }
  func.func @transform_4(%arg0: i32, %arg1: i32) -> (i32, i32) {
    %c0_i32 = arith.constant 0 : i32
    %c0_i32_0 = arith.constant 0 : i32
    %c0_i32_1 = arith.constant 0 : i32
    return %c0_i32, %c0_i32_0 : i32, i32
  }
  func.func @transform_5(%arg0: i32, %arg1: i32) -> (i32, i32) {
    %c0_i32 = arith.constant 0 : i32
    %c0_i32_0 = arith.constant 0 : i32
    %c0_i32_1 = arith.constant 0 : i32
    return %c0_i32, %c0_i32_0 : i32, i32
  }
  func.func @transform_6(%arg0: i32, %arg1: i32) -> (i32, i32, i32) {
    %c0_i32 = arith.constant 0 : i32
    %c0_i32_0 = arith.constant 0 : i32
    %c0_i32_1 = arith.constant 0 : i32
    return %arg0, %c0_i32, %c0_i32_0 : i32, i32, i32
  }
}

module attributes {stable_mosaic.version = 11 : i64} {
  func.func @_fused_conv_kernel(%arg0: i32, %arg1: memref<1x4x16x128xbf16, #tpu.memory_space<vmem>>, %arg2: memref<4x128x16xbf16, #tpu.memory_space<vmem>>, %arg3: memref<1x16xf32, #tpu.memory_space<vmem>>, %arg4: memref<1x4x16x16xf32, #tpu.memory_space<vmem>>) attributes {dimension_semantics = [#tpu.dimension_semantics<parallel>], iteration_bounds = array<i64: 2>, scalar_prefetch = 0 : i64, scratch_operands = 0 : i64, tpu.core_type = #tpu.core_type<tc>, window_params = [{transform_indices = @transform_0, window_bounds = array<i64: 1, 4, 16, 128>}, {pipeline_mode = #tpu.pipeline_mode<synchronous>, transform_indices = @transform_1, window_bounds = array<i64: 4, 128, 16>}, {pipeline_mode = #tpu.pipeline_mode<synchronous>, transform_indices = @transform_2, window_bounds = array<i64: 1, 16>}, {transform_indices = @transform_3, window_bounds = array<i64: 1, 4, 16, 16>}]} {
    %c0 = arith.constant 0 : index
    %c0_0 = arith.constant 0 : index
    %0 = vector.load %arg3[%c0, %c0_0] : memref<1x16xf32, #tpu.memory_space<vmem>>, vector<1x16xf32>
    %c0_1 = arith.constant 0 : index
    %c0_2 = arith.constant 0 : index
    %c0_3 = arith.constant 0 : index
    %c0_4 = arith.constant 0 : index
    %1 = vector.load %arg1[%c0_1, %c0_2, %c0_3, %c0_4] : memref<1x4x16x128xbf16, #tpu.memory_space<vmem>>, vector<1x1x16x128xbf16>
    %2 = vector.shape_cast %1 : vector<1x1x16x128xbf16> to vector<16x128xbf16>
    %c0_5 = arith.constant 0 : index
    %c0_6 = arith.constant 0 : index
    %c0_7 = arith.constant 0 : index
    %3 = vector.load %arg2[%c0_5, %c0_6, %c0_7] : memref<4x128x16xbf16, #tpu.memory_space<vmem>>, vector<1x128x16xbf16>
    %4 = vector.shape_cast %3 : vector<1x128x16xbf16> to vector<128x16xbf16>
    %cst = arith.constant dense<0.000000e+00> : vector<16x16xf32>
    %5 = tpu.matmul %2, %4, %cst {dimension_numbers = #tpu.dot_dimension_numbers<[1], [0], [0], [1], [0, 0, 1, 1], [], []>} : vector<16x128xbf16>, vector<128x16xbf16>, vector<16x16xf32> -> vector<16x16xf32>
    %6 = vector.broadcast %0 : vector<1x16xf32> to vector<16x16xf32>
    %7 = arith.addf %5, %6 : vector<16x16xf32>
    %c0_8 = arith.constant 0 : index
    %c1 = arith.constant 1 : index
    %c0_9 = arith.constant 0 : index
    %c0_10 = arith.constant 0 : index
    %8 = vector.load %arg1[%c0_8, %c1, %c0_9, %c0_10] : memref<1x4x16x128xbf16, #tpu.memory_space<vmem>>, vector<1x1x16x128xbf16>
    %9 = vector.shape_cast %8 : vector<1x1x16x128xbf16> to vector<16x128xbf16>
    %c1_11 = arith.constant 1 : index
    %c0_12 = arith.constant 0 : index
    %c0_13 = arith.constant 0 : index
    %10 = vector.load %arg2[%c1_11, %c0_12, %c0_13] : memref<4x128x16xbf16, #tpu.memory_space<vmem>>, vector<1x128x16xbf16>
    %11 = vector.shape_cast %10 : vector<1x128x16xbf16> to vector<128x16xbf16>
    %cst_14 = arith.constant dense<0.000000e+00> : vector<16x16xf32>
    %12 = tpu.matmul %9, %11, %cst_14 {dimension_numbers = #tpu.dot_dimension_numbers<[1], [0], [0], [1], [0, 0, 1, 1], [], []>} : vector<16x128xbf16>, vector<128x16xbf16>, vector<16x16xf32> -> vector<16x16xf32>
    %13 = vector.broadcast %0 : vector<1x16xf32> to vector<16x16xf32>
    %14 = arith.addf %12, %13 : vector<16x16xf32>
    %c0_15 = arith.constant 0 : index
    %c2 = arith.constant 2 : index
    %c0_16 = arith.constant 0 : index
    %c0_17 = arith.constant 0 : index
    %15 = vector.load %arg1[%c0_15, %c2, %c0_16, %c0_17] : memref<1x4x16x128xbf16, #tpu.memory_space<vmem>>, vector<1x1x16x128xbf16>
    %16 = vector.shape_cast %15 : vector<1x1x16x128xbf16> to vector<16x128xbf16>
    %c2_18 = arith.constant 2 : index
    %c0_19 = arith.constant 0 : index
    %c0_20 = arith.constant 0 : index
    %17 = vector.load %arg2[%c2_18, %c0_19, %c0_20] : memref<4x128x16xbf16, #tpu.memory_space<vmem>>, vector<1x128x16xbf16>
    %18 = vector.shape_cast %17 : vector<1x128x16xbf16> to vector<128x16xbf16>
    %cst_21 = arith.constant dense<0.000000e+00> : vector<16x16xf32>
    %19 = tpu.matmul %16, %18, %cst_21 {dimension_numbers = #tpu.dot_dimension_numbers<[1], [0], [0], [1], [0, 0, 1, 1], [], []>} : vector<16x128xbf16>, vector<128x16xbf16>, vector<16x16xf32> -> vector<16x16xf32>
    %20 = vector.broadcast %0 : vector<1x16xf32> to vector<16x16xf32>
    %21 = arith.addf %19, %20 : vector<16x16xf32>
    %c0_22 = arith.constant 0 : index
    %c3 = arith.constant 3 : index
    %c0_23 = arith.constant 0 : index
    %c0_24 = arith.constant 0 : index
    %22 = vector.load %arg1[%c0_22, %c3, %c0_23, %c0_24] : memref<1x4x16x128xbf16, #tpu.memory_space<vmem>>, vector<1x1x16x128xbf16>
    %23 = vector.shape_cast %22 : vector<1x1x16x128xbf16> to vector<16x128xbf16>
    %c3_25 = arith.constant 3 : index
    %c0_26 = arith.constant 0 : index
    %c0_27 = arith.constant 0 : index
    %24 = vector.load %arg2[%c3_25, %c0_26, %c0_27] : memref<4x128x16xbf16, #tpu.memory_space<vmem>>, vector<1x128x16xbf16>
    %25 = vector.shape_cast %24 : vector<1x128x16xbf16> to vector<128x16xbf16>
    %cst_28 = arith.constant dense<0.000000e+00> : vector<16x16xf32>
    %26 = tpu.matmul %23, %25, %cst_28 {dimension_numbers = #tpu.dot_dimension_numbers<[1], [0], [0], [1], [0, 0, 1, 1], [], []>} : vector<16x128xbf16>, vector<128x16xbf16>, vector<16x16xf32> -> vector<16x16xf32>
    %27 = vector.broadcast %0 : vector<1x16xf32> to vector<16x16xf32>
    %28 = arith.addf %26, %27 : vector<16x16xf32>
    %cst_29 = arith.constant dense<0.000000e+00> : vector<16xf32>
    %29 = vector.multi_reduction <add>, %7, %cst_29 [0] : vector<16x16xf32> to vector<16xf32>
    %30 = vector.shape_cast %29 : vector<16xf32> to vector<1x16xf32>
    %31 = arith.mulf %7, %7 : vector<16x16xf32>
    %cst_30 = arith.constant dense<0.000000e+00> : vector<16xf32>
    %32 = vector.multi_reduction <add>, %31, %cst_30 [0] : vector<16x16xf32> to vector<16xf32>
    %33 = vector.shape_cast %32 : vector<16xf32> to vector<1x16xf32>
    %cst_31 = arith.constant dense<0.000000e+00> : vector<16xf32>
    %34 = vector.multi_reduction <add>, %14, %cst_31 [0] : vector<16x16xf32> to vector<16xf32>
    %35 = vector.shape_cast %34 : vector<16xf32> to vector<1x16xf32>
    %36 = arith.addf %30, %35 : vector<1x16xf32>
    %37 = arith.mulf %14, %14 : vector<16x16xf32>
    %cst_32 = arith.constant dense<0.000000e+00> : vector<16xf32>
    %38 = vector.multi_reduction <add>, %37, %cst_32 [0] : vector<16x16xf32> to vector<16xf32>
    %39 = vector.shape_cast %38 : vector<16xf32> to vector<1x16xf32>
    %40 = arith.addf %33, %39 : vector<1x16xf32>
    %cst_33 = arith.constant dense<0.000000e+00> : vector<16xf32>
    %41 = vector.multi_reduction <add>, %21, %cst_33 [0] : vector<16x16xf32> to vector<16xf32>
    %42 = vector.shape_cast %41 : vector<16xf32> to vector<1x16xf32>
    %43 = arith.addf %36, %42 : vector<1x16xf32>
    %44 = arith.mulf %21, %21 : vector<16x16xf32>
    %cst_34 = arith.constant dense<0.000000e+00> : vector<16xf32>
    %45 = vector.multi_reduction <add>, %44, %cst_34 [0] : vector<16x16xf32> to vector<16xf32>
    %46 = vector.shape_cast %45 : vector<16xf32> to vector<1x16xf32>
    %47 = arith.addf %40, %46 : vector<1x16xf32>
    %cst_35 = arith.constant dense<0.000000e+00> : vector<16xf32>
    %48 = vector.multi_reduction <add>, %28, %cst_35 [0] : vector<16x16xf32> to vector<16xf32>
    %49 = vector.shape_cast %48 : vector<16xf32> to vector<1x16xf32>
    %50 = arith.addf %43, %49 : vector<1x16xf32>
    %51 = arith.mulf %28, %28 : vector<16x16xf32>
    %cst_36 = arith.constant dense<0.000000e+00> : vector<16xf32>
    %52 = vector.multi_reduction <add>, %51, %cst_36 [0] : vector<16x16xf32> to vector<16xf32>
    %53 = vector.shape_cast %52 : vector<16xf32> to vector<1x16xf32>
    %54 = arith.addf %47, %53 : vector<1x16xf32>
    %cst_37 = arith.constant 6.400000e+01 : f32
    %55 = vector.broadcast %cst_37 : f32 to vector<1x16xf32>
    %56 = arith.divf %50, %55 : vector<1x16xf32>
    %cst_38 = arith.constant 6.400000e+01 : f32
    %57 = vector.broadcast %cst_38 : f32 to vector<1x16xf32>
    %58 = arith.divf %54, %57 : vector<1x16xf32>
    %59 = arith.mulf %56, %56 : vector<1x16xf32>
    %60 = arith.subf %58, %59 : vector<1x16xf32>
    %cst_39 = arith.constant 0.000000e+00 : f32
    %61 = vector.broadcast %cst_39 : f32 to vector<1x16xf32>
    %62 = arith.maximumf %60, %61 : vector<1x16xf32>
    %cst_40 = arith.constant 9.99999974E-6 : f32
    %63 = vector.broadcast %cst_40 : f32 to vector<1x16xf32>
    %64 = arith.addf %62, %63 : vector<1x16xf32>
    %65 = math.rsqrt %64 : vector<1x16xf32>
    %66 = vector.broadcast %56 : vector<1x16xf32> to vector<16x16xf32>
    %67 = arith.subf %7, %66 : vector<16x16xf32>
    %68 = vector.broadcast %65 : vector<1x16xf32> to vector<16x16xf32>
    %69 = arith.mulf %67, %68 : vector<16x16xf32>
    %70 = vector.broadcast %56 : vector<1x16xf32> to vector<16x16xf32>
    %71 = arith.subf %14, %70 : vector<16x16xf32>
    %72 = vector.broadcast %65 : vector<1x16xf32> to vector<16x16xf32>
    %73 = arith.mulf %71, %72 : vector<16x16xf32>
    %74 = vector.broadcast %56 : vector<1x16xf32> to vector<16x16xf32>
    %75 = arith.subf %21, %74 : vector<16x16xf32>
    %76 = vector.broadcast %65 : vector<1x16xf32> to vector<16x16xf32>
    %77 = arith.mulf %75, %76 : vector<16x16xf32>
    %78 = vector.broadcast %56 : vector<1x16xf32> to vector<16x16xf32>
    %79 = arith.subf %28, %78 : vector<16x16xf32>
    %80 = vector.broadcast %65 : vector<1x16xf32> to vector<16x16xf32>
    %81 = arith.mulf %79, %80 : vector<16x16xf32>
    %cst_41 = arith.constant 0.000000e+00 : f32
    %82 = vector.broadcast %cst_41 : f32 to vector<16x16xf32>
    %83 = arith.maximumf %69, %82 : vector<16x16xf32>
    %c0_42 = arith.constant 0 : index
    %c0_43 = arith.constant 0 : index
    %c0_44 = arith.constant 0 : index
    %c0_45 = arith.constant 0 : index
    %84 = vector.load %arg4[%c0_42, %c0_43, %c0_44, %c0_45] : memref<1x4x16x16xf32, #tpu.memory_space<vmem>>, vector<1x1x16x16xf32>
    %85 = vector.shape_cast %84 : vector<1x1x16x16xf32> to vector<16x16xf32>
    %86 = vector.shape_cast %83 : vector<16x16xf32> to vector<1x1x16x16xf32>
    tpu.vector_store %arg4[%c0_42, %c0_43, %c0_44, %c0_45], %86 {strides = array<i32>} : memref<1x4x16x16xf32, #tpu.memory_space<vmem>>, vector<1x1x16x16xf32>,
    %cst_46 = arith.constant 0.000000e+00 : f32
    %87 = vector.broadcast %cst_46 : f32 to vector<16x16xf32>
    %88 = arith.maximumf %73, %87 : vector<16x16xf32>
    %c0_47 = arith.constant 0 : index
    %c1_48 = arith.constant 1 : index
    %c0_49 = arith.constant 0 : index
    %c0_50 = arith.constant 0 : index
    %89 = vector.load %arg4[%c0_47, %c1_48, %c0_49, %c0_50] : memref<1x4x16x16xf32, #tpu.memory_space<vmem>>, vector<1x1x16x16xf32>
    %90 = vector.shape_cast %89 : vector<1x1x16x16xf32> to vector<16x16xf32>
    %91 = vector.shape_cast %88 : vector<16x16xf32> to vector<1x1x16x16xf32>
    tpu.vector_store %arg4[%c0_47, %c1_48, %c0_49, %c0_50], %91 {strides = array<i32>} : memref<1x4x16x16xf32, #tpu.memory_space<vmem>>, vector<1x1x16x16xf32>,
    %cst_51 = arith.constant 0.000000e+00 : f32
    %92 = vector.broadcast %cst_51 : f32 to vector<16x16xf32>
    %93 = arith.maximumf %77, %92 : vector<16x16xf32>
    %c0_52 = arith.constant 0 : index
    %c2_53 = arith.constant 2 : index
    %c0_54 = arith.constant 0 : index
    %c0_55 = arith.constant 0 : index
    %94 = vector.load %arg4[%c0_52, %c2_53, %c0_54, %c0_55] : memref<1x4x16x16xf32, #tpu.memory_space<vmem>>, vector<1x1x16x16xf32>
    %95 = vector.shape_cast %94 : vector<1x1x16x16xf32> to vector<16x16xf32>
    %96 = vector.shape_cast %93 : vector<16x16xf32> to vector<1x1x16x16xf32>
    tpu.vector_store %arg4[%c0_52, %c2_53, %c0_54, %c0_55], %96 {strides = array<i32>} : memref<1x4x16x16xf32, #tpu.memory_space<vmem>>, vector<1x1x16x16xf32>,
    %cst_56 = arith.constant 0.000000e+00 : f32
    %97 = vector.broadcast %cst_56 : f32 to vector<16x16xf32>
    %98 = arith.maximumf %81, %97 : vector<16x16xf32>
    %c0_57 = arith.constant 0 : index
    %c3_58 = arith.constant 3 : index
    %c0_59 = arith.constant 0 : index
    %c0_60 = arith.constant 0 : index
    %99 = vector.load %arg4[%c0_57, %c3_58, %c0_59, %c0_60] : memref<1x4x16x16xf32, #tpu.memory_space<vmem>>, vector<1x1x16x16xf32>
    %100 = vector.shape_cast %99 : vector<1x1x16x16xf32> to vector<16x16xf32>
    %101 = vector.shape_cast %98 : vector<16x16xf32> to vector<1x1x16x16xf32>
    tpu.vector_store %arg4[%c0_57, %c3_58, %c0_59, %c0_60], %101 {strides = array<i32>} : memref<1x4x16x16xf32, #tpu.memory_space<vmem>>, vector<1x1x16x16xf32>,
    return
  }
  func.func @transform_0(%arg0: i32) -> (i32, i32, i32, i32) {
    %c0_i32 = arith.constant 0 : i32
    %c0_i32_0 = arith.constant 0 : i32
    %c0_i32_1 = arith.constant 0 : i32
    %c0_i32_2 = arith.constant 0 : i32
    return %arg0, %c0_i32, %c0_i32_0, %c0_i32_1 : i32, i32, i32, i32
  }
  func.func @transform_1(%arg0: i32) -> (i32, i32, i32) {
    %c0_i32 = arith.constant 0 : i32
    %c0_i32_0 = arith.constant 0 : i32
    %c0_i32_1 = arith.constant 0 : i32
    %c0_i32_2 = arith.constant 0 : i32
    return %c0_i32, %c0_i32_0, %c0_i32_1 : i32, i32, i32
  }
  func.func @transform_2(%arg0: i32) -> (i32, i32) {
    %c0_i32 = arith.constant 0 : i32
    %c0_i32_0 = arith.constant 0 : i32
    %c0_i32_1 = arith.constant 0 : i32
    return %c0_i32, %c0_i32_0 : i32, i32
  }
  func.func @transform_3(%arg0: i32) -> (i32, i32, i32, i32) {
    %c0_i32 = arith.constant 0 : i32
    %c0_i32_0 = arith.constant 0 : i32
    %c0_i32_1 = arith.constant 0 : i32
    %c0_i32_2 = arith.constant 0 : i32
    return %arg0, %c0_i32, %c0_i32_0, %c0_i32_1 : i32, i32, i32, i32
  }
}

module attributes {stable_mosaic.version = 11 : i64} {
  func.func @_fused_conv_kernel(%arg0: i32, %arg1: memref<1x4x64x64xbf16, #tpu.memory_space<vmem>>, %arg2: memref<4x64x8xbf16, #tpu.memory_space<vmem>>, %arg3: memref<1x8xf32, #tpu.memory_space<vmem>>, %arg4: memref<1x4x64x8xf32, #tpu.memory_space<vmem>>) attributes {dimension_semantics = [#tpu.dimension_semantics<parallel>], iteration_bounds = array<i64: 2>, scalar_prefetch = 0 : i64, scratch_operands = 0 : i64, tpu.core_type = #tpu.core_type<tc>, window_params = [{transform_indices = @transform_0, window_bounds = array<i64: 1, 4, 64, 64>}, {pipeline_mode = #tpu.pipeline_mode<synchronous>, transform_indices = @transform_1, window_bounds = array<i64: 4, 64, 8>}, {pipeline_mode = #tpu.pipeline_mode<synchronous>, transform_indices = @transform_2, window_bounds = array<i64: 1, 8>}, {transform_indices = @transform_3, window_bounds = array<i64: 1, 4, 64, 8>}]} {
    %c0 = arith.constant 0 : index
    %c0_0 = arith.constant 0 : index
    %0 = vector.load %arg3[%c0, %c0_0] : memref<1x8xf32, #tpu.memory_space<vmem>>, vector<1x8xf32>
    %c0_1 = arith.constant 0 : index
    %c0_2 = arith.constant 0 : index
    %c0_3 = arith.constant 0 : index
    %c0_4 = arith.constant 0 : index
    %1 = vector.load %arg1[%c0_1, %c0_2, %c0_3, %c0_4] : memref<1x4x64x64xbf16, #tpu.memory_space<vmem>>, vector<1x1x64x64xbf16>
    %2 = vector.shape_cast %1 : vector<1x1x64x64xbf16> to vector<64x64xbf16>
    %c0_5 = arith.constant 0 : index
    %c0_6 = arith.constant 0 : index
    %c0_7 = arith.constant 0 : index
    %3 = vector.load %arg2[%c0_5, %c0_6, %c0_7] : memref<4x64x8xbf16, #tpu.memory_space<vmem>>, vector<1x64x8xbf16>
    %4 = vector.shape_cast %3 : vector<1x64x8xbf16> to vector<64x8xbf16>
    %cst = arith.constant dense<0.000000e+00> : vector<64x8xf32>
    %5 = tpu.matmul %2, %4, %cst {dimension_numbers = #tpu.dot_dimension_numbers<[1], [0], [0], [1], [0, 0, 1, 1], [], []>} : vector<64x64xbf16>, vector<64x8xbf16>, vector<64x8xf32> -> vector<64x8xf32>
    %6 = vector.broadcast %0 : vector<1x8xf32> to vector<64x8xf32>
    %7 = arith.addf %5, %6 : vector<64x8xf32>
    %c0_8 = arith.constant 0 : index
    %c1 = arith.constant 1 : index
    %c0_9 = arith.constant 0 : index
    %c0_10 = arith.constant 0 : index
    %8 = vector.load %arg1[%c0_8, %c1, %c0_9, %c0_10] : memref<1x4x64x64xbf16, #tpu.memory_space<vmem>>, vector<1x1x64x64xbf16>
    %9 = vector.shape_cast %8 : vector<1x1x64x64xbf16> to vector<64x64xbf16>
    %c1_11 = arith.constant 1 : index
    %c0_12 = arith.constant 0 : index
    %c0_13 = arith.constant 0 : index
    %10 = vector.load %arg2[%c1_11, %c0_12, %c0_13] : memref<4x64x8xbf16, #tpu.memory_space<vmem>>, vector<1x64x8xbf16>
    %11 = vector.shape_cast %10 : vector<1x64x8xbf16> to vector<64x8xbf16>
    %cst_14 = arith.constant dense<0.000000e+00> : vector<64x8xf32>
    %12 = tpu.matmul %9, %11, %cst_14 {dimension_numbers = #tpu.dot_dimension_numbers<[1], [0], [0], [1], [0, 0, 1, 1], [], []>} : vector<64x64xbf16>, vector<64x8xbf16>, vector<64x8xf32> -> vector<64x8xf32>
    %13 = vector.broadcast %0 : vector<1x8xf32> to vector<64x8xf32>
    %14 = arith.addf %12, %13 : vector<64x8xf32>
    %c0_15 = arith.constant 0 : index
    %c2 = arith.constant 2 : index
    %c0_16 = arith.constant 0 : index
    %c0_17 = arith.constant 0 : index
    %15 = vector.load %arg1[%c0_15, %c2, %c0_16, %c0_17] : memref<1x4x64x64xbf16, #tpu.memory_space<vmem>>, vector<1x1x64x64xbf16>
    %16 = vector.shape_cast %15 : vector<1x1x64x64xbf16> to vector<64x64xbf16>
    %c2_18 = arith.constant 2 : index
    %c0_19 = arith.constant 0 : index
    %c0_20 = arith.constant 0 : index
    %17 = vector.load %arg2[%c2_18, %c0_19, %c0_20] : memref<4x64x8xbf16, #tpu.memory_space<vmem>>, vector<1x64x8xbf16>
    %18 = vector.shape_cast %17 : vector<1x64x8xbf16> to vector<64x8xbf16>
    %cst_21 = arith.constant dense<0.000000e+00> : vector<64x8xf32>
    %19 = tpu.matmul %16, %18, %cst_21 {dimension_numbers = #tpu.dot_dimension_numbers<[1], [0], [0], [1], [0, 0, 1, 1], [], []>} : vector<64x64xbf16>, vector<64x8xbf16>, vector<64x8xf32> -> vector<64x8xf32>
    %20 = vector.broadcast %0 : vector<1x8xf32> to vector<64x8xf32>
    %21 = arith.addf %19, %20 : vector<64x8xf32>
    %c0_22 = arith.constant 0 : index
    %c3 = arith.constant 3 : index
    %c0_23 = arith.constant 0 : index
    %c0_24 = arith.constant 0 : index
    %22 = vector.load %arg1[%c0_22, %c3, %c0_23, %c0_24] : memref<1x4x64x64xbf16, #tpu.memory_space<vmem>>, vector<1x1x64x64xbf16>
    %23 = vector.shape_cast %22 : vector<1x1x64x64xbf16> to vector<64x64xbf16>
    %c3_25 = arith.constant 3 : index
    %c0_26 = arith.constant 0 : index
    %c0_27 = arith.constant 0 : index
    %24 = vector.load %arg2[%c3_25, %c0_26, %c0_27] : memref<4x64x8xbf16, #tpu.memory_space<vmem>>, vector<1x64x8xbf16>
    %25 = vector.shape_cast %24 : vector<1x64x8xbf16> to vector<64x8xbf16>
    %cst_28 = arith.constant dense<0.000000e+00> : vector<64x8xf32>
    %26 = tpu.matmul %23, %25, %cst_28 {dimension_numbers = #tpu.dot_dimension_numbers<[1], [0], [0], [1], [0, 0, 1, 1], [], []>} : vector<64x64xbf16>, vector<64x8xbf16>, vector<64x8xf32> -> vector<64x8xf32>
    %27 = vector.broadcast %0 : vector<1x8xf32> to vector<64x8xf32>
    %28 = arith.addf %26, %27 : vector<64x8xf32>
    %cst_29 = arith.constant dense<0.000000e+00> : vector<8xf32>
    %29 = vector.multi_reduction <add>, %7, %cst_29 [0] : vector<64x8xf32> to vector<8xf32>
    %30 = vector.shape_cast %29 : vector<8xf32> to vector<1x8xf32>
    %31 = arith.mulf %7, %7 : vector<64x8xf32>
    %cst_30 = arith.constant dense<0.000000e+00> : vector<8xf32>
    %32 = vector.multi_reduction <add>, %31, %cst_30 [0] : vector<64x8xf32> to vector<8xf32>
    %33 = vector.shape_cast %32 : vector<8xf32> to vector<1x8xf32>
    %cst_31 = arith.constant dense<0.000000e+00> : vector<8xf32>
    %34 = vector.multi_reduction <add>, %14, %cst_31 [0] : vector<64x8xf32> to vector<8xf32>
    %35 = vector.shape_cast %34 : vector<8xf32> to vector<1x8xf32>
    %36 = arith.addf %30, %35 : vector<1x8xf32>
    %37 = arith.mulf %14, %14 : vector<64x8xf32>
    %cst_32 = arith.constant dense<0.000000e+00> : vector<8xf32>
    %38 = vector.multi_reduction <add>, %37, %cst_32 [0] : vector<64x8xf32> to vector<8xf32>
    %39 = vector.shape_cast %38 : vector<8xf32> to vector<1x8xf32>
    %40 = arith.addf %33, %39 : vector<1x8xf32>
    %cst_33 = arith.constant dense<0.000000e+00> : vector<8xf32>
    %41 = vector.multi_reduction <add>, %21, %cst_33 [0] : vector<64x8xf32> to vector<8xf32>
    %42 = vector.shape_cast %41 : vector<8xf32> to vector<1x8xf32>
    %43 = arith.addf %36, %42 : vector<1x8xf32>
    %44 = arith.mulf %21, %21 : vector<64x8xf32>
    %cst_34 = arith.constant dense<0.000000e+00> : vector<8xf32>
    %45 = vector.multi_reduction <add>, %44, %cst_34 [0] : vector<64x8xf32> to vector<8xf32>
    %46 = vector.shape_cast %45 : vector<8xf32> to vector<1x8xf32>
    %47 = arith.addf %40, %46 : vector<1x8xf32>
    %cst_35 = arith.constant dense<0.000000e+00> : vector<8xf32>
    %48 = vector.multi_reduction <add>, %28, %cst_35 [0] : vector<64x8xf32> to vector<8xf32>
    %49 = vector.shape_cast %48 : vector<8xf32> to vector<1x8xf32>
    %50 = arith.addf %43, %49 : vector<1x8xf32>
    %51 = arith.mulf %28, %28 : vector<64x8xf32>
    %cst_36 = arith.constant dense<0.000000e+00> : vector<8xf32>
    %52 = vector.multi_reduction <add>, %51, %cst_36 [0] : vector<64x8xf32> to vector<8xf32>
    %53 = vector.shape_cast %52 : vector<8xf32> to vector<1x8xf32>
    %54 = arith.addf %47, %53 : vector<1x8xf32>
    %cst_37 = arith.constant 2.560000e+02 : f32
    %55 = vector.broadcast %cst_37 : f32 to vector<1x8xf32>
    %56 = arith.divf %50, %55 : vector<1x8xf32>
    %cst_38 = arith.constant 2.560000e+02 : f32
    %57 = vector.broadcast %cst_38 : f32 to vector<1x8xf32>
    %58 = arith.divf %54, %57 : vector<1x8xf32>
    %59 = arith.mulf %56, %56 : vector<1x8xf32>
    %60 = arith.subf %58, %59 : vector<1x8xf32>
    %cst_39 = arith.constant 0.000000e+00 : f32
    %61 = vector.broadcast %cst_39 : f32 to vector<1x8xf32>
    %62 = arith.maximumf %60, %61 : vector<1x8xf32>
    %cst_40 = arith.constant 9.99999974E-6 : f32
    %63 = vector.broadcast %cst_40 : f32 to vector<1x8xf32>
    %64 = arith.addf %62, %63 : vector<1x8xf32>
    %65 = math.rsqrt %64 : vector<1x8xf32>
    %66 = vector.broadcast %56 : vector<1x8xf32> to vector<64x8xf32>
    %67 = arith.subf %7, %66 : vector<64x8xf32>
    %68 = vector.broadcast %65 : vector<1x8xf32> to vector<64x8xf32>
    %69 = arith.mulf %67, %68 : vector<64x8xf32>
    %70 = vector.broadcast %56 : vector<1x8xf32> to vector<64x8xf32>
    %71 = arith.subf %14, %70 : vector<64x8xf32>
    %72 = vector.broadcast %65 : vector<1x8xf32> to vector<64x8xf32>
    %73 = arith.mulf %71, %72 : vector<64x8xf32>
    %74 = vector.broadcast %56 : vector<1x8xf32> to vector<64x8xf32>
    %75 = arith.subf %21, %74 : vector<64x8xf32>
    %76 = vector.broadcast %65 : vector<1x8xf32> to vector<64x8xf32>
    %77 = arith.mulf %75, %76 : vector<64x8xf32>
    %78 = vector.broadcast %56 : vector<1x8xf32> to vector<64x8xf32>
    %79 = arith.subf %28, %78 : vector<64x8xf32>
    %80 = vector.broadcast %65 : vector<1x8xf32> to vector<64x8xf32>
    %81 = arith.mulf %79, %80 : vector<64x8xf32>
    %cst_41 = arith.constant 0.000000e+00 : f32
    %82 = vector.broadcast %cst_41 : f32 to vector<64x8xf32>
    %83 = arith.maximumf %69, %82 : vector<64x8xf32>
    %c0_42 = arith.constant 0 : index
    %c0_43 = arith.constant 0 : index
    %c0_44 = arith.constant 0 : index
    %c0_45 = arith.constant 0 : index
    %84 = vector.load %arg4[%c0_42, %c0_43, %c0_44, %c0_45] : memref<1x4x64x8xf32, #tpu.memory_space<vmem>>, vector<1x1x64x8xf32>
    %85 = vector.shape_cast %84 : vector<1x1x64x8xf32> to vector<64x8xf32>
    %86 = vector.shape_cast %83 : vector<64x8xf32> to vector<1x1x64x8xf32>
    tpu.vector_store %arg4[%c0_42, %c0_43, %c0_44, %c0_45], %86 {strides = array<i32>} : memref<1x4x64x8xf32, #tpu.memory_space<vmem>>, vector<1x1x64x8xf32>,
    %cst_46 = arith.constant 0.000000e+00 : f32
    %87 = vector.broadcast %cst_46 : f32 to vector<64x8xf32>
    %88 = arith.maximumf %73, %87 : vector<64x8xf32>
    %c0_47 = arith.constant 0 : index
    %c1_48 = arith.constant 1 : index
    %c0_49 = arith.constant 0 : index
    %c0_50 = arith.constant 0 : index
    %89 = vector.load %arg4[%c0_47, %c1_48, %c0_49, %c0_50] : memref<1x4x64x8xf32, #tpu.memory_space<vmem>>, vector<1x1x64x8xf32>
    %90 = vector.shape_cast %89 : vector<1x1x64x8xf32> to vector<64x8xf32>
    %91 = vector.shape_cast %88 : vector<64x8xf32> to vector<1x1x64x8xf32>
    tpu.vector_store %arg4[%c0_47, %c1_48, %c0_49, %c0_50], %91 {strides = array<i32>} : memref<1x4x64x8xf32, #tpu.memory_space<vmem>>, vector<1x1x64x8xf32>,
    %cst_51 = arith.constant 0.000000e+00 : f32
    %92 = vector.broadcast %cst_51 : f32 to vector<64x8xf32>
    %93 = arith.maximumf %77, %92 : vector<64x8xf32>
    %c0_52 = arith.constant 0 : index
    %c2_53 = arith.constant 2 : index
    %c0_54 = arith.constant 0 : index
    %c0_55 = arith.constant 0 : index
    %94 = vector.load %arg4[%c0_52, %c2_53, %c0_54, %c0_55] : memref<1x4x64x8xf32, #tpu.memory_space<vmem>>, vector<1x1x64x8xf32>
    %95 = vector.shape_cast %94 : vector<1x1x64x8xf32> to vector<64x8xf32>
    %96 = vector.shape_cast %93 : vector<64x8xf32> to vector<1x1x64x8xf32>
    tpu.vector_store %arg4[%c0_52, %c2_53, %c0_54, %c0_55], %96 {strides = array<i32>} : memref<1x4x64x8xf32, #tpu.memory_space<vmem>>, vector<1x1x64x8xf32>,
    %cst_56 = arith.constant 0.000000e+00 : f32
    %97 = vector.broadcast %cst_56 : f32 to vector<64x8xf32>
    %98 = arith.maximumf %81, %97 : vector<64x8xf32>
    %c0_57 = arith.constant 0 : index
    %c3_58 = arith.constant 3 : index
    %c0_59 = arith.constant 0 : index
    %c0_60 = arith.constant 0 : index
    %99 = vector.load %arg4[%c0_57, %c3_58, %c0_59, %c0_60] : memref<1x4x64x8xf32, #tpu.memory_space<vmem>>, vector<1x1x64x8xf32>
    %100 = vector.shape_cast %99 : vector<1x1x64x8xf32> to vector<64x8xf32>
    %101 = vector.shape_cast %98 : vector<64x8xf32> to vector<1x1x64x8xf32>
    tpu.vector_store %arg4[%c0_57, %c3_58, %c0_59, %c0_60], %101 {strides = array<i32>} : memref<1x4x64x8xf32, #tpu.memory_space<vmem>>, vector<1x1x64x8xf32>,
    return
  }
  func.func @transform_0(%arg0: i32) -> (i32, i32, i32, i32) {
    %c0_i32 = arith.constant 0 : i32
    %c0_i32_0 = arith.constant 0 : i32
    %c0_i32_1 = arith.constant 0 : i32
    %c0_i32_2 = arith.constant 0 : i32
    return %arg0, %c0_i32, %c0_i32_0, %c0_i32_1 : i32, i32, i32, i32
  }
  func.func @transform_1(%arg0: i32) -> (i32, i32, i32) {
    %c0_i32 = arith.constant 0 : i32
    %c0_i32_0 = arith.constant 0 : i32
    %c0_i32_1 = arith.constant 0 : i32
    %c0_i32_2 = arith.constant 0 : i32
    return %c0_i32, %c0_i32_0, %c0_i32_1 : i32, i32, i32
  }
  func.func @transform_2(%arg0: i32) -> (i32, i32) {
    %c0_i32 = arith.constant 0 : i32
    %c0_i32_0 = arith.constant 0 : i32
    %c0_i32_1 = arith.constant 0 : i32
    return %c0_i32, %c0_i32_0 : i32, i32
  }
  func.func @transform_3(%arg0: i32) -> (i32, i32, i32, i32) {
    %c0_i32 = arith.constant 0 : i32
    %c0_i32_0 = arith.constant 0 : i32
    %c0_i32_1 = arith.constant 0 : i32
    %c0_i32_2 = arith.constant 0 : i32
    return %arg0, %c0_i32, %c0_i32_0, %c0_i32_1 : i32, i32, i32, i32
  }
}

module attributes {stable_mosaic.version = 11 : i64} {
  func.func @_fused_conv_kernel(%arg0: i32, %arg1: memref<1x1x256x392xbf16, #tpu.memory_space<vmem>>, %arg2: memref<1x392x4xbf16, #tpu.memory_space<vmem>>, %arg3: memref<1x4xf32, #tpu.memory_space<vmem>>, %arg4: memref<1x1x256x4xf32, #tpu.memory_space<vmem>>) attributes {dimension_semantics = [#tpu.dimension_semantics<parallel>], iteration_bounds = array<i64: 2>, scalar_prefetch = 0 : i64, scratch_operands = 0 : i64, tpu.core_type = #tpu.core_type<tc>, window_params = [{transform_indices = @transform_0, window_bounds = array<i64: 1, 1, 256, 392>}, {pipeline_mode = #tpu.pipeline_mode<synchronous>, transform_indices = @transform_1, window_bounds = array<i64: 1, 392, 4>}, {pipeline_mode = #tpu.pipeline_mode<synchronous>, transform_indices = @transform_2, window_bounds = array<i64: 1, 4>}, {transform_indices = @transform_3, window_bounds = array<i64: 1, 1, 256, 4>}]} {
    %c0 = arith.constant 0 : index
    %c0_0 = arith.constant 0 : index
    %0 = vector.load %arg3[%c0, %c0_0] : memref<1x4xf32, #tpu.memory_space<vmem>>, vector<1x4xf32>
    %c0_1 = arith.constant 0 : index
    %c0_2 = arith.constant 0 : index
    %c0_3 = arith.constant 0 : index
    %c0_4 = arith.constant 0 : index
    %1 = vector.load %arg1[%c0_1, %c0_2, %c0_3, %c0_4] : memref<1x1x256x392xbf16, #tpu.memory_space<vmem>>, vector<1x1x256x392xbf16>
    %2 = vector.shape_cast %1 : vector<1x1x256x392xbf16> to vector<256x392xbf16>
    %c0_5 = arith.constant 0 : index
    %c0_6 = arith.constant 0 : index
    %c0_7 = arith.constant 0 : index
    %3 = vector.load %arg2[%c0_5, %c0_6, %c0_7] : memref<1x392x4xbf16, #tpu.memory_space<vmem>>, vector<1x392x4xbf16>
    %4 = vector.shape_cast %3 : vector<1x392x4xbf16> to vector<392x4xbf16>
    %cst = arith.constant dense<0.000000e+00> : vector<256x4xf32>
    %5 = tpu.matmul %2, %4, %cst {dimension_numbers = #tpu.dot_dimension_numbers<[1], [0], [0], [1], [0, 0, 1, 1], [], []>} : vector<256x392xbf16>, vector<392x4xbf16>, vector<256x4xf32> -> vector<256x4xf32>
    %6 = vector.broadcast %0 : vector<1x4xf32> to vector<256x4xf32>
    %7 = arith.addf %5, %6 : vector<256x4xf32>
    %8 = math.tanh %7 : vector<256x4xf32>
    %c0_8 = arith.constant 0 : index
    %c0_9 = arith.constant 0 : index
    %c0_10 = arith.constant 0 : index
    %c0_11 = arith.constant 0 : index
    %9 = vector.load %arg4[%c0_8, %c0_9, %c0_10, %c0_11] : memref<1x1x256x4xf32, #tpu.memory_space<vmem>>, vector<1x1x256x4xf32>
    %10 = vector.shape_cast %9 : vector<1x1x256x4xf32> to vector<256x4xf32>
    %11 = vector.shape_cast %8 : vector<256x4xf32> to vector<1x1x256x4xf32>
    tpu.vector_store %arg4[%c0_8, %c0_9, %c0_10, %c0_11], %11 {strides = array<i32>} : memref<1x1x256x4xf32, #tpu.memory_space<vmem>>, vector<1x1x256x4xf32>,
    return
  }
  func.func @transform_0(%arg0: i32) -> (i32, i32, i32, i32) {
    %c0_i32 = arith.constant 0 : i32
    %c0_i32_0 = arith.constant 0 : i32
    %c0_i32_1 = arith.constant 0 : i32
    %c0_i32_2 = arith.constant 0 : i32
    return %arg0, %c0_i32, %c0_i32_0, %c0_i32_1 : i32, i32, i32, i32
  }
  func.func @transform_1(%arg0: i32) -> (i32, i32, i32) {
    %c0_i32 = arith.constant 0 : i32
    %c0_i32_0 = arith.constant 0 : i32
    %c0_i32_1 = arith.constant 0 : i32
    %c0_i32_2 = arith.constant 0 : i32
    return %c0_i32, %c0_i32_0, %c0_i32_1 : i32, i32, i32
  }
  func.func @transform_2(%arg0: i32) -> (i32, i32) {
    %c0_i32 = arith.constant 0 : i32
    %c0_i32_0 = arith.constant 0 : i32
    %c0_i32_1 = arith.constant 0 : i32
    return %c0_i32, %c0_i32_0 : i32, i32
  }
  func.func @transform_3(%arg0: i32) -> (i32, i32, i32, i32) {
    %c0_i32 = arith.constant 0 : i32
    %c0_i32_0 = arith.constant 0 : i32
    %c0_i32_1 = arith.constant 0 : i32
    %c0_i32_2 = arith.constant 0 : i32
    return %arg0, %c0_i32, %c0_i32_0, %c0_i32_1 : i32, i32, i32, i32
  }
}

</mosaic_0001>

<llo_original>
// kernel: generator_forward.7
$region0: #{generator_forward.7}
  #allocation0 [shape = 'u32[]', space=smem, size = 0x4, offset = 0x4, fixed_abs, tag = 'smem constant byte address 0x4 - core index']
  #allocation1 [shape = 'u32[144,128]{1,0:T(1,128)}', space=vmem, size = 0x12000, scoped, tag = 'internal scratch']
  %s0 = inlined_call_operand.vmem [shape: bf16[2,1,256,196], index: 0, kind: input, shape index: {}]
  %s1 = inlined_call_operand.vmem [shape: bf16[1,196,8], index: 1, kind: input, shape index: {}]
  %s2 = inlined_call_operand.vmem [shape: f32[1,8], index: 2, kind: input, shape index: {}]
  %s3 = inlined_call_operand.vmem [shape: f32[2,1,256,8], index: 3, kind: output, shape index: {}]
  %s4 = sld [smem:[#allocation0]]
  $region45: #{generator_forward.7} parent=0
    _
  %s6 = ssub.s32 1, %s4
  %s7 = scalar_select 0, %s6, %s4
  loop: start=0, step=1, limit=4
  $region2: #{generator_forward.7} parent=0 // loop_pre_header
    _
  $region3: #{generator_forward.7} parent=0 // loop_header
    %s9 = sphi 0, %s13
    %p10 = scmp.ge.s32.totalorder %s9, 4
    %s19 = sphi 0, %s21
    %s22 = sphi 0, %s19
    %s23 = sphi 0, %s22
    %s39 = sphi 0, %s23
    %s43 = sphi 0, %s43
    %s45 = sphi 0, %s43
    %s46 = sphi 0, %s45
    %s60 = sphi 0, %s46
    %s64 = sphi 0, %s64
    %s66 = sphi 0, %s64
    %s67 = sphi 0, %s66
    %s81 = sphi 0, %s67
    %s87 = sphi 0, %s89
    %s90 = sphi 0, %s87
    %s91 = sphi 0, %s90
    %s107 = sphi 0, %s91
  $region4: #{generator_forward.7} parent=0 // loop_header_branch
    %12 = sbr.rel (%p10) target = $region8
  $region5: #{generator_forward.7} parent=0 // loop_body
    %s14 = ssub.s32 %s9, 1
    %s15 = ssub.s32 %s9, 2
    %s16 = sadd.s32 %s9, 1
    %s17 = ssub.s32 %s9, %s16
    %p18 = scmp.eq.s32.totalorder %s17, 0
    %s20 = sadd.s32 %s19, 1
    %s21 = scalar_select %p18, %s19, %s20
    %p24 = pneg %p18
    %p25 = scmp.eq.s32.totalorder %s9, 1
    %p26 = por %p24, %p25
    %p27 = scmp.ne.s32.totalorder %s19, %s22
    %p28 = scmp.eq.s32.totalorder %s9, 0
    %p29 = por %p27, %p28
    %p30 = scmp.ne.s32.totalorder %s19, %s22
    %p31 = scmp.eq.s32.totalorder %s14, 1
    %p32 = por %p30, %p31
    %p33 = scmp.ne.s32.totalorder %s22, %s23
    %p34 = scmp.eq.s32.totalorder %s14, 0
    %p35 = por %p33, %p34
    %p36 = scmp.ne.s32.totalorder %s22, %s23
    %p37 = scmp.eq.s32.totalorder %s15, 1
    %p38 = por %p36, %p37
    %p40 = scmp.ne.s32.totalorder %s23, %s39
    %p41 = scmp.eq.s32.totalorder %s15, 0
    %p42 = por %p40, %p41
    %s44 = sadd.s32 %s43, 1
    %p47 = scmp.eq.s32.totalorder %s9, 1
    %p48 = scmp.ne.s32.totalorder %s43, %s45
    %p49 = scmp.eq.s32.totalorder %s9, 0
    %p50 = por %p48, %p49
    %p51 = scmp.ne.s32.totalorder %s43, %s45
    %p52 = scmp.eq.s32.totalorder %s14, 1
    %p53 = por %p51, %p52
    %p54 = scmp.ne.s32.totalorder %s45, %s46
    %p55 = scmp.eq.s32.totalorder %s14, 0
    %p56 = por %p54, %p55
    %p57 = scmp.ne.s32.totalorder %s45, %s46
    %p58 = scmp.eq.s32.totalorder %s15, 1
    %p59 = por %p57, %p58
    %p61 = scmp.ne.s32.totalorder %s46, %s60
    %p62 = scmp.eq.s32.totalorder %s15, 0
    %p63 = por %p61, %p62
    %s65 = sadd.s32 %s64, 1
    %p68 = scmp.eq.s32.totalorder %s9, 1
    %p69 = scmp.ne.s32.totalorder %s64, %s66
    %p70 = scmp.eq.s32.totalorder %s9, 0
    %p71 = por %p69, %p70
    %p72 = scmp.ne.s32.totalorder %s64, %s66
    %p73 = scmp.eq.s32.totalorder %s14, 1
    %p74 = por %p72, %p73
    %p75 = scmp.ne.s32.totalorder %s66, %s67
    %p76 = scmp.eq.s32.totalorder %s14, 0
    %p77 = por %p75, %p76
    %p78 = scmp.ne.s32.totalorder %s66, %s67
    %p79 = scmp.eq.s32.totalorder %s15, 1
    %p80 = por %p78, %p79
    %p82 = scmp.ne.s32.totalorder %s67, %s81
    %p83 = scmp.eq.s32.totalorder %s15, 0
    %p84 = por %p82, %p83
    %s85 = ssub.s32 %s9, %s16
    %p86 = scmp.eq.s32.totalorder %s85, 0
    %s88 = sadd.s32 %s87, 1
    %s89 = scalar_select %p86, %s87, %s88
    %p92 = pneg %p86
    %p93 = scmp.eq.s32.totalorder %s9, 1
    %p94 = por %p92, %p93
    %p95 = scmp.ne.s32.totalorder %s87, %s90
    %p96 = scmp.eq.s32.totalorder %s9, 0
    %p97 = por %p95, %p96
    %p98 = scmp.ne.s32.totalorder %s87, %s90
    %p99 = scmp.eq.s32.totalorder %s14, 1
    %p100 = por %p98, %p99
    %p101 = scmp.ne.s32.totalorder %s90, %s91
    %p102 = scmp.eq.s32.totalorder %s14, 0
    %p103 = por %p101, %p102
    %p104 = scmp.ne.s32.totalorder %s90, %s91
    %p105 = scmp.eq.s32.totalorder %s15, 1
    %p106 = por %p104, %p105
    %p108 = scmp.ne.s32.totalorder %s91, %s107
    %p109 = scmp.eq.s32.totalorder %s15, 0
    %p110 = por %p108, %p109
    %p111 = scmp.le.s32.totalorder 1, %s9
    %p112 = scmp.lt.s32.totalorder %s9, 3
    %p113 = pnand %p111, %p112
    %p114 = pneg %p113
    // Predicated region
    $region9: #{generator_forward.7} parent=5 // pred_check
      _
    $region10: #{generator_forward.7} parent=5 // pred_check_branch
      %116 = sbr.rel (%p113) target = $region12
    $region11: #{generator_forward.7} parent=5 // pred_region
      %s117 = ssub.s32 %s9, 1
      // Predicated region
      $region13: #{generator_forward.7} parent=11 // pred_check
        %p118 = pneg %p56
      $region14: #{generator_forward.7} parent=11 // pred_check_branch
        %120 = sbr.rel (%p118) target = $region16
      $region15: #{generator_forward.7} parent=11 // pred_region
        _
      $region16: #{generator_forward.7} parent=11 // pred_fallthru
        _
      // Predicated region
      $region17: #{generator_forward.7} parent=11 // pred_check
        %p121 = pneg %p77
      $region18: #{generator_forward.7} parent=11 // pred_check_branch
        %123 = sbr.rel (%p121) target = $region20
      $region19: #{generator_forward.7} parent=11 // pred_region
        _
      $region20: #{generator_forward.7} parent=11 // pred_fallthru
        _
    $region12: #{generator_forward.7} parent=5 // pred_fallthru
      _
    %p124 = scmp.lt.s32.totalorder %s9, 2
    // Predicated region
    $region21: #{generator_forward.7} parent=5 // pred_check
      %p125 = pneg %p124
    $region22: #{generator_forward.7} parent=5 // pred_check_branch
      %127 = sbr.rel (%p125) target = $region24
    $region23: #{generator_forward.7} parent=5 // pred_region
      // Predicated region
      $region25: #{generator_forward.7} parent=23 // pred_check
        %p128 = pneg %p29
      $region26: #{generator_forward.7} parent=23 // pred_check_branch
        %130 = sbr.rel (%p128) target = $region28
      $region27: #{generator_forward.7} parent=23 // pred_region
        %p131 = scmp.lt.s32.totalorder %s9, 1
        %s132 = scalar_select %p131, %s9, 1
        %s133 = smul.addr %s132, 64
        %s134 = smul.addr %s133, 4
        %s135 = scalar_lea.vmem %s0, %s134
      $region28: #{generator_forward.7} parent=23 // pred_fallthru
        _
    $region24: #{generator_forward.7} parent=5 // pred_fallthru
      _
    %p136 = scmp.le.s32.totalorder 1, %s9
    %p137 = scmp.lt.s32.totalorder %s9, 3
    %p138 = pnand %p136, %p137
    %p139 = pneg %p138
    // Predicated region
    $region29: #{generator_forward.7} parent=5 // pred_check
      _
    $region30: #{generator_forward.7} parent=5 // pred_check_branch
      %141 = sbr.rel (%p138) target = $region32
    $region31: #{generator_forward.7} parent=5 // pred_region
      %s142 = ssub.s32 %s9, 1
      %p143 = scmp.lt.s32.totalorder %s14, 1
      %s144 = scalar_select %p143, %s14, 1
      %s145 = smul.addr %s144, 64
      %s146 = smul.addr %s145, 4
      %s147 = scalar_lea.vmem %s0, %s146
      %p148 = pneg %p35
      %p149 = pneg %p32
      %p150 = pneg %p56
      %p151 = pneg %p53
      %p152 = pneg %p77
      %p153 = pneg %p74
      %p154 = pneg %p103
      %p155 = pneg %p100
      %p156 = scmp.lt.s32.totalorder %s14, 1
      %s157 = scalar_select %p156, %s14, 1
      %s158 = smul.addr %s157, 32
      %s159 = smul.addr %s158, 8
      %s160 = scalar_lea.vmem %s3, %s159
      %p161 = scmp.lt.s32.totalorder %s14, 1
      %s162 = scalar_select %p161, %s14, 1
      %s163 = smul.addr %s162, 64
      %s164 = smul.addr %s163, 4
      %s165 = scalar_lea.vmem %s0, %s164
      %p166 = scmp.lt.s32.totalorder %s14, 1
      %s167 = scalar_select %p166, %s14, 1
      %s168 = smul.addr %s167, 32
      %s169 = smul.addr %s168, 8
      %s170 = scalar_lea.vmem %s3, %s169
      %v172 = vld [vmem:[%s2] sm:$0x1]
      %v173 = vld [vmem:[%s165] sm:$0xff]
      %v174 = vld [vmem:[%s165 + $0x8] sm:$0xff]
      %v175 = vld [vmem:[%s165 + $0x10] sm:$0xff]
      %v176 = vld [vmem:[%s165 + $0x18] sm:$0xff]
      %v177 = vld [vmem:[%s165 + $0x20] sm:$0xff]
      %v178 = vld [vmem:[%s165 + $0x28] sm:$0xff]
      %v179 = vld [vmem:[%s165 + $0x30] sm:$0xff]
      %v180 = vld [vmem:[%s165 + $0x38] sm:$0xff]
      %v181 = vld [vmem:[%s165 + $0x40] sm:$0xff]
      %v182 = vld [vmem:[%s165 + $0x48] sm:$0xff]
      %v183 = vld [vmem:[%s165 + $0x50] sm:$0xff]
      %v184 = vld [vmem:[%s165 + $0x58] sm:$0xff]
      %v185 = vld [vmem:[%s165 + $0x60] sm:$0xff]
      %v186 = vld [vmem:[%s165 + $0x68] sm:$0xff]
      %v187 = vld [vmem:[%s165 + $0x70] sm:$0xff]
      %v188 = vld [vmem:[%s165 + $0x78] sm:$0xff]
      %v189 = vld [vmem:[%s165 + $0x80] sm:$0xff]
      %v190 = vld [vmem:[%s165 + $0x88] sm:$0xff]
      %v191 = vld [vmem:[%s165 + $0x90] sm:$0xff]
      %v192 = vld [vmem:[%s165 + $0x98] sm:$0xff]
      %v193 = vld [vmem:[%s165 + $0xa0] sm:$0xff]
      %v194 = vld [vmem:[%s165 + $0xa8] sm:$0xff]
      %v195 = vld [vmem:[%s165 + $0xb0] sm:$0xff]
      %v196 = vld [vmem:[%s165 + $0xb8] sm:$0xff]
      %v197 = vld [vmem:[%s165 + $0xc0] sm:$0xff]
      %v198 = vld [vmem:[%s165 + $0xc8] sm:$0xff]
      %v199 = vld [vmem:[%s165 + $0xd0] sm:$0xff]
      %v200 = vld [vmem:[%s165 + $0xd8] sm:$0xff]
      %v201 = vld [vmem:[%s165 + $0xe0] sm:$0xff]
      %v202 = vld [vmem:[%s165 + $0xe8] sm:$0xff]
      %v203 = vld [vmem:[%s165 + $0xf0] sm:$0xff]
      %v204 = vld [vmem:[%s165 + $0xf8] sm:$0xff]
      %v205 = vld [vmem:[%s1] sm:$0xf]
      %v206 = vld [vmem:[%s1 + $0x4] sm:$0xf]
      %v207 = vld [vmem:[%s1 + $0x8] sm:$0xf]
      %v208 = vld [vmem:[%s1 + $0xc] sm:$0xf]
      %v209 = vld [vmem:[%s1 + $0x10] sm:$0xf]
      %v210 = vld [vmem:[%s1 + $0x14] sm:$0xf]
      %v211 = vld [vmem:[%s1 + $0x18] sm:$0xf]
      %v212 = vld [vmem:[%s1 + $0x1c] sm:$0xf]
      %v213 = vld [vmem:[%s1 + $0x20] sm:$0xf]
      %v214 = vld [vmem:[%s1 + $0x24] sm:$0xf]
      %v215 = vld [vmem:[%s1 + $0x28] sm:$0xf]
      %v216 = vld [vmem:[%s1 + $0x2c] sm:$0xf]
      %v217 = vld [vmem:[%s1 + $0x30] sm:$0xf]
      %v218 = vld [vmem:[%s1 + $0x34] sm:$0xf]
      %v219 = vld [vmem:[%s1 + $0x38] sm:$0xf]
      %v220 = vld [vmem:[%s1 + $0x3c] sm:$0xf]
      %v221 = vld [vmem:[%s1 + $0x40] sm:$0xf]
      %v222 = vld [vmem:[%s1 + $0x44] sm:$0xf]
      %v223 = vld [vmem:[%s1 + $0x48] sm:$0xf]
      %v224 = vld [vmem:[%s1 + $0x4c] sm:$0xf]
      %v225 = vld [vmem:[%s1 + $0x50] sm:$0xf]
      %v226 = vld [vmem:[%s1 + $0x54] sm:$0xf]
      %v227 = vld [vmem:[%s1 + $0x58] sm:$0xf]
      %v228 = vld [vmem:[%s1 + $0x5c] sm:$0xf]
      %v229 = vld [vmem:[%s1 + $0x60] sm:$0x3]
      %v231 = vlaneseq
      %v232 = vshrl.u32 %v231, 7
      %v233 = vsub.s32 0, %v232
      %v234 = vrot.slane %v172, %v233
      %v268 = vunpack.c.l.b16 %v173
      %v269 = vunpack.c.h.b16 %v173
      %v270 = vunpack.c.l.b16 %v174
      %v271 = vunpack.c.h.b16 %v174
      %v272 = vunpack.c.l.b16 %v175
      %v273 = vunpack.c.h.b16 %v175
      %v274 = vunpack.c.l.b16 %v176
      %v275 = vunpack.c.h.b16 %v176
      %v276 = vunpack.c.l.b16 %v177
      %v277 = vunpack.c.h.b16 %v177
      %v278 = vunpack.c.l.b16 %v178
      %v279 = vunpack.c.h.b16 %v178
      %v280 = vunpack.c.l.b16 %v179
      %v281 = vunpack.c.h.b16 %v179
      %v282 = vunpack.c.l.b16 %v180
      %v283 = vunpack.c.h.b16 %v180
      %v284 = vunpack.c.l.b16 %v181
      %v285 = vunpack.c.h.b16 %v181
      %v286 = vunpack.c.l.b16 %v182
      %v287 = vunpack.c.h.b16 %v182
      %v288 = vunpack.c.l.b16 %v183
      %v289 = vunpack.c.h.b16 %v183
      %v290 = vunpack.c.l.b16 %v184
      %v291 = vunpack.c.h.b16 %v184
      %v292 = vunpack.c.l.b16 %v185
      %v293 = vunpack.c.h.b16 %v185
      %v294 = vunpack.c.l.b16 %v186
      %v295 = vunpack.c.h.b16 %v186
      %v296 = vunpack.c.l.b16 %v187
      %v297 = vunpack.c.h.b16 %v187
      %v298 = vunpack.c.l.b16 %v188
      %v299 = vunpack.c.h.b16 %v188
      %v300 = vunpack.c.l.b16 %v189
      %v301 = vunpack.c.h.b16 %v189
      %v302 = vunpack.c.l.b16 %v190
      %v303 = vunpack.c.h.b16 %v190
      %v304 = vunpack.c.l.b16 %v191
      %v305 = vunpack.c.h.b16 %v191
      %v306 = vunpack.c.l.b16 %v192
      %v307 = vunpack.c.h.b16 %v192
      %v308 = vunpack.c.l.b16 %v193
      %v309 = vunpack.c.h.b16 %v193
      %v310 = vunpack.c.l.b16 %v194
      %v311 = vunpack.c.h.b16 %v194
      %v312 = vunpack.c.l.b16 %v195
      %v313 = vunpack.c.h.b16 %v195
      %v314 = vunpack.c.l.b16 %v196
      %v315 = vunpack.c.h.b16 %v196
      %v316 = vunpack.c.l.b16 %v197
      %v317 = vunpack.c.h.b16 %v197
      %v318 = vunpack.c.l.b16 %v198
      %v319 = vunpack.c.h.b16 %v198
      %v320 = vunpack.c.l.b16 %v199
      %v321 = vunpack.c.h.b16 %v199
      %v322 = vunpack.c.l.b16 %v200
      %v323 = vunpack.c.h.b16 %v200
      %v324 = vunpack.c.l.b16 %v201
      %v325 = vunpack.c.h.b16 %v201
      %v326 = vunpack.c.l.b16 %v202
      %v327 = vunpack.c.h.b16 %v202
      %v328 = vunpack.c.l.b16 %v203
      %v329 = vunpack.c.h.b16 %v203
      %v330 = vunpack.c.l.b16 %v204
      %v331 = vunpack.c.h.b16 %v204
      %v332 = vpack.c.b16 %v270, %v268
      %v333 = vpack.c.b16 %v271, %v269
      %v334 = vpack.c.b16 %v274, %v272
      %v335 = vpack.c.b16 %v275, %v273
      %v336 = vpack.c.b16 %v278, %v276
      %v337 = vpack.c.b16 %v279, %v277
      %v338 = vpack.c.b16 %v282, %v280
      %v339 = vpack.c.b16 %v283, %v281
      %v340 = vpack.c.b16 %v286, %v284
      %v341 = vpack.c.b16 %v287, %v285
      %v342 = vpack.c.b16 %v290, %v288
      %v343 = vpack.c.b16 %v291, %v289
      %v344 = vpack.c.b16 %v294, %v292
      %v345 = vpack.c.b16 %v295, %v293
      %v346 = vpack.c.b16 %v298, %v296
      %v347 = vpack.c.b16 %v299, %v297
      %v348 = vpack.c.b16 %v302, %v300
      %v349 = vpack.c.b16 %v303, %v301
      %v350 = vpack.c.b16 %v306, %v304
      %v351 = vpack.c.b16 %v307, %v305
      %v352 = vpack.c.b16 %v310, %v308
      %v353 = vpack.c.b16 %v311, %v309
      %v354 = vpack.c.b16 %v314, %v312
      %v355 = vpack.c.b16 %v315, %v313
      %v356 = vpack.c.b16 %v318, %v316
      %v357 = vpack.c.b16 %v319, %v317
      %v358 = vpack.c.b16 %v322, %v320
      %v359 = vpack.c.b16 %v323, %v321
      %v360 = vpack.c.b16 %v326, %v324
      %v361 = vpack.c.b16 %v327, %v325
      %v362 = vpack.c.b16 %v330, %v328
      %v363 = vpack.c.b16 %v331, %v329
      %v405 = vunpack.c.l.b16 %v205
      %v406 = vunpack.c.l.b16 %v206
      %v407 = vunpack.c.l.b16 %v207
      %v408 = vunpack.c.l.b16 %v208
      %v409 = vunpack.c.l.b16 %v209
      %v410 = vunpack.c.l.b16 %v210
      %v411 = vunpack.c.l.b16 %v211
      %v412 = vunpack.c.l.b16 %v212
      %v413 = vunpack.c.l.b16 %v213
      %v414 = vunpack.c.l.b16 %v214
      %v415 = vunpack.c.l.b16 %v215
      %v416 = vunpack.c.l.b16 %v216
      %v417 = vunpack.c.l.b16 %v217
      %v418 = vunpack.c.l.b16 %v218
      %v419 = vunpack.c.l.b16 %v219
      %v420 = vunpack.c.l.b16 %v220
      %v421 = vunpack.c.l.b16 %v221
      %v422 = vunpack.c.l.b16 %v222
      %v423 = vunpack.c.l.b16 %v223
      %v424 = vunpack.c.l.b16 %v224
      %v425 = vunpack.c.l.b16 %v225
      %v426 = vunpack.c.l.b16 %v226
      %v427 = vunpack.c.l.b16 %v227
      %v428 = vunpack.c.l.b16 %v228
      %v429 = vunpack.c.l.b16 %v229
      %v430 = vpack.c.b16 %v406, %v405
      %v431 = vpack.c.b16 %v408, %v407
      %v432 = vpack.c.b16 %v410, %v409
      %v433 = vpack.c.b16 %v412, %v411
      %v434 = vpack.c.b16 %v414, %v413
      %v435 = vpack.c.b16 %v416, %v415
      %v436 = vpack.c.b16 %v418, %v417
      %v437 = vpack.c.b16 %v420, %v419
      %v438 = vpack.c.b16 %v422, %v421
      %v439 = vpack.c.b16 %v424, %v423
      %v440 = vpack.c.b16 %v426, %v425
      %v441 = vpack.c.b16 %v428, %v427
      %v442 = vpack.c.b16 %v429, %v429
      %vm455 = vcmask 556032
      %v457 = vsel %vm455, %v333, 0
      %v460 = vsel %vm455, %v335, 0
      %v463 = vsel %vm455, %v337, 0
      %v466 = vsel %vm455, %v339, 0
      %v469 = vsel %vm455, %v341, 0
      %v472 = vsel %vm455, %v343, 0
      %v475 = vsel %vm455, %v345, 0
      %v478 = vsel %vm455, %v347, 0
      %v481 = vsel %vm455, %v349, 0
      %v484 = vsel %vm455, %v351, 0
      %v487 = vsel %vm455, %v353, 0
      %v490 = vsel %vm455, %v355, 0
      %v493 = vsel %vm455, %v357, 0
      %v496 = vsel %vm455, %v359, 0
      %v499 = vsel %vm455, %v361, 0
      %v502 = vsel %vm455, %v363, 0
      %vm504 = vcmask 1041408
      %v506 = vsel %vm504, %v442, 0
      %508 = vmatprep.subr.bf16.mxu0 0
      %509 = vmatpush1.bf16.msra.mxu0 %v437
      %510 = vmatprep.subr.bf16.mxu0 0
      %511 = vmatpush1.bf16.msra.mxu0 %v436
      %512 = vmatprep.subr.bf16.mxu0 0
      %513 = vmatpush1.bf16.msra.mxu0 %v435
      %514 = vmatprep.subr.bf16.mxu0 0
      %515 = vmatpush1.bf16.msra.mxu0 %v434
      %516 = vmatprep.subr.bf16.mxu0 0
      %517 = vmatpush1.bf16.msra.mxu0 %v433
      %518 = vmatprep.subr.bf16.mxu0 0
      %519 = vmatpush1.bf16.msra.mxu0 %v432
      %520 = vmatprep.subr.bf16.mxu0 0
      %521 = vmatpush1.bf16.msra.mxu0 %v431
      %522 = vmatprep.subr.bf16.mxu0 0
      %523 = vmatpush1.bf16.msra.mxu0 %v430
      %524 = vmatprep.subr.bf16.mxu0 0
      %525 = vmatpush2.bf16.msra.mxu0 0
      %526 = vmatprep.subr.bf16.mxu0 0
      %527 = vmatpush2.bf16.msra.mxu0 0
      %528 = vmatprep.subr.bf16.mxu0 0
      %529 = vmatpush2.bf16.msra.mxu0 0
      %530 = vmatprep.subr.bf16.mxu0 0
      %531 = vmatpush2.bf16.msra.mxu0 %v506
      %532 = vmatprep.subr.bf16.mxu0 0
      %533 = vmatpush2.bf16.msra.mxu0 %v441
      %534 = vmatprep.subr.bf16.mxu0 0
      %535 = vmatpush2.bf16.msra.mxu0 %v440
      %536 = vmatprep.subr.bf16.mxu0 0
      %537 = vmatpush2.bf16.msra.mxu0 %v439
      %538 = vmatprep.subr.bf16.mxu0 0
      %539 = vmatpush2.bf16.msra.mxu0 %v438
      %540 = vmatprep.mubr.bf16.mxu0 %v457
      %541 = vmatmul.mubr.bf16.gmra.mxu0 %v332
      %v542 = vpop.f32.mrf.mxu0
      %v543 = vadd.f32 %v234, %v542
      %v544 = vpop.f32.mrf.mxu0
      %v545 = vpop.f32.mrf.mxu0
      %v546 = vadd.f32 %v234, %v545
      %v547 = vpop.f32.mrf.mxu0
      %548 = vmatprep.mubr.bf16.mxu0 %v460
      %549 = vmatmul.mubr.bf16.gmra.mxu0 %v334
      %v550 = vpop.f32.mrf.mxu0
      %v551 = vadd.f32 %v234, %v550
      %v552 = vpop.f32.mrf.mxu0
      %v553 = vpop.f32.mrf.mxu0
      %v554 = vadd.f32 %v234, %v553
      %v555 = vpop.f32.mrf.mxu0
      %556 = vmatprep.mubr.bf16.mxu0 %v463
      %557 = vmatmul.mubr.bf16.gmra.mxu0 %v336
      %v558 = vpop.f32.mrf.mxu0
      %v559 = vadd.f32 %v234, %v558
      %v560 = vpop.f32.mrf.mxu0
      %v561 = vpop.f32.mrf.mxu0
      %v562 = vadd.f32 %v234, %v561
      %v563 = vpop.f32.mrf.mxu0
      %564 = vmatprep.mubr.bf16.mxu0 %v466
      %565 = vmatmul.mubr.bf16.gmra.mxu0 %v338
      %v566 = vpop.f32.mrf.mxu0
      %v567 = vadd.f32 %v234, %v566
      %v568 = vpop.f32.mrf.mxu0
      %v569 = vpop.f32.mrf.mxu0
      %v570 = vadd.f32 %v234, %v569
      %v571 = vpop.f32.mrf.mxu0
      %572 = vmatprep.mubr.bf16.mxu0 %v469
      %573 = vmatmul.mubr.bf16.gmra.mxu0 %v340
      %v574 = vpop.f32.mrf.mxu0
      %v575 = vadd.f32 %v234, %v574
      %v576 = vpop.f32.mrf.mxu0
      %v577 = vpop.f32.mrf.mxu0
      %v578 = vadd.f32 %v234, %v577
      %v579 = vpop.f32.mrf.mxu0
      %580 = vmatprep.mubr.bf16.mxu0 %v472
      %581 = vmatmul.mubr.bf16.gmra.mxu0 %v342
      %v582 = vpop.f32.mrf.mxu0
      %v583 = vadd.f32 %v234, %v582
      %v584 = vpop.f32.mrf.mxu0
      %v585 = vpop.f32.mrf.mxu0
      %v586 = vadd.f32 %v234, %v585
      %v587 = vpop.f32.mrf.mxu0
      %588 = vmatprep.mubr.bf16.mxu0 %v475
      %589 = vmatmul.mubr.bf16.gmra.mxu0 %v344
      %v590 = vpop.f32.mrf.mxu0
      %v591 = vadd.f32 %v234, %v590
      %v592 = vpop.f32.mrf.mxu0
      %v593 = vpop.f32.mrf.mxu0
      %v594 = vadd.f32 %v234, %v593
      %v595 = vpop.f32.mrf.mxu0
      %596 = vmatprep.mubr.bf16.mxu0 %v478
      %597 = vmatmul.mubr.bf16.gmra.mxu0 %v346
      %v598 = vpop.f32.mrf.mxu0
      %v599 = vadd.f32 %v234, %v598
      %v600 = vpop.f32.mrf.mxu0
      %v601 = vpop.f32.mrf.mxu0
      %v602 = vadd.f32 %v234, %v601
      %v603 = vpop.f32.mrf.mxu0
      %604 = vmatprep.mubr.bf16.mxu0 %v481
      %605 = vmatmul.mubr.bf16.gmra.mxu0 %v348
      %v606 = vpop.f32.mrf.mxu0
      %v607 = vadd.f32 %v234, %v606
      %v608 = vpop.f32.mrf.mxu0
      %v609 = vpop.f32.mrf.mxu0
      %v610 = vadd.f32 %v234, %v609
      %v611 = vpop.f32.mrf.mxu0
      %612 = vmatprep.mubr.bf16.mxu0 %v484
      %613 = vmatmul.mubr.bf16.gmra.mxu0 %v350
      %v614 = vpop.f32.mrf.mxu0
      %v615 = vadd.f32 %v234, %v614
      %v616 = vpop.f32.mrf.mxu0
      %v617 = vpop.f32.mrf.mxu0
      %v618 = vadd.f32 %v234, %v617
      %v619 = vpop.f32.mrf.mxu0
      %620 = vmatprep.mubr.bf16.mxu0 %v487
      %621 = vmatmul.mubr.bf16.gmra.mxu0 %v352
      %v622 = vpop.f32.mrf.mxu0
      %v623 = vadd.f32 %v234, %v622
      %v624 = vpop.f32.mrf.mxu0
      %v625 = vpop.f32.mrf.mxu0
      %v626 = vadd.f32 %v234, %v625
      %v627 = vpop.f32.mrf.mxu0
      %628 = vmatprep.mubr.bf16.mxu0 %v490
      %629 = vmatmul.mubr.bf16.gmra.mxu0 %v354
      %v630 = vpop.f32.mrf.mxu0
      %v631 = vadd.f32 %v234, %v630
      %v632 = vpop.f32.mrf.mxu0
      %v633 = vpop.f32.mrf.mxu0
      %v634 = vadd.f32 %v234, %v633
      %v635 = vpop.f32.mrf.mxu0
      %636 = vmatprep.mubr.bf16.mxu0 %v493
      %637 = vmatmul.mubr.bf16.gmra.mxu0 %v356
      %v638 = vpop.f32.mrf.mxu0
      %v639 = vadd.f32 %v234, %v638
      %v640 = vpop.f32.mrf.mxu0
      %v641 = vpop.f32.mrf.mxu0
      %v642 = vadd.f32 %v234, %v641
      %v643 = vpop.f32.mrf.mxu0
      %644 = vmatprep.mubr.bf16.mxu0 %v496
      %645 = vmatmul.mubr.bf16.gmra.mxu0 %v358
      %v646 = vpop.f32.mrf.mxu0
      %v647 = vadd.f32 %v234, %v646
      %v648 = vpop.f32.mrf.mxu0
      %v649 = vpop.f32.mrf.mxu0
      %v650 = vadd.f32 %v234, %v649
      %v651 = vpop.f32.mrf.mxu0
      %652 = vmatprep.mubr.bf16.mxu0 %v499
      %653 = vmatmul.mubr.bf16.gmra.mxu0 %v360
      %v654 = vpop.f32.mrf.mxu0
      %v655 = vadd.f32 %v234, %v654
      %v656 = vpop.f32.mrf.mxu0
      %v657 = vpop.f32.mrf.mxu0
      %v658 = vadd.f32 %v234, %v657
      %v659 = vpop.f32.mrf.mxu0
      %660 = vmatprep.mubr.bf16.mxu0 %v502
      %661 = vmatmul.mubr.bf16.gmra.mxu0 %v362
      %v662 = vpop.f32.mrf.mxu0
      %v663 = vadd.f32 %v234, %v662
      %v664 = vpop.f32.mrf.mxu0
      %v665 = vpop.f32.mrf.mxu0
      %v666 = vadd.f32 %v234, %v665
      %v667 = vpop.f32.mrf.mxu0
      %668 = vdwg.mxu0
      %vm669 = vcmask 64512
      %v670 = vsel %vm669, %v543, 0.0
      %v671 = vsel %vm669, %v546, 0.0
      %v672 = vadd.f32 %v670, %v671
      %v673 = vsel %vm669, %v551, 0.0
      %v674 = vadd.f32 %v672, %v673
      %v675 = vsel %vm669, %v554, 0.0
      %v676 = vadd.f32 %v674, %v675
      %v677 = vsel %vm669, %v559, 0.0
      %v678 = vadd.f32 %v676, %v677
      %v679 = vsel %vm669, %v562, 0.0
      %v680 = vadd.f32 %v678, %v679
      %v681 = vsel %vm669, %v567, 0.0
      %v682 = vadd.f32 %v680, %v681
      %v683 = vsel %vm669, %v570, 0.0
      %v684 = vadd.f32 %v682, %v683
      %v685 = vsel %vm669, %v575, 0.0
      %v686 = vadd.f32 %v684, %v685
      %v687 = vsel %vm669, %v578, 0.0
      %v688 = vadd.f32 %v686, %v687
      %v689 = vsel %vm669, %v583, 0.0
      %v690 = vadd.f32 %v688, %v689
      %v691 = vsel %vm669, %v586, 0.0
      %v692 = vadd.f32 %v690, %v691
      %v693 = vsel %vm669, %v591, 0.0
      %v694 = vadd.f32 %v692, %v693
      %v695 = vsel %vm669, %v594, 0.0
      %v696 = vadd.f32 %v694, %v695
      %v697 = vsel %vm669, %v599, 0.0
      %v698 = vadd.f32 %v696, %v697
      %v699 = vsel %vm669, %v602, 0.0
      %v700 = vadd.f32 %v698, %v699
      %v701 = vsel %vm669, %v607, 0.0
      %v702 = vadd.f32 %v700, %v701
      %v703 = vsel %vm669, %v610, 0.0
      %v704 = vadd.f32 %v702, %v703
      %v705 = vsel %vm669, %v615, 0.0
      %v706 = vadd.f32 %v704, %v705
      %v707 = vsel %vm669, %v618, 0.0
      %v708 = vadd.f32 %v706, %v707
      %v709 = vsel %vm669, %v623, 0.0
      %v710 = vadd.f32 %v708, %v709
      %v711 = vsel %vm669, %v626, 0.0
      %v712 = vadd.f32 %v710, %v711
      %v713 = vsel %vm669, %v631, 0.0
      %v714 = vadd.f32 %v712, %v713
      %v715 = vsel %vm669, %v634, 0.0
      %v716 = vadd.f32 %v714, %v715
      %v717 = vsel %vm669, %v639, 0.0
      %v718 = vadd.f32 %v716, %v717
      %v719 = vsel %vm669, %v642, 0.0
      %v720 = vadd.f32 %v718, %v719
      %v721 = vsel %vm669, %v647, 0.0
      %v722 = vadd.f32 %v720, %v721
      %v723 = vsel %vm669, %v650, 0.0
      %v724 = vadd.f32 %v722, %v723
      %v725 = vsel %vm669, %v655, 0.0
      %v726 = vadd.f32 %v724, %v725
      %v727 = vsel %vm669, %v658, 0.0
      %v728 = vadd.f32 %v726, %v727
      %v729 = vsel %vm669, %v663, 0.0
      %v730 = vadd.f32 %v728, %v729
      %v731 = vsel %vm669, %v666, 0.0
      %v732 = vadd.f32 %v730, %v731
      %v733 = vrot.slane %v732, 4
      %v734 = vadd.f32 %v732, %v733
      %v735 = vrot.slane %v734, 2
      %v736 = vadd.f32 %v734, %v735
      %v737 = vrot.slane %v736, 1
      %v738 = vadd.f32 %v736, %v737
      %v739 = vmul.f32 %v543, %v543
      %v740 = vmul.f32 %v546, %v546
      %v741 = vmul.f32 %v551, %v551
      %v742 = vmul.f32 %v554, %v554
      %v743 = vmul.f32 %v559, %v559
      %v744 = vmul.f32 %v562, %v562
      %v745 = vmul.f32 %v567, %v567
      %v746 = vmul.f32 %v570, %v570
      %v747 = vmul.f32 %v575, %v575
      %v748 = vmul.f32 %v578, %v578
      %v749 = vmul.f32 %v583, %v583
      %v750 = vmul.f32 %v586, %v586
      %v751 = vmul.f32 %v591, %v591
      %v752 = vmul.f32 %v594, %v594
      %v753 = vmul.f32 %v599, %v599
      %v754 = vmul.f32 %v602, %v602
      %v755 = vmul.f32 %v607, %v607
      %v756 = vmul.f32 %v610, %v610
      %v757 = vmul.f32 %v615, %v615
      %v758 = vmul.f32 %v618, %v618
      %v759 = vmul.f32 %v623, %v623
      %v760 = vmul.f32 %v626, %v626
      %v761 = vmul.f32 %v631, %v631
      %v762 = vmul.f32 %v634, %v634
      %v763 = vmul.f32 %v639, %v639
      %v764 = vmul.f32 %v642, %v642
      %v765 = vmul.f32 %v647, %v647
      %v766 = vmul.f32 %v650, %v650
      %v767 = vmul.f32 %v655, %v655
      %v768 = vmul.f32 %v658, %v658
      %v769 = vmul.f32 %v663, %v663
      %v770 = vmul.f32 %v666, %v666
      %v771 = vsel %vm669, %v739, 0.0
      %v772 = vsel %vm669, %v740, 0.0
      %v773 = vadd.f32 %v771, %v772
      %v774 = vsel %vm669, %v741, 0.0
      %v775 = vadd.f32 %v773, %v774
      %v776 = vsel %vm669, %v742, 0.0
      %v777 = vadd.f32 %v775, %v776
      %v778 = vsel %vm669, %v743, 0.0
      %v779 = vadd.f32 %v777, %v778
      %v780 = vsel %vm669, %v744, 0.0
      %v781 = vadd.f32 %v779, %v780
      %v782 = vsel %vm669, %v745, 0.0
      %v783 = vadd.f32 %v781, %v782
      %v784 = vsel %vm669, %v746, 0.0
      %v785 = vadd.f32 %v783, %v784
      %v786 = vsel %vm669, %v747, 0.0
      %v787 = vadd.f32 %v785, %v786
      %v788 = vsel %vm669, %v748, 0.0
      %v789 = vadd.f32 %v787, %v788
      %v790 = vsel %vm669, %v749, 0.0
      %v791 = vadd.f32 %v789, %v790
      %v792 = vsel %vm669, %v750, 0.0
      %v793 = vadd.f32 %v791, %v792
      %v794 = vsel %vm669, %v751, 0.0
      %v795 = vadd.f32 %v793, %v794
      %v796 = vsel %vm669, %v752, 0.0
      %v797 = vadd.f32 %v795, %v796
      %v798 = vsel %vm669, %v753, 0.0
      %v799 = vadd.f32 %v797, %v798
      %v800 = vsel %vm669, %v754, 0.0
      %v801 = vadd.f32 %v799, %v800
      %v802 = vsel %vm669, %v755, 0.0
      %v803 = vadd.f32 %v801, %v802
      %v804 = vsel %vm669, %v756, 0.0
      %v805 = vadd.f32 %v803, %v804
      %v806 = vsel %vm669, %v757, 0.0
      %v807 = vadd.f32 %v805, %v806
      %v808 = vsel %vm669, %v758, 0.0
      %v809 = vadd.f32 %v807, %v808
      %v810 = vsel %vm669, %v759, 0.0
      %v811 = vadd.f32 %v809, %v810
      %v812 = vsel %vm669, %v760, 0.0
      %v813 = vadd.f32 %v811, %v812
      %v814 = vsel %vm669, %v761, 0.0
      %v815 = vadd.f32 %v813, %v814
      %v816 = vsel %vm669, %v762, 0.0
      %v817 = vadd.f32 %v815, %v816
      %v818 = vsel %vm669, %v763, 0.0
      %v819 = vadd.f32 %v817, %v818
      %v820 = vsel %vm669, %v764, 0.0
      %v821 = vadd.f32 %v819, %v820
      %v822 = vsel %vm669, %v765, 0.0
      %v823 = vadd.f32 %v821, %v822
      %v824 = vsel %vm669, %v766, 0.0
      %v825 = vadd.f32 %v823, %v824
      %v826 = vsel %vm669, %v767, 0.0
      %v827 = vadd.f32 %v825, %v826
      %v828 = vsel %vm669, %v768, 0.0
      %v829 = vadd.f32 %v827, %v828
      %v830 = vsel %vm669, %v769, 0.0
      %v831 = vadd.f32 %v829, %v830
      %v832 = vsel %vm669, %v770, 0.0
      %v833 = vadd.f32 %v831, %v832
      %v834 = vrot.slane %v833, 4
      %v835 = vadd.f32 %v833, %v834
      %v836 = vrot.slane %v835, 2
      %v837 = vadd.f32 %v835, %v836
      %v838 = vrot.slane %v837, 1
      %v839 = vadd.f32 %v837, %v838
      %v840 = vrcp.pop 256.0
      %v841 = vmul.f32 %v738, %v840
      %v842 = vmul.f32 %v839, %v840
      %v843 = vmul.f32 %v841, %v841
      %v844 = vsub.f32 %v842, %v843
      %v845 = vmax.f32 %v844, 0.0
      %v846 = vadd.f32 %v845, 1e-05
      %v847 = vrsqrt.pop %v846
      %v848 = vsub.f32 %v543, %v841
      %v849 = vsub.f32 %v546, %v841
      %v850 = vsub.f32 %v551, %v841
      %v851 = vsub.f32 %v554, %v841
      %v852 = vsub.f32 %v559, %v841
      %v853 = vsub.f32 %v562, %v841
      %v854 = vsub.f32 %v567, %v841
      %v855 = vsub.f32 %v570, %v841
      %v856 = vsub.f32 %v575, %v841
      %v857 = vsub.f32 %v578, %v841
      %v858 = vsub.f32 %v583, %v841
      %v859 = vsub.f32 %v586, %v841
      %v860 = vsub.f32 %v591, %v841
      %v861 = vsub.f32 %v594, %v841
      %v862 = vsub.f32 %v599, %v841
      %v863 = vsub.f32 %v602, %v841
      %v864 = vsub.f32 %v607, %v841
      %v865 = vsub.f32 %v610, %v841
      %v866 = vsub.f32 %v615, %v841
      %v867 = vsub.f32 %v618, %v841
      %v868 = vsub.f32 %v623, %v841
      %v869 = vsub.f32 %v626, %v841
      %v870 = vsub.f32 %v631, %v841
      %v871 = vsub.f32 %v634, %v841
      %v872 = vsub.f32 %v639, %v841
      %v873 = vsub.f32 %v642, %v841
      %v874 = vsub.f32 %v647, %v841
      %v875 = vsub.f32 %v650, %v841
      %v876 = vsub.f32 %v655, %v841
      %v877 = vsub.f32 %v658, %v841
      %v878 = vsub.f32 %v663, %v841
      %v879 = vsub.f32 %v666, %v841
      %v880 = vmul.f32 %v848, %v847
      %v881 = vmul.f32 %v849, %v847
      %v882 = vmul.f32 %v850, %v847
      %v883 = vmul.f32 %v851, %v847
      %v884 = vmul.f32 %v852, %v847
      %v885 = vmul.f32 %v853, %v847
      %v886 = vmul.f32 %v854, %v847
      %v887 = vmul.f32 %v855, %v847
      %v888 = vmul.f32 %v856, %v847
      %v889 = vmul.f32 %v857, %v847
      %v890 = vmul.f32 %v858, %v847
      %v891 = vmul.f32 %v859, %v847
      %v892 = vmul.f32 %v860, %v847
      %v893 = vmul.f32 %v861, %v847
      %v894 = vmul.f32 %v862, %v847
      %v895 = vmul.f32 %v863, %v847
      %v896 = vmul.f32 %v864, %v847
      %v897 = vmul.f32 %v865, %v847
      %v898 = vmul.f32 %v866, %v847
      %v899 = vmul.f32 %v867, %v847
      %v900 = vmul.f32 %v868, %v847
      %v901 = vmul.f32 %v869, %v847
      %v902 = vmul.f32 %v870, %v847
      %v903 = vmul.f32 %v871, %v847
      %v904 = vmul.f32 %v872, %v847
      %v905 = vmul.f32 %v873, %v847
      %v906 = vmul.f32 %v874, %v847
      %v907 = vmul.f32 %v875, %v847
      %v908 = vmul.f32 %v876, %v847
      %v909 = vmul.f32 %v877, %v847
      %v910 = vmul.f32 %v878, %v847
      %v911 = vmul.f32 %v879, %v847
      %v912 = vmax.f32 %v880, 0.0
      %v913 = vmax.f32 %v881, 0.0
      %v914 = vmax.f32 %v882, 0.0
      %v915 = vmax.f32 %v883, 0.0
      %v916 = vmax.f32 %v884, 0.0
      %v917 = vmax.f32 %v885, 0.0
      %v918 = vmax.f32 %v886, 0.0
      %v919 = vmax.f32 %v887, 0.0
      %v920 = vmax.f32 %v888, 0.0
      %v921 = vmax.f32 %v889, 0.0
      %v922 = vmax.f32 %v890, 0.0
      %v923 = vmax.f32 %v891, 0.0
      %v924 = vmax.f32 %v892, 0.0
      %v925 = vmax.f32 %v893, 0.0
      %v926 = vmax.f32 %v894, 0.0
      %v927 = vmax.f32 %v895, 0.0
      %v928 = vmax.f32 %v896, 0.0
      %v929 = vmax.f32 %v897, 0.0
      %v930 = vmax.f32 %v898, 0.0
      %v931 = vmax.f32 %v899, 0.0
      %v932 = vmax.f32 %v900, 0.0
      %v933 = vmax.f32 %v901, 0.0
      %v934 = vmax.f32 %v902, 0.0
      %v935 = vmax.f32 %v903, 0.0
      %v936 = vmax.f32 %v904, 0.0
      %v937 = vmax.f32 %v905, 0.0
      %v938 = vmax.f32 %v906, 0.0
      %v939 = vmax.f32 %v907, 0.0
      %v940 = vmax.f32 %v908, 0.0
      %v941 = vmax.f32 %v909, 0.0
      %v942 = vmax.f32 %v910, 0.0
      %v943 = vmax.f32 %v911, 0.0
      %944 = vst.msk [vmem:[%s170] sm:$0xff] %vm669, %v912
      %945 = vst.msk [vmem:[%s170 + $0x8] sm:$0xff] %vm669, %v913
      %946 = vst.msk [vmem:[%s170 + $0x10] sm:$0xff] %vm669, %v914
      %947 = vst.msk [vmem:[%s170 + $0x18] sm:$0xff] %vm669, %v915
      %948 = vst.msk [vmem:[%s170 + $0x20] sm:$0xff] %vm669, %v916
      %949 = vst.msk [vmem:[%s170 + $0x28] sm:$0xff] %vm669, %v917
      %950 = vst.msk [vmem:[%s170 + $0x30] sm:$0xff] %vm669, %v918
      %951 = vst.msk [vmem:[%s170 + $0x38] sm:$0xff] %vm669, %v919
      %952 = vst.msk [vmem:[%s170 + $0x40] sm:$0xff] %vm669, %v920
      %953 = vst.msk [vmem:[%s170 + $0x48] sm:$0xff] %vm669, %v921
      %954 = vst.msk [vmem:[%s170 + $0x50] sm:$0xff] %vm669, %v922
      %955 = vst.msk [vmem:[%s170 + $0x58] sm:$0xff] %vm669, %v923
      %956 = vst.msk [vmem:[%s170 + $0x60] sm:$0xff] %vm669, %v924
      %957 = vst.msk [vmem:[%s170 + $0x68] sm:$0xff] %vm669, %v925
      %958 = vst.msk [vmem:[%s170 + $0x70] sm:$0xff] %vm669, %v926
      %959 = vst.msk [vmem:[%s170 + $0x78] sm:$0xff] %vm669, %v927
      %960 = vst.msk [vmem:[%s170 + $0x80] sm:$0xff] %vm669, %v928
      %961 = vst.msk [vmem:[%s170 + $0x88] sm:$0xff] %vm669, %v929
      %962 = vst.msk [vmem:[%s170 + $0x90] sm:$0xff] %vm669, %v930
      %963 = vst.msk [vmem:[%s170 + $0x98] sm:$0xff] %vm669, %v931
      %964 = vst.msk [vmem:[%s170 + $0xa0] sm:$0xff] %vm669, %v932
      %965 = vst.msk [vmem:[%s170 + $0xa8] sm:$0xff] %vm669, %v933
      %966 = vst.msk [vmem:[%s170 + $0xb0] sm:$0xff] %vm669, %v934
      %967 = vst.msk [vmem:[%s170 + $0xb8] sm:$0xff] %vm669, %v935
      %968 = vst.msk [vmem:[%s170 + $0xc0] sm:$0xff] %vm669, %v936
      %969 = vst.msk [vmem:[%s170 + $0xc8] sm:$0xff] %vm669, %v937
      %970 = vst.msk [vmem:[%s170 + $0xd0] sm:$0xff] %vm669, %v938
      %971 = vst.msk [vmem:[%s170 + $0xd8] sm:$0xff] %vm669, %v939
      %972 = vst.msk [vmem:[%s170 + $0xe0] sm:$0xff] %vm669, %v940
      %973 = vst.msk [vmem:[%s170 + $0xe8] sm:$0xff] %vm669, %v941
      %974 = vst.msk [vmem:[%s170 + $0xf0] sm:$0xff] %vm669, %v942
      %975 = vst.msk [vmem:[%s170 + $0xf8] sm:$0xff] %vm669, %v943
      %p976 = scmp.lt.s32.totalorder %s14, 1
      %s977 = scalar_select %p976, %s14, 1
      %s978 = smul.addr %s977, 32
      %s979 = smul.addr %s978, 8
      %s980 = scalar_lea.vmem %s3, %s979
      // Predicated region
      $region33: #{generator_forward.7} parent=31 // pred_check
        %p981 = pneg %p100
      $region34: #{generator_forward.7} parent=31 // pred_check_branch
        %983 = sbr.rel (%p981) target = $region36
      $region35: #{generator_forward.7} parent=31 // pred_region
        _
      $region36: #{generator_forward.7} parent=31 // pred_fallthru
        _
    $region32: #{generator_forward.7} parent=5 // pred_fallthru
      _
    %p984 = scmp.le.s32.totalorder 2, %s9
    // Predicated region
    $region37: #{generator_forward.7} parent=5 // pred_check
      %p985 = pneg %p984
    $region38: #{generator_forward.7} parent=5 // pred_check_branch
      %987 = sbr.rel (%p985) target = $region40
    $region39: #{generator_forward.7} parent=5 // pred_region
      %s988 = ssub.s32 %s9, 2
      // Predicated region
      $region41: #{generator_forward.7} parent=39 // pred_check
        %p989 = pneg %p106
      $region42: #{generator_forward.7} parent=39 // pred_check_branch
        %991 = sbr.rel (%p989) target = $region44
      $region43: #{generator_forward.7} parent=39 // pred_region
        %p992 = scmp.lt.s32.totalorder %s15, 1
        %s993 = scalar_select %p992, %s15, 1
        %s994 = smul.addr %s993, 32
        %s995 = smul.addr %s994, 8
        %s996 = scalar_lea.vmem %s3, %s995
      $region44: #{generator_forward.7} parent=39 // pred_fallthru
        _
    $region40: #{generator_forward.7} parent=5 // pred_fallthru
      _
  $region6: #{generator_forward.7} parent=0 // loop_footer
    %s13 = sadd.s32 1, %s9
  $region7: #{generator_forward.7} parent=0 // loop_footer_branch
    %8 = sbr.rel target = $region3
  $region8: #{generator_forward.7} parent=0 // loop_exit
    _

// kernel: generator_forward.8
$region0: #{generator_forward.8}
  #allocation0 [shape = 'u32[]', space=smem, size = 0x4, offset = 0x4, fixed_abs, tag = 'smem constant byte address 0x4 - core index']
  #allocation1 [shape = 'u32[144,128]{1,0:T(1,128)}', space=vmem, size = 0x12000, scoped, tag = 'internal scratch']
  %s0 = inlined_call_operand.vmem [shape: bf16[2,1,64,72], index: 0, kind: input, shape index: {}]
  %s1 = inlined_call_operand.vmem [shape: bf16[1,72,16], index: 1, kind: input, shape index: {}]
  %s2 = inlined_call_operand.vmem [shape: f32[1,16], index: 2, kind: input, shape index: {}]
  %s3 = inlined_call_operand.vmem [shape: f32[2,1,64,16], index: 3, kind: output, shape index: {}]
  %s4 = sld [smem:[#allocation0]]
  $region45: #{generator_forward.8} parent=0
    _
  %s6 = ssub.s32 1, %s4
  %s7 = scalar_select 0, %s6, %s4
  loop: start=0, step=1, limit=4
  $region2: #{generator_forward.8} parent=0 // loop_pre_header
    _
  $region3: #{generator_forward.8} parent=0 // loop_header
    %s9 = sphi 0, %s13
    %p10 = scmp.ge.s32.totalorder %s9, 4
    %s19 = sphi 0, %s21
    %s22 = sphi 0, %s19
    %s23 = sphi 0, %s22
    %s39 = sphi 0, %s23
    %s43 = sphi 0, %s43
    %s45 = sphi 0, %s43
    %s46 = sphi 0, %s45
    %s60 = sphi 0, %s46
    %s64 = sphi 0, %s64
    %s66 = sphi 0, %s64
    %s67 = sphi 0, %s66
    %s81 = sphi 0, %s67
    %s87 = sphi 0, %s89
    %s90 = sphi 0, %s87
    %s91 = sphi 0, %s90
    %s107 = sphi 0, %s91
  $region4: #{generator_forward.8} parent=0 // loop_header_branch
    %12 = sbr.rel (%p10) target = $region8
  $region5: #{generator_forward.8} parent=0 // loop_body
    %s14 = ssub.s32 %s9, 1
    %s15 = ssub.s32 %s9, 2
    %s16 = sadd.s32 %s9, 1
    %s17 = ssub.s32 %s9, %s16
    %p18 = scmp.eq.s32.totalorder %s17, 0
    %s20 = sadd.s32 %s19, 1
    %s21 = scalar_select %p18, %s19, %s20
    %p24 = pneg %p18
    %p25 = scmp.eq.s32.totalorder %s9, 1
    %p26 = por %p24, %p25
    %p27 = scmp.ne.s32.totalorder %s19, %s22
    %p28 = scmp.eq.s32.totalorder %s9, 0
    %p29 = por %p27, %p28
    %p30 = scmp.ne.s32.totalorder %s19, %s22
    %p31 = scmp.eq.s32.totalorder %s14, 1
    %p32 = por %p30, %p31
    %p33 = scmp.ne.s32.totalorder %s22, %s23
    %p34 = scmp.eq.s32.totalorder %s14, 0
    %p35 = por %p33, %p34
    %p36 = scmp.ne.s32.totalorder %s22, %s23
    %p37 = scmp.eq.s32.totalorder %s15, 1
    %p38 = por %p36, %p37
    %p40 = scmp.ne.s32.totalorder %s23, %s39
    %p41 = scmp.eq.s32.totalorder %s15, 0
    %p42 = por %p40, %p41
    %s44 = sadd.s32 %s43, 1
    %p47 = scmp.eq.s32.totalorder %s9, 1
    %p48 = scmp.ne.s32.totalorder %s43, %s45
    %p49 = scmp.eq.s32.totalorder %s9, 0
    %p50 = por %p48, %p49
    %p51 = scmp.ne.s32.totalorder %s43, %s45
    %p52 = scmp.eq.s32.totalorder %s14, 1
    %p53 = por %p51, %p52
    %p54 = scmp.ne.s32.totalorder %s45, %s46
    %p55 = scmp.eq.s32.totalorder %s14, 0
    %p56 = por %p54, %p55
    %p57 = scmp.ne.s32.totalorder %s45, %s46
    %p58 = scmp.eq.s32.totalorder %s15, 1
    %p59 = por %p57, %p58
    %p61 = scmp.ne.s32.totalorder %s46, %s60
    %p62 = scmp.eq.s32.totalorder %s15, 0
    %p63 = por %p61, %p62
    %s65 = sadd.s32 %s64, 1
    %p68 = scmp.eq.s32.totalorder %s9, 1
    %p69 = scmp.ne.s32.totalorder %s64, %s66
    %p70 = scmp.eq.s32.totalorder %s9, 0
    %p71 = por %p69, %p70
    %p72 = scmp.ne.s32.totalorder %s64, %s66
    %p73 = scmp.eq.s32.totalorder %s14, 1
    %p74 = por %p72, %p73
    %p75 = scmp.ne.s32.totalorder %s66, %s67
    %p76 = scmp.eq.s32.totalorder %s14, 0
    %p77 = por %p75, %p76
    %p78 = scmp.ne.s32.totalorder %s66, %s67
    %p79 = scmp.eq.s32.totalorder %s15, 1
    %p80 = por %p78, %p79
    %p82 = scmp.ne.s32.totalorder %s67, %s81
    %p83 = scmp.eq.s32.totalorder %s15, 0
    %p84 = por %p82, %p83
    %s85 = ssub.s32 %s9, %s16
    %p86 = scmp.eq.s32.totalorder %s85, 0
    %s88 = sadd.s32 %s87, 1
    %s89 = scalar_select %p86, %s87, %s88
    %p92 = pneg %p86
    %p93 = scmp.eq.s32.totalorder %s9, 1
    %p94 = por %p92, %p93
    %p95 = scmp.ne.s32.totalorder %s87, %s90
    %p96 = scmp.eq.s32.totalorder %s9, 0
    %p97 = por %p95, %p96
    %p98 = scmp.ne.s32.totalorder %s87, %s90
    %p99 = scmp.eq.s32.totalorder %s14, 1
    %p100 = por %p98, %p99
    %p101 = scmp.ne.s32.totalorder %s90, %s91
    %p102 = scmp.eq.s32.totalorder %s14, 0
    %p103 = por %p101, %p102
    %p104 = scmp.ne.s32.totalorder %s90, %s91
    %p105 = scmp.eq.s32.totalorder %s15, 1
    %p106 = por %p104, %p105
    %p108 = scmp.ne.s32.totalorder %s91, %s107
    %p109 = scmp.eq.s32.totalorder %s15, 0
    %p110 = por %p108, %p109
    %p111 = scmp.le.s32.totalorder 1, %s9
    %p112 = scmp.lt.s32.totalorder %s9, 3
    %p113 = pnand %p111, %p112
    %p114 = pneg %p113
    // Predicated region
    $region9: #{generator_forward.8} parent=5 // pred_check
      _
    $region10: #{generator_forward.8} parent=5 // pred_check_branch
      %116 = sbr.rel (%p113) target = $region12
    $region11: #{generator_forward.8} parent=5 // pred_region
      %s117 = ssub.s32 %s9, 1
      // Predicated region
      $region13: #{generator_forward.8} parent=11 // pred_check
        %p118 = pneg %p56
      $region14: #{generator_forward.8} parent=11 // pred_check_branch
        %120 = sbr.rel (%p118) target = $region16
      $region15: #{generator_forward.8} parent=11 // pred_region
        _
      $region16: #{generator_forward.8} parent=11 // pred_fallthru
        _
      // Predicated region
      $region17: #{generator_forward.8} parent=11 // pred_check
        %p121 = pneg %p77
      $region18: #{generator_forward.8} parent=11 // pred_check_branch
        %123 = sbr.rel (%p121) target = $region20
      $region19: #{generator_forward.8} parent=11 // pred_region
        _
      $region20: #{generator_forward.8} parent=11 // pred_fallthru
        _
    $region12: #{generator_forward.8} parent=5 // pred_fallthru
      _
    %p124 = scmp.lt.s32.totalorder %s9, 2
    // Predicated region
    $region21: #{generator_forward.8} parent=5 // pred_check
      %p125 = pneg %p124
    $region22: #{generator_forward.8} parent=5 // pred_check_branch
      %127 = sbr.rel (%p125) target = $region24
    $region23: #{generator_forward.8} parent=5 // pred_region
      // Predicated region
      $region25: #{generator_forward.8} parent=23 // pred_check
        %p128 = pneg %p29
      $region26: #{generator_forward.8} parent=23 // pred_check_branch
        %130 = sbr.rel (%p128) target = $region28
      $region27: #{generator_forward.8} parent=23 // pred_region
        %p131 = scmp.lt.s32.totalorder %s9, 1
        %s132 = scalar_select %p131, %s9, 1
        %s133 = smul.addr %s132, 8
        %s134 = smul.addr %s133, 4
        %s135 = scalar_lea.vmem %s0, %s134
      $region28: #{generator_forward.8} parent=23 // pred_fallthru
        _
    $region24: #{generator_forward.8} parent=5 // pred_fallthru
      _
    %p136 = scmp.le.s32.totalorder 1, %s9
    %p137 = scmp.lt.s32.totalorder %s9, 3
    %p138 = pnand %p136, %p137
    %p139 = pneg %p138
    // Predicated region
    $region29: #{generator_forward.8} parent=5 // pred_check
      _
    $region30: #{generator_forward.8} parent=5 // pred_check_branch
      %141 = sbr.rel (%p138) target = $region32
    $region31: #{generator_forward.8} parent=5 // pred_region
      %s142 = ssub.s32 %s9, 1
      %p143 = scmp.lt.s32.totalorder %s14, 1
      %s144 = scalar_select %p143, %s14, 1
      %s145 = smul.addr %s144, 8
      %s146 = smul.addr %s145, 4
      %s147 = scalar_lea.vmem %s0, %s146
      %p148 = pneg %p35
      %p149 = pneg %p32
      %p150 = pneg %p56
      %p151 = pneg %p53
      %p152 = pneg %p77
      %p153 = pneg %p74
      %p154 = pneg %p103
      %p155 = pneg %p100
      %p156 = scmp.lt.s32.totalorder %s14, 1
      %s157 = scalar_select %p156, %s14, 1
      %s158 = smul.addr %s157, 8
      %s159 = smul.addr %s158, 8
      %s160 = scalar_lea.vmem %s3, %s159
      %p161 = scmp.lt.s32.totalorder %s14, 1
      %s162 = scalar_select %p161, %s14, 1
      %s163 = smul.addr %s162, 8
      %s164 = smul.addr %s163, 4
      %s165 = scalar_lea.vmem %s0, %s164
      %p166 = scmp.lt.s32.totalorder %s14, 1
      %s167 = scalar_select %p166, %s14, 1
      %s168 = smul.addr %s167, 8
      %s169 = smul.addr %s168, 8
      %s170 = scalar_lea.vmem %s3, %s169
      %v172 = vld [vmem:[%s2] sm:$0x1]
      %v173 = vld [vmem:[%s165] sm:$0xf]
      %v174 = vld [vmem:[%s165 + $0x4] sm:$0xf]
      %v175 = vld [vmem:[%s165 + $0x8] sm:$0xf]
      %v176 = vld [vmem:[%s165 + $0xc] sm:$0xf]
      %v177 = vld [vmem:[%s165 + $0x10] sm:$0xf]
      %v178 = vld [vmem:[%s165 + $0x14] sm:$0xf]
      %v179 = vld [vmem:[%s165 + $0x18] sm:$0xf]
      %v180 = vld [vmem:[%s165 + $0x1c] sm:$0xf]
      %v181 = vld [vmem:[%s1] sm:$0xf]
      %v182 = vld [vmem:[%s1 + $0x4] sm:$0xf]
      %v183 = vld [vmem:[%s1 + $0x8] sm:$0xf]
      %v184 = vld [vmem:[%s1 + $0xc] sm:$0xf]
      %v185 = vld [vmem:[%s1 + $0x10] sm:$0xf]
      %v186 = vld [vmem:[%s1 + $0x14] sm:$0xf]
      %v187 = vld [vmem:[%s1 + $0x18] sm:$0xf]
      %v188 = vld [vmem:[%s1 + $0x1c] sm:$0xf]
      %v189 = vld [vmem:[%s1 + $0x20] sm:$0xf]
      %v191 = vlaneseq
      %v192 = vshrl.u32 %v191, 7
      %v193 = vsub.s32 0, %v192
      %v194 = vrot.slane %v172, %v193
      %v204 = vunpack.c.l.b16 %v173
      %v205 = vunpack.c.l.b16 %v174
      %v206 = vunpack.c.l.b16 %v175
      %v207 = vunpack.c.l.b16 %v176
      %v208 = vunpack.c.l.b16 %v177
      %v209 = vunpack.c.l.b16 %v178
      %v210 = vunpack.c.l.b16 %v179
      %v211 = vunpack.c.l.b16 %v180
      %v212 = vpack.c.b16 %v205, %v204
      %v213 = vpack.c.b16 %v207, %v206
      %v214 = vpack.c.b16 %v209, %v208
      %v215 = vpack.c.b16 %v211, %v210
      %v225 = vunpack.c.l.b16 %v181
      %v226 = vunpack.c.l.b16 %v182
      %v227 = vunpack.c.l.b16 %v183
      %v228 = vunpack.c.l.b16 %v184
      %v229 = vunpack.c.l.b16 %v185
      %v230 = vunpack.c.l.b16 %v186
      %v231 = vunpack.c.l.b16 %v187
      %v232 = vunpack.c.l.b16 %v188
      %v233 = vunpack.c.l.b16 %v189
      %v234 = vpack.c.b16 %v226, %v225
      %v235 = vpack.c.b16 %v228, %v227
      %v236 = vpack.c.b16 %v230, %v229
      %v237 = vpack.c.b16 %v232, %v231
      %v238 = vpack.c.b16 %v233, %v233
      %vm243 = vcmask 588800
      %v245 = vsel %vm243, %v212, 0
      %v248 = vsel %vm243, %v213, 0
      %v251 = vsel %vm243, %v214, 0
      %v254 = vsel %vm243, %v215, 0
      %vm256 = vcmask 1043456
      %v258 = vsel %vm256, %v238, 0
      %260 = vmatprep.subr.bf16.mxu0 0
      %261 = vmatpush1.bf16.msra.mxu0 0
      %262 = vmatprep.subr.bf16.mxu0 0
      %263 = vmatpush1.bf16.msra.mxu0 0
      %264 = vmatprep.subr.bf16.mxu0 0
      %265 = vmatpush1.bf16.msra.mxu0 0
      %266 = vmatprep.subr.bf16.mxu0 0
      %267 = vmatpush1.bf16.msra.mxu0 %v258
      %268 = vmatprep.subr.bf16.mxu0 0
      %269 = vmatpush1.bf16.msra.mxu0 %v237
      %270 = vmatprep.subr.bf16.mxu0 0
      %271 = vmatpush1.bf16.msra.mxu0 %v236
      %272 = vmatprep.subr.bf16.mxu0 0
      %273 = vmatpush1.bf16.msra.mxu0 %v235
      %274 = vmatprep.subr.bf16.mxu0 0
      %275 = vmatpush1.bf16.msra.mxu0 %v234
      %276 = vmatprep.subr.bf16.mxu0 0
      %277 = vmatpush2.bf16.msra.mxu0 0
      %278 = vmatprep.subr.bf16.mxu0 0
      %279 = vmatpush2.bf16.msra.mxu0 0
      %280 = vmatprep.subr.bf16.mxu0 0
      %281 = vmatpush2.bf16.msra.mxu0 0
      %282 = vmatprep.subr.bf16.mxu0 0
      %283 = vmatpush2.bf16.msra.mxu0 0
      %284 = vmatprep.subr.bf16.mxu0 0
      %285 = vmatpush2.bf16.msra.mxu0 0
      %286 = vmatprep.subr.bf16.mxu0 0
      %287 = vmatpush2.bf16.msra.mxu0 0
      %288 = vmatprep.subr.bf16.mxu0 0
      %289 = vmatpush2.bf16.msra.mxu0 0
      %290 = vmatprep.subr.bf16.mxu0 0
      %291 = vmatpush2.bf16.msra.mxu0 0
      %292 = vmatprep.mubr.bf16.mxu0 0
      %293 = vmatmul.mubr.bf16.gmra.mxu0 %v245
      %v294 = vpop.f32.mrf.mxu0
      %v295 = vadd.f32 %v194, %v294
      %v296 = vpop.f32.mrf.mxu0
      %v297 = vpop.f32.mrf.mxu0
      %v298 = vadd.f32 %v194, %v297
      %v299 = vpop.f32.mrf.mxu0
      %300 = vmatprep.mubr.bf16.mxu0 0
      %301 = vmatmul.mubr.bf16.gmra.mxu0 %v248
      %v302 = vpop.f32.mrf.mxu0
      %v303 = vadd.f32 %v194, %v302
      %v304 = vpop.f32.mrf.mxu0
      %v305 = vpop.f32.mrf.mxu0
      %v306 = vadd.f32 %v194, %v305
      %v307 = vpop.f32.mrf.mxu0
      %308 = vmatprep.mubr.bf16.mxu0 0
      %309 = vmatmul.mubr.bf16.gmra.mxu0 %v251
      %v310 = vpop.f32.mrf.mxu0
      %v311 = vadd.f32 %v194, %v310
      %v312 = vpop.f32.mrf.mxu0
      %v313 = vpop.f32.mrf.mxu0
      %v314 = vadd.f32 %v194, %v313
      %v315 = vpop.f32.mrf.mxu0
      %316 = vmatprep.mubr.bf16.mxu0 0
      %317 = vmatmul.mubr.bf16.gmra.mxu0 %v254
      %v318 = vpop.f32.mrf.mxu0
      %v319 = vadd.f32 %v194, %v318
      %v320 = vpop.f32.mrf.mxu0
      %v321 = vpop.f32.mrf.mxu0
      %v322 = vadd.f32 %v194, %v321
      %v323 = vpop.f32.mrf.mxu0
      %324 = vdwg.mxu0
      %vm325 = vcmask 130048
      %v326 = vsel %vm325, %v295, 0.0
      %v327 = vsel %vm325, %v298, 0.0
      %v328 = vadd.f32 %v326, %v327
      %v329 = vsel %vm325, %v303, 0.0
      %v330 = vadd.f32 %v328, %v329
      %v331 = vsel %vm325, %v306, 0.0
      %v332 = vadd.f32 %v330, %v331
      %v333 = vsel %vm325, %v311, 0.0
      %v334 = vadd.f32 %v332, %v333
      %v335 = vsel %vm325, %v314, 0.0
      %v336 = vadd.f32 %v334, %v335
      %v337 = vsel %vm325, %v319, 0.0
      %v338 = vadd.f32 %v336, %v337
      %v339 = vsel %vm325, %v322, 0.0
      %v340 = vadd.f32 %v338, %v339
      %v341 = vrot.slane %v340, 4
      %v342 = vadd.f32 %v340, %v341
      %v343 = vrot.slane %v342, 2
      %v344 = vadd.f32 %v342, %v343
      %v345 = vrot.slane %v344, 1
      %v346 = vadd.f32 %v344, %v345
      %v347 = vmul.f32 %v295, %v295
      %v348 = vmul.f32 %v298, %v298
      %v349 = vmul.f32 %v303, %v303
      %v350 = vmul.f32 %v306, %v306
      %v351 = vmul.f32 %v311, %v311
      %v352 = vmul.f32 %v314, %v314
      %v353 = vmul.f32 %v319, %v319
      %v354 = vmul.f32 %v322, %v322
      %v355 = vsel %vm325, %v347, 0.0
      %v356 = vsel %vm325, %v348, 0.0
      %v357 = vadd.f32 %v355, %v356
      %v358 = vsel %vm325, %v349, 0.0
      %v359 = vadd.f32 %v357, %v358
      %v360 = vsel %vm325, %v350, 0.0
      %v361 = vadd.f32 %v359, %v360
      %v362 = vsel %vm325, %v351, 0.0
      %v363 = vadd.f32 %v361, %v362
      %v364 = vsel %vm325, %v352, 0.0
      %v365 = vadd.f32 %v363, %v364
      %v366 = vsel %vm325, %v353, 0.0
      %v367 = vadd.f32 %v365, %v366
      %v368 = vsel %vm325, %v354, 0.0
      %v369 = vadd.f32 %v367, %v368
      %v370 = vrot.slane %v369, 4
      %v371 = vadd.f32 %v369, %v370
      %v372 = vrot.slane %v371, 2
      %v373 = vadd.f32 %v371, %v372
      %v374 = vrot.slane %v373, 1
      %v375 = vadd.f32 %v373, %v374
      %v376 = vrcp.pop 64.0
      %v377 = vmul.f32 %v346, %v376
      %v378 = vmul.f32 %v375, %v376
      %v379 = vmul.f32 %v377, %v377
      %v380 = vsub.f32 %v378, %v379
      %v381 = vmax.f32 %v380, 0.0
      %v382 = vadd.f32 %v381, 1e-05
      %v383 = vrsqrt.pop %v382
      %v384 = vsub.f32 %v295, %v377
      %v385 = vsub.f32 %v298, %v377
      %v386 = vsub.f32 %v303, %v377
      %v387 = vsub.f32 %v306, %v377
      %v388 = vsub.f32 %v311, %v377
      %v389 = vsub.f32 %v314, %v377
      %v390 = vsub.f32 %v319, %v377
      %v391 = vsub.f32 %v322, %v377
      %v392 = vmul.f32 %v384, %v383
      %v393 = vmul.f32 %v385, %v383
      %v394 = vmul.f32 %v386, %v383
      %v395 = vmul.f32 %v387, %v383
      %v396 = vmul.f32 %v388, %v383
      %v397 = vmul.f32 %v389, %v383
      %v398 = vmul.f32 %v390, %v383
      %v399 = vmul.f32 %v391, %v383
      %v400 = vmax.f32 %v392, 0.0
      %v401 = vmax.f32 %v393, 0.0
      %v402 = vmax.f32 %v394, 0.0
      %v403 = vmax.f32 %v395, 0.0
      %v404 = vmax.f32 %v396, 0.0
      %v405 = vmax.f32 %v397, 0.0
      %v406 = vmax.f32 %v398, 0.0
      %v407 = vmax.f32 %v399, 0.0
      %408 = vst.msk [vmem:[%s170] sm:$0xff] %vm325, %v400
      %409 = vst.msk [vmem:[%s170 + $0x8] sm:$0xff] %vm325, %v401
      %410 = vst.msk [vmem:[%s170 + $0x10] sm:$0xff] %vm325, %v402
      %411 = vst.msk [vmem:[%s170 + $0x18] sm:$0xff] %vm325, %v403
      %412 = vst.msk [vmem:[%s170 + $0x20] sm:$0xff] %vm325, %v404
      %413 = vst.msk [vmem:[%s170 + $0x28] sm:$0xff] %vm325, %v405
      %414 = vst.msk [vmem:[%s170 + $0x30] sm:$0xff] %vm325, %v406
      %415 = vst.msk [vmem:[%s170 + $0x38] sm:$0xff] %vm325, %v407
      %p416 = scmp.lt.s32.totalorder %s14, 1
      %s417 = scalar_select %p416, %s14, 1
      %s418 = smul.addr %s417, 8
      %s419 = smul.addr %s418, 8
      %s420 = scalar_lea.vmem %s3, %s419
      // Predicated region
      $region33: #{generator_forward.8} parent=31 // pred_check
        %p421 = pneg %p100
      $region34: #{generator_forward.8} parent=31 // pred_check_branch
        %423 = sbr.rel (%p421) target = $region36
      $region35: #{generator_forward.8} parent=31 // pred_region
        _
      $region36: #{generator_forward.8} parent=31 // pred_fallthru
        _
    $region32: #{generator_forward.8} parent=5 // pred_fallthru
      _
    %p424 = scmp.le.s32.totalorder 2, %s9
    // Predicated region
    $region37: #{generator_forward.8} parent=5 // pred_check
      %p425 = pneg %p424
    $region38: #{generator_forward.8} parent=5 // pred_check_branch
      %427 = sbr.rel (%p425) target = $region40
    $region39: #{generator_forward.8} parent=5 // pred_region
      %s428 = ssub.s32 %s9, 2
      // Predicated region
      $region41: #{generator_forward.8} parent=39 // pred_check
        %p429 = pneg %p106
      $region42: #{generator_forward.8} parent=39 // pred_check_branch
        %431 = sbr.rel (%p429) target = $region44
      $region43: #{generator_forward.8} parent=39 // pred_region
        %p432 = scmp.lt.s32.totalorder %s15, 1
        %s433 = scalar_select %p432, %s15, 1
        %s434 = smul.addr %s433, 8
        %s435 = smul.addr %s434, 8
        %s436 = scalar_lea.vmem %s3, %s435
      $region44: #{generator_forward.8} parent=39 // pred_fallthru
        _
    $region40: #{generator_forward.8} parent=5 // pred_fallthru
      _
  $region6: #{generator_forward.8} parent=0 // loop_footer
    %s13 = sadd.s32 1, %s9
  $region7: #{generator_forward.8} parent=0 // loop_footer_branch
    %8 = sbr.rel target = $region3
  $region8: #{generator_forward.8} parent=0 // loop_exit
    _

// kernel: generator_forward.9
$region0: #{generator_forward.9}
  #allocation0 [shape = 'u32[]', space=smem, size = 0x4, offset = 0x4, fixed_abs, tag = 'smem constant byte address 0x4 - core index']
  #allocation1 [shape = 'u32[144,128]{1,0:T(1,128)}', space=vmem, size = 0x12000, scoped, tag = 'internal scratch']
  %s0 = inlined_call_operand.vmem [shape: bf16[2,1,16,144], index: 0, kind: input, shape index: {}]
  %s1 = inlined_call_operand.vmem [shape: bf16[1,144,32], index: 1, kind: input, shape index: {}]
  %s2 = inlined_call_operand.vmem [shape: f32[1,32], index: 2, kind: input, shape index: {}]
  %s3 = inlined_call_operand.vmem [shape: f32[2,1,16,32], index: 3, kind: output, shape index: {}]
  %s4 = sld [smem:[#allocation0]]
  $region45: #{generator_forward.9} parent=0
    _
  %s6 = ssub.s32 1, %s4
  %s7 = scalar_select 0, %s6, %s4
  loop: start=0, step=1, limit=4
  $region2: #{generator_forward.9} parent=0 // loop_pre_header
    _
  $region3: #{generator_forward.9} parent=0 // loop_header
    %s9 = sphi 0, %s13
    %p10 = scmp.ge.s32.totalorder %s9, 4
    %s19 = sphi 0, %s21
    %s22 = sphi 0, %s19
    %s23 = sphi 0, %s22
    %s39 = sphi 0, %s23
    %s43 = sphi 0, %s43
    %s45 = sphi 0, %s43
    %s46 = sphi 0, %s45
    %s60 = sphi 0, %s46
    %s64 = sphi 0, %s64
    %s66 = sphi 0, %s64
    %s67 = sphi 0, %s66
    %s81 = sphi 0, %s67
    %s87 = sphi 0, %s89
    %s90 = sphi 0, %s87
    %s91 = sphi 0, %s90
    %s107 = sphi 0, %s91
  $region4: #{generator_forward.9} parent=0 // loop_header_branch
    %12 = sbr.rel (%p10) target = $region8
  $region5: #{generator_forward.9} parent=0 // loop_body
    %s14 = ssub.s32 %s9, 1
    %s15 = ssub.s32 %s9, 2
    %s16 = sadd.s32 %s9, 1
    %s17 = ssub.s32 %s9, %s16
    %p18 = scmp.eq.s32.totalorder %s17, 0
    %s20 = sadd.s32 %s19, 1
    %s21 = scalar_select %p18, %s19, %s20
    %p24 = pneg %p18
    %p25 = scmp.eq.s32.totalorder %s9, 1
    %p26 = por %p24, %p25
    %p27 = scmp.ne.s32.totalorder %s19, %s22
    %p28 = scmp.eq.s32.totalorder %s9, 0
    %p29 = por %p27, %p28
    %p30 = scmp.ne.s32.totalorder %s19, %s22
    %p31 = scmp.eq.s32.totalorder %s14, 1
    %p32 = por %p30, %p31
    %p33 = scmp.ne.s32.totalorder %s22, %s23
    %p34 = scmp.eq.s32.totalorder %s14, 0
    %p35 = por %p33, %p34
    %p36 = scmp.ne.s32.totalorder %s22, %s23
    %p37 = scmp.eq.s32.totalorder %s15, 1
    %p38 = por %p36, %p37
    %p40 = scmp.ne.s32.totalorder %s23, %s39
    %p41 = scmp.eq.s32.totalorder %s15, 0
    %p42 = por %p40, %p41
    %s44 = sadd.s32 %s43, 1
    %p47 = scmp.eq.s32.totalorder %s9, 1
    %p48 = scmp.ne.s32.totalorder %s43, %s45
    %p49 = scmp.eq.s32.totalorder %s9, 0
    %p50 = por %p48, %p49
    %p51 = scmp.ne.s32.totalorder %s43, %s45
    %p52 = scmp.eq.s32.totalorder %s14, 1
    %p53 = por %p51, %p52
    %p54 = scmp.ne.s32.totalorder %s45, %s46
    %p55 = scmp.eq.s32.totalorder %s14, 0
    %p56 = por %p54, %p55
    %p57 = scmp.ne.s32.totalorder %s45, %s46
    %p58 = scmp.eq.s32.totalorder %s15, 1
    %p59 = por %p57, %p58
    %p61 = scmp.ne.s32.totalorder %s46, %s60
    %p62 = scmp.eq.s32.totalorder %s15, 0
    %p63 = por %p61, %p62
    %s65 = sadd.s32 %s64, 1
    %p68 = scmp.eq.s32.totalorder %s9, 1
    %p69 = scmp.ne.s32.totalorder %s64, %s66
    %p70 = scmp.eq.s32.totalorder %s9, 0
    %p71 = por %p69, %p70
    %p72 = scmp.ne.s32.totalorder %s64, %s66
    %p73 = scmp.eq.s32.totalorder %s14, 1
    %p74 = por %p72, %p73
    %p75 = scmp.ne.s32.totalorder %s66, %s67
    %p76 = scmp.eq.s32.totalorder %s14, 0
    %p77 = por %p75, %p76
    %p78 = scmp.ne.s32.totalorder %s66, %s67
    %p79 = scmp.eq.s32.totalorder %s15, 1
    %p80 = por %p78, %p79
    %p82 = scmp.ne.s32.totalorder %s67, %s81
    %p83 = scmp.eq.s32.totalorder %s15, 0
    %p84 = por %p82, %p83
    %s85 = ssub.s32 %s9, %s16
    %p86 = scmp.eq.s32.totalorder %s85, 0
    %s88 = sadd.s32 %s87, 1
    %s89 = scalar_select %p86, %s87, %s88
    %p92 = pneg %p86
    %p93 = scmp.eq.s32.totalorder %s9, 1
    %p94 = por %p92, %p93
    %p95 = scmp.ne.s32.totalorder %s87, %s90
    %p96 = scmp.eq.s32.totalorder %s9, 0
    %p97 = por %p95, %p96
    %p98 = scmp.ne.s32.totalorder %s87, %s90
    %p99 = scmp.eq.s32.totalorder %s14, 1
    %p100 = por %p98, %p99
    %p101 = scmp.ne.s32.totalorder %s90, %s91
    %p102 = scmp.eq.s32.totalorder %s14, 0
    %p103 = por %p101, %p102
    %p104 = scmp.ne.s32.totalorder %s90, %s91
    %p105 = scmp.eq.s32.totalorder %s15, 1
    %p106 = por %p104, %p105
    %p108 = scmp.ne.s32.totalorder %s91, %s107
    %p109 = scmp.eq.s32.totalorder %s15, 0
    %p110 = por %p108, %p109
    %p111 = scmp.le.s32.totalorder 1, %s9
    %p112 = scmp.lt.s32.totalorder %s9, 3
    %p113 = pnand %p111, %p112
    %p114 = pneg %p113
    // Predicated region
    $region9: #{generator_forward.9} parent=5 // pred_check
      _
    $region10: #{generator_forward.9} parent=5 // pred_check_branch
      %116 = sbr.rel (%p113) target = $region12
    $region11: #{generator_forward.9} parent=5 // pred_region
      %s117 = ssub.s32 %s9, 1
      // Predicated region
      $region13: #{generator_forward.9} parent=11 // pred_check
        %p118 = pneg %p56
      $region14: #{generator_forward.9} parent=11 // pred_check_branch
        %120 = sbr.rel (%p118) target = $region16
      $region15: #{generator_forward.9} parent=11 // pred_region
        _
      $region16: #{generator_forward.9} parent=11 // pred_fallthru
        _
      // Predicated region
      $region17: #{generator_forward.9} parent=11 // pred_check
        %p121 = pneg %p77
      $region18: #{generator_forward.9} parent=11 // pred_check_branch
        %123 = sbr.rel (%p121) target = $region20
      $region19: #{generator_forward.9} parent=11 // pred_region
        _
      $region20: #{generator_forward.9} parent=11 // pred_fallthru
        _
    $region12: #{generator_forward.9} parent=5 // pred_fallthru
      _
    %p124 = scmp.lt.s32.totalorder %s9, 2
    // Predicated region
    $region21: #{generator_forward.9} parent=5 // pred_check
      %p125 = pneg %p124
    $region22: #{generator_forward.9} parent=5 // pred_check_branch
      %127 = sbr.rel (%p125) target = $region24
    $region23: #{generator_forward.9} parent=5 // pred_region
      // Predicated region
      $region25: #{generator_forward.9} parent=23 // pred_check
        %p128 = pneg %p29
      $region26: #{generator_forward.9} parent=23 // pred_check_branch
        %130 = sbr.rel (%p128) target = $region28
      $region27: #{generator_forward.9} parent=23 // pred_region
        %p131 = scmp.lt.s32.totalorder %s9, 1
        %s132 = scalar_select %p131, %s9, 1
        %s133 = smul.addr %s132, 4
        %s134 = smul.addr %s133, 4
        %s135 = scalar_lea.vmem %s0, %s134
      $region28: #{generator_forward.9} parent=23 // pred_fallthru
        _
    $region24: #{generator_forward.9} parent=5 // pred_fallthru
      _
    %p136 = scmp.le.s32.totalorder 1, %s9
    %p137 = scmp.lt.s32.totalorder %s9, 3
    %p138 = pnand %p136, %p137
    %p139 = pneg %p138
    // Predicated region
    $region29: #{generator_forward.9} parent=5 // pred_check
      _
    $region30: #{generator_forward.9} parent=5 // pred_check_branch
      %141 = sbr.rel (%p138) target = $region32
    $region31: #{generator_forward.9} parent=5 // pred_region
      %s142 = ssub.s32 %s9, 1
      %p143 = scmp.lt.s32.totalorder %s14, 1
      %s144 = scalar_select %p143, %s14, 1
      %s145 = smul.addr %s144, 4
      %s146 = smul.addr %s145, 4
      %s147 = scalar_lea.vmem %s0, %s146
      %p148 = pneg %p35
      %p149 = pneg %p32
      %p150 = pneg %p56
      %p151 = pneg %p53
      %p152 = pneg %p77
      %p153 = pneg %p74
      %p154 = pneg %p103
      %p155 = pneg %p100
      %p156 = scmp.lt.s32.totalorder %s14, 1
      %s157 = scalar_select %p156, %s14, 1
      %s158 = smul.addr %s157, 2
      %s159 = smul.addr %s158, 8
      %s160 = scalar_lea.vmem %s3, %s159
      %p161 = scmp.lt.s32.totalorder %s14, 1
      %s162 = scalar_select %p161, %s14, 1
      %s163 = smul.addr %s162, 4
      %s164 = smul.addr %s163, 4
      %s165 = scalar_lea.vmem %s0, %s164
      %p166 = scmp.lt.s32.totalorder %s14, 1
      %s167 = scalar_select %p166, %s14, 1
      %s168 = smul.addr %s167, 2
      %s169 = smul.addr %s168, 8
      %s170 = scalar_lea.vmem %s3, %s169
      %v172 = vld [vmem:[%s2] sm:$0x1]
      %v173 = vld [vmem:[%s165] sm:$0xff]
      %v174 = vld [vmem:[%s165 + $0x8] sm:$0xff]
      %v175 = vld [vmem:[%s1] sm:$0xf]
      %v176 = vld [vmem:[%s1 + $0x4] sm:$0xf]
      %v177 = vld [vmem:[%s1 + $0x8] sm:$0xf]
      %v178 = vld [vmem:[%s1 + $0xc] sm:$0xf]
      %v179 = vld [vmem:[%s1 + $0x10] sm:$0xf]
      %v180 = vld [vmem:[%s1 + $0x14] sm:$0xf]
      %v181 = vld [vmem:[%s1 + $0x18] sm:$0xf]
      %v182 = vld [vmem:[%s1 + $0x1c] sm:$0xf]
      %v183 = vld [vmem:[%s1 + $0x20] sm:$0xf]
      %v184 = vld [vmem:[%s1 + $0x24] sm:$0xf]
      %v185 = vld [vmem:[%s1 + $0x28] sm:$0xf]
      %v186 = vld [vmem:[%s1 + $0x2c] sm:$0xf]
      %v187 = vld [vmem:[%s1 + $0x30] sm:$0xf]
      %v188 = vld [vmem:[%s1 + $0x34] sm:$0xf]
      %v189 = vld [vmem:[%s1 + $0x38] sm:$0xf]
      %v190 = vld [vmem:[%s1 + $0x3c] sm:$0xf]
      %v191 = vld [vmem:[%s1 + $0x40] sm:$0xf]
      %v192 = vld [vmem:[%s1 + $0x44] sm:$0xf]
      %v194 = vlaneseq
      %v195 = vshrl.u32 %v194, 7
      %v196 = vsub.s32 0, %v195
      %v197 = vrot.slane %v172, %v196
      %v201 = vunpack.c.l.b16 %v173
      %v202 = vunpack.c.h.b16 %v173
      %v203 = vunpack.c.l.b16 %v174
      %v204 = vunpack.c.h.b16 %v174
      %v205 = vpack.c.b16 %v203, %v201
      %v206 = vpack.c.b16 %v204, %v202
      %v226 = vunpack.c.l.b16 %v175
      %v227 = vunpack.c.l.b16 %v176
      %v228 = vunpack.c.l.b16 %v177
      %v229 = vunpack.c.l.b16 %v178
      %v230 = vunpack.c.l.b16 %v179
      %v231 = vunpack.c.l.b16 %v180
      %v232 = vunpack.c.l.b16 %v181
      %v233 = vunpack.c.l.b16 %v182
      %v234 = vunpack.c.l.b16 %v183
      %v235 = vunpack.c.l.b16 %v184
      %v236 = vunpack.c.l.b16 %v185
      %v237 = vunpack.c.l.b16 %v186
      %v238 = vunpack.c.l.b16 %v187
      %v239 = vunpack.c.l.b16 %v188
      %v240 = vunpack.c.l.b16 %v189
      %v241 = vunpack.c.l.b16 %v190
      %v242 = vunpack.c.l.b16 %v191
      %v243 = vunpack.c.l.b16 %v192
      %v244 = vpack.c.b16 %v227, %v226
      %v245 = vpack.c.b16 %v229, %v228
      %v246 = vpack.c.b16 %v231, %v230
      %v247 = vpack.c.b16 %v233, %v232
      %v248 = vpack.c.b16 %v235, %v234
      %v249 = vpack.c.b16 %v237, %v236
      %v250 = vpack.c.b16 %v239, %v238
      %v251 = vpack.c.b16 %v241, %v240
      %v252 = vpack.c.b16 %v243, %v242
      %vm262 = vcmask 130048
      %v264 = vsel %vm262, %v206, 0
      %266 = vmatprep.subr.bf16.mxu0 0
      %267 = vmatpush1.bf16.msra.mxu0 %v251
      %268 = vmatprep.subr.bf16.mxu0 0
      %269 = vmatpush1.bf16.msra.mxu0 %v250
      %270 = vmatprep.subr.bf16.mxu0 0
      %271 = vmatpush1.bf16.msra.mxu0 %v249
      %272 = vmatprep.subr.bf16.mxu0 0
      %273 = vmatpush1.bf16.msra.mxu0 %v248
      %274 = vmatprep.subr.bf16.mxu0 0
      %275 = vmatpush1.bf16.msra.mxu0 %v247
      %276 = vmatprep.subr.bf16.mxu0 0
      %277 = vmatpush1.bf16.msra.mxu0 %v246
      %278 = vmatprep.subr.bf16.mxu0 0
      %279 = vmatpush1.bf16.msra.mxu0 %v245
      %280 = vmatprep.subr.bf16.mxu0 0
      %281 = vmatpush1.bf16.msra.mxu0 %v244
      %282 = vmatprep.subr.bf16.mxu0 0
      %283 = vmatpush2.bf16.msra.mxu0 0
      %284 = vmatprep.subr.bf16.mxu0 0
      %285 = vmatpush2.bf16.msra.mxu0 0
      %286 = vmatprep.subr.bf16.mxu0 0
      %287 = vmatpush2.bf16.msra.mxu0 0
      %288 = vmatprep.subr.bf16.mxu0 0
      %289 = vmatpush2.bf16.msra.mxu0 0
      %290 = vmatprep.subr.bf16.mxu0 0
      %291 = vmatpush2.bf16.msra.mxu0 0
      %292 = vmatprep.subr.bf16.mxu0 0
      %293 = vmatpush2.bf16.msra.mxu0 0
      %294 = vmatprep.subr.bf16.mxu0 0
      %295 = vmatpush2.bf16.msra.mxu0 0
      %296 = vmatprep.subr.bf16.mxu0 0
      %297 = vmatpush2.bf16.msra.mxu0 %v252
      %298 = vmatprep.mubr.bf16.mxu0 %v264
      %299 = vmatmul.mubr.bf16.gmra.mxu0 %v205
      %v300 = vpop.f32.mrf.mxu0
      %v301 = vadd.f32 %v197, %v300
      %v302 = vpop.f32.mrf.mxu0
      %v303 = vpop.f32.mrf.mxu0
      %v304 = vadd.f32 %v197, %v303
      %v305 = vpop.f32.mrf.mxu0
      %306 = vdwg.mxu0
      %vm307 = vcmask 261120
      %v308 = vsel %vm307, %v301, 0.0
      %v309 = vsel %vm307, %v304, 0.0
      %v310 = vadd.f32 %v308, %v309
      %v311 = vrot.slane %v310, 4
      %v312 = vadd.f32 %v310, %v311
      %v313 = vrot.slane %v312, 2
      %v314 = vadd.f32 %v312, %v313
      %v315 = vrot.slane %v314, 1
      %v316 = vadd.f32 %v314, %v315
      %v317 = vmul.f32 %v301, %v301
      %v318 = vmul.f32 %v304, %v304
      %v319 = vsel %vm307, %v317, 0.0
      %v320 = vsel %vm307, %v318, 0.0
      %v321 = vadd.f32 %v319, %v320
      %v322 = vrot.slane %v321, 4
      %v323 = vadd.f32 %v321, %v322
      %v324 = vrot.slane %v323, 2
      %v325 = vadd.f32 %v323, %v324
      %v326 = vrot.slane %v325, 1
      %v327 = vadd.f32 %v325, %v326
      %v328 = vrcp.pop 16.0
      %v329 = vmul.f32 %v316, %v328
      %v330 = vmul.f32 %v327, %v328
      %v331 = vmul.f32 %v329, %v329
      %v332 = vsub.f32 %v330, %v331
      %v333 = vmax.f32 %v332, 0.0
      %v334 = vadd.f32 %v333, 1e-05
      %v335 = vrsqrt.pop %v334
      %v336 = vsub.f32 %v301, %v329
      %v337 = vsub.f32 %v304, %v329
      %v338 = vmul.f32 %v336, %v335
      %v339 = vmul.f32 %v337, %v335
      %v340 = vmax.f32 %v338, 0.0
      %v341 = vmax.f32 %v339, 0.0
      %342 = vst.msk [vmem:[%s170] sm:$0xff] %vm307, %v340
      %343 = vst.msk [vmem:[%s170 + $0x8] sm:$0xff] %vm307, %v341
      %p344 = scmp.lt.s32.totalorder %s14, 1
      %s345 = scalar_select %p344, %s14, 1
      %s346 = smul.addr %s345, 2
      %s347 = smul.addr %s346, 8
      %s348 = scalar_lea.vmem %s3, %s347
      // Predicated region
      $region33: #{generator_forward.9} parent=31 // pred_check
        %p349 = pneg %p100
      $region34: #{generator_forward.9} parent=31 // pred_check_branch
        %351 = sbr.rel (%p349) target = $region36
      $region35: #{generator_forward.9} parent=31 // pred_region
        _
      $region36: #{generator_forward.9} parent=31 // pred_fallthru
        _
    $region32: #{generator_forward.9} parent=5 // pred_fallthru
      _
    %p352 = scmp.le.s32.totalorder 2, %s9
    // Predicated region
    $region37: #{generator_forward.9} parent=5 // pred_check
      %p353 = pneg %p352
    $region38: #{generator_forward.9} parent=5 // pred_check_branch
      %355 = sbr.rel (%p353) target = $region40
    $region39: #{generator_forward.9} parent=5 // pred_region
      %s356 = ssub.s32 %s9, 2
      // Predicated region
      $region41: #{generator_forward.9} parent=39 // pred_check
        %p357 = pneg %p106
      $region42: #{generator_forward.9} parent=39 // pred_check_branch
        %359 = sbr.rel (%p357) target = $region44
      $region43: #{generator_forward.9} parent=39 // pred_region
        %p360 = scmp.lt.s32.totalorder %s15, 1
        %s361 = scalar_select %p360, %s15, 1
        %s362 = smul.addr %s361, 2
        %s363 = smul.addr %s362, 8
        %s364 = scalar_lea.vmem %s3, %s363
      $region44: #{generator_forward.9} parent=39 // pred_fallthru
        _
    $region40: #{generator_forward.9} parent=5 // pred_fallthru
      _
  $region6: #{generator_forward.9} parent=0 // loop_footer
    %s13 = sadd.s32 1, %s9
  $region7: #{generator_forward.9} parent=0 // loop_footer_branch
    %8 = sbr.rel target = $region3
  $region8: #{generator_forward.9} parent=0 // loop_exit
    _

// kernel: generator_forward.10
$region0: #{generator_forward.10}
  #allocation0 [shape = 'u32[]', space=smem, size = 0x4, offset = 0x4, fixed_abs, tag = 'smem constant byte address 0x4 - core index']
  #allocation1 [shape = 'u32[144,128]{1,0:T(1,128)}', space=vmem, size = 0x12000, scoped, tag = 'internal scratch']
  %s0 = inlined_call_operand.vmem [shape: f32[2,16,32], index: 0, kind: input, shape index: {}]
  %s1 = inlined_call_operand.vmem [shape: f32[9,16,16], index: 1, kind: input, shape index: {}]
  %s2 = inlined_call_operand.vmem [shape: bf16[32,288], index: 2, kind: input, shape index: {}]
  %s3 = inlined_call_operand.vmem [shape: f32[1,32], index: 3, kind: input, shape index: {}]
  %s4 = inlined_call_operand.vmem [shape: bf16[32,288], index: 4, kind: input, shape index: {}]
  %s5 = inlined_call_operand.vmem [shape: f32[1,32], index: 5, kind: input, shape index: {}]
  %s6 = inlined_call_operand.vmem [shape: f32[2,16,32], index: 6, kind: output, shape index: {}]
  %s7 = sld [smem:[#allocation0]]
  $region61: #{generator_forward.10} parent=0
    _
  %s9 = ssub.s32 1, %s7
  %s10 = scalar_select 0, %s9, %s7
  loop: start=0, step=1, limit=20
  $region2: #{generator_forward.10} parent=0 // loop_pre_header
    _
  $region3: #{generator_forward.10} parent=0 // loop_header
    %s12 = sphi 0, %s16
    %p13 = scmp.ge.s32.totalorder %s12, 20
    %s19 = sphi 0, %s31
    %s20 = sphi 0, %s27
    %s21 = sphi 0, %s19
    %s22 = sphi 0, %s20
    %s23 = sphi 0, %s21
    %s24 = sphi 0, %s22
    %s34 = sphi 0, %s36
    %s37 = sphi 0, %s34
    %s38 = sphi 0, %s37
    %s54 = sphi 0, %s38
    %s58 = sphi 0, %s58
    %s60 = sphi 0, %s58
    %s61 = sphi 0, %s60
    %s75 = sphi 0, %s61
    %s79 = sphi 0, %s79
    %s81 = sphi 0, %s79
    %s82 = sphi 0, %s81
    %s96 = sphi 0, %s82
    %s100 = sphi 0, %s100
    %s102 = sphi 0, %s100
    %s103 = sphi 0, %s102
    %s117 = sphi 0, %s103
    %s121 = sphi 0, %s121
    %s123 = sphi 0, %s121
    %s124 = sphi 0, %s123
    %s138 = sphi 0, %s124
    %s142 = sphi 0, %s142
    %s144 = sphi 0, %s142
    %s145 = sphi 0, %s144
    %s159 = sphi 0, %s145
    %s165 = sphi 0, %s167
    %s168 = sphi 0, %s165
    %s169 = sphi 0, %s168
    %s185 = sphi 0, %s169
  $region4: #{generator_forward.10} parent=0 // loop_header_branch
    %15 = sbr.rel (%p13) target = $region8
  $region5: #{generator_forward.10} parent=0 // loop_body
    %s17 = ssub.s32 %s12, 1
    %s18 = ssub.s32 %s12, 2
    %s25 = sadd.s32 1, %s20
    %p26 = scmp.ge.s32.totalorder %s25, 9
    %s27 = scalar_select %p26, 0, %s25
    %s28 = sadd.s32 1, %s19
    %s29 = scalar_select %p26, %s28, %s19
    %p30 = scmp.ge.s32.totalorder %s29, 2
    %s31 = scalar_select %p30, 0, %s29
    %s32 = ssub.s32 %s19, %s31
    %p33 = scmp.eq.s32.totalorder %s32, 0
    %s35 = sadd.s32 %s34, 1
    %s36 = scalar_select %p33, %s34, %s35
    %p39 = pneg %p33
    %p40 = scmp.eq.s32.totalorder %s12, 17
    %p41 = por %p39, %p40
    %p42 = scmp.ne.s32.totalorder %s34, %s37
    %p43 = scmp.eq.s32.totalorder %s12, 0
    %p44 = por %p42, %p43
    %p45 = scmp.ne.s32.totalorder %s34, %s37
    %p46 = scmp.eq.s32.totalorder %s17, 17
    %p47 = por %p45, %p46
    %p48 = scmp.ne.s32.totalorder %s37, %s38
    %p49 = scmp.eq.s32.totalorder %s17, 0
    %p50 = por %p48, %p49
    %p51 = scmp.ne.s32.totalorder %s37, %s38
    %p52 = scmp.eq.s32.totalorder %s18, 17
    %p53 = por %p51, %p52
    %p55 = scmp.ne.s32.totalorder %s38, %s54
    %p56 = scmp.eq.s32.totalorder %s18, 0
    %p57 = por %p55, %p56
    %s59 = sadd.s32 %s58, 1
    %p62 = scmp.eq.s32.totalorder %s12, 17
    %p63 = scmp.ne.s32.totalorder %s58, %s60
    %p64 = scmp.eq.s32.totalorder %s12, 0
    %p65 = por %p63, %p64
    %p66 = scmp.ne.s32.totalorder %s58, %s60
    %p67 = scmp.eq.s32.totalorder %s17, 17
    %p68 = por %p66, %p67
    %p69 = scmp.ne.s32.totalorder %s60, %s61
    %p70 = scmp.eq.s32.totalorder %s17, 0
    %p71 = por %p69, %p70
    %p72 = scmp.ne.s32.totalorder %s60, %s61
    %p73 = scmp.eq.s32.totalorder %s18, 17
    %p74 = por %p72, %p73
    %p76 = scmp.ne.s32.totalorder %s61, %s75
    %p77 = scmp.eq.s32.totalorder %s18, 0
    %p78 = por %p76, %p77
    %s80 = sadd.s32 %s79, 1
    %p83 = scmp.eq.s32.totalorder %s12, 17
    %p84 = scmp.ne.s32.totalorder %s79, %s81
    %p85 = scmp.eq.s32.totalorder %s12, 0
    %p86 = por %p84, %p85
    %p87 = scmp.ne.s32.totalorder %s79, %s81
    %p88 = scmp.eq.s32.totalorder %s17, 17
    %p89 = por %p87, %p88
    %p90 = scmp.ne.s32.totalorder %s81, %s82
    %p91 = scmp.eq.s32.totalorder %s17, 0
    %p92 = por %p90, %p91
    %p93 = scmp.ne.s32.totalorder %s81, %s82
    %p94 = scmp.eq.s32.totalorder %s18, 17
    %p95 = por %p93, %p94
    %p97 = scmp.ne.s32.totalorder %s82, %s96
    %p98 = scmp.eq.s32.totalorder %s18, 0
    %p99 = por %p97, %p98
    %s101 = sadd.s32 %s100, 1
    %p104 = scmp.eq.s32.totalorder %s12, 17
    %p105 = scmp.ne.s32.totalorder %s100, %s102
    %p106 = scmp.eq.s32.totalorder %s12, 0
    %p107 = por %p105, %p106
    %p108 = scmp.ne.s32.totalorder %s100, %s102
    %p109 = scmp.eq.s32.totalorder %s17, 17
    %p110 = por %p108, %p109
    %p111 = scmp.ne.s32.totalorder %s102, %s103
    %p112 = scmp.eq.s32.totalorder %s17, 0
    %p113 = por %p111, %p112
    %p114 = scmp.ne.s32.totalorder %s102, %s103
    %p115 = scmp.eq.s32.totalorder %s18, 17
    %p116 = por %p114, %p115
    %p118 = scmp.ne.s32.totalorder %s103, %s117
    %p119 = scmp.eq.s32.totalorder %s18, 0
    %p120 = por %p118, %p119
    %s122 = sadd.s32 %s121, 1
    %p125 = scmp.eq.s32.totalorder %s12, 17
    %p126 = scmp.ne.s32.totalorder %s121, %s123
    %p127 = scmp.eq.s32.totalorder %s12, 0
    %p128 = por %p126, %p127
    %p129 = scmp.ne.s32.totalorder %s121, %s123
    %p130 = scmp.eq.s32.totalorder %s17, 17
    %p131 = por %p129, %p130
    %p132 = scmp.ne.s32.totalorder %s123, %s124
    %p133 = scmp.eq.s32.totalorder %s17, 0
    %p134 = por %p132, %p133
    %p135 = scmp.ne.s32.totalorder %s123, %s124
    %p136 = scmp.eq.s32.totalorder %s18, 17
    %p137 = por %p135, %p136
    %p139 = scmp.ne.s32.totalorder %s124, %s138
    %p140 = scmp.eq.s32.totalorder %s18, 0
    %p141 = por %p139, %p140
    %s143 = sadd.s32 %s142, 1
    %p146 = scmp.eq.s32.totalorder %s12, 17
    %p147 = scmp.ne.s32.totalorder %s142, %s144
    %p148 = scmp.eq.s32.totalorder %s12, 0
    %p149 = por %p147, %p148
    %p150 = scmp.ne.s32.totalorder %s142, %s144
    %p151 = scmp.eq.s32.totalorder %s17, 17
    %p152 = por %p150, %p151
    %p153 = scmp.ne.s32.totalorder %s144, %s145
    %p154 = scmp.eq.s32.totalorder %s17, 0
    %p155 = por %p153, %p154
    %p156 = scmp.ne.s32.totalorder %s144, %s145
    %p157 = scmp.eq.s32.totalorder %s18, 17
    %p158 = por %p156, %p157
    %p160 = scmp.ne.s32.totalorder %s145, %s159
    %p161 = scmp.eq.s32.totalorder %s18, 0
    %p162 = por %p160, %p161
    %s163 = ssub.s32 %s19, %s31
    %p164 = scmp.eq.s32.totalorder %s163, 0
    %s166 = sadd.s32 %s165, 1
    %s167 = scalar_select %p164, %s165, %s166
    %p170 = pneg %p164
    %p171 = scmp.eq.s32.totalorder %s12, 17
    %p172 = por %p170, %p171
    %p173 = scmp.ne.s32.totalorder %s165, %s168
    %p174 = scmp.eq.s32.totalorder %s12, 0
    %p175 = por %p173, %p174
    %p176 = scmp.ne.s32.totalorder %s165, %s168
    %p177 = scmp.eq.s32.totalorder %s17, 17
    %p178 = por %p176, %p177
    %p179 = scmp.ne.s32.totalorder %s168, %s169
    %p180 = scmp.eq.s32.totalorder %s17, 0
    %p181 = por %p179, %p180
    %p182 = scmp.ne.s32.totalorder %s168, %s169
    %p183 = scmp.eq.s32.totalorder %s18, 17
    %p184 = por %p182, %p183
    %p186 = scmp.ne.s32.totalorder %s169, %s185
    %p187 = scmp.eq.s32.totalorder %s18, 0
    %p188 = por %p186, %p187
    %p189 = scmp.le.s32.totalorder 1, %s12
    %p190 = scmp.lt.s32.totalorder %s12, 19
    %p191 = pnand %p189, %p190
    %p192 = pneg %p191
    // Predicated region
    $region9: #{generator_forward.10} parent=5 // pred_check
      _
    $region10: #{generator_forward.10} parent=5 // pred_check_branch
      %194 = sbr.rel (%p191) target = $region12
    $region11: #{generator_forward.10} parent=5 // pred_region
      %s195 = ssub.s32 %s12, 1
      // Predicated region
      $region13: #{generator_forward.10} parent=11 // pred_check
        %p196 = pneg %p71
      $region14: #{generator_forward.10} parent=11 // pred_check_branch
        %198 = sbr.rel (%p196) target = $region16
      $region15: #{generator_forward.10} parent=11 // pred_region
        _
      $region16: #{generator_forward.10} parent=11 // pred_fallthru
        _
      // Predicated region
      $region17: #{generator_forward.10} parent=11 // pred_check
        %p199 = pneg %p92
      $region18: #{generator_forward.10} parent=11 // pred_check_branch
        %201 = sbr.rel (%p199) target = $region20
      $region19: #{generator_forward.10} parent=11 // pred_region
        _
      $region20: #{generator_forward.10} parent=11 // pred_fallthru
        _
      // Predicated region
      $region21: #{generator_forward.10} parent=11 // pred_check
        %p202 = pneg %p113
      $region22: #{generator_forward.10} parent=11 // pred_check_branch
        %204 = sbr.rel (%p202) target = $region24
      $region23: #{generator_forward.10} parent=11 // pred_region
        _
      $region24: #{generator_forward.10} parent=11 // pred_fallthru
        _
      // Predicated region
      $region25: #{generator_forward.10} parent=11 // pred_check
        %p205 = pneg %p134
      $region26: #{generator_forward.10} parent=11 // pred_check_branch
        %207 = sbr.rel (%p205) target = $region28
      $region27: #{generator_forward.10} parent=11 // pred_region
        _
      $region28: #{generator_forward.10} parent=11 // pred_fallthru
        _
      // Predicated region
      $region29: #{generator_forward.10} parent=11 // pred_check
        %p208 = pneg %p155
      $region30: #{generator_forward.10} parent=11 // pred_check_branch
        %210 = sbr.rel (%p208) target = $region32
      $region31: #{generator_forward.10} parent=11 // pred_region
        _
      $region32: #{generator_forward.10} parent=11 // pred_fallthru
        _
    $region12: #{generator_forward.10} parent=5 // pred_fallthru
      _
    %p211 = scmp.lt.s32.totalorder %s12, 18
    // Predicated region
    $region33: #{generator_forward.10} parent=5 // pred_check
      %p212 = pneg %p211
    $region34: #{generator_forward.10} parent=5 // pred_check_branch
      %214 = sbr.rel (%p212) target = $region36
    $region35: #{generator_forward.10} parent=5 // pred_region
      // Predicated region
      $region37: #{generator_forward.10} parent=35 // pred_check
        %p215 = pneg %p44
      $region38: #{generator_forward.10} parent=35 // pred_check_branch
        %217 = sbr.rel (%p215) target = $region40
      $region39: #{generator_forward.10} parent=35 // pred_region
        %p218 = scmp.lt.s32.totalorder %s19, 1
        %s219 = scalar_select %p218, %s19, 1
        %s220 = smul.addr %s219, 2
        %s221 = smul.addr %s220, 8
        %s222 = scalar_lea.vmem %s0, %s221
      $region40: #{generator_forward.10} parent=35 // pred_fallthru
        _
    $region36: #{generator_forward.10} parent=5 // pred_fallthru
      _
    %p223 = scmp.le.s32.totalorder 1, %s12
    %p224 = scmp.lt.s32.totalorder %s12, 19
    %p225 = pnand %p223, %p224
    %p226 = pneg %p225
    // Predicated region
    $region41: #{generator_forward.10} parent=5 // pred_check
      _
    $region42: #{generator_forward.10} parent=5 // pred_check_branch
      %228 = sbr.rel (%p225) target = $region44
    $region43: #{generator_forward.10} parent=5 // pred_region
      %s229 = ssub.s32 %s12, 1
      %p230 = scmp.lt.s32.totalorder %s21, 1
      %s231 = scalar_select %p230, %s21, 1
      %s232 = smul.addr %s231, 2
      %s233 = smul.addr %s232, 8
      %s234 = scalar_lea.vmem %s0, %s233
      %p235 = pneg %p50
      %p236 = pneg %p47
      %p237 = pneg %p71
      %p238 = pneg %p68
      %p239 = pneg %p92
      %p240 = pneg %p89
      %p241 = pneg %p113
      %p242 = pneg %p110
      %p243 = pneg %p134
      %p244 = pneg %p131
      %p245 = pneg %p155
      %p246 = pneg %p152
      %p247 = pneg %p181
      %p248 = pneg %p178
      %p249 = scmp.lt.s32.totalorder %s21, 1
      %s250 = scalar_select %p249, %s21, 1
      %s251 = smul.addr %s250, 2
      %s252 = smul.addr %s251, 8
      %s253 = scalar_lea.vmem %s6, %s252
      %p254 = scmp.lt.s32.totalorder %s21, 1
      %s255 = scalar_select %p254, %s21, 1
      %s256 = smul.addr %s255, 2
      %s257 = smul.addr %s256, 8
      %s258 = scalar_lea.vmem %s0, %s257
      %p259 = scmp.lt.s32.totalorder %s21, 1
      %s260 = scalar_select %p259, %s21, 1
      %s261 = smul.addr %s260, 2
      %s262 = smul.addr %s261, 8
      %s263 = scalar_lea.vmem %s6, %s262
      %p265 = scmp.eq.s32.totalorder %s22, 0
      // Predicated region
      $region45: #{generator_forward.10} parent=43 // pred_check
        %p266 = pneg %p265
      $region46: #{generator_forward.10} parent=43 // pred_check_branch
        %268 = sbr.rel (%p266) target = $region48
      $region47: #{generator_forward.10} parent=43 // pred_region
        %v269 = vld [vmem:[%s258] sm:$0xff]
        %v270 = vld [vmem:[%s258 + $0x8] sm:$0xff]
        %vm271 = vcmask 261120
        %272 = vst.msk [vmem:[%s263] sm:$0xff] %vm271, %v269
        %273 = vst.msk [vmem:[%s263 + $0x8] sm:$0xff] %vm271, %v270
      $region48: #{generator_forward.10} parent=43 // pred_fallthru
        _
      %v274 = vld [vmem:[%s263] sm:$0xff]
      %v275 = vld [vmem:[%s263 + $0x8] sm:$0xff]
      %v276 = vpack.c.bf16 %v275, %v274
      %v277 = vld [vmem:[%s2] sm:$0xff]
      %v278 = vld [vmem:[%s2 + $0x8] sm:$0xf]
      %v279 = vld [vmem:[%s2 + $0xc] sm:$0xff]
      %v280 = vld [vmem:[%s2 + $0x14] sm:$0xf]
      %v281 = vld [vmem:[%s2 + $0x18] sm:$0xff]
      %v282 = vld [vmem:[%s2 + $0x20] sm:$0xf]
      %v283 = vld [vmem:[%s2 + $0x24] sm:$0xff]
      %v284 = vld [vmem:[%s2 + $0x2c] sm:$0xf]
      %v293 = vunpack.c.l.b16 %v277
      %v294 = vunpack.c.h.b16 %v277
      %v295 = vunpack.c.l.b16 %v278
      %v296 = vunpack.c.l.b16 %v279
      %v297 = vunpack.c.h.b16 %v279
      %v298 = vunpack.c.l.b16 %v280
      %v299 = vunpack.c.l.b16 %v281
      %v300 = vunpack.c.h.b16 %v281
      %v301 = vunpack.c.l.b16 %v282
      %v302 = vunpack.c.l.b16 %v283
      %v303 = vunpack.c.h.b16 %v283
      %v304 = vunpack.c.l.b16 %v284
      %v305 = vpack.c.b16 %v296, %v293
      %v306 = vpack.c.b16 %v297, %v294
      %v307 = vpack.c.b16 %v298, %v295
      %v308 = vpack.c.b16 %v302, %v299
      %v309 = vpack.c.b16 %v303, %v300
      %v310 = vpack.c.b16 %v304, %v301
      %vm317 = vcmask 261120
      %v319 = vsel %vm317, %v276, 0
      %321 = vmatprep.subr.bf16.mxu0 0
      %322 = vmatpush1.bf16.msra.mxu0 0
      %323 = vmatprep.subr.bf16.mxu0 0
      %324 = vmatpush1.bf16.msra.mxu0 0
      %325 = vmatprep.subr.bf16.mxu0 0
      %326 = vmatpush1.bf16.msra.mxu0 0
      %327 = vmatprep.subr.bf16.mxu0 0
      %328 = vmatpush1.bf16.msra.mxu0 0
      %329 = vmatprep.subr.bf16.mxu0 0
      %330 = vmatpush1.bf16.msra.mxu0 0
      %331 = vmatprep.subr.bf16.mxu0 0
      %332 = vmatpush1.bf16.msra.mxu0 0
      %333 = vmatprep.subr.bf16.mxu0 %v309
      %334 = vmatpush1.bf16.msra.mxu0 %v308
      %335 = vmatprep.subr.bf16.mxu0 %v306
      %336 = vmatpush1.bf16.msra.mxu0 %v305
      %337 = vmatprep.subr.bf16.mxu0 0
      %338 = vmatpush2.bf16.msra.mxu0 0
      %339 = vmatprep.subr.bf16.mxu0 0
      %340 = vmatpush2.bf16.msra.mxu0 0
      %341 = vmatprep.subr.bf16.mxu0 0
      %342 = vmatpush2.bf16.msra.mxu0 0
      %343 = vmatprep.subr.bf16.mxu0 0
      %344 = vmatpush2.bf16.msra.mxu0 0
      %345 = vmatprep.subr.bf16.mxu0 0
      %346 = vmatpush2.bf16.msra.mxu0 0
      %347 = vmatprep.subr.bf16.mxu0 0
      %348 = vmatpush2.bf16.msra.mxu0 0
      %349 = vmatprep.subr.bf16.mxu0 0
      %350 = vmatpush2.bf16.msra.mxu0 0
      %351 = vmatprep.subr.bf16.mxu0 0
      %352 = vmatpush2.bf16.msra.mxu0 0
      %353 = vmatprep.mubr.bf16.mxu0 0
      %354 = vmatmul.mubr.bf16.gmra.mxu0 %v319
      %v355 = vpop.f32.mrf.mxu0
      %v356 = vadd.f32 0.0, %v355
      %v357 = vpop.f32.mrf.mxu0
      %v358 = vadd.f32 0.0, %v357
      %v359 = vpop.f32.mrf.mxu0
      %v360 = vadd.f32 0.0, %v359
      %v361 = vpop.f32.mrf.mxu0
      %v362 = vadd.f32 0.0, %v361
      %363 = vdwg.mxu0
      %364 = vmatprep.subr.bf16.mxu0 0
      %365 = vmatpush1.bf16.msra.mxu0 0
      %366 = vmatprep.subr.bf16.mxu0 0
      %367 = vmatpush1.bf16.msra.mxu0 0
      %368 = vmatprep.subr.bf16.mxu0 0
      %369 = vmatpush1.bf16.msra.mxu0 0
      %370 = vmatprep.subr.bf16.mxu0 0
      %371 = vmatpush1.bf16.msra.mxu0 0
      %372 = vmatprep.subr.bf16.mxu0 0
      %373 = vmatpush1.bf16.msra.mxu0 0
      %374 = vmatprep.subr.bf16.mxu0 0
      %375 = vmatpush1.bf16.msra.mxu0 0
      %376 = vmatprep.subr.bf16.mxu0 0
      %377 = vmatpush1.bf16.msra.mxu0 %v310
      %378 = vmatprep.subr.bf16.mxu0 0
      %379 = vmatpush1.bf16.msra.mxu0 %v307
      %380 = vmatprep.subr.bf16.mxu0 0
      %381 = vmatpush2.bf16.msra.mxu0 0
      %382 = vmatprep.subr.bf16.mxu0 0
      %383 = vmatpush2.bf16.msra.mxu0 0
      %384 = vmatprep.subr.bf16.mxu0 0
      %385 = vmatpush2.bf16.msra.mxu0 0
      %386 = vmatprep.subr.bf16.mxu0 0
      %387 = vmatpush2.bf16.msra.mxu0 0
      %388 = vmatprep.subr.bf16.mxu0 0
      %389 = vmatpush2.bf16.msra.mxu0 0
      %390 = vmatprep.subr.bf16.mxu0 0
      %391 = vmatpush2.bf16.msra.mxu0 0
      %392 = vmatprep.subr.bf16.mxu0 0
      %393 = vmatpush2.bf16.msra.mxu0 0
      %394 = vmatprep.subr.bf16.mxu0 0
      %395 = vmatpush2.bf16.msra.mxu0 0
      %396 = vmatprep.mubr.bf16.mxu0 0
      %397 = vmatmul.mubr.bf16.gmra.mxu0 %v319
      %v398 = vpop.f32.mrf.mxu0
      %v399 = vadd.f32 0.0, %v398
      %v400 = vpop.f32.mrf.mxu0
      %v401 = vpop.f32.mrf.mxu0
      %v402 = vadd.f32 0.0, %v401
      %v403 = vpop.f32.mrf.mxu0
      %404 = vdwg.mxu0
      %v405 = vld [vmem:[%s1] sm:$0xff]
      %v406 = vld [vmem:[%s1 + $0x8] sm:$0xff]
      %s407 = scalar_lea.vmem %s1, 16
      %v408 = vld [vmem:[%s407] sm:$0xff]
      %v409 = vld [vmem:[%s407 + $0x8] sm:$0xff]
      %412 = vrot.lane.b32.xlu0 %v356, 96
      %v413 = vpop.permute.xlu0 %412
      %414 = vrot.lane.b32.xlu0 %v360, 96
      %v415 = vpop.permute.xlu0 %414
      %vm418 = vcmask 130048
      %v420 = vsel %vm418, %v408, 0
      %v423 = vsel %vm418, %v409, 0
      %425 = vmatprep.subr.mxu0 0.0
      %426 = vmatpush1.msra.mxu0 0.0
      %427 = vmatprep.subr.mxu0 0.0
      %428 = vmatpush1.msra.mxu0 0.0
      %429 = vmatprep.subr.mxu0 0.0
      %430 = vmatpush1.msra.mxu0 0.0
      %431 = vmatprep.subr.mxu0 0.0
      %432 = vmatpush1.msra.mxu0 0.0
      %433 = vmatprep.subr.mxu0 0.0
      %434 = vmatpush1.msra.mxu0 0.0
      %435 = vmatprep.subr.mxu0 0.0
      %436 = vmatpush1.msra.mxu0 0.0
      %437 = vmatprep.subr.mxu0 0.0
      %438 = vmatpush1.msra.mxu0 0.0
      %439 = vmatprep.subr.mxu0 0.0
      %440 = vmatpush1.msra.mxu0 0.0
      %441 = vmatprep.subr.mxu0 0.0
      %442 = vmatpush1.msra.mxu0 0.0
      %443 = vmatprep.subr.mxu0 0.0
      %444 = vmatpush1.msra.mxu0 0.0
      %445 = vmatprep.subr.mxu0 0.0
      %446 = vmatpush1.msra.mxu0 0.0
      %447 = vmatprep.subr.mxu0 0.0
      %448 = vmatpush1.msra.mxu0 0.0
      %449 = vmatprep.subr.mxu0 0.0
      %450 = vmatpush1.msra.mxu0 0.0
      %451 = vmatprep.subr.mxu0 0.0
      %452 = vmatpush1.msra.mxu0 0.0
      %453 = vmatprep.subr.mxu0 0.0
      %454 = vmatpush1.msra.mxu0 %v415
      %455 = vmatprep.subr.mxu0 0.0
      %456 = vmatpush1.msra.mxu0 %v413
      %457 = vmatprep.subr.mxu0 0.0
      %458 = vmatpush2.msra.mxu0 0.0
      %459 = vmatprep.subr.mxu0 0.0
      %460 = vmatpush2.msra.mxu0 0.0
      %461 = vmatprep.subr.mxu0 0.0
      %462 = vmatpush2.msra.mxu0 0.0
      %463 = vmatprep.subr.mxu0 0.0
      %464 = vmatpush2.msra.mxu0 0.0
      %465 = vmatprep.subr.mxu0 0.0
      %466 = vmatpush2.msra.mxu0 0.0
      %467 = vmatprep.subr.mxu0 0.0
      %468 = vmatpush2.msra.mxu0 0.0
      %469 = vmatprep.subr.mxu0 0.0
      %470 = vmatpush2.msra.mxu0 0.0
      %471 = vmatprep.subr.mxu0 0.0
      %472 = vmatpush2.msra.mxu0 0.0
      %473 = vmatprep.subr.mxu0 0.0
      %474 = vmatpush2.msra.mxu0 0.0
      %475 = vmatprep.subr.mxu0 0.0
      %476 = vmatpush2.msra.mxu0 0.0
      %477 = vmatprep.subr.mxu0 0.0
      %478 = vmatpush2.msra.mxu0 0.0
      %479 = vmatprep.subr.mxu0 0.0
      %480 = vmatpush2.msra.mxu0 0.0
      %481 = vmatprep.subr.mxu0 0.0
      %482 = vmatpush2.msra.mxu0 0.0
      %483 = vmatprep.subr.mxu0 0.0
      %484 = vmatpush2.msra.mxu0 0.0
      %485 = vmatprep.subr.mxu0 0.0
      %486 = vmatpush2.msra.mxu0 0.0
      %487 = vmatprep.subr.mxu0 0.0
      %488 = vmatpush2.msra.mxu0 0.0
      %489 = vmatprep.mubr.f32.mxu0 0.0
      %490 = vmatmul.mubr.f32.gmra.mxu0 %v420
      %v491 = vpop.f32.mrf.mxu0
      %v492 = vadd.f32 0.0, %v491
      %v493 = vpop.f32.mrf.mxu0
      %494 = vmatprep.mubr.f32.mxu0 0.0
      %495 = vmatmul.mubr.f32.gmra.mxu0 %v423
      %v496 = vpop.f32.mrf.mxu0
      %v497 = vadd.f32 0.0, %v496
      %v498 = vpop.f32.mrf.mxu0
      %499 = vdwg.mxu0
      %v501 = vsel %vm418, %v405, 0
      %v504 = vsel %vm418, %v406, 0
      %506 = vmatprep.subr.mxu0 0.0
      %507 = vmatpush1.msra.mxu0 0.0
      %508 = vmatprep.subr.mxu0 0.0
      %509 = vmatpush1.msra.mxu0 0.0
      %510 = vmatprep.subr.mxu0 0.0
      %511 = vmatpush1.msra.mxu0 0.0
      %512 = vmatprep.subr.mxu0 0.0
      %513 = vmatpush1.msra.mxu0 0.0
      %514 = vmatprep.subr.mxu0 0.0
      %515 = vmatpush1.msra.mxu0 0.0
      %516 = vmatprep.subr.mxu0 0.0
      %517 = vmatpush1.msra.mxu0 0.0
      %518 = vmatprep.subr.mxu0 0.0
      %519 = vmatpush1.msra.mxu0 0.0
      %520 = vmatprep.subr.mxu0 0.0
      %521 = vmatpush1.msra.mxu0 0.0
      %522 = vmatprep.subr.mxu0 0.0
      %523 = vmatpush1.msra.mxu0 0.0
      %524 = vmatprep.subr.mxu0 0.0
      %525 = vmatpush1.msra.mxu0 0.0
      %526 = vmatprep.subr.mxu0 0.0
      %527 = vmatpush1.msra.mxu0 0.0
      %528 = vmatprep.subr.mxu0 0.0
      %529 = vmatpush1.msra.mxu0 0.0
      %530 = vmatprep.subr.mxu0 0.0
      %531 = vmatpush1.msra.mxu0 0.0
      %532 = vmatprep.subr.mxu0 0.0
      %533 = vmatpush1.msra.mxu0 0.0
      %534 = vmatprep.subr.mxu0 0.0
      %535 = vmatpush1.msra.mxu0 %v360
      %536 = vmatprep.subr.mxu0 0.0
      %537 = vmatpush1.msra.mxu0 %v356
      %538 = vmatprep.subr.mxu0 0.0
      %539 = vmatpush2.msra.mxu0 0.0
      %540 = vmatprep.subr.mxu0 0.0
      %541 = vmatpush2.msra.mxu0 0.0
      %542 = vmatprep.subr.mxu0 0.0
      %543 = vmatpush2.msra.mxu0 0.0
      %544 = vmatprep.subr.mxu0 0.0
      %545 = vmatpush2.msra.mxu0 0.0
      %546 = vmatprep.subr.mxu0 0.0
      %547 = vmatpush2.msra.mxu0 0.0
      %548 = vmatprep.subr.mxu0 0.0
      %549 = vmatpush2.msra.mxu0 0.0
      %550 = vmatprep.subr.mxu0 0.0
      %551 = vmatpush2.msra.mxu0 0.0
      %552 = vmatprep.subr.mxu0 0.0
      %553 = vmatpush2.msra.mxu0 0.0
      %554 = vmatprep.subr.mxu0 0.0
      %555 = vmatpush2.msra.mxu0 0.0
      %556 = vmatprep.subr.mxu0 0.0
      %557 = vmatpush2.msra.mxu0 0.0
      %558 = vmatprep.subr.mxu0 0.0
      %559 = vmatpush2.msra.mxu0 0.0
      %560 = vmatprep.subr.mxu0 0.0
      %561 = vmatpush2.msra.mxu0 0.0
      %562 = vmatprep.subr.mxu0 0.0
      %563 = vmatpush2.msra.mxu0 0.0
      %564 = vmatprep.subr.mxu0 0.0
      %565 = vmatpush2.msra.mxu0 0.0
      %566 = vmatprep.subr.mxu0 0.0
      %567 = vmatpush2.msra.mxu0 0.0
      %568 = vmatprep.subr.mxu0 0.0
      %569 = vmatpush2.msra.mxu0 0.0
      %570 = vmatprep.mubr.f32.mxu0 0.0
      %571 = vmatmul.mubr.f32.gmra.mxu0 %v501
      %v572 = vpop.f32.mrf.mxu0
      %v573 = vadd.f32 %v492, %v572
      %v574 = vpop.f32.mrf.mxu0
      %575 = vmatprep.mubr.f32.mxu0 0.0
      %576 = vmatmul.mubr.f32.gmra.mxu0 %v504
      %v577 = vpop.f32.mrf.mxu0
      %v578 = vadd.f32 %v497, %v577
      %v579 = vpop.f32.mrf.mxu0
      %580 = vdwg.mxu0
      %s581 = scalar_lea.vmem %s1, 32
      %v582 = vld [vmem:[%s581] sm:$0xff]
      %v583 = vld [vmem:[%s581 + $0x8] sm:$0xff]
      %584 = vrot.lane.b32.xlu0 %v356, 64
      %v585 = vpop.permute.xlu0 %584
      %586 = vrot.lane.b32.xlu0 %v360, 64
      %v587 = vpop.permute.xlu0 %586
      %v591 = vsel %vm418, %v582, 0
      %v594 = vsel %vm418, %v583, 0
      %596 = vmatprep.subr.mxu0 0.0
      %597 = vmatpush1.msra.mxu0 0.0
      %598 = vmatprep.subr.mxu0 0.0
      %599 = vmatpush1.msra.mxu0 0.0
      %600 = vmatprep.subr.mxu0 0.0
      %601 = vmatpush1.msra.mxu0 0.0
      %602 = vmatprep.subr.mxu0 0.0
      %603 = vmatpush1.msra.mxu0 0.0
      %604 = vmatprep.subr.mxu0 0.0
      %605 = vmatpush1.msra.mxu0 0.0
      %606 = vmatprep.subr.mxu0 0.0
      %607 = vmatpush1.msra.mxu0 0.0
      %608 = vmatprep.subr.mxu0 0.0
      %609 = vmatpush1.msra.mxu0 0.0
      %610 = vmatprep.subr.mxu0 0.0
      %611 = vmatpush1.msra.mxu0 0.0
      %612 = vmatprep.subr.mxu0 0.0
      %613 = vmatpush1.msra.mxu0 0.0
      %614 = vmatprep.subr.mxu0 0.0
      %615 = vmatpush1.msra.mxu0 0.0
      %616 = vmatprep.subr.mxu0 0.0
      %617 = vmatpush1.msra.mxu0 0.0
      %618 = vmatprep.subr.mxu0 0.0
      %619 = vmatpush1.msra.mxu0 0.0
      %620 = vmatprep.subr.mxu0 0.0
      %621 = vmatpush1.msra.mxu0 0.0
      %622 = vmatprep.subr.mxu0 0.0
      %623 = vmatpush1.msra.mxu0 0.0
      %624 = vmatprep.subr.mxu0 0.0
      %625 = vmatpush1.msra.mxu0 %v587
      %626 = vmatprep.subr.mxu0 0.0
      %627 = vmatpush1.msra.mxu0 %v585
      %628 = vmatprep.subr.mxu0 0.0
      %629 = vmatpush2.msra.mxu0 0.0
      %630 = vmatprep.subr.mxu0 0.0
      %631 = vmatpush2.msra.mxu0 0.0
      %632 = vmatprep.subr.mxu0 0.0
      %633 = vmatpush2.msra.mxu0 0.0
      %634 = vmatprep.subr.mxu0 0.0
      %635 = vmatpush2.msra.mxu0 0.0
      %636 = vmatprep.subr.mxu0 0.0
      %637 = vmatpush2.msra.mxu0 0.0
      %638 = vmatprep.subr.mxu0 0.0
      %639 = vmatpush2.msra.mxu0 0.0
      %640 = vmatprep.subr.mxu0 0.0
      %641 = vmatpush2.msra.mxu0 0.0
      %642 = vmatprep.subr.mxu0 0.0
      %643 = vmatpush2.msra.mxu0 0.0
      %644 = vmatprep.subr.mxu0 0.0
      %645 = vmatpush2.msra.mxu0 0.0
      %646 = vmatprep.subr.mxu0 0.0
      %647 = vmatpush2.msra.mxu0 0.0
      %648 = vmatprep.subr.mxu0 0.0
      %649 = vmatpush2.msra.mxu0 0.0
      %650 = vmatprep.subr.mxu0 0.0
      %651 = vmatpush2.msra.mxu0 0.0
      %652 = vmatprep.subr.mxu0 0.0
      %653 = vmatpush2.msra.mxu0 0.0
      %654 = vmatprep.subr.mxu0 0.0
      %655 = vmatpush2.msra.mxu0 0.0
      %656 = vmatprep.subr.mxu0 0.0
      %657 = vmatpush2.msra.mxu0 0.0
      %658 = vmatprep.subr.mxu0 0.0
      %659 = vmatpush2.msra.mxu0 0.0
      %660 = vmatprep.mubr.f32.mxu0 0.0
      %661 = vmatmul.mubr.f32.gmra.mxu0 %v591
      %v662 = vpop.f32.mrf.mxu0
      %v663 = vadd.f32 0.0, %v662
      %v664 = vpop.f32.mrf.mxu0
      %665 = vmatprep.mubr.f32.mxu0 0.0
      %666 = vmatmul.mubr.f32.gmra.mxu0 %v594
      %v667 = vpop.f32.mrf.mxu0
      %v668 = vadd.f32 0.0, %v667
      %v669 = vpop.f32.mrf.mxu0
      %670 = vdwg.mxu0
      %v671 = vadd.f32 %v573, %v663
      %v672 = vadd.f32 %v578, %v668
      %s673 = scalar_lea.vmem %s1, 48
      %v674 = vld [vmem:[%s673] sm:$0xff]
      %v675 = vld [vmem:[%s673 + $0x8] sm:$0xff]
      %676 = vrot.lane.b32.xlu0 %v356, 32
      %v677 = vpop.permute.xlu0 %676
      %678 = vrot.lane.b32.xlu0 %v360, 32
      %v679 = vpop.permute.xlu0 %678
      %v683 = vsel %vm418, %v674, 0
      %v686 = vsel %vm418, %v675, 0
      %688 = vmatprep.subr.mxu0 0.0
      %689 = vmatpush1.msra.mxu0 0.0
      %690 = vmatprep.subr.mxu0 0.0
      %691 = vmatpush1.msra.mxu0 0.0
      %692 = vmatprep.subr.mxu0 0.0
      %693 = vmatpush1.msra.mxu0 0.0
      %694 = vmatprep.subr.mxu0 0.0
      %695 = vmatpush1.msra.mxu0 0.0
      %696 = vmatprep.subr.mxu0 0.0
      %697 = vmatpush1.msra.mxu0 0.0
      %698 = vmatprep.subr.mxu0 0.0
      %699 = vmatpush1.msra.mxu0 0.0
      %700 = vmatprep.subr.mxu0 0.0
      %701 = vmatpush1.msra.mxu0 0.0
      %702 = vmatprep.subr.mxu0 0.0
      %703 = vmatpush1.msra.mxu0 0.0
      %704 = vmatprep.subr.mxu0 0.0
      %705 = vmatpush1.msra.mxu0 0.0
      %706 = vmatprep.subr.mxu0 0.0
      %707 = vmatpush1.msra.mxu0 0.0
      %708 = vmatprep.subr.mxu0 0.0
      %709 = vmatpush1.msra.mxu0 0.0
      %710 = vmatprep.subr.mxu0 0.0
      %711 = vmatpush1.msra.mxu0 0.0
      %712 = vmatprep.subr.mxu0 0.0
      %713 = vmatpush1.msra.mxu0 0.0
      %714 = vmatprep.subr.mxu0 0.0
      %715 = vmatpush1.msra.mxu0 0.0
      %716 = vmatprep.subr.mxu0 0.0
      %717 = vmatpush1.msra.mxu0 %v679
      %718 = vmatprep.subr.mxu0 0.0
      %719 = vmatpush1.msra.mxu0 %v677
      %720 = vmatprep.subr.mxu0 0.0
      %721 = vmatpush2.msra.mxu0 0.0
      %722 = vmatprep.subr.mxu0 0.0
      %723 = vmatpush2.msra.mxu0 0.0
      %724 = vmatprep.subr.mxu0 0.0
      %725 = vmatpush2.msra.mxu0 0.0
      %726 = vmatprep.subr.mxu0 0.0
      %727 = vmatpush2.msra.mxu0 0.0
      %728 = vmatprep.subr.mxu0 0.0
      %729 = vmatpush2.msra.mxu0 0.0
      %730 = vmatprep.subr.mxu0 0.0
      %731 = vmatpush2.msra.mxu0 0.0
      %732 = vmatprep.subr.mxu0 0.0
      %733 = vmatpush2.msra.mxu0 0.0
      %734 = vmatprep.subr.mxu0 0.0
      %735 = vmatpush2.msra.mxu0 0.0
      %736 = vmatprep.subr.mxu0 0.0
      %737 = vmatpush2.msra.mxu0 0.0
      %738 = vmatprep.subr.mxu0 0.0
      %739 = vmatpush2.msra.mxu0 0.0
      %740 = vmatprep.subr.mxu0 0.0
      %741 = vmatpush2.msra.mxu0 0.0
      %742 = vmatprep.subr.mxu0 0.0
      %743 = vmatpush2.msra.mxu0 0.0
      %744 = vmatprep.subr.mxu0 0.0
      %745 = vmatpush2.msra.mxu0 0.0
      %746 = vmatprep.subr.mxu0 0.0
      %747 = vmatpush2.msra.mxu0 0.0
      %748 = vmatprep.subr.mxu0 0.0
      %749 = vmatpush2.msra.mxu0 0.0
      %750 = vmatprep.subr.mxu0 0.0
      %751 = vmatpush2.msra.mxu0 0.0
      %752 = vmatprep.mubr.f32.mxu0 0.0
      %753 = vmatmul.mubr.f32.gmra.mxu0 %v683
      %v754 = vpop.f32.mrf.mxu0
      %v755 = vadd.f32 0.0, %v754
      %v756 = vpop.f32.mrf.mxu0
      %757 = vmatprep.mubr.f32.mxu0 0.0
      %758 = vmatmul.mubr.f32.gmra.mxu0 %v686
      %v759 = vpop.f32.mrf.mxu0
      %v760 = vadd.f32 0.0, %v759
      %v761 = vpop.f32.mrf.mxu0
      %762 = vdwg.mxu0
      %v763 = vadd.f32 %v671, %v755
      %v764 = vadd.f32 %v672, %v760
      %s765 = scalar_lea.vmem %s1, 64
      %v766 = vld [vmem:[%s765] sm:$0xff]
      %v767 = vld [vmem:[%s765 + $0x8] sm:$0xff]
      %v769 = vsel %vm418, %v766, 0
      %v772 = vsel %vm418, %v767, 0
      %774 = vmatprep.subr.mxu0 0.0
      %775 = vmatpush1.msra.mxu0 0.0
      %776 = vmatprep.subr.mxu0 0.0
      %777 = vmatpush1.msra.mxu0 0.0
      %778 = vmatprep.subr.mxu0 0.0
      %779 = vmatpush1.msra.mxu0 0.0
      %780 = vmatprep.subr.mxu0 0.0
      %781 = vmatpush1.msra.mxu0 0.0
      %782 = vmatprep.subr.mxu0 0.0
      %783 = vmatpush1.msra.mxu0 0.0
      %784 = vmatprep.subr.mxu0 0.0
      %785 = vmatpush1.msra.mxu0 0.0
      %786 = vmatprep.subr.mxu0 0.0
      %787 = vmatpush1.msra.mxu0 0.0
      %788 = vmatprep.subr.mxu0 0.0
      %789 = vmatpush1.msra.mxu0 0.0
      %790 = vmatprep.subr.mxu0 0.0
      %791 = vmatpush1.msra.mxu0 0.0
      %792 = vmatprep.subr.mxu0 0.0
      %793 = vmatpush1.msra.mxu0 0.0
      %794 = vmatprep.subr.mxu0 0.0
      %795 = vmatpush1.msra.mxu0 0.0
      %796 = vmatprep.subr.mxu0 0.0
      %797 = vmatpush1.msra.mxu0 0.0
      %798 = vmatprep.subr.mxu0 0.0
      %799 = vmatpush1.msra.mxu0 0.0
      %800 = vmatprep.subr.mxu0 0.0
      %801 = vmatpush1.msra.mxu0 0.0
      %802 = vmatprep.subr.mxu0 0.0
      %803 = vmatpush1.msra.mxu0 %v362
      %804 = vmatprep.subr.mxu0 0.0
      %805 = vmatpush1.msra.mxu0 %v358
      %806 = vmatprep.subr.mxu0 0.0
      %807 = vmatpush2.msra.mxu0 0.0
      %808 = vmatprep.subr.mxu0 0.0
      %809 = vmatpush2.msra.mxu0 0.0
      %810 = vmatprep.subr.mxu0 0.0
      %811 = vmatpush2.msra.mxu0 0.0
      %812 = vmatprep.subr.mxu0 0.0
      %813 = vmatpush2.msra.mxu0 0.0
      %814 = vmatprep.subr.mxu0 0.0
      %815 = vmatpush2.msra.mxu0 0.0
      %816 = vmatprep.subr.mxu0 0.0
      %817 = vmatpush2.msra.mxu0 0.0
      %818 = vmatprep.subr.mxu0 0.0
      %819 = vmatpush2.msra.mxu0 0.0
      %820 = vmatprep.subr.mxu0 0.0
      %821 = vmatpush2.msra.mxu0 0.0
      %822 = vmatprep.subr.mxu0 0.0
      %823 = vmatpush2.msra.mxu0 0.0
      %824 = vmatprep.subr.mxu0 0.0
      %825 = vmatpush2.msra.mxu0 0.0
      %826 = vmatprep.subr.mxu0 0.0
      %827 = vmatpush2.msra.mxu0 0.0
      %828 = vmatprep.subr.mxu0 0.0
      %829 = vmatpush2.msra.mxu0 0.0
      %830 = vmatprep.subr.mxu0 0.0
      %831 = vmatpush2.msra.mxu0 0.0
      %832 = vmatprep.subr.mxu0 0.0
      %833 = vmatpush2.msra.mxu0 0.0
      %834 = vmatprep.subr.mxu0 0.0
      %835 = vmatpush2.msra.mxu0 0.0
      %836 = vmatprep.subr.mxu0 0.0
      %837 = vmatpush2.msra.mxu0 0.0
      %838 = vmatprep.mubr.f32.mxu0 0.0
      %839 = vmatmul.mubr.f32.gmra.mxu0 %v769
      %v840 = vpop.f32.mrf.mxu0
      %v841 = vadd.f32 0.0, %v840
      %v842 = vpop.f32.mrf.mxu0
      %843 = vmatprep.mubr.f32.mxu0 0.0
      %844 = vmatmul.mubr.f32.gmra.mxu0 %v772
      %v845 = vpop.f32.mrf.mxu0
      %v846 = vadd.f32 0.0, %v845
      %v847 = vpop.f32.mrf.mxu0
      %848 = vdwg.mxu0
      %v849 = vadd.f32 %v763, %v841
      %v850 = vadd.f32 %v764, %v846
      %s851 = scalar_lea.vmem %s1, 80
      %v852 = vld [vmem:[%s851] sm:$0xff]
      %v853 = vld [vmem:[%s851 + $0x8] sm:$0xff]
      %856 = vrot.lane.b32.xlu0 %v358, 96
      %v857 = vpop.permute.xlu0 %856
      %858 = vrot.lane.b32.xlu0 %v362, 96
      %v859 = vpop.permute.xlu0 %858
      %v863 = vsel %vm418, %v852, 0
      %v866 = vsel %vm418, %v853, 0
      %868 = vmatprep.subr.mxu0 0.0
      %869 = vmatpush1.msra.mxu0 0.0
      %870 = vmatprep.subr.mxu0 0.0
      %871 = vmatpush1.msra.mxu0 0.0
      %872 = vmatprep.subr.mxu0 0.0
      %873 = vmatpush1.msra.mxu0 0.0
      %874 = vmatprep.subr.mxu0 0.0
      %875 = vmatpush1.msra.mxu0 0.0
      %876 = vmatprep.subr.mxu0 0.0
      %877 = vmatpush1.msra.mxu0 0.0
      %878 = vmatprep.subr.mxu0 0.0
      %879 = vmatpush1.msra.mxu0 0.0
      %880 = vmatprep.subr.mxu0 0.0
      %881 = vmatpush1.msra.mxu0 0.0
      %882 = vmatprep.subr.mxu0 0.0
      %883 = vmatpush1.msra.mxu0 0.0
      %884 = vmatprep.subr.mxu0 0.0
      %885 = vmatpush1.msra.mxu0 0.0
      %886 = vmatprep.subr.mxu0 0.0
      %887 = vmatpush1.msra.mxu0 0.0
      %888 = vmatprep.subr.mxu0 0.0
      %889 = vmatpush1.msra.mxu0 0.0
      %890 = vmatprep.subr.mxu0 0.0
      %891 = vmatpush1.msra.mxu0 0.0
      %892 = vmatprep.subr.mxu0 0.0
      %893 = vmatpush1.msra.mxu0 0.0
      %894 = vmatprep.subr.mxu0 0.0
      %895 = vmatpush1.msra.mxu0 0.0
      %896 = vmatprep.subr.mxu0 0.0
      %897 = vmatpush1.msra.mxu0 %v859
      %898 = vmatprep.subr.mxu0 0.0
      %899 = vmatpush1.msra.mxu0 %v857
      %900 = vmatprep.subr.mxu0 0.0
      %901 = vmatpush2.msra.mxu0 0.0
      %902 = vmatprep.subr.mxu0 0.0
      %903 = vmatpush2.msra.mxu0 0.0
      %904 = vmatprep.subr.mxu0 0.0
      %905 = vmatpush2.msra.mxu0 0.0
      %906 = vmatprep.subr.mxu0 0.0
      %907 = vmatpush2.msra.mxu0 0.0
      %908 = vmatprep.subr.mxu0 0.0
      %909 = vmatpush2.msra.mxu0 0.0
      %910 = vmatprep.subr.mxu0 0.0
      %911 = vmatpush2.msra.mxu0 0.0
      %912 = vmatprep.subr.mxu0 0.0
      %913 = vmatpush2.msra.mxu0 0.0
      %914 = vmatprep.subr.mxu0 0.0
      %915 = vmatpush2.msra.mxu0 0.0
      %916 = vmatprep.subr.mxu0 0.0
      %917 = vmatpush2.msra.mxu0 0.0
      %918 = vmatprep.subr.mxu0 0.0
      %919 = vmatpush2.msra.mxu0 0.0
      %920 = vmatprep.subr.mxu0 0.0
      %921 = vmatpush2.msra.mxu0 0.0
      %922 = vmatprep.subr.mxu0 0.0
      %923 = vmatpush2.msra.mxu0 0.0
      %924 = vmatprep.subr.mxu0 0.0
      %925 = vmatpush2.msra.mxu0 0.0
      %926 = vmatprep.subr.mxu0 0.0
      %927 = vmatpush2.msra.mxu0 0.0
      %928 = vmatprep.subr.mxu0 0.0
      %929 = vmatpush2.msra.mxu0 0.0
      %930 = vmatprep.subr.mxu0 0.0
      %931 = vmatpush2.msra.mxu0 0.0
      %932 = vmatprep.mubr.f32.mxu0 0.0
      %933 = vmatmul.mubr.f32.gmra.mxu0 %v863
      %v934 = vpop.f32.mrf.mxu0
      %v935 = vadd.f32 0.0, %v934
      %v936 = vpop.f32.mrf.mxu0
      %937 = vmatprep.mubr.f32.mxu0 0.0
      %938 = vmatmul.mubr.f32.gmra.mxu0 %v866
      %v939 = vpop.f32.mrf.mxu0
      %v940 = vadd.f32 0.0, %v939
      %v941 = vpop.f32.mrf.mxu0
      %942 = vdwg.mxu0
      %v943 = vadd.f32 %v849, %v935
      %v944 = vadd.f32 %v850, %v940
      %s945 = scalar_lea.vmem %s1, 96
      %v946 = vld [vmem:[%s945] sm:$0xff]
      %v947 = vld [vmem:[%s945 + $0x8] sm:$0xff]
      %948 = vrot.lane.b32.xlu0 %v358, 64
      %v949 = vpop.permute.xlu0 %948
      %950 = vrot.lane.b32.xlu0 %v362, 64
      %v951 = vpop.permute.xlu0 %950
      %v955 = vsel %vm418, %v946, 0
      %v958 = vsel %vm418, %v947, 0
      %960 = vmatprep.subr.mxu0 0.0
      %961 = vmatpush1.msra.mxu0 0.0
      %962 = vmatprep.subr.mxu0 0.0
      %963 = vmatpush1.msra.mxu0 0.0
      %964 = vmatprep.subr.mxu0 0.0
      %965 = vmatpush1.msra.mxu0 0.0
      %966 = vmatprep.subr.mxu0 0.0
      %967 = vmatpush1.msra.mxu0 0.0
      %968 = vmatprep.subr.mxu0 0.0
      %969 = vmatpush1.msra.mxu0 0.0
      %970 = vmatprep.subr.mxu0 0.0
      %971 = vmatpush1.msra.mxu0 0.0
      %972 = vmatprep.subr.mxu0 0.0
      %973 = vmatpush1.msra.mxu0 0.0
      %974 = vmatprep.subr.mxu0 0.0
      %975 = vmatpush1.msra.mxu0 0.0
      %976 = vmatprep.subr.mxu0 0.0
      %977 = vmatpush1.msra.mxu0 0.0
      %978 = vmatprep.subr.mxu0 0.0
      %979 = vmatpush1.msra.mxu0 0.0
      %980 = vmatprep.subr.mxu0 0.0
      %981 = vmatpush1.msra.mxu0 0.0
      %982 = vmatprep.subr.mxu0 0.0
      %983 = vmatpush1.msra.mxu0 0.0
      %984 = vmatprep.subr.mxu0 0.0
      %985 = vmatpush1.msra.mxu0 0.0
      %986 = vmatprep.subr.mxu0 0.0
      %987 = vmatpush1.msra.mxu0 0.0
      %988 = vmatprep.subr.mxu0 0.0
      %989 = vmatpush1.msra.mxu0 %v951
      %990 = vmatprep.subr.mxu0 0.0
      %991 = vmatpush1.msra.mxu0 %v949
      %992 = vmatprep.subr.mxu0 0.0
      %993 = vmatpush2.msra.mxu0 0.0
      %994 = vmatprep.subr.mxu0 0.0
      %995 = vmatpush2.msra.mxu0 0.0
      %996 = vmatprep.subr.mxu0 0.0
      %997 = vmatpush2.msra.mxu0 0.0
      %998 = vmatprep.subr.mxu0 0.0
      %999 = vmatpush2.msra.mxu0 0.0
      %1000 = vmatprep.subr.mxu0 0.0
      %1001 = vmatpush2.msra.mxu0 0.0
      %1002 = vmatprep.subr.mxu0 0.0
      %1003 = vmatpush2.msra.mxu0 0.0
      %1004 = vmatprep.subr.mxu0 0.0
      %1005 = vmatpush2.msra.mxu0 0.0
      %1006 = vmatprep.subr.mxu0 0.0
      %1007 = vmatpush2.msra.mxu0 0.0
      %1008 = vmatprep.subr.mxu0 0.0
      %1009 = vmatpush2.msra.mxu0 0.0
      %1010 = vmatprep.subr.mxu0 0.0
      %1011 = vmatpush2.msra.mxu0 0.0
      %1012 = vmatprep.subr.mxu0 0.0
      %1013 = vmatpush2.msra.mxu0 0.0
      %1014 = vmatprep.subr.mxu0 0.0
      %1015 = vmatpush2.msra.mxu0 0.0
      %1016 = vmatprep.subr.mxu0 0.0
      %1017 = vmatpush2.msra.mxu0 0.0
      %1018 = vmatprep.subr.mxu0 0.0
      %1019 = vmatpush2.msra.mxu0 0.0
      %1020 = vmatprep.subr.mxu0 0.0
      %1021 = vmatpush2.msra.mxu0 0.0
      %1022 = vmatprep.subr.mxu0 0.0
      %1023 = vmatpush2.msra.mxu0 0.0
      %1024 = vmatprep.mubr.f32.mxu0 0.0
      %1025 = vmatmul.mubr.f32.gmra.mxu0 %v955
      %v1026 = vpop.f32.mrf.mxu0
      %v1027 = vadd.f32 0.0, %v1026
      %v1028 = vpop.f32.mrf.mxu0
      %1029 = vmatprep.mubr.f32.mxu0 0.0
      %1030 = vmatmul.mubr.f32.gmra.mxu0 %v958
      %v1031 = vpop.f32.mrf.mxu0
      %v1032 = vadd.f32 0.0, %v1031
      %v1033 = vpop.f32.mrf.mxu0
      %1034 = vdwg.mxu0
      %v1035 = vadd.f32 %v943, %v1027
      %v1036 = vadd.f32 %v944, %v1032
      %s1037 = scalar_lea.vmem %s1, 112
      %v1038 = vld [vmem:[%s1037] sm:$0xff]
      %v1039 = vld [vmem:[%s1037 + $0x8] sm:$0xff]
      %1040 = vrot.lane.b32.xlu0 %v358, 32
      %v1041 = vpop.permute.xlu0 %1040
      %1042 = vrot.lane.b32.xlu0 %v362, 32
      %v1043 = vpop.permute.xlu0 %1042
      %v1047 = vsel %vm418, %v1038, 0
      %v1050 = vsel %vm418, %v1039, 0
      %1052 = vmatprep.subr.mxu0 0.0
      %1053 = vmatpush1.msra.mxu0 0.0
      %1054 = vmatprep.subr.mxu0 0.0
      %1055 = vmatpush1.msra.mxu0 0.0
      %1056 = vmatprep.subr.mxu0 0.0
      %1057 = vmatpush1.msra.mxu0 0.0
      %1058 = vmatprep.subr.mxu0 0.0
      %1059 = vmatpush1.msra.mxu0 0.0
      %1060 = vmatprep.subr.mxu0 0.0
      %1061 = vmatpush1.msra.mxu0 0.0
      %1062 = vmatprep.subr.mxu0 0.0
      %1063 = vmatpush1.msra.mxu0 0.0
      %1064 = vmatprep.subr.mxu0 0.0
      %1065 = vmatpush1.msra.mxu0 0.0
      %1066 = vmatprep.subr.mxu0 0.0
      %1067 = vmatpush1.msra.mxu0 0.0
      %1068 = vmatprep.subr.mxu0 0.0
      %1069 = vmatpush1.msra.mxu0 0.0
      %1070 = vmatprep.subr.mxu0 0.0
      %1071 = vmatpush1.msra.mxu0 0.0
      %1072 = vmatprep.subr.mxu0 0.0
      %1073 = vmatpush1.msra.mxu0 0.0
      %1074 = vmatprep.subr.mxu0 0.0
      %1075 = vmatpush1.msra.mxu0 0.0
      %1076 = vmatprep.subr.mxu0 0.0
      %1077 = vmatpush1.msra.mxu0 0.0
      %1078 = vmatprep.subr.mxu0 0.0
      %1079 = vmatpush1.msra.mxu0 0.0
      %1080 = vmatprep.subr.mxu0 0.0
      %1081 = vmatpush1.msra.mxu0 %v1043
      %1082 = vmatprep.subr.mxu0 0.0
      %1083 = vmatpush1.msra.mxu0 %v1041
      %1084 = vmatprep.subr.mxu0 0.0
      %1085 = vmatpush2.msra.mxu0 0.0
      %1086 = vmatprep.subr.mxu0 0.0
      %1087 = vmatpush2.msra.mxu0 0.0
      %1088 = vmatprep.subr.mxu0 0.0
      %1089 = vmatpush2.msra.mxu0 0.0
      %1090 = vmatprep.subr.mxu0 0.0
      %1091 = vmatpush2.msra.mxu0 0.0
      %1092 = vmatprep.subr.mxu0 0.0
      %1093 = vmatpush2.msra.mxu0 0.0
      %1094 = vmatprep.subr.mxu0 0.0
      %1095 = vmatpush2.msra.mxu0 0.0
      %1096 = vmatprep.subr.mxu0 0.0
      %1097 = vmatpush2.msra.mxu0 0.0
      %1098 = vmatprep.subr.mxu0 0.0
      %1099 = vmatpush2.msra.mxu0 0.0
      %1100 = vmatprep.subr.mxu0 0.0
      %1101 = vmatpush2.msra.mxu0 0.0
      %1102 = vmatprep.subr.mxu0 0.0
      %1103 = vmatpush2.msra.mxu0 0.0
      %1104 = vmatprep.subr.mxu0 0.0
      %1105 = vmatpush2.msra.mxu0 0.0
      %1106 = vmatprep.subr.mxu0 0.0
      %1107 = vmatpush2.msra.mxu0 0.0
      %1108 = vmatprep.subr.mxu0 0.0
      %1109 = vmatpush2.msra.mxu0 0.0
      %1110 = vmatprep.subr.mxu0 0.0
      %1111 = vmatpush2.msra.mxu0 0.0
      %1112 = vmatprep.subr.mxu0 0.0
      %1113 = vmatpush2.msra.mxu0 0.0
      %1114 = vmatprep.subr.mxu0 0.0
      %1115 = vmatpush2.msra.mxu0 0.0
      %1116 = vmatprep.mubr.f32.mxu0 0.0
      %1117 = vmatmul.mubr.f32.gmra.mxu0 %v1047
      %v1118 = vpop.f32.mrf.mxu0
      %v1119 = vadd.f32 0.0, %v1118
      %v1120 = vpop.f32.mrf.mxu0
      %1121 = vmatprep.mubr.f32.mxu0 0.0
      %1122 = vmatmul.mubr.f32.gmra.mxu0 %v1050
      %v1123 = vpop.f32.mrf.mxu0
      %v1124 = vadd.f32 0.0, %v1123
      %v1125 = vpop.f32.mrf.mxu0
      %1126 = vdwg.mxu0
      %v1127 = vadd.f32 %v1035, %v1119
      %v1128 = vadd.f32 %v1036, %v1124
      %s1129 = scalar_lea.vmem %s1, 128
      %v1130 = vld [vmem:[%s1129] sm:$0xff]
      %v1131 = vld [vmem:[%s1129 + $0x8] sm:$0xff]
      %v1133 = vsel %vm418, %v1130, 0
      %v1136 = vsel %vm418, %v1131, 0
      %1138 = vmatprep.subr.mxu0 0.0
      %1139 = vmatpush1.msra.mxu0 0.0
      %1140 = vmatprep.subr.mxu0 0.0
      %1141 = vmatpush1.msra.mxu0 0.0
      %1142 = vmatprep.subr.mxu0 0.0
      %1143 = vmatpush1.msra.mxu0 0.0
      %1144 = vmatprep.subr.mxu0 0.0
      %1145 = vmatpush1.msra.mxu0 0.0
      %1146 = vmatprep.subr.mxu0 0.0
      %1147 = vmatpush1.msra.mxu0 0.0
      %1148 = vmatprep.subr.mxu0 0.0
      %1149 = vmatpush1.msra.mxu0 0.0
      %1150 = vmatprep.subr.mxu0 0.0
      %1151 = vmatpush1.msra.mxu0 0.0
      %1152 = vmatprep.subr.mxu0 0.0
      %1153 = vmatpush1.msra.mxu0 0.0
      %1154 = vmatprep.subr.mxu0 0.0
      %1155 = vmatpush1.msra.mxu0 0.0
      %1156 = vmatprep.subr.mxu0 0.0
      %1157 = vmatpush1.msra.mxu0 0.0
      %1158 = vmatprep.subr.mxu0 0.0
      %1159 = vmatpush1.msra.mxu0 0.0
      %1160 = vmatprep.subr.mxu0 0.0
      %1161 = vmatpush1.msra.mxu0 0.0
      %1162 = vmatprep.subr.mxu0 0.0
      %1163 = vmatpush1.msra.mxu0 0.0
      %1164 = vmatprep.subr.mxu0 0.0
      %1165 = vmatpush1.msra.mxu0 0.0
      %1166 = vmatprep.subr.mxu0 0.0
      %1167 = vmatpush1.msra.mxu0 %v402
      %1168 = vmatprep.subr.mxu0 0.0
      %1169 = vmatpush1.msra.mxu0 %v399
      %1170 = vmatprep.subr.mxu0 0.0
      %1171 = vmatpush2.msra.mxu0 0.0
      %1172 = vmatprep.subr.mxu0 0.0
      %1173 = vmatpush2.msra.mxu0 0.0
      %1174 = vmatprep.subr.mxu0 0.0
      %1175 = vmatpush2.msra.mxu0 0.0
      %1176 = vmatprep.subr.mxu0 0.0
      %1177 = vmatpush2.msra.mxu0 0.0
      %1178 = vmatprep.subr.mxu0 0.0
      %1179 = vmatpush2.msra.mxu0 0.0
      %1180 = vmatprep.subr.mxu0 0.0
      %1181 = vmatpush2.msra.mxu0 0.0
      %1182 = vmatprep.subr.mxu0 0.0
      %1183 = vmatpush2.msra.mxu0 0.0
      %1184 = vmatprep.subr.mxu0 0.0
      %1185 = vmatpush2.msra.mxu0 0.0
      %1186 = vmatprep.subr.mxu0 0.0
      %1187 = vmatpush2.msra.mxu0 0.0
      %1188 = vmatprep.subr.mxu0 0.0
      %1189 = vmatpush2.msra.mxu0 0.0
      %1190 = vmatprep.subr.mxu0 0.0
      %1191 = vmatpush2.msra.mxu0 0.0
      %1192 = vmatprep.subr.mxu0 0.0
      %1193 = vmatpush2.msra.mxu0 0.0
      %1194 = vmatprep.subr.mxu0 0.0
      %1195 = vmatpush2.msra.mxu0 0.0
      %1196 = vmatprep.subr.mxu0 0.0
      %1197 = vmatpush2.msra.mxu0 0.0
      %1198 = vmatprep.subr.mxu0 0.0
      %1199 = vmatpush2.msra.mxu0 0.0
      %1200 = vmatprep.subr.mxu0 0.0
      %1201 = vmatpush2.msra.mxu0 0.0
      %1202 = vmatprep.mubr.f32.mxu0 0.0
      %1203 = vmatmul.mubr.f32.gmra.mxu0 %v1133
      %v1204 = vpop.f32.mrf.mxu0
      %v1205 = vadd.f32 0.0, %v1204
      %v1206 = vpop.f32.mrf.mxu0
      %1207 = vmatprep.mubr.f32.mxu0 0.0
      %1208 = vmatmul.mubr.f32.gmra.mxu0 %v1136
      %v1209 = vpop.f32.mrf.mxu0
      %v1210 = vadd.f32 0.0, %v1209
      %v1211 = vpop.f32.mrf.mxu0
      %1212 = vdwg.mxu0
      %v1213 = vadd.f32 %v1127, %v1205
      %v1214 = vadd.f32 %v1128, %v1210
      %v1215 = vld [vmem:[%s3] sm:$0x1]
      %v1217 = vlaneseq
      %v1218 = vshrl.u32 %v1217, 7
      %v1219 = vsub.s32 0, %v1218
      %v1220 = vrot.slane %v1215, %v1219
      %v1222 = vadd.f32 %v1213, %v1220
      %v1223 = vadd.f32 %v1214, %v1220
      %v1224 = vmax.f32 %v1222, 0.0
      %v1225 = vmax.f32 %v1223, 0.0
      %v1226 = vpack.c.bf16 %v1225, %v1224
      %v1227 = vld [vmem:[%s4] sm:$0xff]
      %v1228 = vld [vmem:[%s4 + $0x8] sm:$0xf]
      %v1229 = vld [vmem:[%s4 + $0xc] sm:$0xff]
      %v1230 = vld [vmem:[%s4 + $0x14] sm:$0xf]
      %v1231 = vld [vmem:[%s4 + $0x18] sm:$0xff]
      %v1232 = vld [vmem:[%s4 + $0x20] sm:$0xf]
      %v1233 = vld [vmem:[%s4 + $0x24] sm:$0xff]
      %v1234 = vld [vmem:[%s4 + $0x2c] sm:$0xf]
      %v1243 = vunpack.c.l.b16 %v1227
      %v1244 = vunpack.c.h.b16 %v1227
      %v1245 = vunpack.c.l.b16 %v1228
      %v1246 = vunpack.c.l.b16 %v1229
      %v1247 = vunpack.c.h.b16 %v1229
      %v1248 = vunpack.c.l.b16 %v1230
      %v1249 = vunpack.c.l.b16 %v1231
      %v1250 = vunpack.c.h.b16 %v1231
      %v1251 = vunpack.c.l.b16 %v1232
      %v1252 = vunpack.c.l.b16 %v1233
      %v1253 = vunpack.c.h.b16 %v1233
      %v1254 = vunpack.c.l.b16 %v1234
      %v1255 = vpack.c.b16 %v1246, %v1243
      %v1256 = vpack.c.b16 %v1247, %v1244
      %v1257 = vpack.c.b16 %v1248, %v1245
      %v1258 = vpack.c.b16 %v1252, %v1249
      %v1259 = vpack.c.b16 %v1253, %v1250
      %v1260 = vpack.c.b16 %v1254, %v1251
      %v1268 = vsel %vm317, %v1226, 0
      %1270 = vmatprep.subr.bf16.mxu0 0
      %1271 = vmatpush1.bf16.msra.mxu0 0
      %1272 = vmatprep.subr.bf16.mxu0 0
      %1273 = vmatpush1.bf16.msra.mxu0 0
      %1274 = vmatprep.subr.bf16.mxu0 0
      %1275 = vmatpush1.bf16.msra.mxu0 0
      %1276 = vmatprep.subr.bf16.mxu0 0
      %1277 = vmatpush1.bf16.msra.mxu0 0
      %1278 = vmatprep.subr.bf16.mxu0 0
      %1279 = vmatpush1.bf16.msra.mxu0 0
      %1280 = vmatprep.subr.bf16.mxu0 0
      %1281 = vmatpush1.bf16.msra.mxu0 0
      %1282 = vmatprep.subr.bf16.mxu0 %v1259
      %1283 = vmatpush1.bf16.msra.mxu0 %v1258
      %1284 = vmatprep.subr.bf16.mxu0 %v1256
      %1285 = vmatpush1.bf16.msra.mxu0 %v1255
      %1286 = vmatprep.subr.bf16.mxu0 0
      %1287 = vmatpush2.bf16.msra.mxu0 0
      %1288 = vmatprep.subr.bf16.mxu0 0
      %1289 = vmatpush2.bf16.msra.mxu0 0
      %1290 = vmatprep.subr.bf16.mxu0 0
      %1291 = vmatpush2.bf16.msra.mxu0 0
      %1292 = vmatprep.subr.bf16.mxu0 0
      %1293 = vmatpush2.bf16.msra.mxu0 0
      %1294 = vmatprep.subr.bf16.mxu0 0
      %1295 = vmatpush2.bf16.msra.mxu0 0
      %1296 = vmatprep.subr.bf16.mxu0 0
      %1297 = vmatpush2.bf16.msra.mxu0 0
      %1298 = vmatprep.subr.bf16.mxu0 0
      %1299 = vmatpush2.bf16.msra.mxu0 0
      %1300 = vmatprep.subr.bf16.mxu0 0
      %1301 = vmatpush2.bf16.msra.mxu0 0
      %1302 = vmatprep.mubr.bf16.mxu0 0
      %1303 = vmatmul.mubr.bf16.gmra.mxu0 %v1268
      %v1304 = vpop.f32.mrf.mxu0
      %v1305 = vadd.f32 0.0, %v1304
      %v1306 = vpop.f32.mrf.mxu0
      %v1307 = vadd.f32 0.0, %v1306
      %v1308 = vpop.f32.mrf.mxu0
      %v1309 = vadd.f32 0.0, %v1308
      %v1310 = vpop.f32.mrf.mxu0
      %v1311 = vadd.f32 0.0, %v1310
      %1312 = vdwg.mxu0
      %1313 = vmatprep.subr.bf16.mxu0 0
      %1314 = vmatpush1.bf16.msra.mxu0 0
      %1315 = vmatprep.subr.bf16.mxu0 0
      %1316 = vmatpush1.bf16.msra.mxu0 0
      %1317 = vmatprep.subr.bf16.mxu0 0
      %1318 = vmatpush1.bf16.msra.mxu0 0
      %1319 = vmatprep.subr.bf16.mxu0 0
      %1320 = vmatpush1.bf16.msra.mxu0 0
      %1321 = vmatprep.subr.bf16.mxu0 0
      %1322 = vmatpush1.bf16.msra.mxu0 0
      %1323 = vmatprep.subr.bf16.mxu0 0
      %1324 = vmatpush1.bf16.msra.mxu0 0
      %1325 = vmatprep.subr.bf16.mxu0 0
      %1326 = vmatpush1.bf16.msra.mxu0 %v1260
      %1327 = vmatprep.subr.bf16.mxu0 0
      %1328 = vmatpush1.bf16.msra.mxu0 %v1257
      %1329 = vmatprep.subr.bf16.mxu0 0
      %1330 = vmatpush2.bf16.msra.mxu0 0
      %1331 = vmatprep.subr.bf16.mxu0 0
      %1332 = vmatpush2.bf16.msra.mxu0 0
      %1333 = vmatprep.subr.bf16.mxu0 0
      %1334 = vmatpush2.bf16.msra.mxu0 0
      %1335 = vmatprep.subr.bf16.mxu0 0
      %1336 = vmatpush2.bf16.msra.mxu0 0
      %1337 = vmatprep.subr.bf16.mxu0 0
      %1338 = vmatpush2.bf16.msra.mxu0 0
      %1339 = vmatprep.subr.bf16.mxu0 0
      %1340 = vmatpush2.bf16.msra.mxu0 0
      %1341 = vmatprep.subr.bf16.mxu0 0
      %1342 = vmatpush2.bf16.msra.mxu0 0
      %1343 = vmatprep.subr.bf16.mxu0 0
      %1344 = vmatpush2.bf16.msra.mxu0 0
      %1345 = vmatprep.mubr.bf16.mxu0 0
      %1346 = vmatmul.mubr.bf16.gmra.mxu0 %v1268
      %v1347 = vpop.f32.mrf.mxu0
      %v1348 = vadd.f32 0.0, %v1347
      %v1349 = vpop.f32.mrf.mxu0
      %v1350 = vpop.f32.mrf.mxu0
      %v1351 = vadd.f32 0.0, %v1350
      %v1352 = vpop.f32.mrf.mxu0
      %1353 = vdwg.mxu0
      %1356 = vrot.lane.b32.xlu0 %v1305, 96
      %v1357 = vpop.permute.xlu0 %1356
      %1358 = vrot.lane.b32.xlu0 %v1309, 96
      %v1359 = vpop.permute.xlu0 %1358
      %1362 = vmatprep.subr.mxu0 0.0
      %1363 = vmatpush1.msra.mxu0 0.0
      %1364 = vmatprep.subr.mxu0 0.0
      %1365 = vmatpush1.msra.mxu0 0.0
      %1366 = vmatprep.subr.mxu0 0.0
      %1367 = vmatpush1.msra.mxu0 0.0
      %1368 = vmatprep.subr.mxu0 0.0
      %1369 = vmatpush1.msra.mxu0 0.0
      %1370 = vmatprep.subr.mxu0 0.0
      %1371 = vmatpush1.msra.mxu0 0.0
      %1372 = vmatprep.subr.mxu0 0.0
      %1373 = vmatpush1.msra.mxu0 0.0
      %1374 = vmatprep.subr.mxu0 0.0
      %1375 = vmatpush1.msra.mxu0 0.0
      %1376 = vmatprep.subr.mxu0 0.0
      %1377 = vmatpush1.msra.mxu0 0.0
      %1378 = vmatprep.subr.mxu0 0.0
      %1379 = vmatpush1.msra.mxu0 0.0
      %1380 = vmatprep.subr.mxu0 0.0
      %1381 = vmatpush1.msra.mxu0 0.0
      %1382 = vmatprep.subr.mxu0 0.0
      %1383 = vmatpush1.msra.mxu0 0.0
      %1384 = vmatprep.subr.mxu0 0.0
      %1385 = vmatpush1.msra.mxu0 0.0
      %1386 = vmatprep.subr.mxu0 0.0
      %1387 = vmatpush1.msra.mxu0 0.0
      %1388 = vmatprep.subr.mxu0 0.0
      %1389 = vmatpush1.msra.mxu0 0.0
      %1390 = vmatprep.subr.mxu0 0.0
      %1391 = vmatpush1.msra.mxu0 %v1359
      %1392 = vmatprep.subr.mxu0 0.0
      %1393 = vmatpush1.msra.mxu0 %v1357
      %1394 = vmatprep.subr.mxu0 0.0
      %1395 = vmatpush2.msra.mxu0 0.0
      %1396 = vmatprep.subr.mxu0 0.0
      %1397 = vmatpush2.msra.mxu0 0.0
      %1398 = vmatprep.subr.mxu0 0.0
      %1399 = vmatpush2.msra.mxu0 0.0
      %1400 = vmatprep.subr.mxu0 0.0
      %1401 = vmatpush2.msra.mxu0 0.0
      %1402 = vmatprep.subr.mxu0 0.0
      %1403 = vmatpush2.msra.mxu0 0.0
      %1404 = vmatprep.subr.mxu0 0.0
      %1405 = vmatpush2.msra.mxu0 0.0
      %1406 = vmatprep.subr.mxu0 0.0
      %1407 = vmatpush2.msra.mxu0 0.0
      %1408 = vmatprep.subr.mxu0 0.0
      %1409 = vmatpush2.msra.mxu0 0.0
      %1410 = vmatprep.subr.mxu0 0.0
      %1411 = vmatpush2.msra.mxu0 0.0
      %1412 = vmatprep.subr.mxu0 0.0
      %1413 = vmatpush2.msra.mxu0 0.0
      %1414 = vmatprep.subr.mxu0 0.0
      %1415 = vmatpush2.msra.mxu0 0.0
      %1416 = vmatprep.subr.mxu0 0.0
      %1417 = vmatpush2.msra.mxu0 0.0
      %1418 = vmatprep.subr.mxu0 0.0
      %1419 = vmatpush2.msra.mxu0 0.0
      %1420 = vmatprep.subr.mxu0 0.0
      %1421 = vmatpush2.msra.mxu0 0.0
      %1422 = vmatprep.subr.mxu0 0.0
      %1423 = vmatpush2.msra.mxu0 0.0
      %1424 = vmatprep.subr.mxu0 0.0
      %1425 = vmatpush2.msra.mxu0 0.0
      %1426 = vmatprep.mubr.f32.mxu0 0.0
      %1427 = vmatmul.mubr.f32.gmra.mxu0 %v420
      %v1428 = vpop.f32.mrf.mxu0
      %v1429 = vadd.f32 0.0, %v1428
      %v1430 = vpop.f32.mrf.mxu0
      %1431 = vmatprep.mubr.f32.mxu0 0.0
      %1432 = vmatmul.mubr.f32.gmra.mxu0 %v423
      %v1433 = vpop.f32.mrf.mxu0
      %v1434 = vadd.f32 0.0, %v1433
      %v1435 = vpop.f32.mrf.mxu0
      %1436 = vdwg.mxu0
      %1437 = vmatprep.subr.mxu0 0.0
      %1438 = vmatpush1.msra.mxu0 0.0
      %1439 = vmatprep.subr.mxu0 0.0
      %1440 = vmatpush1.msra.mxu0 0.0
      %1441 = vmatprep.subr.mxu0 0.0
      %1442 = vmatpush1.msra.mxu0 0.0
      %1443 = vmatprep.subr.mxu0 0.0
      %1444 = vmatpush1.msra.mxu0 0.0
      %1445 = vmatprep.subr.mxu0 0.0
      %1446 = vmatpush1.msra.mxu0 0.0
      %1447 = vmatprep.subr.mxu0 0.0
      %1448 = vmatpush1.msra.mxu0 0.0
      %1449 = vmatprep.subr.mxu0 0.0
      %1450 = vmatpush1.msra.mxu0 0.0
      %1451 = vmatprep.subr.mxu0 0.0
      %1452 = vmatpush1.msra.mxu0 0.0
      %1453 = vmatprep.subr.mxu0 0.0
      %1454 = vmatpush1.msra.mxu0 0.0
      %1455 = vmatprep.subr.mxu0 0.0
      %1456 = vmatpush1.msra.mxu0 0.0
      %1457 = vmatprep.subr.mxu0 0.0
      %1458 = vmatpush1.msra.mxu0 0.0
      %1459 = vmatprep.subr.mxu0 0.0
      %1460 = vmatpush1.msra.mxu0 0.0
      %1461 = vmatprep.subr.mxu0 0.0
      %1462 = vmatpush1.msra.mxu0 0.0
      %1463 = vmatprep.subr.mxu0 0.0
      %1464 = vmatpush1.msra.mxu0 0.0
      %1465 = vmatprep.subr.mxu0 0.0
      %1466 = vmatpush1.msra.mxu0 %v1309
      %1467 = vmatprep.subr.mxu0 0.0
      %1468 = vmatpush1.msra.mxu0 %v1305
      %1469 = vmatprep.subr.mxu0 0.0
      %1470 = vmatpush2.msra.mxu0 0.0
      %1471 = vmatprep.subr.mxu0 0.0
      %1472 = vmatpush2.msra.mxu0 0.0
      %1473 = vmatprep.subr.mxu0 0.0
      %1474 = vmatpush2.msra.mxu0 0.0
      %1475 = vmatprep.subr.mxu0 0.0
      %1476 = vmatpush2.msra.mxu0 0.0
      %1477 = vmatprep.subr.mxu0 0.0
      %1478 = vmatpush2.msra.mxu0 0.0
      %1479 = vmatprep.subr.mxu0 0.0
      %1480 = vmatpush2.msra.mxu0 0.0
      %1481 = vmatprep.subr.mxu0 0.0
      %1482 = vmatpush2.msra.mxu0 0.0
      %1483 = vmatprep.subr.mxu0 0.0
      %1484 = vmatpush2.msra.mxu0 0.0
      %1485 = vmatprep.subr.mxu0 0.0
      %1486 = vmatpush2.msra.mxu0 0.0
      %1487 = vmatprep.subr.mxu0 0.0
      %1488 = vmatpush2.msra.mxu0 0.0
      %1489 = vmatprep.subr.mxu0 0.0
      %1490 = vmatpush2.msra.mxu0 0.0
      %1491 = vmatprep.subr.mxu0 0.0
      %1492 = vmatpush2.msra.mxu0 0.0
      %1493 = vmatprep.subr.mxu0 0.0
      %1494 = vmatpush2.msra.mxu0 0.0
      %1495 = vmatprep.subr.mxu0 0.0
      %1496 = vmatpush2.msra.mxu0 0.0
      %1497 = vmatprep.subr.mxu0 0.0
      %1498 = vmatpush2.msra.mxu0 0.0
      %1499 = vmatprep.subr.mxu0 0.0
      %1500 = vmatpush2.msra.mxu0 0.0
      %1501 = vmatprep.mubr.f32.mxu0 0.0
      %1502 = vmatmul.mubr.f32.gmra.mxu0 %v501
      %v1503 = vpop.f32.mrf.mxu0
      %v1504 = vadd.f32 %v1429, %v1503
      %v1505 = vpop.f32.mrf.mxu0
      %1506 = vmatprep.mubr.f32.mxu0 0.0
      %1507 = vmatmul.mubr.f32.gmra.mxu0 %v504
      %v1508 = vpop.f32.mrf.mxu0
      %v1509 = vadd.f32 %v1434, %v1508
      %v1510 = vpop.f32.mrf.mxu0
      %1511 = vdwg.mxu0
      %1512 = vrot.lane.b32.xlu0 %v1305, 64
      %v1513 = vpop.permute.xlu0 %1512
      %1514 = vrot.lane.b32.xlu0 %v1309, 64
      %v1515 = vpop.permute.xlu0 %1514
      %1518 = vmatprep.subr.mxu0 0.0
      %1519 = vmatpush1.msra.mxu0 0.0
      %1520 = vmatprep.subr.mxu0 0.0
      %1521 = vmatpush1.msra.mxu0 0.0
      %1522 = vmatprep.subr.mxu0 0.0
      %1523 = vmatpush1.msra.mxu0 0.0
      %1524 = vmatprep.subr.mxu0 0.0
      %1525 = vmatpush1.msra.mxu0 0.0
      %1526 = vmatprep.subr.mxu0 0.0
      %1527 = vmatpush1.msra.mxu0 0.0
      %1528 = vmatprep.subr.mxu0 0.0
      %1529 = vmatpush1.msra.mxu0 0.0
      %1530 = vmatprep.subr.mxu0 0.0
      %1531 = vmatpush1.msra.mxu0 0.0
      %1532 = vmatprep.subr.mxu0 0.0
      %1533 = vmatpush1.msra.mxu0 0.0
      %1534 = vmatprep.subr.mxu0 0.0
      %1535 = vmatpush1.msra.mxu0 0.0
      %1536 = vmatprep.subr.mxu0 0.0
      %1537 = vmatpush1.msra.mxu0 0.0
      %1538 = vmatprep.subr.mxu0 0.0
      %1539 = vmatpush1.msra.mxu0 0.0
      %1540 = vmatprep.subr.mxu0 0.0
      %1541 = vmatpush1.msra.mxu0 0.0
      %1542 = vmatprep.subr.mxu0 0.0
      %1543 = vmatpush1.msra.mxu0 0.0
      %1544 = vmatprep.subr.mxu0 0.0
      %1545 = vmatpush1.msra.mxu0 0.0
      %1546 = vmatprep.subr.mxu0 0.0
      %1547 = vmatpush1.msra.mxu0 %v1515
      %1548 = vmatprep.subr.mxu0 0.0
      %1549 = vmatpush1.msra.mxu0 %v1513
      %1550 = vmatprep.subr.mxu0 0.0
      %1551 = vmatpush2.msra.mxu0 0.0
      %1552 = vmatprep.subr.mxu0 0.0
      %1553 = vmatpush2.msra.mxu0 0.0
      %1554 = vmatprep.subr.mxu0 0.0
      %1555 = vmatpush2.msra.mxu0 0.0
      %1556 = vmatprep.subr.mxu0 0.0
      %1557 = vmatpush2.msra.mxu0 0.0
      %1558 = vmatprep.subr.mxu0 0.0
      %1559 = vmatpush2.msra.mxu0 0.0
      %1560 = vmatprep.subr.mxu0 0.0
      %1561 = vmatpush2.msra.mxu0 0.0
      %1562 = vmatprep.subr.mxu0 0.0
      %1563 = vmatpush2.msra.mxu0 0.0
      %1564 = vmatprep.subr.mxu0 0.0
      %1565 = vmatpush2.msra.mxu0 0.0
      %1566 = vmatprep.subr.mxu0 0.0
      %1567 = vmatpush2.msra.mxu0 0.0
      %1568 = vmatprep.subr.mxu0 0.0
      %1569 = vmatpush2.msra.mxu0 0.0
      %1570 = vmatprep.subr.mxu0 0.0
      %1571 = vmatpush2.msra.mxu0 0.0
      %1572 = vmatprep.subr.mxu0 0.0
      %1573 = vmatpush2.msra.mxu0 0.0
      %1574 = vmatprep.subr.mxu0 0.0
      %1575 = vmatpush2.msra.mxu0 0.0
      %1576 = vmatprep.subr.mxu0 0.0
      %1577 = vmatpush2.msra.mxu0 0.0
      %1578 = vmatprep.subr.mxu0 0.0
      %1579 = vmatpush2.msra.mxu0 0.0
      %1580 = vmatprep.subr.mxu0 0.0
      %1581 = vmatpush2.msra.mxu0 0.0
      %1582 = vmatprep.mubr.f32.mxu0 0.0
      %1583 = vmatmul.mubr.f32.gmra.mxu0 %v591
      %v1584 = vpop.f32.mrf.mxu0
      %v1585 = vadd.f32 0.0, %v1584
      %v1586 = vpop.f32.mrf.mxu0
      %1587 = vmatprep.mubr.f32.mxu0 0.0
      %1588 = vmatmul.mubr.f32.gmra.mxu0 %v594
      %v1589 = vpop.f32.mrf.mxu0
      %v1590 = vadd.f32 0.0, %v1589
      %v1591 = vpop.f32.mrf.mxu0
      %1592 = vdwg.mxu0
      %v1593 = vadd.f32 %v1504, %v1585
      %v1594 = vadd.f32 %v1509, %v1590
      %1595 = vrot.lane.b32.xlu0 %v1305, 32
      %v1596 = vpop.permute.xlu0 %1595
      %1597 = vrot.lane.b32.xlu0 %v1309, 32
      %v1598 = vpop.permute.xlu0 %1597
      %1601 = vmatprep.subr.mxu0 0.0
      %1602 = vmatpush1.msra.mxu0 0.0
      %1603 = vmatprep.subr.mxu0 0.0
      %1604 = vmatpush1.msra.mxu0 0.0
      %1605 = vmatprep.subr.mxu0 0.0
      %1606 = vmatpush1.msra.mxu0 0.0
      %1607 = vmatprep.subr.mxu0 0.0
      %1608 = vmatpush1.msra.mxu0 0.0
      %1609 = vmatprep.subr.mxu0 0.0
      %1610 = vmatpush1.msra.mxu0 0.0
      %1611 = vmatprep.subr.mxu0 0.0
      %1612 = vmatpush1.msra.mxu0 0.0
      %1613 = vmatprep.subr.mxu0 0.0
      %1614 = vmatpush1.msra.mxu0 0.0
      %1615 = vmatprep.subr.mxu0 0.0
      %1616 = vmatpush1.msra.mxu0 0.0
      %1617 = vmatprep.subr.mxu0 0.0
      %1618 = vmatpush1.msra.mxu0 0.0
      %1619 = vmatprep.subr.mxu0 0.0
      %1620 = vmatpush1.msra.mxu0 0.0
      %1621 = vmatprep.subr.mxu0 0.0
      %1622 = vmatpush1.msra.mxu0 0.0
      %1623 = vmatprep.subr.mxu0 0.0
      %1624 = vmatpush1.msra.mxu0 0.0
      %1625 = vmatprep.subr.mxu0 0.0
      %1626 = vmatpush1.msra.mxu0 0.0
      %1627 = vmatprep.subr.mxu0 0.0
      %1628 = vmatpush1.msra.mxu0 0.0
      %1629 = vmatprep.subr.mxu0 0.0
      %1630 = vmatpush1.msra.mxu0 %v1598
      %1631 = vmatprep.subr.mxu0 0.0
      %1632 = vmatpush1.msra.mxu0 %v1596
      %1633 = vmatprep.subr.mxu0 0.0
      %1634 = vmatpush2.msra.mxu0 0.0
      %1635 = vmatprep.subr.mxu0 0.0
      %1636 = vmatpush2.msra.mxu0 0.0
      %1637 = vmatprep.subr.mxu0 0.0
      %1638 = vmatpush2.msra.mxu0 0.0
      %1639 = vmatprep.subr.mxu0 0.0
      %1640 = vmatpush2.msra.mxu0 0.0
      %1641 = vmatprep.subr.mxu0 0.0
      %1642 = vmatpush2.msra.mxu0 0.0
      %1643 = vmatprep.subr.mxu0 0.0
      %1644 = vmatpush2.msra.mxu0 0.0
      %1645 = vmatprep.subr.mxu0 0.0
      %1646 = vmatpush2.msra.mxu0 0.0
      %1647 = vmatprep.subr.mxu0 0.0
      %1648 = vmatpush2.msra.mxu0 0.0
      %1649 = vmatprep.subr.mxu0 0.0
      %1650 = vmatpush2.msra.mxu0 0.0
      %1651 = vmatprep.subr.mxu0 0.0
      %1652 = vmatpush2.msra.mxu0 0.0
      %1653 = vmatprep.subr.mxu0 0.0
      %1654 = vmatpush2.msra.mxu0 0.0
      %1655 = vmatprep.subr.mxu0 0.0
      %1656 = vmatpush2.msra.mxu0 0.0
      %1657 = vmatprep.subr.mxu0 0.0
      %1658 = vmatpush2.msra.mxu0 0.0
      %1659 = vmatprep.subr.mxu0 0.0
      %1660 = vmatpush2.msra.mxu0 0.0
      %1661 = vmatprep.subr.mxu0 0.0
      %1662 = vmatpush2.msra.mxu0 0.0
      %1663 = vmatprep.subr.mxu0 0.0
      %1664 = vmatpush2.msra.mxu0 0.0
      %1665 = vmatprep.mubr.f32.mxu0 0.0
      %1666 = vmatmul.mubr.f32.gmra.mxu0 %v683
      %v1667 = vpop.f32.mrf.mxu0
      %v1668 = vadd.f32 0.0, %v1667
      %v1669 = vpop.f32.mrf.mxu0
      %1670 = vmatprep.mubr.f32.mxu0 0.0
      %1671 = vmatmul.mubr.f32.gmra.mxu0 %v686
      %v1672 = vpop.f32.mrf.mxu0
      %v1673 = vadd.f32 0.0, %v1672
      %v1674 = vpop.f32.mrf.mxu0
      %1675 = vdwg.mxu0
      %v1676 = vadd.f32 %v1593, %v1668
      %v1677 = vadd.f32 %v1594, %v1673
      %1678 = vmatprep.subr.mxu0 0.0
      %1679 = vmatpush1.msra.mxu0 0.0
      %1680 = vmatprep.subr.mxu0 0.0
      %1681 = vmatpush1.msra.mxu0 0.0
      %1682 = vmatprep.subr.mxu0 0.0
      %1683 = vmatpush1.msra.mxu0 0.0
      %1684 = vmatprep.subr.mxu0 0.0
      %1685 = vmatpush1.msra.mxu0 0.0
      %1686 = vmatprep.subr.mxu0 0.0
      %1687 = vmatpush1.msra.mxu0 0.0
      %1688 = vmatprep.subr.mxu0 0.0
      %1689 = vmatpush1.msra.mxu0 0.0
      %1690 = vmatprep.subr.mxu0 0.0
      %1691 = vmatpush1.msra.mxu0 0.0
      %1692 = vmatprep.subr.mxu0 0.0
      %1693 = vmatpush1.msra.mxu0 0.0
      %1694 = vmatprep.subr.mxu0 0.0
      %1695 = vmatpush1.msra.mxu0 0.0
      %1696 = vmatprep.subr.mxu0 0.0
      %1697 = vmatpush1.msra.mxu0 0.0
      %1698 = vmatprep.subr.mxu0 0.0
      %1699 = vmatpush1.msra.mxu0 0.0
      %1700 = vmatprep.subr.mxu0 0.0
      %1701 = vmatpush1.msra.mxu0 0.0
      %1702 = vmatprep.subr.mxu0 0.0
      %1703 = vmatpush1.msra.mxu0 0.0
      %1704 = vmatprep.subr.mxu0 0.0
      %1705 = vmatpush1.msra.mxu0 0.0
      %1706 = vmatprep.subr.mxu0 0.0
      %1707 = vmatpush1.msra.mxu0 %v1311
      %1708 = vmatprep.subr.mxu0 0.0
      %1709 = vmatpush1.msra.mxu0 %v1307
      %1710 = vmatprep.subr.mxu0 0.0
      %1711 = vmatpush2.msra.mxu0 0.0
      %1712 = vmatprep.subr.mxu0 0.0
      %1713 = vmatpush2.msra.mxu0 0.0
      %1714 = vmatprep.subr.mxu0 0.0
      %1715 = vmatpush2.msra.mxu0 0.0
      %1716 = vmatprep.subr.mxu0 0.0
      %1717 = vmatpush2.msra.mxu0 0.0
      %1718 = vmatprep.subr.mxu0 0.0
      %1719 = vmatpush2.msra.mxu0 0.0
      %1720 = vmatprep.subr.mxu0 0.0
      %1721 = vmatpush2.msra.mxu0 0.0
      %1722 = vmatprep.subr.mxu0 0.0
      %1723 = vmatpush2.msra.mxu0 0.0
      %1724 = vmatprep.subr.mxu0 0.0
      %1725 = vmatpush2.msra.mxu0 0.0
      %1726 = vmatprep.subr.mxu0 0.0
      %1727 = vmatpush2.msra.mxu0 0.0
      %1728 = vmatprep.subr.mxu0 0.0
      %1729 = vmatpush2.msra.mxu0 0.0
      %1730 = vmatprep.subr.mxu0 0.0
      %1731 = vmatpush2.msra.mxu0 0.0
      %1732 = vmatprep.subr.mxu0 0.0
      %1733 = vmatpush2.msra.mxu0 0.0
      %1734 = vmatprep.subr.mxu0 0.0
      %1735 = vmatpush2.msra.mxu0 0.0
      %1736 = vmatprep.subr.mxu0 0.0
      %1737 = vmatpush2.msra.mxu0 0.0
      %1738 = vmatprep.subr.mxu0 0.0
      %1739 = vmatpush2.msra.mxu0 0.0
      %1740 = vmatprep.subr.mxu0 0.0
      %1741 = vmatpush2.msra.mxu0 0.0
      %1742 = vmatprep.mubr.f32.mxu0 0.0
      %1743 = vmatmul.mubr.f32.gmra.mxu0 %v769
      %v1744 = vpop.f32.mrf.mxu0
      %v1745 = vadd.f32 0.0, %v1744
      %v1746 = vpop.f32.mrf.mxu0
      %1747 = vmatprep.mubr.f32.mxu0 0.0
      %1748 = vmatmul.mubr.f32.gmra.mxu0 %v772
      %v1749 = vpop.f32.mrf.mxu0
      %v1750 = vadd.f32 0.0, %v1749
      %v1751 = vpop.f32.mrf.mxu0
      %1752 = vdwg.mxu0
      %v1753 = vadd.f32 %v1676, %v1745
      %v1754 = vadd.f32 %v1677, %v1750
      %1757 = vrot.lane.b32.xlu0 %v1307, 96
      %v1758 = vpop.permute.xlu0 %1757
      %1759 = vrot.lane.b32.xlu0 %v1311, 96
      %v1760 = vpop.permute.xlu0 %1759
      %1763 = vmatprep.subr.mxu0 0.0
      %1764 = vmatpush1.msra.mxu0 0.0
      %1765 = vmatprep.subr.mxu0 0.0
      %1766 = vmatpush1.msra.mxu0 0.0
      %1767 = vmatprep.subr.mxu0 0.0
      %1768 = vmatpush1.msra.mxu0 0.0
      %1769 = vmatprep.subr.mxu0 0.0
      %1770 = vmatpush1.msra.mxu0 0.0
      %1771 = vmatprep.subr.mxu0 0.0
      %1772 = vmatpush1.msra.mxu0 0.0
      %1773 = vmatprep.subr.mxu0 0.0
      %1774 = vmatpush1.msra.mxu0 0.0
      %1775 = vmatprep.subr.mxu0 0.0
      %1776 = vmatpush1.msra.mxu0 0.0
      %1777 = vmatprep.subr.mxu0 0.0
      %1778 = vmatpush1.msra.mxu0 0.0
      %1779 = vmatprep.subr.mxu0 0.0
      %1780 = vmatpush1.msra.mxu0 0.0
      %1781 = vmatprep.subr.mxu0 0.0
      %1782 = vmatpush1.msra.mxu0 0.0
      %1783 = vmatprep.subr.mxu0 0.0
      %1784 = vmatpush1.msra.mxu0 0.0
      %1785 = vmatprep.subr.mxu0 0.0
      %1786 = vmatpush1.msra.mxu0 0.0
      %1787 = vmatprep.subr.mxu0 0.0
      %1788 = vmatpush1.msra.mxu0 0.0
      %1789 = vmatprep.subr.mxu0 0.0
      %1790 = vmatpush1.msra.mxu0 0.0
      %1791 = vmatprep.subr.mxu0 0.0
      %1792 = vmatpush1.msra.mxu0 %v1760
      %1793 = vmatprep.subr.mxu0 0.0
      %1794 = vmatpush1.msra.mxu0 %v1758
      %1795 = vmatprep.subr.mxu0 0.0
      %1796 = vmatpush2.msra.mxu0 0.0
      %1797 = vmatprep.subr.mxu0 0.0
      %1798 = vmatpush2.msra.mxu0 0.0
      %1799 = vmatprep.subr.mxu0 0.0
      %1800 = vmatpush2.msra.mxu0 0.0
      %1801 = vmatprep.subr.mxu0 0.0
      %1802 = vmatpush2.msra.mxu0 0.0
      %1803 = vmatprep.subr.mxu0 0.0
      %1804 = vmatpush2.msra.mxu0 0.0
      %1805 = vmatprep.subr.mxu0 0.0
      %1806 = vmatpush2.msra.mxu0 0.0
      %1807 = vmatprep.subr.mxu0 0.0
      %1808 = vmatpush2.msra.mxu0 0.0
      %1809 = vmatprep.subr.mxu0 0.0
      %1810 = vmatpush2.msra.mxu0 0.0
      %1811 = vmatprep.subr.mxu0 0.0
      %1812 = vmatpush2.msra.mxu0 0.0
      %1813 = vmatprep.subr.mxu0 0.0
      %1814 = vmatpush2.msra.mxu0 0.0
      %1815 = vmatprep.subr.mxu0 0.0
      %1816 = vmatpush2.msra.mxu0 0.0
      %1817 = vmatprep.subr.mxu0 0.0
      %1818 = vmatpush2.msra.mxu0 0.0
      %1819 = vmatprep.subr.mxu0 0.0
      %1820 = vmatpush2.msra.mxu0 0.0
      %1821 = vmatprep.subr.mxu0 0.0
      %1822 = vmatpush2.msra.mxu0 0.0
      %1823 = vmatprep.subr.mxu0 0.0
      %1824 = vmatpush2.msra.mxu0 0.0
      %1825 = vmatprep.subr.mxu0 0.0
      %1826 = vmatpush2.msra.mxu0 0.0
      %1827 = vmatprep.mubr.f32.mxu0 0.0
      %1828 = vmatmul.mubr.f32.gmra.mxu0 %v863
      %v1829 = vpop.f32.mrf.mxu0
      %v1830 = vadd.f32 0.0, %v1829
      %v1831 = vpop.f32.mrf.mxu0
      %1832 = vmatprep.mubr.f32.mxu0 0.0
      %1833 = vmatmul.mubr.f32.gmra.mxu0 %v866
      %v1834 = vpop.f32.mrf.mxu0
      %v1835 = vadd.f32 0.0, %v1834
      %v1836 = vpop.f32.mrf.mxu0
      %1837 = vdwg.mxu0
      %v1838 = vadd.f32 %v1753, %v1830
      %v1839 = vadd.f32 %v1754, %v1835
      %1840 = vrot.lane.b32.xlu0 %v1307, 64
      %v1841 = vpop.permute.xlu0 %1840
      %1842 = vrot.lane.b32.xlu0 %v1311, 64
      %v1843 = vpop.permute.xlu0 %1842
      %1846 = vmatprep.subr.mxu0 0.0
      %1847 = vmatpush1.msra.mxu0 0.0
      %1848 = vmatprep.subr.mxu0 0.0
      %1849 = vmatpush1.msra.mxu0 0.0
      %1850 = vmatprep.subr.mxu0 0.0
      %1851 = vmatpush1.msra.mxu0 0.0
      %1852 = vmatprep.subr.mxu0 0.0
      %1853 = vmatpush1.msra.mxu0 0.0
      %1854 = vmatprep.subr.mxu0 0.0
      %1855 = vmatpush1.msra.mxu0 0.0
      %1856 = vmatprep.subr.mxu0 0.0
      %1857 = vmatpush1.msra.mxu0 0.0
      %1858 = vmatprep.subr.mxu0 0.0
      %1859 = vmatpush1.msra.mxu0 0.0
      %1860 = vmatprep.subr.mxu0 0.0
      %1861 = vmatpush1.msra.mxu0 0.0
      %1862 = vmatprep.subr.mxu0 0.0
      %1863 = vmatpush1.msra.mxu0 0.0
      %1864 = vmatprep.subr.mxu0 0.0
      %1865 = vmatpush1.msra.mxu0 0.0
      %1866 = vmatprep.subr.mxu0 0.0
      %1867 = vmatpush1.msra.mxu0 0.0
      %1868 = vmatprep.subr.mxu0 0.0
      %1869 = vmatpush1.msra.mxu0 0.0
      %1870 = vmatprep.subr.mxu0 0.0
      %1871 = vmatpush1.msra.mxu0 0.0
      %1872 = vmatprep.subr.mxu0 0.0
      %1873 = vmatpush1.msra.mxu0 0.0
      %1874 = vmatprep.subr.mxu0 0.0
      %1875 = vmatpush1.msra.mxu0 %v1843
      %1876 = vmatprep.subr.mxu0 0.0
      %1877 = vmatpush1.msra.mxu0 %v1841
      %1878 = vmatprep.subr.mxu0 0.0
      %1879 = vmatpush2.msra.mxu0 0.0
      %1880 = vmatprep.subr.mxu0 0.0
      %1881 = vmatpush2.msra.mxu0 0.0
      %1882 = vmatprep.subr.mxu0 0.0
      %1883 = vmatpush2.msra.mxu0 0.0
      %1884 = vmatprep.subr.mxu0 0.0
      %1885 = vmatpush2.msra.mxu0 0.0
      %1886 = vmatprep.subr.mxu0 0.0
      %1887 = vmatpush2.msra.mxu0 0.0
      %1888 = vmatprep.subr.mxu0 0.0
      %1889 = vmatpush2.msra.mxu0 0.0
      %1890 = vmatprep.subr.mxu0 0.0
      %1891 = vmatpush2.msra.mxu0 0.0
      %1892 = vmatprep.subr.mxu0 0.0
      %1893 = vmatpush2.msra.mxu0 0.0
      %1894 = vmatprep.subr.mxu0 0.0
      %1895 = vmatpush2.msra.mxu0 0.0
      %1896 = vmatprep.subr.mxu0 0.0
      %1897 = vmatpush2.msra.mxu0 0.0
      %1898 = vmatprep.subr.mxu0 0.0
      %1899 = vmatpush2.msra.mxu0 0.0
      %1900 = vmatprep.subr.mxu0 0.0
      %1901 = vmatpush2.msra.mxu0 0.0
      %1902 = vmatprep.subr.mxu0 0.0
      %1903 = vmatpush2.msra.mxu0 0.0
      %1904 = vmatprep.subr.mxu0 0.0
      %1905 = vmatpush2.msra.mxu0 0.0
      %1906 = vmatprep.subr.mxu0 0.0
      %1907 = vmatpush2.msra.mxu0 0.0
      %1908 = vmatprep.subr.mxu0 0.0
      %1909 = vmatpush2.msra.mxu0 0.0
      %1910 = vmatprep.mubr.f32.mxu0 0.0
      %1911 = vmatmul.mubr.f32.gmra.mxu0 %v955
      %v1912 = vpop.f32.mrf.mxu0
      %v1913 = vadd.f32 0.0, %v1912
      %v1914 = vpop.f32.mrf.mxu0
      %1915 = vmatprep.mubr.f32.mxu0 0.0
      %1916 = vmatmul.mubr.f32.gmra.mxu0 %v958
      %v1917 = vpop.f32.mrf.mxu0
      %v1918 = vadd.f32 0.0, %v1917
      %v1919 = vpop.f32.mrf.mxu0
      %1920 = vdwg.mxu0
      %v1921 = vadd.f32 %v1838, %v1913
      %v1922 = vadd.f32 %v1839, %v1918
      %1923 = vrot.lane.b32.xlu0 %v1307, 32
      %v1924 = vpop.permute.xlu0 %1923
      %1925 = vrot.lane.b32.xlu0 %v1311, 32
      %v1926 = vpop.permute.xlu0 %1925
      %1929 = vmatprep.subr.mxu0 0.0
      %1930 = vmatpush1.msra.mxu0 0.0
      %1931 = vmatprep.subr.mxu0 0.0
      %1932 = vmatpush1.msra.mxu0 0.0
      %1933 = vmatprep.subr.mxu0 0.0
      %1934 = vmatpush1.msra.mxu0 0.0
      %1935 = vmatprep.subr.mxu0 0.0
      %1936 = vmatpush1.msra.mxu0 0.0
      %1937 = vmatprep.subr.mxu0 0.0
      %1938 = vmatpush1.msra.mxu0 0.0
      %1939 = vmatprep.subr.mxu0 0.0
      %1940 = vmatpush1.msra.mxu0 0.0
      %1941 = vmatprep.subr.mxu0 0.0
      %1942 = vmatpush1.msra.mxu0 0.0
      %1943 = vmatprep.subr.mxu0 0.0
      %1944 = vmatpush1.msra.mxu0 0.0
      %1945 = vmatprep.subr.mxu0 0.0
      %1946 = vmatpush1.msra.mxu0 0.0
      %1947 = vmatprep.subr.mxu0 0.0
      %1948 = vmatpush1.msra.mxu0 0.0
      %1949 = vmatprep.subr.mxu0 0.0
      %1950 = vmatpush1.msra.mxu0 0.0
      %1951 = vmatprep.subr.mxu0 0.0
      %1952 = vmatpush1.msra.mxu0 0.0
      %1953 = vmatprep.subr.mxu0 0.0
      %1954 = vmatpush1.msra.mxu0 0.0
      %1955 = vmatprep.subr.mxu0 0.0
      %1956 = vmatpush1.msra.mxu0 0.0
      %1957 = vmatprep.subr.mxu0 0.0
      %1958 = vmatpush1.msra.mxu0 %v1926
      %1959 = vmatprep.subr.mxu0 0.0
      %1960 = vmatpush1.msra.mxu0 %v1924
      %1961 = vmatprep.subr.mxu0 0.0
      %1962 = vmatpush2.msra.mxu0 0.0
      %1963 = vmatprep.subr.mxu0 0.0
      %1964 = vmatpush2.msra.mxu0 0.0
      %1965 = vmatprep.subr.mxu0 0.0
      %1966 = vmatpush2.msra.mxu0 0.0
      %1967 = vmatprep.subr.mxu0 0.0
      %1968 = vmatpush2.msra.mxu0 0.0
      %1969 = vmatprep.subr.mxu0 0.0
      %1970 = vmatpush2.msra.mxu0 0.0
      %1971 = vmatprep.subr.mxu0 0.0
      %1972 = vmatpush2.msra.mxu0 0.0
      %1973 = vmatprep.subr.mxu0 0.0
      %1974 = vmatpush2.msra.mxu0 0.0
      %1975 = vmatprep.subr.mxu0 0.0
      %1976 = vmatpush2.msra.mxu0 0.0
      %1977 = vmatprep.subr.mxu0 0.0
      %1978 = vmatpush2.msra.mxu0 0.0
      %1979 = vmatprep.subr.mxu0 0.0
      %1980 = vmatpush2.msra.mxu0 0.0
      %1981 = vmatprep.subr.mxu0 0.0
      %1982 = vmatpush2.msra.mxu0 0.0
      %1983 = vmatprep.subr.mxu0 0.0
      %1984 = vmatpush2.msra.mxu0 0.0
      %1985 = vmatprep.subr.mxu0 0.0
      %1986 = vmatpush2.msra.mxu0 0.0
      %1987 = vmatprep.subr.mxu0 0.0
      %1988 = vmatpush2.msra.mxu0 0.0
      %1989 = vmatprep.subr.mxu0 0.0
      %1990 = vmatpush2.msra.mxu0 0.0
      %1991 = vmatprep.subr.mxu0 0.0
      %1992 = vmatpush2.msra.mxu0 0.0
      %1993 = vmatprep.mubr.f32.mxu0 0.0
      %1994 = vmatmul.mubr.f32.gmra.mxu0 %v1047
      %v1995 = vpop.f32.mrf.mxu0
      %v1996 = vadd.f32 0.0, %v1995
      %v1997 = vpop.f32.mrf.mxu0
      %1998 = vmatprep.mubr.f32.mxu0 0.0
      %1999 = vmatmul.mubr.f32.gmra.mxu0 %v1050
      %v2000 = vpop.f32.mrf.mxu0
      %v2001 = vadd.f32 0.0, %v2000
      %v2002 = vpop.f32.mrf.mxu0
      %2003 = vdwg.mxu0
      %v2004 = vadd.f32 %v1921, %v1996
      %v2005 = vadd.f32 %v1922, %v2001
      %2006 = vmatprep.subr.mxu0 0.0
      %2007 = vmatpush1.msra.mxu0 0.0
      %2008 = vmatprep.subr.mxu0 0.0
      %2009 = vmatpush1.msra.mxu0 0.0
      %2010 = vmatprep.subr.mxu0 0.0
      %2011 = vmatpush1.msra.mxu0 0.0
      %2012 = vmatprep.subr.mxu0 0.0
      %2013 = vmatpush1.msra.mxu0 0.0
      %2014 = vmatprep.subr.mxu0 0.0
      %2015 = vmatpush1.msra.mxu0 0.0
      %2016 = vmatprep.subr.mxu0 0.0
      %2017 = vmatpush1.msra.mxu0 0.0
      %2018 = vmatprep.subr.mxu0 0.0
      %2019 = vmatpush1.msra.mxu0 0.0
      %2020 = vmatprep.subr.mxu0 0.0
      %2021 = vmatpush1.msra.mxu0 0.0
      %2022 = vmatprep.subr.mxu0 0.0
      %2023 = vmatpush1.msra.mxu0 0.0
      %2024 = vmatprep.subr.mxu0 0.0
      %2025 = vmatpush1.msra.mxu0 0.0
      %2026 = vmatprep.subr.mxu0 0.0
      %2027 = vmatpush1.msra.mxu0 0.0
      %2028 = vmatprep.subr.mxu0 0.0
      %2029 = vmatpush1.msra.mxu0 0.0
      %2030 = vmatprep.subr.mxu0 0.0
      %2031 = vmatpush1.msra.mxu0 0.0
      %2032 = vmatprep.subr.mxu0 0.0
      %2033 = vmatpush1.msra.mxu0 0.0
      %2034 = vmatprep.subr.mxu0 0.0
      %2035 = vmatpush1.msra.mxu0 %v1351
      %2036 = vmatprep.subr.mxu0 0.0
      %2037 = vmatpush1.msra.mxu0 %v1348
      %2038 = vmatprep.subr.mxu0 0.0
      %2039 = vmatpush2.msra.mxu0 0.0
      %2040 = vmatprep.subr.mxu0 0.0
      %2041 = vmatpush2.msra.mxu0 0.0
      %2042 = vmatprep.subr.mxu0 0.0
      %2043 = vmatpush2.msra.mxu0 0.0
      %2044 = vmatprep.subr.mxu0 0.0
      %2045 = vmatpush2.msra.mxu0 0.0
      %2046 = vmatprep.subr.mxu0 0.0
      %2047 = vmatpush2.msra.mxu0 0.0
      %2048 = vmatprep.subr.mxu0 0.0
      %2049 = vmatpush2.msra.mxu0 0.0
      %2050 = vmatprep.subr.mxu0 0.0
      %2051 = vmatpush2.msra.mxu0 0.0
      %2052 = vmatprep.subr.mxu0 0.0
      %2053 = vmatpush2.msra.mxu0 0.0
      %2054 = vmatprep.subr.mxu0 0.0
      %2055 = vmatpush2.msra.mxu0 0.0
      %2056 = vmatprep.subr.mxu0 0.0
      %2057 = vmatpush2.msra.mxu0 0.0
      %2058 = vmatprep.subr.mxu0 0.0
      %2059 = vmatpush2.msra.mxu0 0.0
      %2060 = vmatprep.subr.mxu0 0.0
      %2061 = vmatpush2.msra.mxu0 0.0
      %2062 = vmatprep.subr.mxu0 0.0
      %2063 = vmatpush2.msra.mxu0 0.0
      %2064 = vmatprep.subr.mxu0 0.0
      %2065 = vmatpush2.msra.mxu0 0.0
      %2066 = vmatprep.subr.mxu0 0.0
      %2067 = vmatpush2.msra.mxu0 0.0
      %2068 = vmatprep.subr.mxu0 0.0
      %2069 = vmatpush2.msra.mxu0 0.0
      %2070 = vmatprep.mubr.f32.mxu0 0.0
      %2071 = vmatmul.mubr.f32.gmra.mxu0 %v1133
      %v2072 = vpop.f32.mrf.mxu0
      %v2073 = vadd.f32 0.0, %v2072
      %v2074 = vpop.f32.mrf.mxu0
      %2075 = vmatprep.mubr.f32.mxu0 0.0
      %2076 = vmatmul.mubr.f32.gmra.mxu0 %v1136
      %v2077 = vpop.f32.mrf.mxu0
      %v2078 = vadd.f32 0.0, %v2077
      %v2079 = vpop.f32.mrf.mxu0
      %2080 = vdwg.mxu0
      %v2081 = vadd.f32 %v2004, %v2073
      %v2082 = vadd.f32 %v2005, %v2078
      %v2083 = vld [vmem:[%s5] sm:$0x1]
      %v2085 = vlaneseq
      %v2086 = vshrl.u32 %v2085, 7
      %v2087 = vsub.s32 0, %v2086
      %v2088 = vrot.slane %v2083, %v2087
      %v2090 = vadd.f32 %v2081, %v2088
      %v2091 = vadd.f32 %v2082, %v2088
      %2092 = vst.msk [vmem:[%s263] sm:$0xff] %vm317, %v2090
      %2093 = vst.msk [vmem:[%s263 + $0x8] sm:$0xff] %vm317, %v2091
      %p2094 = scmp.lt.s32.totalorder %s21, 1
      %s2095 = scalar_select %p2094, %s21, 1
      %s2096 = smul.addr %s2095, 2
      %s2097 = smul.addr %s2096, 8
      %s2098 = scalar_lea.vmem %s6, %s2097
      // Predicated region
      $region49: #{generator_forward.10} parent=43 // pred_check
        %p2099 = pneg %p178
      $region50: #{generator_forward.10} parent=43 // pred_check_branch
        %2101 = sbr.rel (%p2099) target = $region52
      $region51: #{generator_forward.10} parent=43 // pred_region
        _
      $region52: #{generator_forward.10} parent=43 // pred_fallthru
        _
    $region44: #{generator_forward.10} parent=5 // pred_fallthru
      _
    %p2102 = scmp.le.s32.totalorder 2, %s12
    // Predicated region
    $region53: #{generator_forward.10} parent=5 // pred_check
      %p2103 = pneg %p2102
    $region54: #{generator_forward.10} parent=5 // pred_check_branch
      %2105 = sbr.rel (%p2103) target = $region56
    $region55: #{generator_forward.10} parent=5 // pred_region
      %s2106 = ssub.s32 %s12, 2
      // Predicated region
      $region57: #{generator_forward.10} parent=55 // pred_check
        %p2107 = pneg %p184
      $region58: #{generator_forward.10} parent=55 // pred_check_branch
        %2109 = sbr.rel (%p2107) target = $region60
      $region59: #{generator_forward.10} parent=55 // pred_region
        %p2110 = scmp.lt.s32.totalorder %s23, 1
        %s2111 = scalar_select %p2110, %s23, 1
        %s2112 = smul.addr %s2111, 2
        %s2113 = smul.addr %s2112, 8
        %s2114 = scalar_lea.vmem %s6, %s2113
      $region60: #{generator_forward.10} parent=55 // pred_fallthru
        _
    $region56: #{generator_forward.10} parent=5 // pred_fallthru
      _
  $region6: #{generator_forward.10} parent=0 // loop_footer
    %s16 = sadd.s32 1, %s12
  $region7: #{generator_forward.10} parent=0 // loop_footer_branch
    %11 = sbr.rel target = $region3
  $region8: #{generator_forward.10} parent=0 // loop_exit
    _

// kernel: generator_forward.11
$region0: #{generator_forward.11}
  #allocation0 [shape = 'u32[]', space=smem, size = 0x4, offset = 0x4, fixed_abs, tag = 'smem constant byte address 0x4 - core index']
  #allocation1 [shape = 'u32[144,128]{1,0:T(1,128)}', space=vmem, size = 0x12000, scoped, tag = 'internal scratch']
  %s0 = inlined_call_operand.vmem [shape: bf16[2,4,16,128], index: 0, kind: input, shape index: {}]
  %s1 = inlined_call_operand.vmem [shape: bf16[4,128,16], index: 1, kind: input, shape index: {}]
  %s2 = inlined_call_operand.vmem [shape: f32[1,16], index: 2, kind: input, shape index: {}]
  %s3 = inlined_call_operand.vmem [shape: f32[2,4,16,16], index: 3, kind: output, shape index: {}]
  %s4 = sld [smem:[#allocation0]]
  $region45: #{generator_forward.11} parent=0
    _
  %s6 = ssub.s32 1, %s4
  %s7 = scalar_select 0, %s6, %s4
  loop: start=0, step=1, limit=4
  $region2: #{generator_forward.11} parent=0 // loop_pre_header
    _
  $region3: #{generator_forward.11} parent=0 // loop_header
    %s9 = sphi 0, %s13
    %p10 = scmp.ge.s32.totalorder %s9, 4
    %s19 = sphi 0, %s21
    %s22 = sphi 0, %s19
    %s23 = sphi 0, %s22
    %s39 = sphi 0, %s23
    %s43 = sphi 0, %s43
    %s45 = sphi 0, %s43
    %s46 = sphi 0, %s45
    %s60 = sphi 0, %s46
    %s64 = sphi 0, %s64
    %s66 = sphi 0, %s64
    %s67 = sphi 0, %s66
    %s81 = sphi 0, %s67
    %s87 = sphi 0, %s89
    %s90 = sphi 0, %s87
    %s91 = sphi 0, %s90
    %s107 = sphi 0, %s91
  $region4: #{generator_forward.11} parent=0 // loop_header_branch
    %12 = sbr.rel (%p10) target = $region8
  $region5: #{generator_forward.11} parent=0 // loop_body
    %s14 = ssub.s32 %s9, 1
    %s15 = ssub.s32 %s9, 2
    %s16 = sadd.s32 %s9, 1
    %s17 = ssub.s32 %s9, %s16
    %p18 = scmp.eq.s32.totalorder %s17, 0
    %s20 = sadd.s32 %s19, 1
    %s21 = scalar_select %p18, %s19, %s20
    %p24 = pneg %p18
    %p25 = scmp.eq.s32.totalorder %s9, 1
    %p26 = por %p24, %p25
    %p27 = scmp.ne.s32.totalorder %s19, %s22
    %p28 = scmp.eq.s32.totalorder %s9, 0
    %p29 = por %p27, %p28
    %p30 = scmp.ne.s32.totalorder %s19, %s22
    %p31 = scmp.eq.s32.totalorder %s14, 1
    %p32 = por %p30, %p31
    %p33 = scmp.ne.s32.totalorder %s22, %s23
    %p34 = scmp.eq.s32.totalorder %s14, 0
    %p35 = por %p33, %p34
    %p36 = scmp.ne.s32.totalorder %s22, %s23
    %p37 = scmp.eq.s32.totalorder %s15, 1
    %p38 = por %p36, %p37
    %p40 = scmp.ne.s32.totalorder %s23, %s39
    %p41 = scmp.eq.s32.totalorder %s15, 0
    %p42 = por %p40, %p41
    %s44 = sadd.s32 %s43, 1
    %p47 = scmp.eq.s32.totalorder %s9, 1
    %p48 = scmp.ne.s32.totalorder %s43, %s45
    %p49 = scmp.eq.s32.totalorder %s9, 0
    %p50 = por %p48, %p49
    %p51 = scmp.ne.s32.totalorder %s43, %s45
    %p52 = scmp.eq.s32.totalorder %s14, 1
    %p53 = por %p51, %p52
    %p54 = scmp.ne.s32.totalorder %s45, %s46
    %p55 = scmp.eq.s32.totalorder %s14, 0
    %p56 = por %p54, %p55
    %p57 = scmp.ne.s32.totalorder %s45, %s46
    %p58 = scmp.eq.s32.totalorder %s15, 1
    %p59 = por %p57, %p58
    %p61 = scmp.ne.s32.totalorder %s46, %s60
    %p62 = scmp.eq.s32.totalorder %s15, 0
    %p63 = por %p61, %p62
    %s65 = sadd.s32 %s64, 1
    %p68 = scmp.eq.s32.totalorder %s9, 1
    %p69 = scmp.ne.s32.totalorder %s64, %s66
    %p70 = scmp.eq.s32.totalorder %s9, 0
    %p71 = por %p69, %p70
    %p72 = scmp.ne.s32.totalorder %s64, %s66
    %p73 = scmp.eq.s32.totalorder %s14, 1
    %p74 = por %p72, %p73
    %p75 = scmp.ne.s32.totalorder %s66, %s67
    %p76 = scmp.eq.s32.totalorder %s14, 0
    %p77 = por %p75, %p76
    %p78 = scmp.ne.s32.totalorder %s66, %s67
    %p79 = scmp.eq.s32.totalorder %s15, 1
    %p80 = por %p78, %p79
    %p82 = scmp.ne.s32.totalorder %s67, %s81
    %p83 = scmp.eq.s32.totalorder %s15, 0
    %p84 = por %p82, %p83
    %s85 = ssub.s32 %s9, %s16
    %p86 = scmp.eq.s32.totalorder %s85, 0
    %s88 = sadd.s32 %s87, 1
    %s89 = scalar_select %p86, %s87, %s88
    %p92 = pneg %p86
    %p93 = scmp.eq.s32.totalorder %s9, 1
    %p94 = por %p92, %p93
    %p95 = scmp.ne.s32.totalorder %s87, %s90
    %p96 = scmp.eq.s32.totalorder %s9, 0
    %p97 = por %p95, %p96
    %p98 = scmp.ne.s32.totalorder %s87, %s90
    %p99 = scmp.eq.s32.totalorder %s14, 1
    %p100 = por %p98, %p99
    %p101 = scmp.ne.s32.totalorder %s90, %s91
    %p102 = scmp.eq.s32.totalorder %s14, 0
    %p103 = por %p101, %p102
    %p104 = scmp.ne.s32.totalorder %s90, %s91
    %p105 = scmp.eq.s32.totalorder %s15, 1
    %p106 = por %p104, %p105
    %p108 = scmp.ne.s32.totalorder %s91, %s107
    %p109 = scmp.eq.s32.totalorder %s15, 0
    %p110 = por %p108, %p109
    %p111 = scmp.le.s32.totalorder 1, %s9
    %p112 = scmp.lt.s32.totalorder %s9, 3
    %p113 = pnand %p111, %p112
    %p114 = pneg %p113
    // Predicated region
    $region9: #{generator_forward.11} parent=5 // pred_check
      _
    $region10: #{generator_forward.11} parent=5 // pred_check_branch
      %116 = sbr.rel (%p113) target = $region12
    $region11: #{generator_forward.11} parent=5 // pred_region
      %s117 = ssub.s32 %s9, 1
      // Predicated region
      $region13: #{generator_forward.11} parent=11 // pred_check
        %p118 = pneg %p56
      $region14: #{generator_forward.11} parent=11 // pred_check_branch
        %120 = sbr.rel (%p118) target = $region16
      $region15: #{generator_forward.11} parent=11 // pred_region
        _
      $region16: #{generator_forward.11} parent=11 // pred_fallthru
        _
      // Predicated region
      $region17: #{generator_forward.11} parent=11 // pred_check
        %p121 = pneg %p77
      $region18: #{generator_forward.11} parent=11 // pred_check_branch
        %123 = sbr.rel (%p121) target = $region20
      $region19: #{generator_forward.11} parent=11 // pred_region
        _
      $region20: #{generator_forward.11} parent=11 // pred_fallthru
        _
    $region12: #{generator_forward.11} parent=5 // pred_fallthru
      _
    %p124 = scmp.lt.s32.totalorder %s9, 2
    // Predicated region
    $region21: #{generator_forward.11} parent=5 // pred_check
      %p125 = pneg %p124
    $region22: #{generator_forward.11} parent=5 // pred_check_branch
      %127 = sbr.rel (%p125) target = $region24
    $region23: #{generator_forward.11} parent=5 // pred_region
      // Predicated region
      $region25: #{generator_forward.11} parent=23 // pred_check
        %p128 = pneg %p29
      $region26: #{generator_forward.11} parent=23 // pred_check_branch
        %130 = sbr.rel (%p128) target = $region28
      $region27: #{generator_forward.11} parent=23 // pred_region
        %p131 = scmp.lt.s32.totalorder %s9, 1
        %s132 = scalar_select %p131, %s9, 1
        %s133 = smul.addr %s132, 8
        %s134 = smul.addr %s133, 4
        %s135 = scalar_lea.vmem %s0, %s134
      $region28: #{generator_forward.11} parent=23 // pred_fallthru
        _
    $region24: #{generator_forward.11} parent=5 // pred_fallthru
      _
    %p136 = scmp.le.s32.totalorder 1, %s9
    %p137 = scmp.lt.s32.totalorder %s9, 3
    %p138 = pnand %p136, %p137
    %p139 = pneg %p138
    // Predicated region
    $region29: #{generator_forward.11} parent=5 // pred_check
      _
    $region30: #{generator_forward.11} parent=5 // pred_check_branch
      %141 = sbr.rel (%p138) target = $region32
    $region31: #{generator_forward.11} parent=5 // pred_region
      %s142 = ssub.s32 %s9, 1
      %p143 = scmp.lt.s32.totalorder %s14, 1
      %s144 = scalar_select %p143, %s14, 1
      %s145 = smul.addr %s144, 8
      %s146 = smul.addr %s145, 4
      %s147 = scalar_lea.vmem %s0, %s146
      %p148 = pneg %p35
      %p149 = pneg %p32
      %p150 = pneg %p56
      %p151 = pneg %p53
      %p152 = pneg %p77
      %p153 = pneg %p74
      %p154 = pneg %p103
      %p155 = pneg %p100
      %p156 = scmp.lt.s32.totalorder %s14, 1
      %s157 = scalar_select %p156, %s14, 1
      %s158 = smul.addr %s157, 8
      %s159 = smul.addr %s158, 8
      %s160 = scalar_lea.vmem %s3, %s159
      %p161 = scmp.lt.s32.totalorder %s14, 1
      %s162 = scalar_select %p161, %s14, 1
      %s163 = smul.addr %s162, 8
      %s164 = smul.addr %s163, 4
      %s165 = scalar_lea.vmem %s0, %s164
      %p166 = scmp.lt.s32.totalorder %s14, 1
      %s167 = scalar_select %p166, %s14, 1
      %s168 = smul.addr %s167, 8
      %s169 = smul.addr %s168, 8
      %s170 = scalar_lea.vmem %s3, %s169
      %v172 = vld [vmem:[%s2] sm:$0x1]
      %v173 = vld [vmem:[%s165] sm:$0xf]
      %v174 = vld [vmem:[%s165 + $0x4] sm:$0xf]
      %v175 = vld [vmem:[%s1] sm:$0xf]
      %v176 = vld [vmem:[%s1 + $0x4] sm:$0xf]
      %v177 = vld [vmem:[%s1 + $0x8] sm:$0xf]
      %v178 = vld [vmem:[%s1 + $0xc] sm:$0xf]
      %v179 = vld [vmem:[%s1 + $0x10] sm:$0xf]
      %v180 = vld [vmem:[%s1 + $0x14] sm:$0xf]
      %v181 = vld [vmem:[%s1 + $0x18] sm:$0xf]
      %v182 = vld [vmem:[%s1 + $0x1c] sm:$0xf]
      %v183 = vld [vmem:[%s1 + $0x20] sm:$0xf]
      %v184 = vld [vmem:[%s1 + $0x24] sm:$0xf]
      %v185 = vld [vmem:[%s1 + $0x28] sm:$0xf]
      %v186 = vld [vmem:[%s1 + $0x2c] sm:$0xf]
      %v187 = vld [vmem:[%s1 + $0x30] sm:$0xf]
      %v188 = vld [vmem:[%s1 + $0x34] sm:$0xf]
      %v189 = vld [vmem:[%s1 + $0x38] sm:$0xf]
      %v190 = vld [vmem:[%s1 + $0x3c] sm:$0xf]
      %v192 = vlaneseq
      %v193 = vshrl.u32 %v192, 7
      %v194 = vsub.s32 0, %v193
      %v195 = vrot.slane %v172, %v194
      %v199 = vunpack.c.l.b16 %v173
      %v200 = vunpack.c.l.b16 %v174
      %v201 = vpack.c.b16 %v200, %v199
      %v219 = vunpack.c.l.b16 %v175
      %v220 = vunpack.c.l.b16 %v176
      %v221 = vunpack.c.l.b16 %v177
      %v222 = vunpack.c.l.b16 %v178
      %v223 = vunpack.c.l.b16 %v179
      %v224 = vunpack.c.l.b16 %v180
      %v225 = vunpack.c.l.b16 %v181
      %v226 = vunpack.c.l.b16 %v182
      %v227 = vunpack.c.l.b16 %v183
      %v228 = vunpack.c.l.b16 %v184
      %v229 = vunpack.c.l.b16 %v185
      %v230 = vunpack.c.l.b16 %v186
      %v231 = vunpack.c.l.b16 %v187
      %v232 = vunpack.c.l.b16 %v188
      %v233 = vunpack.c.l.b16 %v189
      %v234 = vunpack.c.l.b16 %v190
      %v235 = vpack.c.b16 %v220, %v219
      %v236 = vpack.c.b16 %v222, %v221
      %v237 = vpack.c.b16 %v224, %v223
      %v238 = vpack.c.b16 %v226, %v225
      %v239 = vpack.c.b16 %v228, %v227
      %v240 = vpack.c.b16 %v230, %v229
      %v241 = vpack.c.b16 %v232, %v231
      %v242 = vpack.c.b16 %v234, %v233
      %251 = vmatprep.subr.bf16.mxu0 0
      %252 = vmatpush1.bf16.msra.mxu0 %v242
      %253 = vmatprep.subr.bf16.mxu0 0
      %254 = vmatpush1.bf16.msra.mxu0 %v241
      %255 = vmatprep.subr.bf16.mxu0 0
      %256 = vmatpush1.bf16.msra.mxu0 %v240
      %257 = vmatprep.subr.bf16.mxu0 0
      %258 = vmatpush1.bf16.msra.mxu0 %v239
      %259 = vmatprep.subr.bf16.mxu0 0
      %260 = vmatpush1.bf16.msra.mxu0 %v238
      %261 = vmatprep.subr.bf16.mxu0 0
      %262 = vmatpush1.bf16.msra.mxu0 %v237
      %263 = vmatprep.subr.bf16.mxu0 0
      %264 = vmatpush1.bf16.msra.mxu0 %v236
      %265 = vmatprep.subr.bf16.mxu0 0
      %266 = vmatpush1.bf16.msra.mxu0 %v235
      %267 = vmatprep.subr.bf16.mxu0 0
      %268 = vmatpush2.bf16.msra.mxu0 0
      %269 = vmatprep.subr.bf16.mxu0 0
      %270 = vmatpush2.bf16.msra.mxu0 0
      %271 = vmatprep.subr.bf16.mxu0 0
      %272 = vmatpush2.bf16.msra.mxu0 0
      %273 = vmatprep.subr.bf16.mxu0 0
      %274 = vmatpush2.bf16.msra.mxu0 0
      %275 = vmatprep.subr.bf16.mxu0 0
      %276 = vmatpush2.bf16.msra.mxu0 0
      %277 = vmatprep.subr.bf16.mxu0 0
      %278 = vmatpush2.bf16.msra.mxu0 0
      %279 = vmatprep.subr.bf16.mxu0 0
      %280 = vmatpush2.bf16.msra.mxu0 0
      %281 = vmatprep.subr.bf16.mxu0 0
      %282 = vmatpush2.bf16.msra.mxu0 0
      %283 = vmatprep.mubr.bf16.mxu0 0
      %284 = vmatmul.mubr.bf16.gmra.mxu0 %v201
      %v285 = vpop.f32.mrf.mxu0
      %v286 = vadd.f32 %v195, %v285
      %v287 = vpop.f32.mrf.mxu0
      %v288 = vpop.f32.mrf.mxu0
      %v289 = vadd.f32 %v195, %v288
      %v290 = vpop.f32.mrf.mxu0
      %291 = vdwg.mxu0
      %s292 = scalar_lea.vmem %s165, 8
      %v293 = vld [vmem:[%s292] sm:$0xf]
      %v294 = vld [vmem:[%s292 + $0x4] sm:$0xf]
      %s295 = scalar_lea.vmem %s1, 64
      %v296 = vld [vmem:[%s295] sm:$0xf]
      %v297 = vld [vmem:[%s295 + $0x4] sm:$0xf]
      %v298 = vld [vmem:[%s295 + $0x8] sm:$0xf]
      %v299 = vld [vmem:[%s295 + $0xc] sm:$0xf]
      %v300 = vld [vmem:[%s295 + $0x10] sm:$0xf]
      %v301 = vld [vmem:[%s295 + $0x14] sm:$0xf]
      %v302 = vld [vmem:[%s295 + $0x18] sm:$0xf]
      %v303 = vld [vmem:[%s295 + $0x1c] sm:$0xf]
      %v304 = vld [vmem:[%s295 + $0x20] sm:$0xf]
      %v305 = vld [vmem:[%s295 + $0x24] sm:$0xf]
      %v306 = vld [vmem:[%s295 + $0x28] sm:$0xf]
      %v307 = vld [vmem:[%s295 + $0x2c] sm:$0xf]
      %v308 = vld [vmem:[%s295 + $0x30] sm:$0xf]
      %v309 = vld [vmem:[%s295 + $0x34] sm:$0xf]
      %v310 = vld [vmem:[%s295 + $0x38] sm:$0xf]
      %v311 = vld [vmem:[%s295 + $0x3c] sm:$0xf]
      %v314 = vunpack.c.l.b16 %v293
      %v315 = vunpack.c.l.b16 %v294
      %v316 = vpack.c.b16 %v315, %v314
      %v334 = vunpack.c.l.b16 %v296
      %v335 = vunpack.c.l.b16 %v297
      %v336 = vunpack.c.l.b16 %v298
      %v337 = vunpack.c.l.b16 %v299
      %v338 = vunpack.c.l.b16 %v300
      %v339 = vunpack.c.l.b16 %v301
      %v340 = vunpack.c.l.b16 %v302
      %v341 = vunpack.c.l.b16 %v303
      %v342 = vunpack.c.l.b16 %v304
      %v343 = vunpack.c.l.b16 %v305
      %v344 = vunpack.c.l.b16 %v306
      %v345 = vunpack.c.l.b16 %v307
      %v346 = vunpack.c.l.b16 %v308
      %v347 = vunpack.c.l.b16 %v309
      %v348 = vunpack.c.l.b16 %v310
      %v349 = vunpack.c.l.b16 %v311
      %v350 = vpack.c.b16 %v335, %v334
      %v351 = vpack.c.b16 %v337, %v336
      %v352 = vpack.c.b16 %v339, %v338
      %v353 = vpack.c.b16 %v341, %v340
      %v354 = vpack.c.b16 %v343, %v342
      %v355 = vpack.c.b16 %v345, %v344
      %v356 = vpack.c.b16 %v347, %v346
      %v357 = vpack.c.b16 %v349, %v348
      %366 = vmatprep.subr.bf16.mxu0 0
      %367 = vmatpush1.bf16.msra.mxu0 %v357
      %368 = vmatprep.subr.bf16.mxu0 0
      %369 = vmatpush1.bf16.msra.mxu0 %v356
      %370 = vmatprep.subr.bf16.mxu0 0
      %371 = vmatpush1.bf16.msra.mxu0 %v355
      %372 = vmatprep.subr.bf16.mxu0 0
      %373 = vmatpush1.bf16.msra.mxu0 %v354
      %374 = vmatprep.subr.bf16.mxu0 0
      %375 = vmatpush1.bf16.msra.mxu0 %v353
      %376 = vmatprep.subr.bf16.mxu0 0
      %377 = vmatpush1.bf16.msra.mxu0 %v352
      %378 = vmatprep.subr.bf16.mxu0 0
      %379 = vmatpush1.bf16.msra.mxu0 %v351
      %380 = vmatprep.subr.bf16.mxu0 0
      %381 = vmatpush1.bf16.msra.mxu0 %v350
      %382 = vmatprep.subr.bf16.mxu0 0
      %383 = vmatpush2.bf16.msra.mxu0 0
      %384 = vmatprep.subr.bf16.mxu0 0
      %385 = vmatpush2.bf16.msra.mxu0 0
      %386 = vmatprep.subr.bf16.mxu0 0
      %387 = vmatpush2.bf16.msra.mxu0 0
      %388 = vmatprep.subr.bf16.mxu0 0
      %389 = vmatpush2.bf16.msra.mxu0 0
      %390 = vmatprep.subr.bf16.mxu0 0
      %391 = vmatpush2.bf16.msra.mxu0 0
      %392 = vmatprep.subr.bf16.mxu0 0
      %393 = vmatpush2.bf16.msra.mxu0 0
      %394 = vmatprep.subr.bf16.mxu0 0
      %395 = vmatpush2.bf16.msra.mxu0 0
      %396 = vmatprep.subr.bf16.mxu0 0
      %397 = vmatpush2.bf16.msra.mxu0 0
      %398 = vmatprep.mubr.bf16.mxu0 0
      %399 = vmatmul.mubr.bf16.gmra.mxu0 %v316
      %v400 = vpop.f32.mrf.mxu0
      %v401 = vadd.f32 %v195, %v400
      %v402 = vpop.f32.mrf.mxu0
      %v403 = vpop.f32.mrf.mxu0
      %v404 = vadd.f32 %v195, %v403
      %v405 = vpop.f32.mrf.mxu0
      %406 = vdwg.mxu0
      %s407 = scalar_lea.vmem %s165, 16
      %v408 = vld [vmem:[%s407] sm:$0xf]
      %v409 = vld [vmem:[%s407 + $0x4] sm:$0xf]
      %s410 = scalar_lea.vmem %s1, 128
      %v411 = vld [vmem:[%s410] sm:$0xf]
      %v412 = vld [vmem:[%s410 + $0x4] sm:$0xf]
      %v413 = vld [vmem:[%s410 + $0x8] sm:$0xf]
      %v414 = vld [vmem:[%s410 + $0xc] sm:$0xf]
      %v415 = vld [vmem:[%s410 + $0x10] sm:$0xf]
      %v416 = vld [vmem:[%s410 + $0x14] sm:$0xf]
      %v417 = vld [vmem:[%s410 + $0x18] sm:$0xf]
      %v418 = vld [vmem:[%s410 + $0x1c] sm:$0xf]
      %v419 = vld [vmem:[%s410 + $0x20] sm:$0xf]
      %v420 = vld [vmem:[%s410 + $0x24] sm:$0xf]
      %v421 = vld [vmem:[%s410 + $0x28] sm:$0xf]
      %v422 = vld [vmem:[%s410 + $0x2c] sm:$0xf]
      %v423 = vld [vmem:[%s410 + $0x30] sm:$0xf]
      %v424 = vld [vmem:[%s410 + $0x34] sm:$0xf]
      %v425 = vld [vmem:[%s410 + $0x38] sm:$0xf]
      %v426 = vld [vmem:[%s410 + $0x3c] sm:$0xf]
      %v429 = vunpack.c.l.b16 %v408
      %v430 = vunpack.c.l.b16 %v409
      %v431 = vpack.c.b16 %v430, %v429
      %v449 = vunpack.c.l.b16 %v411
      %v450 = vunpack.c.l.b16 %v412
      %v451 = vunpack.c.l.b16 %v413
      %v452 = vunpack.c.l.b16 %v414
      %v453 = vunpack.c.l.b16 %v415
      %v454 = vunpack.c.l.b16 %v416
      %v455 = vunpack.c.l.b16 %v417
      %v456 = vunpack.c.l.b16 %v418
      %v457 = vunpack.c.l.b16 %v419
      %v458 = vunpack.c.l.b16 %v420
      %v459 = vunpack.c.l.b16 %v421
      %v460 = vunpack.c.l.b16 %v422
      %v461 = vunpack.c.l.b16 %v423
      %v462 = vunpack.c.l.b16 %v424
      %v463 = vunpack.c.l.b16 %v425
      %v464 = vunpack.c.l.b16 %v426
      %v465 = vpack.c.b16 %v450, %v449
      %v466 = vpack.c.b16 %v452, %v451
      %v467 = vpack.c.b16 %v454, %v453
      %v468 = vpack.c.b16 %v456, %v455
      %v469 = vpack.c.b16 %v458, %v457
      %v470 = vpack.c.b16 %v460, %v459
      %v471 = vpack.c.b16 %v462, %v461
      %v472 = vpack.c.b16 %v464, %v463
      %481 = vmatprep.subr.bf16.mxu0 0
      %482 = vmatpush1.bf16.msra.mxu0 %v472
      %483 = vmatprep.subr.bf16.mxu0 0
      %484 = vmatpush1.bf16.msra.mxu0 %v471
      %485 = vmatprep.subr.bf16.mxu0 0
      %486 = vmatpush1.bf16.msra.mxu0 %v470
      %487 = vmatprep.subr.bf16.mxu0 0
      %488 = vmatpush1.bf16.msra.mxu0 %v469
      %489 = vmatprep.subr.bf16.mxu0 0
      %490 = vmatpush1.bf16.msra.mxu0 %v468
      %491 = vmatprep.subr.bf16.mxu0 0
      %492 = vmatpush1.bf16.msra.mxu0 %v467
      %493 = vmatprep.subr.bf16.mxu0 0
      %494 = vmatpush1.bf16.msra.mxu0 %v466
      %495 = vmatprep.subr.bf16.mxu0 0
      %496 = vmatpush1.bf16.msra.mxu0 %v465
      %497 = vmatprep.subr.bf16.mxu0 0
      %498 = vmatpush2.bf16.msra.mxu0 0
      %499 = vmatprep.subr.bf16.mxu0 0
      %500 = vmatpush2.bf16.msra.mxu0 0
      %501 = vmatprep.subr.bf16.mxu0 0
      %502 = vmatpush2.bf16.msra.mxu0 0
      %503 = vmatprep.subr.bf16.mxu0 0
      %504 = vmatpush2.bf16.msra.mxu0 0
      %505 = vmatprep.subr.bf16.mxu0 0
      %506 = vmatpush2.bf16.msra.mxu0 0
      %507 = vmatprep.subr.bf16.mxu0 0
      %508 = vmatpush2.bf16.msra.mxu0 0
      %509 = vmatprep.subr.bf16.mxu0 0
      %510 = vmatpush2.bf16.msra.mxu0 0
      %511 = vmatprep.subr.bf16.mxu0 0
      %512 = vmatpush2.bf16.msra.mxu0 0
      %513 = vmatprep.mubr.bf16.mxu0 0
      %514 = vmatmul.mubr.bf16.gmra.mxu0 %v431
      %v515 = vpop.f32.mrf.mxu0
      %v516 = vadd.f32 %v195, %v515
      %v517 = vpop.f32.mrf.mxu0
      %v518 = vpop.f32.mrf.mxu0
      %v519 = vadd.f32 %v195, %v518
      %v520 = vpop.f32.mrf.mxu0
      %521 = vdwg.mxu0
      %s522 = scalar_lea.vmem %s165, 24
      %v523 = vld [vmem:[%s522] sm:$0xf]
      %v524 = vld [vmem:[%s522 + $0x4] sm:$0xf]
      %s525 = scalar_lea.vmem %s1, 192
      %v526 = vld [vmem:[%s525] sm:$0xf]
      %v527 = vld [vmem:[%s525 + $0x4] sm:$0xf]
      %v528 = vld [vmem:[%s525 + $0x8] sm:$0xf]
      %v529 = vld [vmem:[%s525 + $0xc] sm:$0xf]
      %v530 = vld [vmem:[%s525 + $0x10] sm:$0xf]
      %v531 = vld [vmem:[%s525 + $0x14] sm:$0xf]
      %v532 = vld [vmem:[%s525 + $0x18] sm:$0xf]
      %v533 = vld [vmem:[%s525 + $0x1c] sm:$0xf]
      %v534 = vld [vmem:[%s525 + $0x20] sm:$0xf]
      %v535 = vld [vmem:[%s525 + $0x24] sm:$0xf]
      %v536 = vld [vmem:[%s525 + $0x28] sm:$0xf]
      %v537 = vld [vmem:[%s525 + $0x2c] sm:$0xf]
      %v538 = vld [vmem:[%s525 + $0x30] sm:$0xf]
      %v539 = vld [vmem:[%s525 + $0x34] sm:$0xf]
      %v540 = vld [vmem:[%s525 + $0x38] sm:$0xf]
      %v541 = vld [vmem:[%s525 + $0x3c] sm:$0xf]
      %v544 = vunpack.c.l.b16 %v523
      %v545 = vunpack.c.l.b16 %v524
      %v546 = vpack.c.b16 %v545, %v544
      %v564 = vunpack.c.l.b16 %v526
      %v565 = vunpack.c.l.b16 %v527
      %v566 = vunpack.c.l.b16 %v528
      %v567 = vunpack.c.l.b16 %v529
      %v568 = vunpack.c.l.b16 %v530
      %v569 = vunpack.c.l.b16 %v531
      %v570 = vunpack.c.l.b16 %v532
      %v571 = vunpack.c.l.b16 %v533
      %v572 = vunpack.c.l.b16 %v534
      %v573 = vunpack.c.l.b16 %v535
      %v574 = vunpack.c.l.b16 %v536
      %v575 = vunpack.c.l.b16 %v537
      %v576 = vunpack.c.l.b16 %v538
      %v577 = vunpack.c.l.b16 %v539
      %v578 = vunpack.c.l.b16 %v540
      %v579 = vunpack.c.l.b16 %v541
      %v580 = vpack.c.b16 %v565, %v564
      %v581 = vpack.c.b16 %v567, %v566
      %v582 = vpack.c.b16 %v569, %v568
      %v583 = vpack.c.b16 %v571, %v570
      %v584 = vpack.c.b16 %v573, %v572
      %v585 = vpack.c.b16 %v575, %v574
      %v586 = vpack.c.b16 %v577, %v576
      %v587 = vpack.c.b16 %v579, %v578
      %596 = vmatprep.subr.bf16.mxu0 0
      %597 = vmatpush1.bf16.msra.mxu0 %v587
      %598 = vmatprep.subr.bf16.mxu0 0
      %599 = vmatpush1.bf16.msra.mxu0 %v586
      %600 = vmatprep.subr.bf16.mxu0 0
      %601 = vmatpush1.bf16.msra.mxu0 %v585
      %602 = vmatprep.subr.bf16.mxu0 0
      %603 = vmatpush1.bf16.msra.mxu0 %v584
      %604 = vmatprep.subr.bf16.mxu0 0
      %605 = vmatpush1.bf16.msra.mxu0 %v583
      %606 = vmatprep.subr.bf16.mxu0 0
      %607 = vmatpush1.bf16.msra.mxu0 %v582
      %608 = vmatprep.subr.bf16.mxu0 0
      %609 = vmatpush1.bf16.msra.mxu0 %v581
      %610 = vmatprep.subr.bf16.mxu0 0
      %611 = vmatpush1.bf16.msra.mxu0 %v580
      %612 = vmatprep.subr.bf16.mxu0 0
      %613 = vmatpush2.bf16.msra.mxu0 0
      %614 = vmatprep.subr.bf16.mxu0 0
      %615 = vmatpush2.bf16.msra.mxu0 0
      %616 = vmatprep.subr.bf16.mxu0 0
      %617 = vmatpush2.bf16.msra.mxu0 0
      %618 = vmatprep.subr.bf16.mxu0 0
      %619 = vmatpush2.bf16.msra.mxu0 0
      %620 = vmatprep.subr.bf16.mxu0 0
      %621 = vmatpush2.bf16.msra.mxu0 0
      %622 = vmatprep.subr.bf16.mxu0 0
      %623 = vmatpush2.bf16.msra.mxu0 0
      %624 = vmatprep.subr.bf16.mxu0 0
      %625 = vmatpush2.bf16.msra.mxu0 0
      %626 = vmatprep.subr.bf16.mxu0 0
      %627 = vmatpush2.bf16.msra.mxu0 0
      %628 = vmatprep.mubr.bf16.mxu0 0
      %629 = vmatmul.mubr.bf16.gmra.mxu0 %v546
      %v630 = vpop.f32.mrf.mxu0
      %v631 = vadd.f32 %v195, %v630
      %v632 = vpop.f32.mrf.mxu0
      %v633 = vpop.f32.mrf.mxu0
      %v634 = vadd.f32 %v195, %v633
      %v635 = vpop.f32.mrf.mxu0
      %636 = vdwg.mxu0
      %vm637 = vcmask 130048
      %v638 = vsel %vm637, %v286, 0.0
      %v639 = vsel %vm637, %v289, 0.0
      %v640 = vadd.f32 %v638, %v639
      %v641 = vrot.slane %v640, 4
      %v642 = vadd.f32 %v640, %v641
      %v643 = vrot.slane %v642, 2
      %v644 = vadd.f32 %v642, %v643
      %v645 = vrot.slane %v644, 1
      %v646 = vadd.f32 %v644, %v645
      %v647 = vmul.f32 %v286, %v286
      %v648 = vmul.f32 %v289, %v289
      %v649 = vsel %vm637, %v647, 0.0
      %v650 = vsel %vm637, %v648, 0.0
      %v651 = vadd.f32 %v649, %v650
      %v652 = vrot.slane %v651, 4
      %v653 = vadd.f32 %v651, %v652
      %v654 = vrot.slane %v653, 2
      %v655 = vadd.f32 %v653, %v654
      %v656 = vrot.slane %v655, 1
      %v657 = vadd.f32 %v655, %v656
      %v658 = vsel %vm637, %v401, 0.0
      %v659 = vsel %vm637, %v404, 0.0
      %v660 = vadd.f32 %v658, %v659
      %v661 = vrot.slane %v660, 4
      %v662 = vadd.f32 %v660, %v661
      %v663 = vrot.slane %v662, 2
      %v664 = vadd.f32 %v662, %v663
      %v665 = vrot.slane %v664, 1
      %v666 = vadd.f32 %v664, %v665
      %v667 = vadd.f32 %v646, %v666
      %v668 = vmul.f32 %v401, %v401
      %v669 = vmul.f32 %v404, %v404
      %v670 = vsel %vm637, %v668, 0.0
      %v671 = vsel %vm637, %v669, 0.0
      %v672 = vadd.f32 %v670, %v671
      %v673 = vrot.slane %v672, 4
      %v674 = vadd.f32 %v672, %v673
      %v675 = vrot.slane %v674, 2
      %v676 = vadd.f32 %v674, %v675
      %v677 = vrot.slane %v676, 1
      %v678 = vadd.f32 %v676, %v677
      %v679 = vadd.f32 %v657, %v678
      %v680 = vsel %vm637, %v516, 0.0
      %v681 = vsel %vm637, %v519, 0.0
      %v682 = vadd.f32 %v680, %v681
      %v683 = vrot.slane %v682, 4
      %v684 = vadd.f32 %v682, %v683
      %v685 = vrot.slane %v684, 2
      %v686 = vadd.f32 %v684, %v685
      %v687 = vrot.slane %v686, 1
      %v688 = vadd.f32 %v686, %v687
      %v689 = vadd.f32 %v667, %v688
      %v690 = vmul.f32 %v516, %v516
      %v691 = vmul.f32 %v519, %v519
      %v692 = vsel %vm637, %v690, 0.0
      %v693 = vsel %vm637, %v691, 0.0
      %v694 = vadd.f32 %v692, %v693
      %v695 = vrot.slane %v694, 4
      %v696 = vadd.f32 %v694, %v695
      %v697 = vrot.slane %v696, 2
      %v698 = vadd.f32 %v696, %v697
      %v699 = vrot.slane %v698, 1
      %v700 = vadd.f32 %v698, %v699
      %v701 = vadd.f32 %v679, %v700
      %v702 = vsel %vm637, %v631, 0.0
      %v703 = vsel %vm637, %v634, 0.0
      %v704 = vadd.f32 %v702, %v703
      %v705 = vrot.slane %v704, 4
      %v706 = vadd.f32 %v704, %v705
      %v707 = vrot.slane %v706, 2
      %v708 = vadd.f32 %v706, %v707
      %v709 = vrot.slane %v708, 1
      %v710 = vadd.f32 %v708, %v709
      %v711 = vadd.f32 %v689, %v710
      %v712 = vmul.f32 %v631, %v631
      %v713 = vmul.f32 %v634, %v634
      %v714 = vsel %vm637, %v712, 0.0
      %v715 = vsel %vm637, %v713, 0.0
      %v716 = vadd.f32 %v714, %v715
      %v717 = vrot.slane %v716, 4
      %v718 = vadd.f32 %v716, %v717
      %v719 = vrot.slane %v718, 2
      %v720 = vadd.f32 %v718, %v719
      %v721 = vrot.slane %v720, 1
      %v722 = vadd.f32 %v720, %v721
      %v723 = vadd.f32 %v701, %v722
      %v724 = vrcp.pop 64.0
      %v725 = vmul.f32 %v711, %v724
      %v726 = vmul.f32 %v723, %v724
      %v727 = vmul.f32 %v725, %v725
      %v728 = vsub.f32 %v726, %v727
      %v729 = vmax.f32 %v728, 0.0
      %v730 = vadd.f32 %v729, 1e-05
      %v731 = vrsqrt.pop %v730
      %v732 = vsub.f32 %v286, %v725
      %v733 = vsub.f32 %v289, %v725
      %v734 = vmul.f32 %v732, %v731
      %v735 = vmul.f32 %v733, %v731
      %v736 = vsub.f32 %v401, %v725
      %v737 = vsub.f32 %v404, %v725
      %v738 = vmul.f32 %v736, %v731
      %v739 = vmul.f32 %v737, %v731
      %v740 = vsub.f32 %v516, %v725
      %v741 = vsub.f32 %v519, %v725
      %v742 = vmul.f32 %v740, %v731
      %v743 = vmul.f32 %v741, %v731
      %v744 = vsub.f32 %v631, %v725
      %v745 = vsub.f32 %v634, %v725
      %v746 = vmul.f32 %v744, %v731
      %v747 = vmul.f32 %v745, %v731
      %v748 = vmax.f32 %v734, 0.0
      %v749 = vmax.f32 %v735, 0.0
      %750 = vst.msk [vmem:[%s170] sm:$0xff] %vm637, %v748
      %751 = vst.msk [vmem:[%s170 + $0x8] sm:$0xff] %vm637, %v749
      %v752 = vmax.f32 %v738, 0.0
      %v753 = vmax.f32 %v739, 0.0
      %s754 = scalar_lea.vmem %s170, 16
      %755 = vst.msk [vmem:[%s754] sm:$0xff] %vm637, %v752
      %756 = vst.msk [vmem:[%s754 + $0x8] sm:$0xff] %vm637, %v753
      %v757 = vmax.f32 %v742, 0.0
      %v758 = vmax.f32 %v743, 0.0
      %s759 = scalar_lea.vmem %s170, 32
      %760 = vst.msk [vmem:[%s759] sm:$0xff] %vm637, %v757
      %761 = vst.msk [vmem:[%s759 + $0x8] sm:$0xff] %vm637, %v758
      %v762 = vmax.f32 %v746, 0.0
      %v763 = vmax.f32 %v747, 0.0
      %s764 = scalar_lea.vmem %s170, 48
      %765 = vst.msk [vmem:[%s764] sm:$0xff] %vm637, %v762
      %766 = vst.msk [vmem:[%s764 + $0x8] sm:$0xff] %vm637, %v763
      %p767 = scmp.lt.s32.totalorder %s14, 1
      %s768 = scalar_select %p767, %s14, 1
      %s769 = smul.addr %s768, 8
      %s770 = smul.addr %s769, 8
      %s771 = scalar_lea.vmem %s3, %s770
      // Predicated region
      $region33: #{generator_forward.11} parent=31 // pred_check
        %p772 = pneg %p100
      $region34: #{generator_forward.11} parent=31 // pred_check_branch
        %774 = sbr.rel (%p772) target = $region36
      $region35: #{generator_forward.11} parent=31 // pred_region
        _
      $region36: #{generator_forward.11} parent=31 // pred_fallthru
        _
    $region32: #{generator_forward.11} parent=5 // pred_fallthru
      _
    %p775 = scmp.le.s32.totalorder 2, %s9
    // Predicated region
    $region37: #{generator_forward.11} parent=5 // pred_check
      %p776 = pneg %p775
    $region38: #{generator_forward.11} parent=5 // pred_check_branch
      %778 = sbr.rel (%p776) target = $region40
    $region39: #{generator_forward.11} parent=5 // pred_region
      %s779 = ssub.s32 %s9, 2
      // Predicated region
      $region41: #{generator_forward.11} parent=39 // pred_check
        %p780 = pneg %p106
      $region42: #{generator_forward.11} parent=39 // pred_check_branch
        %782 = sbr.rel (%p780) target = $region44
      $region43: #{generator_forward.11} parent=39 // pred_region
        %p783 = scmp.lt.s32.totalorder %s15, 1
        %s784 = scalar_select %p783, %s15, 1
        %s785 = smul.addr %s784, 8
        %s786 = smul.addr %s785, 8
        %s787 = scalar_lea.vmem %s3, %s786
      $region44: #{generator_forward.11} parent=39 // pred_fallthru
        _
    $region40: #{generator_forward.11} parent=5 // pred_fallthru
      _
  $region6: #{generator_forward.11} parent=0 // loop_footer
    %s13 = sadd.s32 1, %s9
  $region7: #{generator_forward.11} parent=0 // loop_footer_branch
    %8 = sbr.rel target = $region3
  $region8: #{generator_forward.11} parent=0 // loop_exit
    _

// kernel: generator_forward.12
$region0: #{generator_forward.12}
  #allocation0 [shape = 'u32[]', space=smem, size = 0x4, offset = 0x4, fixed_abs, tag = 'smem constant byte address 0x4 - core index']
  #allocation1 [shape = 'u32[144,128]{1,0:T(1,128)}', space=vmem, size = 0x12000, scoped, tag = 'internal scratch']
  %s0 = inlined_call_operand.vmem [shape: bf16[2,4,64,64], index: 0, kind: input, shape index: {}]
  %s1 = inlined_call_operand.vmem [shape: bf16[4,64,8], index: 1, kind: input, shape index: {}]
  %s2 = inlined_call_operand.vmem [shape: f32[1,8], index: 2, kind: input, shape index: {}]
  %s3 = inlined_call_operand.vmem [shape: f32[2,4,64,8], index: 3, kind: output, shape index: {}]
  %s4 = sld [smem:[#allocation0]]
  $region45: #{generator_forward.12} parent=0
    _
  %s6 = ssub.s32 1, %s4
  %s7 = scalar_select 0, %s6, %s4
  loop: start=0, step=1, limit=4
  $region2: #{generator_forward.12} parent=0 // loop_pre_header
    _
  $region3: #{generator_forward.12} parent=0 // loop_header
    %s9 = sphi 0, %s13
    %p10 = scmp.ge.s32.totalorder %s9, 4
    %s19 = sphi 0, %s21
    %s22 = sphi 0, %s19
    %s23 = sphi 0, %s22
    %s39 = sphi 0, %s23
    %s43 = sphi 0, %s43
    %s45 = sphi 0, %s43
    %s46 = sphi 0, %s45
    %s60 = sphi 0, %s46
    %s64 = sphi 0, %s64
    %s66 = sphi 0, %s64
    %s67 = sphi 0, %s66
    %s81 = sphi 0, %s67
    %s87 = sphi 0, %s89
    %s90 = sphi 0, %s87
    %s91 = sphi 0, %s90
    %s107 = sphi 0, %s91
  $region4: #{generator_forward.12} parent=0 // loop_header_branch
    %12 = sbr.rel (%p10) target = $region8
  $region5: #{generator_forward.12} parent=0 // loop_body
    %s14 = ssub.s32 %s9, 1
    %s15 = ssub.s32 %s9, 2
    %s16 = sadd.s32 %s9, 1
    %s17 = ssub.s32 %s9, %s16
    %p18 = scmp.eq.s32.totalorder %s17, 0
    %s20 = sadd.s32 %s19, 1
    %s21 = scalar_select %p18, %s19, %s20
    %p24 = pneg %p18
    %p25 = scmp.eq.s32.totalorder %s9, 1
    %p26 = por %p24, %p25
    %p27 = scmp.ne.s32.totalorder %s19, %s22
    %p28 = scmp.eq.s32.totalorder %s9, 0
    %p29 = por %p27, %p28
    %p30 = scmp.ne.s32.totalorder %s19, %s22
    %p31 = scmp.eq.s32.totalorder %s14, 1
    %p32 = por %p30, %p31
    %p33 = scmp.ne.s32.totalorder %s22, %s23
    %p34 = scmp.eq.s32.totalorder %s14, 0
    %p35 = por %p33, %p34
    %p36 = scmp.ne.s32.totalorder %s22, %s23
    %p37 = scmp.eq.s32.totalorder %s15, 1
    %p38 = por %p36, %p37
    %p40 = scmp.ne.s32.totalorder %s23, %s39
    %p41 = scmp.eq.s32.totalorder %s15, 0
    %p42 = por %p40, %p41
    %s44 = sadd.s32 %s43, 1
    %p47 = scmp.eq.s32.totalorder %s9, 1
    %p48 = scmp.ne.s32.totalorder %s43, %s45
    %p49 = scmp.eq.s32.totalorder %s9, 0
    %p50 = por %p48, %p49
    %p51 = scmp.ne.s32.totalorder %s43, %s45
    %p52 = scmp.eq.s32.totalorder %s14, 1
    %p53 = por %p51, %p52
    %p54 = scmp.ne.s32.totalorder %s45, %s46
    %p55 = scmp.eq.s32.totalorder %s14, 0
    %p56 = por %p54, %p55
    %p57 = scmp.ne.s32.totalorder %s45, %s46
    %p58 = scmp.eq.s32.totalorder %s15, 1
    %p59 = por %p57, %p58
    %p61 = scmp.ne.s32.totalorder %s46, %s60
    %p62 = scmp.eq.s32.totalorder %s15, 0
    %p63 = por %p61, %p62
    %s65 = sadd.s32 %s64, 1
    %p68 = scmp.eq.s32.totalorder %s9, 1
    %p69 = scmp.ne.s32.totalorder %s64, %s66
    %p70 = scmp.eq.s32.totalorder %s9, 0
    %p71 = por %p69, %p70
    %p72 = scmp.ne.s32.totalorder %s64, %s66
    %p73 = scmp.eq.s32.totalorder %s14, 1
    %p74 = por %p72, %p73
    %p75 = scmp.ne.s32.totalorder %s66, %s67
    %p76 = scmp.eq.s32.totalorder %s14, 0
    %p77 = por %p75, %p76
    %p78 = scmp.ne.s32.totalorder %s66, %s67
    %p79 = scmp.eq.s32.totalorder %s15, 1
    %p80 = por %p78, %p79
    %p82 = scmp.ne.s32.totalorder %s67, %s81
    %p83 = scmp.eq.s32.totalorder %s15, 0
    %p84 = por %p82, %p83
    %s85 = ssub.s32 %s9, %s16
    %p86 = scmp.eq.s32.totalorder %s85, 0
    %s88 = sadd.s32 %s87, 1
    %s89 = scalar_select %p86, %s87, %s88
    %p92 = pneg %p86
    %p93 = scmp.eq.s32.totalorder %s9, 1
    %p94 = por %p92, %p93
    %p95 = scmp.ne.s32.totalorder %s87, %s90
    %p96 = scmp.eq.s32.totalorder %s9, 0
    %p97 = por %p95, %p96
    %p98 = scmp.ne.s32.totalorder %s87, %s90
    %p99 = scmp.eq.s32.totalorder %s14, 1
    %p100 = por %p98, %p99
    %p101 = scmp.ne.s32.totalorder %s90, %s91
    %p102 = scmp.eq.s32.totalorder %s14, 0
    %p103 = por %p101, %p102
    %p104 = scmp.ne.s32.totalorder %s90, %s91
    %p105 = scmp.eq.s32.totalorder %s15, 1
    %p106 = por %p104, %p105
    %p108 = scmp.ne.s32.totalorder %s91, %s107
    %p109 = scmp.eq.s32.totalorder %s15, 0
    %p110 = por %p108, %p109
    %p111 = scmp.le.s32.totalorder 1, %s9
    %p112 = scmp.lt.s32.totalorder %s9, 3
    %p113 = pnand %p111, %p112
    %p114 = pneg %p113
    // Predicated region
    $region9: #{generator_forward.12} parent=5 // pred_check
      _
    $region10: #{generator_forward.12} parent=5 // pred_check_branch
      %116 = sbr.rel (%p113) target = $region12
    $region11: #{generator_forward.12} parent=5 // pred_region
      %s117 = ssub.s32 %s9, 1
      // Predicated region
      $region13: #{generator_forward.12} parent=11 // pred_check
        %p118 = pneg %p56
      $region14: #{generator_forward.12} parent=11 // pred_check_branch
        %120 = sbr.rel (%p118) target = $region16
      $region15: #{generator_forward.12} parent=11 // pred_region
        _
      $region16: #{generator_forward.12} parent=11 // pred_fallthru
        _
      // Predicated region
      $region17: #{generator_forward.12} parent=11 // pred_check
        %p121 = pneg %p77
      $region18: #{generator_forward.12} parent=11 // pred_check_branch
        %123 = sbr.rel (%p121) target = $region20
      $region19: #{generator_forward.12} parent=11 // pred_region
        _
      $region20: #{generator_forward.12} parent=11 // pred_fallthru
        _
    $region12: #{generator_forward.12} parent=5 // pred_fallthru
      _
    %p124 = scmp.lt.s32.totalorder %s9, 2
    // Predicated region
    $region21: #{generator_forward.12} parent=5 // pred_check
      %p125 = pneg %p124
    $region22: #{generator_forward.12} parent=5 // pred_check_branch
      %127 = sbr.rel (%p125) target = $region24
    $region23: #{generator_forward.12} parent=5 // pred_region
      // Predicated region
      $region25: #{generator_forward.12} parent=23 // pred_check
        %p128 = pneg %p29
      $region26: #{generator_forward.12} parent=23 // pred_check_branch
        %130 = sbr.rel (%p128) target = $region28
      $region27: #{generator_forward.12} parent=23 // pred_region
        %p131 = scmp.lt.s32.totalorder %s9, 1
        %s132 = scalar_select %p131, %s9, 1
        %s133 = smul.addr %s132, 32
        %s134 = smul.addr %s133, 4
        %s135 = scalar_lea.vmem %s0, %s134
      $region28: #{generator_forward.12} parent=23 // pred_fallthru
        _
    $region24: #{generator_forward.12} parent=5 // pred_fallthru
      _
    %p136 = scmp.le.s32.totalorder 1, %s9
    %p137 = scmp.lt.s32.totalorder %s9, 3
    %p138 = pnand %p136, %p137
    %p139 = pneg %p138
    // Predicated region
    $region29: #{generator_forward.12} parent=5 // pred_check
      _
    $region30: #{generator_forward.12} parent=5 // pred_check_branch
      %141 = sbr.rel (%p138) target = $region32
    $region31: #{generator_forward.12} parent=5 // pred_region
      %s142 = ssub.s32 %s9, 1
      %p143 = scmp.lt.s32.totalorder %s14, 1
      %s144 = scalar_select %p143, %s14, 1
      %s145 = smul.addr %s144, 32
      %s146 = smul.addr %s145, 4
      %s147 = scalar_lea.vmem %s0, %s146
      %p148 = pneg %p35
      %p149 = pneg %p32
      %p150 = pneg %p56
      %p151 = pneg %p53
      %p152 = pneg %p77
      %p153 = pneg %p74
      %p154 = pneg %p103
      %p155 = pneg %p100
      %p156 = scmp.lt.s32.totalorder %s14, 1
      %s157 = scalar_select %p156, %s14, 1
      %s158 = smul.addr %s157, 32
      %s159 = smul.addr %s158, 8
      %s160 = scalar_lea.vmem %s3, %s159
      %p161 = scmp.lt.s32.totalorder %s14, 1
      %s162 = scalar_select %p161, %s14, 1
      %s163 = smul.addr %s162, 32
      %s164 = smul.addr %s163, 4
      %s165 = scalar_lea.vmem %s0, %s164
      %p166 = scmp.lt.s32.totalorder %s14, 1
      %s167 = scalar_select %p166, %s14, 1
      %s168 = smul.addr %s167, 32
      %s169 = smul.addr %s168, 8
      %s170 = scalar_lea.vmem %s3, %s169
      %v172 = vld [vmem:[%s2] sm:$0x1]
      %v173 = vld [vmem:[%s165] sm:$0xf]
      %v174 = vld [vmem:[%s165 + $0x4] sm:$0xf]
      %v175 = vld [vmem:[%s165 + $0x8] sm:$0xf]
      %v176 = vld [vmem:[%s165 + $0xc] sm:$0xf]
      %v177 = vld [vmem:[%s165 + $0x10] sm:$0xf]
      %v178 = vld [vmem:[%s165 + $0x14] sm:$0xf]
      %v179 = vld [vmem:[%s165 + $0x18] sm:$0xf]
      %v180 = vld [vmem:[%s165 + $0x1c] sm:$0xf]
      %v181 = vld [vmem:[%s1] sm:$0xf]
      %v182 = vld [vmem:[%s1 + $0x4] sm:$0xf]
      %v183 = vld [vmem:[%s1 + $0x8] sm:$0xf]
      %v184 = vld [vmem:[%s1 + $0xc] sm:$0xf]
      %v185 = vld [vmem:[%s1 + $0x10] sm:$0xf]
      %v186 = vld [vmem:[%s1 + $0x14] sm:$0xf]
      %v187 = vld [vmem:[%s1 + $0x18] sm:$0xf]
      %v188 = vld [vmem:[%s1 + $0x1c] sm:$0xf]
      %v190 = vlaneseq
      %v191 = vshrl.u32 %v190, 7
      %v192 = vsub.s32 0, %v191
      %v193 = vrot.slane %v172, %v192
      %v203 = vunpack.c.l.b16 %v173
      %v204 = vunpack.c.l.b16 %v174
      %v205 = vunpack.c.l.b16 %v175
      %v206 = vunpack.c.l.b16 %v176
      %v207 = vunpack.c.l.b16 %v177
      %v208 = vunpack.c.l.b16 %v178
      %v209 = vunpack.c.l.b16 %v179
      %v210 = vunpack.c.l.b16 %v180
      %v211 = vpack.c.b16 %v204, %v203
      %v212 = vpack.c.b16 %v206, %v205
      %v213 = vpack.c.b16 %v208, %v207
      %v214 = vpack.c.b16 %v210, %v209
      %v223 = vunpack.c.l.b16 %v181
      %v224 = vunpack.c.l.b16 %v182
      %v225 = vunpack.c.l.b16 %v183
      %v226 = vunpack.c.l.b16 %v184
      %v227 = vunpack.c.l.b16 %v185
      %v228 = vunpack.c.l.b16 %v186
      %v229 = vunpack.c.l.b16 %v187
      %v230 = vunpack.c.l.b16 %v188
      %v231 = vpack.c.b16 %v224, %v223
      %v232 = vpack.c.b16 %v226, %v225
      %v233 = vpack.c.b16 %v228, %v227
      %v234 = vpack.c.b16 %v230, %v229
      %vm239 = vcmask 523264
      %v241 = vsel %vm239, %v211, 0
      %v244 = vsel %vm239, %v212, 0
      %v247 = vsel %vm239, %v213, 0
      %v250 = vsel %vm239, %v214, 0
      %252 = vmatprep.subr.bf16.mxu0 0
      %253 = vmatpush1.bf16.msra.mxu0 0
      %254 = vmatprep.subr.bf16.mxu0 0
      %255 = vmatpush1.bf16.msra.mxu0 0
      %256 = vmatprep.subr.bf16.mxu0 0
      %257 = vmatpush1.bf16.msra.mxu0 0
      %258 = vmatprep.subr.bf16.mxu0 0
      %259 = vmatpush1.bf16.msra.mxu0 0
      %260 = vmatprep.subr.bf16.mxu0 0
      %261 = vmatpush1.bf16.msra.mxu0 %v234
      %262 = vmatprep.subr.bf16.mxu0 0
      %263 = vmatpush1.bf16.msra.mxu0 %v233
      %264 = vmatprep.subr.bf16.mxu0 0
      %265 = vmatpush1.bf16.msra.mxu0 %v232
      %266 = vmatprep.subr.bf16.mxu0 0
      %267 = vmatpush1.bf16.msra.mxu0 %v231
      %268 = vmatprep.subr.bf16.mxu0 0
      %269 = vmatpush2.bf16.msra.mxu0 0
      %270 = vmatprep.subr.bf16.mxu0 0
      %271 = vmatpush2.bf16.msra.mxu0 0
      %272 = vmatprep.subr.bf16.mxu0 0
      %273 = vmatpush2.bf16.msra.mxu0 0
      %274 = vmatprep.subr.bf16.mxu0 0
      %275 = vmatpush2.bf16.msra.mxu0 0
      %276 = vmatprep.subr.bf16.mxu0 0
      %277 = vmatpush2.bf16.msra.mxu0 0
      %278 = vmatprep.subr.bf16.mxu0 0
      %279 = vmatpush2.bf16.msra.mxu0 0
      %280 = vmatprep.subr.bf16.mxu0 0
      %281 = vmatpush2.bf16.msra.mxu0 0
      %282 = vmatprep.subr.bf16.mxu0 0
      %283 = vmatpush2.bf16.msra.mxu0 0
      %284 = vmatprep.mubr.bf16.mxu0 0
      %285 = vmatmul.mubr.bf16.gmra.mxu0 %v241
      %v286 = vpop.f32.mrf.mxu0
      %v287 = vadd.f32 %v193, %v286
      %v288 = vpop.f32.mrf.mxu0
      %v289 = vpop.f32.mrf.mxu0
      %v290 = vadd.f32 %v193, %v289
      %v291 = vpop.f32.mrf.mxu0
      %292 = vmatprep.mubr.bf16.mxu0 0
      %293 = vmatmul.mubr.bf16.gmra.mxu0 %v244
      %v294 = vpop.f32.mrf.mxu0
      %v295 = vadd.f32 %v193, %v294
      %v296 = vpop.f32.mrf.mxu0
      %v297 = vpop.f32.mrf.mxu0
      %v298 = vadd.f32 %v193, %v297
      %v299 = vpop.f32.mrf.mxu0
      %300 = vmatprep.mubr.bf16.mxu0 0
      %301 = vmatmul.mubr.bf16.gmra.mxu0 %v247
      %v302 = vpop.f32.mrf.mxu0
      %v303 = vadd.f32 %v193, %v302
      %v304 = vpop.f32.mrf.mxu0
      %v305 = vpop.f32.mrf.mxu0
      %v306 = vadd.f32 %v193, %v305
      %v307 = vpop.f32.mrf.mxu0
      %308 = vmatprep.mubr.bf16.mxu0 0
      %309 = vmatmul.mubr.bf16.gmra.mxu0 %v250
      %v310 = vpop.f32.mrf.mxu0
      %v311 = vadd.f32 %v193, %v310
      %v312 = vpop.f32.mrf.mxu0
      %v313 = vpop.f32.mrf.mxu0
      %v314 = vadd.f32 %v193, %v313
      %v315 = vpop.f32.mrf.mxu0
      %316 = vdwg.mxu0
      %s317 = scalar_lea.vmem %s165, 32
      %v318 = vld [vmem:[%s317] sm:$0xf]
      %v319 = vld [vmem:[%s317 + $0x4] sm:$0xf]
      %v320 = vld [vmem:[%s317 + $0x8] sm:$0xf]
      %v321 = vld [vmem:[%s317 + $0xc] sm:$0xf]
      %v322 = vld [vmem:[%s317 + $0x10] sm:$0xf]
      %v323 = vld [vmem:[%s317 + $0x14] sm:$0xf]
      %v324 = vld [vmem:[%s317 + $0x18] sm:$0xf]
      %v325 = vld [vmem:[%s317 + $0x1c] sm:$0xf]
      %s326 = scalar_lea.vmem %s1, 32
      %v327 = vld [vmem:[%s326] sm:$0xf]
      %v328 = vld [vmem:[%s326 + $0x4] sm:$0xf]
      %v329 = vld [vmem:[%s326 + $0x8] sm:$0xf]
      %v330 = vld [vmem:[%s326 + $0xc] sm:$0xf]
      %v331 = vld [vmem:[%s326 + $0x10] sm:$0xf]
      %v332 = vld [vmem:[%s326 + $0x14] sm:$0xf]
      %v333 = vld [vmem:[%s326 + $0x18] sm:$0xf]
      %v334 = vld [vmem:[%s326 + $0x1c] sm:$0xf]
      %v343 = vunpack.c.l.b16 %v318
      %v344 = vunpack.c.l.b16 %v319
      %v345 = vunpack.c.l.b16 %v320
      %v346 = vunpack.c.l.b16 %v321
      %v347 = vunpack.c.l.b16 %v322
      %v348 = vunpack.c.l.b16 %v323
      %v349 = vunpack.c.l.b16 %v324
      %v350 = vunpack.c.l.b16 %v325
      %v351 = vpack.c.b16 %v344, %v343
      %v352 = vpack.c.b16 %v346, %v345
      %v353 = vpack.c.b16 %v348, %v347
      %v354 = vpack.c.b16 %v350, %v349
      %v363 = vunpack.c.l.b16 %v327
      %v364 = vunpack.c.l.b16 %v328
      %v365 = vunpack.c.l.b16 %v329
      %v366 = vunpack.c.l.b16 %v330
      %v367 = vunpack.c.l.b16 %v331
      %v368 = vunpack.c.l.b16 %v332
      %v369 = vunpack.c.l.b16 %v333
      %v370 = vunpack.c.l.b16 %v334
      %v371 = vpack.c.b16 %v364, %v363
      %v372 = vpack.c.b16 %v366, %v365
      %v373 = vpack.c.b16 %v368, %v367
      %v374 = vpack.c.b16 %v370, %v369
      %v380 = vsel %vm239, %v351, 0
      %v383 = vsel %vm239, %v352, 0
      %v386 = vsel %vm239, %v353, 0
      %v389 = vsel %vm239, %v354, 0
      %391 = vmatprep.subr.bf16.mxu0 0
      %392 = vmatpush1.bf16.msra.mxu0 0
      %393 = vmatprep.subr.bf16.mxu0 0
      %394 = vmatpush1.bf16.msra.mxu0 0
      %395 = vmatprep.subr.bf16.mxu0 0
      %396 = vmatpush1.bf16.msra.mxu0 0
      %397 = vmatprep.subr.bf16.mxu0 0
      %398 = vmatpush1.bf16.msra.mxu0 0
      %399 = vmatprep.subr.bf16.mxu0 0
      %400 = vmatpush1.bf16.msra.mxu0 %v374
      %401 = vmatprep.subr.bf16.mxu0 0
      %402 = vmatpush1.bf16.msra.mxu0 %v373
      %403 = vmatprep.subr.bf16.mxu0 0
      %404 = vmatpush1.bf16.msra.mxu0 %v372
      %405 = vmatprep.subr.bf16.mxu0 0
      %406 = vmatpush1.bf16.msra.mxu0 %v371
      %407 = vmatprep.subr.bf16.mxu0 0
      %408 = vmatpush2.bf16.msra.mxu0 0
      %409 = vmatprep.subr.bf16.mxu0 0
      %410 = vmatpush2.bf16.msra.mxu0 0
      %411 = vmatprep.subr.bf16.mxu0 0
      %412 = vmatpush2.bf16.msra.mxu0 0
      %413 = vmatprep.subr.bf16.mxu0 0
      %414 = vmatpush2.bf16.msra.mxu0 0
      %415 = vmatprep.subr.bf16.mxu0 0
      %416 = vmatpush2.bf16.msra.mxu0 0
      %417 = vmatprep.subr.bf16.mxu0 0
      %418 = vmatpush2.bf16.msra.mxu0 0
      %419 = vmatprep.subr.bf16.mxu0 0
      %420 = vmatpush2.bf16.msra.mxu0 0
      %421 = vmatprep.subr.bf16.mxu0 0
      %422 = vmatpush2.bf16.msra.mxu0 0
      %423 = vmatprep.mubr.bf16.mxu0 0
      %424 = vmatmul.mubr.bf16.gmra.mxu0 %v380
      %v425 = vpop.f32.mrf.mxu0
      %v426 = vadd.f32 %v193, %v425
      %v427 = vpop.f32.mrf.mxu0
      %v428 = vpop.f32.mrf.mxu0
      %v429 = vadd.f32 %v193, %v428
      %v430 = vpop.f32.mrf.mxu0
      %431 = vmatprep.mubr.bf16.mxu0 0
      %432 = vmatmul.mubr.bf16.gmra.mxu0 %v383
      %v433 = vpop.f32.mrf.mxu0
      %v434 = vadd.f32 %v193, %v433
      %v435 = vpop.f32.mrf.mxu0
      %v436 = vpop.f32.mrf.mxu0
      %v437 = vadd.f32 %v193, %v436
      %v438 = vpop.f32.mrf.mxu0
      %439 = vmatprep.mubr.bf16.mxu0 0
      %440 = vmatmul.mubr.bf16.gmra.mxu0 %v386
      %v441 = vpop.f32.mrf.mxu0
      %v442 = vadd.f32 %v193, %v441
      %v443 = vpop.f32.mrf.mxu0
      %v444 = vpop.f32.mrf.mxu0
      %v445 = vadd.f32 %v193, %v444
      %v446 = vpop.f32.mrf.mxu0
      %447 = vmatprep.mubr.bf16.mxu0 0
      %448 = vmatmul.mubr.bf16.gmra.mxu0 %v389
      %v449 = vpop.f32.mrf.mxu0
      %v450 = vadd.f32 %v193, %v449
      %v451 = vpop.f32.mrf.mxu0
      %v452 = vpop.f32.mrf.mxu0
      %v453 = vadd.f32 %v193, %v452
      %v454 = vpop.f32.mrf.mxu0
      %455 = vdwg.mxu0
      %s456 = scalar_lea.vmem %s165, 64
      %v457 = vld [vmem:[%s456] sm:$0xf]
      %v458 = vld [vmem:[%s456 + $0x4] sm:$0xf]
      %v459 = vld [vmem:[%s456 + $0x8] sm:$0xf]
      %v460 = vld [vmem:[%s456 + $0xc] sm:$0xf]
      %v461 = vld [vmem:[%s456 + $0x10] sm:$0xf]
      %v462 = vld [vmem:[%s456 + $0x14] sm:$0xf]
      %v463 = vld [vmem:[%s456 + $0x18] sm:$0xf]
      %v464 = vld [vmem:[%s456 + $0x1c] sm:$0xf]
      %s465 = scalar_lea.vmem %s1, 64
      %v466 = vld [vmem:[%s465] sm:$0xf]
      %v467 = vld [vmem:[%s465 + $0x4] sm:$0xf]
      %v468 = vld [vmem:[%s465 + $0x8] sm:$0xf]
      %v469 = vld [vmem:[%s465 + $0xc] sm:$0xf]
      %v470 = vld [vmem:[%s465 + $0x10] sm:$0xf]
      %v471 = vld [vmem:[%s465 + $0x14] sm:$0xf]
      %v472 = vld [vmem:[%s465 + $0x18] sm:$0xf]
      %v473 = vld [vmem:[%s465 + $0x1c] sm:$0xf]
      %v482 = vunpack.c.l.b16 %v457
      %v483 = vunpack.c.l.b16 %v458
      %v484 = vunpack.c.l.b16 %v459
      %v485 = vunpack.c.l.b16 %v460
      %v486 = vunpack.c.l.b16 %v461
      %v487 = vunpack.c.l.b16 %v462
      %v488 = vunpack.c.l.b16 %v463
      %v489 = vunpack.c.l.b16 %v464
      %v490 = vpack.c.b16 %v483, %v482
      %v491 = vpack.c.b16 %v485, %v484
      %v492 = vpack.c.b16 %v487, %v486
      %v493 = vpack.c.b16 %v489, %v488
      %v502 = vunpack.c.l.b16 %v466
      %v503 = vunpack.c.l.b16 %v467
      %v504 = vunpack.c.l.b16 %v468
      %v505 = vunpack.c.l.b16 %v469
      %v506 = vunpack.c.l.b16 %v470
      %v507 = vunpack.c.l.b16 %v471
      %v508 = vunpack.c.l.b16 %v472
      %v509 = vunpack.c.l.b16 %v473
      %v510 = vpack.c.b16 %v503, %v502
      %v511 = vpack.c.b16 %v505, %v504
      %v512 = vpack.c.b16 %v507, %v506
      %v513 = vpack.c.b16 %v509, %v508
      %v519 = vsel %vm239, %v490, 0
      %v522 = vsel %vm239, %v491, 0
      %v525 = vsel %vm239, %v492, 0
      %v528 = vsel %vm239, %v493, 0
      %530 = vmatprep.subr.bf16.mxu0 0
      %531 = vmatpush1.bf16.msra.mxu0 0
      %532 = vmatprep.subr.bf16.mxu0 0
      %533 = vmatpush1.bf16.msra.mxu0 0
      %534 = vmatprep.subr.bf16.mxu0 0
      %535 = vmatpush1.bf16.msra.mxu0 0
      %536 = vmatprep.subr.bf16.mxu0 0
      %537 = vmatpush1.bf16.msra.mxu0 0
      %538 = vmatprep.subr.bf16.mxu0 0
      %539 = vmatpush1.bf16.msra.mxu0 %v513
      %540 = vmatprep.subr.bf16.mxu0 0
      %541 = vmatpush1.bf16.msra.mxu0 %v512
      %542 = vmatprep.subr.bf16.mxu0 0
      %543 = vmatpush1.bf16.msra.mxu0 %v511
      %544 = vmatprep.subr.bf16.mxu0 0
      %545 = vmatpush1.bf16.msra.mxu0 %v510
      %546 = vmatprep.subr.bf16.mxu0 0
      %547 = vmatpush2.bf16.msra.mxu0 0
      %548 = vmatprep.subr.bf16.mxu0 0
      %549 = vmatpush2.bf16.msra.mxu0 0
      %550 = vmatprep.subr.bf16.mxu0 0
      %551 = vmatpush2.bf16.msra.mxu0 0
      %552 = vmatprep.subr.bf16.mxu0 0
      %553 = vmatpush2.bf16.msra.mxu0 0
      %554 = vmatprep.subr.bf16.mxu0 0
      %555 = vmatpush2.bf16.msra.mxu0 0
      %556 = vmatprep.subr.bf16.mxu0 0
      %557 = vmatpush2.bf16.msra.mxu0 0
      %558 = vmatprep.subr.bf16.mxu0 0
      %559 = vmatpush2.bf16.msra.mxu0 0
      %560 = vmatprep.subr.bf16.mxu0 0
      %561 = vmatpush2.bf16.msra.mxu0 0
      %562 = vmatprep.mubr.bf16.mxu0 0
      %563 = vmatmul.mubr.bf16.gmra.mxu0 %v519
      %v564 = vpop.f32.mrf.mxu0
      %v565 = vadd.f32 %v193, %v564
      %v566 = vpop.f32.mrf.mxu0
      %v567 = vpop.f32.mrf.mxu0
      %v568 = vadd.f32 %v193, %v567
      %v569 = vpop.f32.mrf.mxu0
      %570 = vmatprep.mubr.bf16.mxu0 0
      %571 = vmatmul.mubr.bf16.gmra.mxu0 %v522
      %v572 = vpop.f32.mrf.mxu0
      %v573 = vadd.f32 %v193, %v572
      %v574 = vpop.f32.mrf.mxu0
      %v575 = vpop.f32.mrf.mxu0
      %v576 = vadd.f32 %v193, %v575
      %v577 = vpop.f32.mrf.mxu0
      %578 = vmatprep.mubr.bf16.mxu0 0
      %579 = vmatmul.mubr.bf16.gmra.mxu0 %v525
      %v580 = vpop.f32.mrf.mxu0
      %v581 = vadd.f32 %v193, %v580
      %v582 = vpop.f32.mrf.mxu0
      %v583 = vpop.f32.mrf.mxu0
      %v584 = vadd.f32 %v193, %v583
      %v585 = vpop.f32.mrf.mxu0
      %586 = vmatprep.mubr.bf16.mxu0 0
      %587 = vmatmul.mubr.bf16.gmra.mxu0 %v528
      %v588 = vpop.f32.mrf.mxu0
      %v589 = vadd.f32 %v193, %v588
      %v590 = vpop.f32.mrf.mxu0
      %v591 = vpop.f32.mrf.mxu0
      %v592 = vadd.f32 %v193, %v591
      %v593 = vpop.f32.mrf.mxu0
      %594 = vdwg.mxu0
      %s595 = scalar_lea.vmem %s165, 96
      %v596 = vld [vmem:[%s595] sm:$0xf]
      %v597 = vld [vmem:[%s595 + $0x4] sm:$0xf]
      %v598 = vld [vmem:[%s595 + $0x8] sm:$0xf]
      %v599 = vld [vmem:[%s595 + $0xc] sm:$0xf]
      %v600 = vld [vmem:[%s595 + $0x10] sm:$0xf]
      %v601 = vld [vmem:[%s595 + $0x14] sm:$0xf]
      %v602 = vld [vmem:[%s595 + $0x18] sm:$0xf]
      %v603 = vld [vmem:[%s595 + $0x1c] sm:$0xf]
      %s604 = scalar_lea.vmem %s1, 96
      %v605 = vld [vmem:[%s604] sm:$0xf]
      %v606 = vld [vmem:[%s604 + $0x4] sm:$0xf]
      %v607 = vld [vmem:[%s604 + $0x8] sm:$0xf]
      %v608 = vld [vmem:[%s604 + $0xc] sm:$0xf]
      %v609 = vld [vmem:[%s604 + $0x10] sm:$0xf]
      %v610 = vld [vmem:[%s604 + $0x14] sm:$0xf]
      %v611 = vld [vmem:[%s604 + $0x18] sm:$0xf]
      %v612 = vld [vmem:[%s604 + $0x1c] sm:$0xf]
      %v621 = vunpack.c.l.b16 %v596
      %v622 = vunpack.c.l.b16 %v597
      %v623 = vunpack.c.l.b16 %v598
      %v624 = vunpack.c.l.b16 %v599
      %v625 = vunpack.c.l.b16 %v600
      %v626 = vunpack.c.l.b16 %v601
      %v627 = vunpack.c.l.b16 %v602
      %v628 = vunpack.c.l.b16 %v603
      %v629 = vpack.c.b16 %v622, %v621
      %v630 = vpack.c.b16 %v624, %v623
      %v631 = vpack.c.b16 %v626, %v625
      %v632 = vpack.c.b16 %v628, %v627
      %v641 = vunpack.c.l.b16 %v605
      %v642 = vunpack.c.l.b16 %v606
      %v643 = vunpack.c.l.b16 %v607
      %v644 = vunpack.c.l.b16 %v608
      %v645 = vunpack.c.l.b16 %v609
      %v646 = vunpack.c.l.b16 %v610
      %v647 = vunpack.c.l.b16 %v611
      %v648 = vunpack.c.l.b16 %v612
      %v649 = vpack.c.b16 %v642, %v641
      %v650 = vpack.c.b16 %v644, %v643
      %v651 = vpack.c.b16 %v646, %v645
      %v652 = vpack.c.b16 %v648, %v647
      %v658 = vsel %vm239, %v629, 0
      %v661 = vsel %vm239, %v630, 0
      %v664 = vsel %vm239, %v631, 0
      %v667 = vsel %vm239, %v632, 0
      %669 = vmatprep.subr.bf16.mxu0 0
      %670 = vmatpush1.bf16.msra.mxu0 0
      %671 = vmatprep.subr.bf16.mxu0 0
      %672 = vmatpush1.bf16.msra.mxu0 0
      %673 = vmatprep.subr.bf16.mxu0 0
      %674 = vmatpush1.bf16.msra.mxu0 0
      %675 = vmatprep.subr.bf16.mxu0 0
      %676 = vmatpush1.bf16.msra.mxu0 0
      %677 = vmatprep.subr.bf16.mxu0 0
      %678 = vmatpush1.bf16.msra.mxu0 %v652
      %679 = vmatprep.subr.bf16.mxu0 0
      %680 = vmatpush1.bf16.msra.mxu0 %v651
      %681 = vmatprep.subr.bf16.mxu0 0
      %682 = vmatpush1.bf16.msra.mxu0 %v650
      %683 = vmatprep.subr.bf16.mxu0 0
      %684 = vmatpush1.bf16.msra.mxu0 %v649
      %685 = vmatprep.subr.bf16.mxu0 0
      %686 = vmatpush2.bf16.msra.mxu0 0
      %687 = vmatprep.subr.bf16.mxu0 0
      %688 = vmatpush2.bf16.msra.mxu0 0
      %689 = vmatprep.subr.bf16.mxu0 0
      %690 = vmatpush2.bf16.msra.mxu0 0
      %691 = vmatprep.subr.bf16.mxu0 0
      %692 = vmatpush2.bf16.msra.mxu0 0
      %693 = vmatprep.subr.bf16.mxu0 0
      %694 = vmatpush2.bf16.msra.mxu0 0
      %695 = vmatprep.subr.bf16.mxu0 0
      %696 = vmatpush2.bf16.msra.mxu0 0
      %697 = vmatprep.subr.bf16.mxu0 0
      %698 = vmatpush2.bf16.msra.mxu0 0
      %699 = vmatprep.subr.bf16.mxu0 0
      %700 = vmatpush2.bf16.msra.mxu0 0
      %701 = vmatprep.mubr.bf16.mxu0 0
      %702 = vmatmul.mubr.bf16.gmra.mxu0 %v658
      %v703 = vpop.f32.mrf.mxu0
      %v704 = vadd.f32 %v193, %v703
      %v705 = vpop.f32.mrf.mxu0
      %v706 = vpop.f32.mrf.mxu0
      %v707 = vadd.f32 %v193, %v706
      %v708 = vpop.f32.mrf.mxu0
      %709 = vmatprep.mubr.bf16.mxu0 0
      %710 = vmatmul.mubr.bf16.gmra.mxu0 %v661
      %v711 = vpop.f32.mrf.mxu0
      %v712 = vadd.f32 %v193, %v711
      %v713 = vpop.f32.mrf.mxu0
      %v714 = vpop.f32.mrf.mxu0
      %v715 = vadd.f32 %v193, %v714
      %v716 = vpop.f32.mrf.mxu0
      %717 = vmatprep.mubr.bf16.mxu0 0
      %718 = vmatmul.mubr.bf16.gmra.mxu0 %v664
      %v719 = vpop.f32.mrf.mxu0
      %v720 = vadd.f32 %v193, %v719
      %v721 = vpop.f32.mrf.mxu0
      %v722 = vpop.f32.mrf.mxu0
      %v723 = vadd.f32 %v193, %v722
      %v724 = vpop.f32.mrf.mxu0
      %725 = vmatprep.mubr.bf16.mxu0 0
      %726 = vmatmul.mubr.bf16.gmra.mxu0 %v667
      %v727 = vpop.f32.mrf.mxu0
      %v728 = vadd.f32 %v193, %v727
      %v729 = vpop.f32.mrf.mxu0
      %v730 = vpop.f32.mrf.mxu0
      %v731 = vadd.f32 %v193, %v730
      %v732 = vpop.f32.mrf.mxu0
      %733 = vdwg.mxu0
      %vm734 = vcmask 64512
      %v735 = vsel %vm734, %v287, 0.0
      %v736 = vsel %vm734, %v290, 0.0
      %v737 = vadd.f32 %v735, %v736
      %v738 = vsel %vm734, %v295, 0.0
      %v739 = vadd.f32 %v737, %v738
      %v740 = vsel %vm734, %v298, 0.0
      %v741 = vadd.f32 %v739, %v740
      %v742 = vsel %vm734, %v303, 0.0
      %v743 = vadd.f32 %v741, %v742
      %v744 = vsel %vm734, %v306, 0.0
      %v745 = vadd.f32 %v743, %v744
      %v746 = vsel %vm734, %v311, 0.0
      %v747 = vadd.f32 %v745, %v746
      %v748 = vsel %vm734, %v314, 0.0
      %v749 = vadd.f32 %v747, %v748
      %v750 = vrot.slane %v749, 4
      %v751 = vadd.f32 %v749, %v750
      %v752 = vrot.slane %v751, 2
      %v753 = vadd.f32 %v751, %v752
      %v754 = vrot.slane %v753, 1
      %v755 = vadd.f32 %v753, %v754
      %v756 = vmul.f32 %v287, %v287
      %v757 = vmul.f32 %v290, %v290
      %v758 = vmul.f32 %v295, %v295
      %v759 = vmul.f32 %v298, %v298
      %v760 = vmul.f32 %v303, %v303
      %v761 = vmul.f32 %v306, %v306
      %v762 = vmul.f32 %v311, %v311
      %v763 = vmul.f32 %v314, %v314
      %v764 = vsel %vm734, %v756, 0.0
      %v765 = vsel %vm734, %v757, 0.0
      %v766 = vadd.f32 %v764, %v765
      %v767 = vsel %vm734, %v758, 0.0
      %v768 = vadd.f32 %v766, %v767
      %v769 = vsel %vm734, %v759, 0.0
      %v770 = vadd.f32 %v768, %v769
      %v771 = vsel %vm734, %v760, 0.0
      %v772 = vadd.f32 %v770, %v771
      %v773 = vsel %vm734, %v761, 0.0
      %v774 = vadd.f32 %v772, %v773
      %v775 = vsel %vm734, %v762, 0.0
      %v776 = vadd.f32 %v774, %v775
      %v777 = vsel %vm734, %v763, 0.0
      %v778 = vadd.f32 %v776, %v777
      %v779 = vrot.slane %v778, 4
      %v780 = vadd.f32 %v778, %v779
      %v781 = vrot.slane %v780, 2
      %v782 = vadd.f32 %v780, %v781
      %v783 = vrot.slane %v782, 1
      %v784 = vadd.f32 %v782, %v783
      %v785 = vsel %vm734, %v426, 0.0
      %v786 = vsel %vm734, %v429, 0.0
      %v787 = vadd.f32 %v785, %v786
      %v788 = vsel %vm734, %v434, 0.0
      %v789 = vadd.f32 %v787, %v788
      %v790 = vsel %vm734, %v437, 0.0
      %v791 = vadd.f32 %v789, %v790
      %v792 = vsel %vm734, %v442, 0.0
      %v793 = vadd.f32 %v791, %v792
      %v794 = vsel %vm734, %v445, 0.0
      %v795 = vadd.f32 %v793, %v794
      %v796 = vsel %vm734, %v450, 0.0
      %v797 = vadd.f32 %v795, %v796
      %v798 = vsel %vm734, %v453, 0.0
      %v799 = vadd.f32 %v797, %v798
      %v800 = vrot.slane %v799, 4
      %v801 = vadd.f32 %v799, %v800
      %v802 = vrot.slane %v801, 2
      %v803 = vadd.f32 %v801, %v802
      %v804 = vrot.slane %v803, 1
      %v805 = vadd.f32 %v803, %v804
      %v806 = vadd.f32 %v755, %v805
      %v807 = vmul.f32 %v426, %v426
      %v808 = vmul.f32 %v429, %v429
      %v809 = vmul.f32 %v434, %v434
      %v810 = vmul.f32 %v437, %v437
      %v811 = vmul.f32 %v442, %v442
      %v812 = vmul.f32 %v445, %v445
      %v813 = vmul.f32 %v450, %v450
      %v814 = vmul.f32 %v453, %v453
      %v815 = vsel %vm734, %v807, 0.0
      %v816 = vsel %vm734, %v808, 0.0
      %v817 = vadd.f32 %v815, %v816
      %v818 = vsel %vm734, %v809, 0.0
      %v819 = vadd.f32 %v817, %v818
      %v820 = vsel %vm734, %v810, 0.0
      %v821 = vadd.f32 %v819, %v820
      %v822 = vsel %vm734, %v811, 0.0
      %v823 = vadd.f32 %v821, %v822
      %v824 = vsel %vm734, %v812, 0.0
      %v825 = vadd.f32 %v823, %v824
      %v826 = vsel %vm734, %v813, 0.0
      %v827 = vadd.f32 %v825, %v826
      %v828 = vsel %vm734, %v814, 0.0
      %v829 = vadd.f32 %v827, %v828
      %v830 = vrot.slane %v829, 4
      %v831 = vadd.f32 %v829, %v830
      %v832 = vrot.slane %v831, 2
      %v833 = vadd.f32 %v831, %v832
      %v834 = vrot.slane %v833, 1
      %v835 = vadd.f32 %v833, %v834
      %v836 = vadd.f32 %v784, %v835
      %v837 = vsel %vm734, %v565, 0.0
      %v838 = vsel %vm734, %v568, 0.0
      %v839 = vadd.f32 %v837, %v838
      %v840 = vsel %vm734, %v573, 0.0
      %v841 = vadd.f32 %v839, %v840
      %v842 = vsel %vm734, %v576, 0.0
      %v843 = vadd.f32 %v841, %v842
      %v844 = vsel %vm734, %v581, 0.0
      %v845 = vadd.f32 %v843, %v844
      %v846 = vsel %vm734, %v584, 0.0
      %v847 = vadd.f32 %v845, %v846
      %v848 = vsel %vm734, %v589, 0.0
      %v849 = vadd.f32 %v847, %v848
      %v850 = vsel %vm734, %v592, 0.0
      %v851 = vadd.f32 %v849, %v850
      %v852 = vrot.slane %v851, 4
      %v853 = vadd.f32 %v851, %v852
      %v854 = vrot.slane %v853, 2
      %v855 = vadd.f32 %v853, %v854
      %v856 = vrot.slane %v855, 1
      %v857 = vadd.f32 %v855, %v856
      %v858 = vadd.f32 %v806, %v857
      %v859 = vmul.f32 %v565, %v565
      %v860 = vmul.f32 %v568, %v568
      %v861 = vmul.f32 %v573, %v573
      %v862 = vmul.f32 %v576, %v576
      %v863 = vmul.f32 %v581, %v581
      %v864 = vmul.f32 %v584, %v584
      %v865 = vmul.f32 %v589, %v589
      %v866 = vmul.f32 %v592, %v592
      %v867 = vsel %vm734, %v859, 0.0
      %v868 = vsel %vm734, %v860, 0.0
      %v869 = vadd.f32 %v867, %v868
      %v870 = vsel %vm734, %v861, 0.0
      %v871 = vadd.f32 %v869, %v870
      %v872 = vsel %vm734, %v862, 0.0
      %v873 = vadd.f32 %v871, %v872
      %v874 = vsel %vm734, %v863, 0.0
      %v875 = vadd.f32 %v873, %v874
      %v876 = vsel %vm734, %v864, 0.0
      %v877 = vadd.f32 %v875, %v876
      %v878 = vsel %vm734, %v865, 0.0
      %v879 = vadd.f32 %v877, %v878
      %v880 = vsel %vm734, %v866, 0.0
      %v881 = vadd.f32 %v879, %v880
      %v882 = vrot.slane %v881, 4
      %v883 = vadd.f32 %v881, %v882
      %v884 = vrot.slane %v883, 2
      %v885 = vadd.f32 %v883, %v884
      %v886 = vrot.slane %v885, 1
      %v887 = vadd.f32 %v885, %v886
      %v888 = vadd.f32 %v836, %v887
      %v889 = vsel %vm734, %v704, 0.0
      %v890 = vsel %vm734, %v707, 0.0
      %v891 = vadd.f32 %v889, %v890
      %v892 = vsel %vm734, %v712, 0.0
      %v893 = vadd.f32 %v891, %v892
      %v894 = vsel %vm734, %v715, 0.0
      %v895 = vadd.f32 %v893, %v894
      %v896 = vsel %vm734, %v720, 0.0
      %v897 = vadd.f32 %v895, %v896
      %v898 = vsel %vm734, %v723, 0.0
      %v899 = vadd.f32 %v897, %v898
      %v900 = vsel %vm734, %v728, 0.0
      %v901 = vadd.f32 %v899, %v900
      %v902 = vsel %vm734, %v731, 0.0
      %v903 = vadd.f32 %v901, %v902
      %v904 = vrot.slane %v903, 4
      %v905 = vadd.f32 %v903, %v904
      %v906 = vrot.slane %v905, 2
      %v907 = vadd.f32 %v905, %v906
      %v908 = vrot.slane %v907, 1
      %v909 = vadd.f32 %v907, %v908
      %v910 = vadd.f32 %v858, %v909
      %v911 = vmul.f32 %v704, %v704
      %v912 = vmul.f32 %v707, %v707
      %v913 = vmul.f32 %v712, %v712
      %v914 = vmul.f32 %v715, %v715
      %v915 = vmul.f32 %v720, %v720
      %v916 = vmul.f32 %v723, %v723
      %v917 = vmul.f32 %v728, %v728
      %v918 = vmul.f32 %v731, %v731
      %v919 = vsel %vm734, %v911, 0.0
      %v920 = vsel %vm734, %v912, 0.0
      %v921 = vadd.f32 %v919, %v920
      %v922 = vsel %vm734, %v913, 0.0
      %v923 = vadd.f32 %v921, %v922
      %v924 = vsel %vm734, %v914, 0.0
      %v925 = vadd.f32 %v923, %v924
      %v926 = vsel %vm734, %v915, 0.0
      %v927 = vadd.f32 %v925, %v926
      %v928 = vsel %vm734, %v916, 0.0
      %v929 = vadd.f32 %v927, %v928
      %v930 = vsel %vm734, %v917, 0.0
      %v931 = vadd.f32 %v929, %v930
      %v932 = vsel %vm734, %v918, 0.0
      %v933 = vadd.f32 %v931, %v932
      %v934 = vrot.slane %v933, 4
      %v935 = vadd.f32 %v933, %v934
      %v936 = vrot.slane %v935, 2
      %v937 = vadd.f32 %v935, %v936
      %v938 = vrot.slane %v937, 1
      %v939 = vadd.f32 %v937, %v938
      %v940 = vadd.f32 %v888, %v939
      %v941 = vrcp.pop 256.0
      %v942 = vmul.f32 %v910, %v941
      %v943 = vmul.f32 %v940, %v941
      %v944 = vmul.f32 %v942, %v942
      %v945 = vsub.f32 %v943, %v944
      %v946 = vmax.f32 %v945, 0.0
      %v947 = vadd.f32 %v946, 1e-05
      %v948 = vrsqrt.pop %v947
      %v949 = vsub.f32 %v287, %v942
      %v950 = vsub.f32 %v290, %v942
      %v951 = vsub.f32 %v295, %v942
      %v952 = vsub.f32 %v298, %v942
      %v953 = vsub.f32 %v303, %v942
      %v954 = vsub.f32 %v306, %v942
      %v955 = vsub.f32 %v311, %v942
      %v956 = vsub.f32 %v314, %v942
      %v957 = vmul.f32 %v949, %v948
      %v958 = vmul.f32 %v950, %v948
      %v959 = vmul.f32 %v951, %v948
      %v960 = vmul.f32 %v952, %v948
      %v961 = vmul.f32 %v953, %v948
      %v962 = vmul.f32 %v954, %v948
      %v963 = vmul.f32 %v955, %v948
      %v964 = vmul.f32 %v956, %v948
      %v965 = vsub.f32 %v426, %v942
      %v966 = vsub.f32 %v429, %v942
      %v967 = vsub.f32 %v434, %v942
      %v968 = vsub.f32 %v437, %v942
      %v969 = vsub.f32 %v442, %v942
      %v970 = vsub.f32 %v445, %v942
      %v971 = vsub.f32 %v450, %v942
      %v972 = vsub.f32 %v453, %v942
      %v973 = vmul.f32 %v965, %v948
      %v974 = vmul.f32 %v966, %v948
      %v975 = vmul.f32 %v967, %v948
      %v976 = vmul.f32 %v968, %v948
      %v977 = vmul.f32 %v969, %v948
      %v978 = vmul.f32 %v970, %v948
      %v979 = vmul.f32 %v971, %v948
      %v980 = vmul.f32 %v972, %v948
      %v981 = vsub.f32 %v565, %v942
      %v982 = vsub.f32 %v568, %v942
      %v983 = vsub.f32 %v573, %v942
      %v984 = vsub.f32 %v576, %v942
      %v985 = vsub.f32 %v581, %v942
      %v986 = vsub.f32 %v584, %v942
      %v987 = vsub.f32 %v589, %v942
      %v988 = vsub.f32 %v592, %v942
      %v989 = vmul.f32 %v981, %v948
      %v990 = vmul.f32 %v982, %v948
      %v991 = vmul.f32 %v983, %v948
      %v992 = vmul.f32 %v984, %v948
      %v993 = vmul.f32 %v985, %v948
      %v994 = vmul.f32 %v986, %v948
      %v995 = vmul.f32 %v987, %v948
      %v996 = vmul.f32 %v988, %v948
      %v997 = vsub.f32 %v704, %v942
      %v998 = vsub.f32 %v707, %v942
      %v999 = vsub.f32 %v712, %v942
      %v1000 = vsub.f32 %v715, %v942
      %v1001 = vsub.f32 %v720, %v942
      %v1002 = vsub.f32 %v723, %v942
      %v1003 = vsub.f32 %v728, %v942
      %v1004 = vsub.f32 %v731, %v942
      %v1005 = vmul.f32 %v997, %v948
      %v1006 = vmul.f32 %v998, %v948
      %v1007 = vmul.f32 %v999, %v948
      %v1008 = vmul.f32 %v1000, %v948
      %v1009 = vmul.f32 %v1001, %v948
      %v1010 = vmul.f32 %v1002, %v948
      %v1011 = vmul.f32 %v1003, %v948
      %v1012 = vmul.f32 %v1004, %v948
      %v1013 = vmax.f32 %v957, 0.0
      %v1014 = vmax.f32 %v958, 0.0
      %v1015 = vmax.f32 %v959, 0.0
      %v1016 = vmax.f32 %v960, 0.0
      %v1017 = vmax.f32 %v961, 0.0
      %v1018 = vmax.f32 %v962, 0.0
      %v1019 = vmax.f32 %v963, 0.0
      %v1020 = vmax.f32 %v964, 0.0
      %1021 = vst.msk [vmem:[%s170] sm:$0xff] %vm734, %v1013
      %1022 = vst.msk [vmem:[%s170 + $0x8] sm:$0xff] %vm734, %v1014
      %1023 = vst.msk [vmem:[%s170 + $0x10] sm:$0xff] %vm734, %v1015
      %1024 = vst.msk [vmem:[%s170 + $0x18] sm:$0xff] %vm734, %v1016
      %1025 = vst.msk [vmem:[%s170 + $0x20] sm:$0xff] %vm734, %v1017
      %1026 = vst.msk [vmem:[%s170 + $0x28] sm:$0xff] %vm734, %v1018
      %1027 = vst.msk [vmem:[%s170 + $0x30] sm:$0xff] %vm734, %v1019
      %1028 = vst.msk [vmem:[%s170 + $0x38] sm:$0xff] %vm734, %v1020
      %v1029 = vmax.f32 %v973, 0.0
      %v1030 = vmax.f32 %v974, 0.0
      %v1031 = vmax.f32 %v975, 0.0
      %v1032 = vmax.f32 %v976, 0.0
      %v1033 = vmax.f32 %v977, 0.0
      %v1034 = vmax.f32 %v978, 0.0
      %v1035 = vmax.f32 %v979, 0.0
      %v1036 = vmax.f32 %v980, 0.0
      %s1037 = scalar_lea.vmem %s170, 64
      %1038 = vst.msk [vmem:[%s1037] sm:$0xff] %vm734, %v1029
      %1039 = vst.msk [vmem:[%s1037 + $0x8] sm:$0xff] %vm734, %v1030
      %1040 = vst.msk [vmem:[%s1037 + $0x10] sm:$0xff] %vm734, %v1031
      %1041 = vst.msk [vmem:[%s1037 + $0x18] sm:$0xff] %vm734, %v1032
      %1042 = vst.msk [vmem:[%s1037 + $0x20] sm:$0xff] %vm734, %v1033
      %1043 = vst.msk [vmem:[%s1037 + $0x28] sm:$0xff] %vm734, %v1034
      %1044 = vst.msk [vmem:[%s1037 + $0x30] sm:$0xff] %vm734, %v1035
      %1045 = vst.msk [vmem:[%s1037 + $0x38] sm:$0xff] %vm734, %v1036
      %v1046 = vmax.f32 %v989, 0.0
      %v1047 = vmax.f32 %v990, 0.0
      %v1048 = vmax.f32 %v991, 0.0
      %v1049 = vmax.f32 %v992, 0.0
      %v1050 = vmax.f32 %v993, 0.0
      %v1051 = vmax.f32 %v994, 0.0
      %v1052 = vmax.f32 %v995, 0.0
      %v1053 = vmax.f32 %v996, 0.0
      %s1054 = scalar_lea.vmem %s170, 128
      %1055 = vst.msk [vmem:[%s1054] sm:$0xff] %vm734, %v1046
      %1056 = vst.msk [vmem:[%s1054 + $0x8] sm:$0xff] %vm734, %v1047
      %1057 = vst.msk [vmem:[%s1054 + $0x10] sm:$0xff] %vm734, %v1048
      %1058 = vst.msk [vmem:[%s1054 + $0x18] sm:$0xff] %vm734, %v1049
      %1059 = vst.msk [vmem:[%s1054 + $0x20] sm:$0xff] %vm734, %v1050
      %1060 = vst.msk [vmem:[%s1054 + $0x28] sm:$0xff] %vm734, %v1051
      %1061 = vst.msk [vmem:[%s1054 + $0x30] sm:$0xff] %vm734, %v1052
      %1062 = vst.msk [vmem:[%s1054 + $0x38] sm:$0xff] %vm734, %v1053
      %v1063 = vmax.f32 %v1005, 0.0
      %v1064 = vmax.f32 %v1006, 0.0
      %v1065 = vmax.f32 %v1007, 0.0
      %v1066 = vmax.f32 %v1008, 0.0
      %v1067 = vmax.f32 %v1009, 0.0
      %v1068 = vmax.f32 %v1010, 0.0
      %v1069 = vmax.f32 %v1011, 0.0
      %v1070 = vmax.f32 %v1012, 0.0
      %s1071 = scalar_lea.vmem %s170, 192
      %1072 = vst.msk [vmem:[%s1071] sm:$0xff] %vm734, %v1063
      %1073 = vst.msk [vmem:[%s1071 + $0x8] sm:$0xff] %vm734, %v1064
      %1074 = vst.msk [vmem:[%s1071 + $0x10] sm:$0xff] %vm734, %v1065
      %1075 = vst.msk [vmem:[%s1071 + $0x18] sm:$0xff] %vm734, %v1066
      %1076 = vst.msk [vmem:[%s1071 + $0x20] sm:$0xff] %vm734, %v1067
      %1077 = vst.msk [vmem:[%s1071 + $0x28] sm:$0xff] %vm734, %v1068
      %1078 = vst.msk [vmem:[%s1071 + $0x30] sm:$0xff] %vm734, %v1069
      %1079 = vst.msk [vmem:[%s1071 + $0x38] sm:$0xff] %vm734, %v1070
      %p1080 = scmp.lt.s32.totalorder %s14, 1
      %s1081 = scalar_select %p1080, %s14, 1
      %s1082 = smul.addr %s1081, 32
      %s1083 = smul.addr %s1082, 8
      %s1084 = scalar_lea.vmem %s3, %s1083
      // Predicated region
      $region33: #{generator_forward.12} parent=31 // pred_check
        %p1085 = pneg %p100
      $region34: #{generator_forward.12} parent=31 // pred_check_branch
        %1087 = sbr.rel (%p1085) target = $region36
      $region35: #{generator_forward.12} parent=31 // pred_region
        _
      $region36: #{generator_forward.12} parent=31 // pred_fallthru
        _
    $region32: #{generator_forward.12} parent=5 // pred_fallthru
      _
    %p1088 = scmp.le.s32.totalorder 2, %s9
    // Predicated region
    $region37: #{generator_forward.12} parent=5 // pred_check
      %p1089 = pneg %p1088
    $region38: #{generator_forward.12} parent=5 // pred_check_branch
      %1091 = sbr.rel (%p1089) target = $region40
    $region39: #{generator_forward.12} parent=5 // pred_region
      %s1092 = ssub.s32 %s9, 2
      // Predicated region
      $region41: #{generator_forward.12} parent=39 // pred_check
        %p1093 = pneg %p106
      $region42: #{generator_forward.12} parent=39 // pred_check_branch
        %1095 = sbr.rel (%p1093) target = $region44
      $region43: #{generator_forward.12} parent=39 // pred_region
        %p1096 = scmp.lt.s32.totalorder %s15, 1
        %s1097 = scalar_select %p1096, %s15, 1
        %s1098 = smul.addr %s1097, 32
        %s1099 = smul.addr %s1098, 8
        %s1100 = scalar_lea.vmem %s3, %s1099
      $region44: #{generator_forward.12} parent=39 // pred_fallthru
        _
    $region40: #{generator_forward.12} parent=5 // pred_fallthru
      _
  $region6: #{generator_forward.12} parent=0 // loop_footer
    %s13 = sadd.s32 1, %s9
  $region7: #{generator_forward.12} parent=0 // loop_footer_branch
    %8 = sbr.rel target = $region3
  $region8: #{generator_forward.12} parent=0 // loop_exit
    _

// kernel: generator_forward.13
$region0: #{generator_forward.13}
  #allocation0 [shape = 'u32[]', space=smem, size = 0x4, offset = 0x4, fixed_abs, tag = 'smem constant byte address 0x4 - core index']
  #allocation1 [shape = 'u32[144,128]{1,0:T(1,128)}', space=vmem, size = 0x12000, scoped, tag = 'internal scratch']
  %s0 = inlined_call_operand.vmem [shape: bf16[2,1,256,392], index: 0, kind: input, shape index: {}]
  %s1 = inlined_call_operand.vmem [shape: bf16[1,392,4], index: 1, kind: input, shape index: {}]
  %s2 = inlined_call_operand.vmem [shape: f32[1,4], index: 2, kind: input, shape index: {}]
  %s3 = inlined_call_operand.vmem [shape: f32[2,1,256,4], index: 3, kind: output, shape index: {}]
  %s4 = sld [smem:[#allocation0]]
  $region45: #{generator_forward.13} parent=0
    _
  %s6 = ssub.s32 1, %s4
  %s7 = scalar_select 0, %s6, %s4
  loop: start=0, step=1, limit=4
  $region2: #{generator_forward.13} parent=0 // loop_pre_header
    _
  $region3: #{generator_forward.13} parent=0 // loop_header
    %s9 = sphi 0, %s13
    %p10 = scmp.ge.s32.totalorder %s9, 4
    %s19 = sphi 0, %s21
    %s22 = sphi 0, %s19
    %s23 = sphi 0, %s22
    %s39 = sphi 0, %s23
    %s43 = sphi 0, %s43
    %s45 = sphi 0, %s43
    %s46 = sphi 0, %s45
    %s60 = sphi 0, %s46
    %s64 = sphi 0, %s64
    %s66 = sphi 0, %s64
    %s67 = sphi 0, %s66
    %s81 = sphi 0, %s67
    %s87 = sphi 0, %s89
    %s90 = sphi 0, %s87
    %s91 = sphi 0, %s90
    %s107 = sphi 0, %s91
  $region4: #{generator_forward.13} parent=0 // loop_header_branch
    %12 = sbr.rel (%p10) target = $region8
  $region5: #{generator_forward.13} parent=0 // loop_body
    %s14 = ssub.s32 %s9, 1
    %s15 = ssub.s32 %s9, 2
    %s16 = sadd.s32 %s9, 1
    %s17 = ssub.s32 %s9, %s16
    %p18 = scmp.eq.s32.totalorder %s17, 0
    %s20 = sadd.s32 %s19, 1
    %s21 = scalar_select %p18, %s19, %s20
    %p24 = pneg %p18
    %p25 = scmp.eq.s32.totalorder %s9, 1
    %p26 = por %p24, %p25
    %p27 = scmp.ne.s32.totalorder %s19, %s22
    %p28 = scmp.eq.s32.totalorder %s9, 0
    %p29 = por %p27, %p28
    %p30 = scmp.ne.s32.totalorder %s19, %s22
    %p31 = scmp.eq.s32.totalorder %s14, 1
    %p32 = por %p30, %p31
    %p33 = scmp.ne.s32.totalorder %s22, %s23
    %p34 = scmp.eq.s32.totalorder %s14, 0
    %p35 = por %p33, %p34
    %p36 = scmp.ne.s32.totalorder %s22, %s23
    %p37 = scmp.eq.s32.totalorder %s15, 1
    %p38 = por %p36, %p37
    %p40 = scmp.ne.s32.totalorder %s23, %s39
    %p41 = scmp.eq.s32.totalorder %s15, 0
    %p42 = por %p40, %p41
    %s44 = sadd.s32 %s43, 1
    %p47 = scmp.eq.s32.totalorder %s9, 1
    %p48 = scmp.ne.s32.totalorder %s43, %s45
    %p49 = scmp.eq.s32.totalorder %s9, 0
    %p50 = por %p48, %p49
    %p51 = scmp.ne.s32.totalorder %s43, %s45
    %p52 = scmp.eq.s32.totalorder %s14, 1
    %p53 = por %p51, %p52
    %p54 = scmp.ne.s32.totalorder %s45, %s46
    %p55 = scmp.eq.s32.totalorder %s14, 0
    %p56 = por %p54, %p55
    %p57 = scmp.ne.s32.totalorder %s45, %s46
    %p58 = scmp.eq.s32.totalorder %s15, 1
    %p59 = por %p57, %p58
    %p61 = scmp.ne.s32.totalorder %s46, %s60
    %p62 = scmp.eq.s32.totalorder %s15, 0
    %p63 = por %p61, %p62
    %s65 = sadd.s32 %s64, 1
    %p68 = scmp.eq.s32.totalorder %s9, 1
    %p69 = scmp.ne.s32.totalorder %s64, %s66
    %p70 = scmp.eq.s32.totalorder %s9, 0
    %p71 = por %p69, %p70
    %p72 = scmp.ne.s32.totalorder %s64, %s66
    %p73 = scmp.eq.s32.totalorder %s14, 1
    %p74 = por %p72, %p73
    %p75 = scmp.ne.s32.totalorder %s66, %s67
    %p76 = scmp.eq.s32.totalorder %s14, 0
    %p77 = por %p75, %p76
    %p78 = scmp.ne.s32.totalorder %s66, %s67
    %p79 = scmp.eq.s32.totalorder %s15, 1
    %p80 = por %p78, %p79
    %p82 = scmp.ne.s32.totalorder %s67, %s81
    %p83 = scmp.eq.s32.totalorder %s15, 0
    %p84 = por %p82, %p83
    %s85 = ssub.s32 %s9, %s16
    %p86 = scmp.eq.s32.totalorder %s85, 0
    %s88 = sadd.s32 %s87, 1
    %s89 = scalar_select %p86, %s87, %s88
    %p92 = pneg %p86
    %p93 = scmp.eq.s32.totalorder %s9, 1
    %p94 = por %p92, %p93
    %p95 = scmp.ne.s32.totalorder %s87, %s90
    %p96 = scmp.eq.s32.totalorder %s9, 0
    %p97 = por %p95, %p96
    %p98 = scmp.ne.s32.totalorder %s87, %s90
    %p99 = scmp.eq.s32.totalorder %s14, 1
    %p100 = por %p98, %p99
    %p101 = scmp.ne.s32.totalorder %s90, %s91
    %p102 = scmp.eq.s32.totalorder %s14, 0
    %p103 = por %p101, %p102
    %p104 = scmp.ne.s32.totalorder %s90, %s91
    %p105 = scmp.eq.s32.totalorder %s15, 1
    %p106 = por %p104, %p105
    %p108 = scmp.ne.s32.totalorder %s91, %s107
    %p109 = scmp.eq.s32.totalorder %s15, 0
    %p110 = por %p108, %p109
    %p111 = scmp.le.s32.totalorder 1, %s9
    %p112 = scmp.lt.s32.totalorder %s9, 3
    %p113 = pnand %p111, %p112
    %p114 = pneg %p113
    // Predicated region
    $region9: #{generator_forward.13} parent=5 // pred_check
      _
    $region10: #{generator_forward.13} parent=5 // pred_check_branch
      %116 = sbr.rel (%p113) target = $region12
    $region11: #{generator_forward.13} parent=5 // pred_region
      %s117 = ssub.s32 %s9, 1
      // Predicated region
      $region13: #{generator_forward.13} parent=11 // pred_check
        %p118 = pneg %p56
      $region14: #{generator_forward.13} parent=11 // pred_check_branch
        %120 = sbr.rel (%p118) target = $region16
      $region15: #{generator_forward.13} parent=11 // pred_region
        _
      $region16: #{generator_forward.13} parent=11 // pred_fallthru
        _
      // Predicated region
      $region17: #{generator_forward.13} parent=11 // pred_check
        %p121 = pneg %p77
      $region18: #{generator_forward.13} parent=11 // pred_check_branch
        %123 = sbr.rel (%p121) target = $region20
      $region19: #{generator_forward.13} parent=11 // pred_region
        _
      $region20: #{generator_forward.13} parent=11 // pred_fallthru
        _
    $region12: #{generator_forward.13} parent=5 // pred_fallthru
      _
    %p124 = scmp.lt.s32.totalorder %s9, 2
    // Predicated region
    $region21: #{generator_forward.13} parent=5 // pred_check
      %p125 = pneg %p124
    $region22: #{generator_forward.13} parent=5 // pred_check_branch
      %127 = sbr.rel (%p125) target = $region24
    $region23: #{generator_forward.13} parent=5 // pred_region
      // Predicated region
      $region25: #{generator_forward.13} parent=23 // pred_check
        %p128 = pneg %p29
      $region26: #{generator_forward.13} parent=23 // pred_check_branch
        %130 = sbr.rel (%p128) target = $region28
      $region27: #{generator_forward.13} parent=23 // pred_region
        %p131 = scmp.lt.s32.totalorder %s9, 1
        %s132 = scalar_select %p131, %s9, 1
        %s133 = smul.addr %s132, 128
        %s134 = smul.addr %s133, 4
        %s135 = scalar_lea.vmem %s0, %s134
      $region28: #{generator_forward.13} parent=23 // pred_fallthru
        _
    $region24: #{generator_forward.13} parent=5 // pred_fallthru
      _
    %p136 = scmp.le.s32.totalorder 1, %s9
    %p137 = scmp.lt.s32.totalorder %s9, 3
    %p138 = pnand %p136, %p137
    %p139 = pneg %p138
    // Predicated region
    $region29: #{generator_forward.13} parent=5 // pred_check
      _
    $region30: #{generator_forward.13} parent=5 // pred_check_branch
      %141 = sbr.rel (%p138) target = $region32
    $region31: #{generator_forward.13} parent=5 // pred_region
      %s142 = ssub.s32 %s9, 1
      %p143 = scmp.lt.s32.totalorder %s14, 1
      %s144 = scalar_select %p143, %s14, 1
      %s145 = smul.addr %s144, 128
      %s146 = smul.addr %s145, 4
      %s147 = scalar_lea.vmem %s0, %s146
      %p148 = pneg %p35
      %p149 = pneg %p32
      %p150 = pneg %p56
      %p151 = pneg %p53
      %p152 = pneg %p77
      %p153 = pneg %p74
      %p154 = pneg %p103
      %p155 = pneg %p100
      %p156 = scmp.lt.s32.totalorder %s14, 1
      %s157 = scalar_select %p156, %s14, 1
      %s158 = smul.addr %s157, 32
      %s159 = smul.addr %s158, 8
      %s160 = scalar_lea.vmem %s3, %s159
      %p161 = scmp.lt.s32.totalorder %s14, 1
      %s162 = scalar_select %p161, %s14, 1
      %s163 = smul.addr %s162, 128
      %s164 = smul.addr %s163, 4
      %s165 = scalar_lea.vmem %s0, %s164
      %p166 = scmp.lt.s32.totalorder %s14, 1
      %s167 = scalar_select %p166, %s14, 1
      %s168 = smul.addr %s167, 32
      %s169 = smul.addr %s168, 8
      %s170 = scalar_lea.vmem %s3, %s169
      %v172 = vld [vmem:[%s2] sm:$0x1]
      %v173 = vld [vmem:[%s165] sm:$0xff]
      %v174 = vld [vmem:[%s165 + $0x8] sm:$0xff]
      %v175 = vld [vmem:[%s165 + $0x10] sm:$0xff]
      %v176 = vld [vmem:[%s165 + $0x18] sm:$0xff]
      %v177 = vld [vmem:[%s165 + $0x20] sm:$0xff]
      %v178 = vld [vmem:[%s165 + $0x28] sm:$0xff]
      %v179 = vld [vmem:[%s165 + $0x30] sm:$0xff]
      %v180 = vld [vmem:[%s165 + $0x38] sm:$0xff]
      %v181 = vld [vmem:[%s165 + $0x40] sm:$0xff]
      %v182 = vld [vmem:[%s165 + $0x48] sm:$0xff]
      %v183 = vld [vmem:[%s165 + $0x50] sm:$0xff]
      %v184 = vld [vmem:[%s165 + $0x58] sm:$0xff]
      %v185 = vld [vmem:[%s165 + $0x60] sm:$0xff]
      %v186 = vld [vmem:[%s165 + $0x68] sm:$0xff]
      %v187 = vld [vmem:[%s165 + $0x70] sm:$0xff]
      %v188 = vld [vmem:[%s165 + $0x78] sm:$0xff]
      %v189 = vld [vmem:[%s165 + $0x80] sm:$0xff]
      %v190 = vld [vmem:[%s165 + $0x88] sm:$0xff]
      %v191 = vld [vmem:[%s165 + $0x90] sm:$0xff]
      %v192 = vld [vmem:[%s165 + $0x98] sm:$0xff]
      %v193 = vld [vmem:[%s165 + $0xa0] sm:$0xff]
      %v194 = vld [vmem:[%s165 + $0xa8] sm:$0xff]
      %v195 = vld [vmem:[%s165 + $0xb0] sm:$0xff]
      %v196 = vld [vmem:[%s165 + $0xb8] sm:$0xff]
      %v197 = vld [vmem:[%s165 + $0xc0] sm:$0xff]
      %v198 = vld [vmem:[%s165 + $0xc8] sm:$0xff]
      %v199 = vld [vmem:[%s165 + $0xd0] sm:$0xff]
      %v200 = vld [vmem:[%s165 + $0xd8] sm:$0xff]
      %v201 = vld [vmem:[%s165 + $0xe0] sm:$0xff]
      %v202 = vld [vmem:[%s165 + $0xe8] sm:$0xff]
      %v203 = vld [vmem:[%s165 + $0xf0] sm:$0xff]
      %v204 = vld [vmem:[%s165 + $0xf8] sm:$0xff]
      %v205 = vld [vmem:[%s165 + $0x100] sm:$0xff]
      %v206 = vld [vmem:[%s165 + $0x108] sm:$0xff]
      %v207 = vld [vmem:[%s165 + $0x110] sm:$0xff]
      %v208 = vld [vmem:[%s165 + $0x118] sm:$0xff]
      %v209 = vld [vmem:[%s165 + $0x120] sm:$0xff]
      %v210 = vld [vmem:[%s165 + $0x128] sm:$0xff]
      %v211 = vld [vmem:[%s165 + $0x130] sm:$0xff]
      %v212 = vld [vmem:[%s165 + $0x138] sm:$0xff]
      %v213 = vld [vmem:[%s165 + $0x140] sm:$0xff]
      %v214 = vld [vmem:[%s165 + $0x148] sm:$0xff]
      %v215 = vld [vmem:[%s165 + $0x150] sm:$0xff]
      %v216 = vld [vmem:[%s165 + $0x158] sm:$0xff]
      %v217 = vld [vmem:[%s165 + $0x160] sm:$0xff]
      %v218 = vld [vmem:[%s165 + $0x168] sm:$0xff]
      %v219 = vld [vmem:[%s165 + $0x170] sm:$0xff]
      %v220 = vld [vmem:[%s165 + $0x178] sm:$0xff]
      %v221 = vld [vmem:[%s165 + $0x180] sm:$0xff]
      %v222 = vld [vmem:[%s165 + $0x188] sm:$0xff]
      %v223 = vld [vmem:[%s165 + $0x190] sm:$0xff]
      %v224 = vld [vmem:[%s165 + $0x198] sm:$0xff]
      %v225 = vld [vmem:[%s165 + $0x1a0] sm:$0xff]
      %v226 = vld [vmem:[%s165 + $0x1a8] sm:$0xff]
      %v227 = vld [vmem:[%s165 + $0x1b0] sm:$0xff]
      %v228 = vld [vmem:[%s165 + $0x1b8] sm:$0xff]
      %v229 = vld [vmem:[%s165 + $0x1c0] sm:$0xff]
      %v230 = vld [vmem:[%s165 + $0x1c8] sm:$0xff]
      %v231 = vld [vmem:[%s165 + $0x1d0] sm:$0xff]
      %v232 = vld [vmem:[%s165 + $0x1d8] sm:$0xff]
      %v233 = vld [vmem:[%s165 + $0x1e0] sm:$0xff]
      %v234 = vld [vmem:[%s165 + $0x1e8] sm:$0xff]
      %v235 = vld [vmem:[%s165 + $0x1f0] sm:$0xff]
      %v236 = vld [vmem:[%s165 + $0x1f8] sm:$0xff]
      %v237 = vld [vmem:[%s1] sm:$0xf]
      %v238 = vld [vmem:[%s1 + $0x4] sm:$0xf]
      %v239 = vld [vmem:[%s1 + $0x8] sm:$0xf]
      %v240 = vld [vmem:[%s1 + $0xc] sm:$0xf]
      %v241 = vld [vmem:[%s1 + $0x10] sm:$0xf]
      %v242 = vld [vmem:[%s1 + $0x14] sm:$0xf]
      %v243 = vld [vmem:[%s1 + $0x18] sm:$0xf]
      %v244 = vld [vmem:[%s1 + $0x1c] sm:$0xf]
      %v245 = vld [vmem:[%s1 + $0x20] sm:$0xf]
      %v246 = vld [vmem:[%s1 + $0x24] sm:$0xf]
      %v247 = vld [vmem:[%s1 + $0x28] sm:$0xf]
      %v248 = vld [vmem:[%s1 + $0x2c] sm:$0xf]
      %v249 = vld [vmem:[%s1 + $0x30] sm:$0xf]
      %v250 = vld [vmem:[%s1 + $0x34] sm:$0xf]
      %v251 = vld [vmem:[%s1 + $0x38] sm:$0xf]
      %v252 = vld [vmem:[%s1 + $0x3c] sm:$0xf]
      %v253 = vld [vmem:[%s1 + $0x40] sm:$0xf]
      %v254 = vld [vmem:[%s1 + $0x44] sm:$0xf]
      %v255 = vld [vmem:[%s1 + $0x48] sm:$0xf]
      %v256 = vld [vmem:[%s1 + $0x4c] sm:$0xf]
      %v257 = vld [vmem:[%s1 + $0x50] sm:$0xf]
      %v258 = vld [vmem:[%s1 + $0x54] sm:$0xf]
      %v259 = vld [vmem:[%s1 + $0x58] sm:$0xf]
      %v260 = vld [vmem:[%s1 + $0x5c] sm:$0xf]
      %v261 = vld [vmem:[%s1 + $0x60] sm:$0xf]
      %v262 = vld [vmem:[%s1 + $0x64] sm:$0xf]
      %v263 = vld [vmem:[%s1 + $0x68] sm:$0xf]
      %v264 = vld [vmem:[%s1 + $0x6c] sm:$0xf]
      %v265 = vld [vmem:[%s1 + $0x70] sm:$0xf]
      %v266 = vld [vmem:[%s1 + $0x74] sm:$0xf]
      %v267 = vld [vmem:[%s1 + $0x78] sm:$0xf]
      %v268 = vld [vmem:[%s1 + $0x7c] sm:$0xf]
      %v269 = vld [vmem:[%s1 + $0x80] sm:$0xf]
      %v270 = vld [vmem:[%s1 + $0x84] sm:$0xf]
      %v271 = vld [vmem:[%s1 + $0x88] sm:$0xf]
      %v272 = vld [vmem:[%s1 + $0x8c] sm:$0xf]
      %v273 = vld [vmem:[%s1 + $0x90] sm:$0xf]
      %v274 = vld [vmem:[%s1 + $0x94] sm:$0xf]
      %v275 = vld [vmem:[%s1 + $0x98] sm:$0xf]
      %v276 = vld [vmem:[%s1 + $0x9c] sm:$0xf]
      %v277 = vld [vmem:[%s1 + $0xa0] sm:$0xf]
      %v278 = vld [vmem:[%s1 + $0xa4] sm:$0xf]
      %v279 = vld [vmem:[%s1 + $0xa8] sm:$0xf]
      %v280 = vld [vmem:[%s1 + $0xac] sm:$0xf]
      %v281 = vld [vmem:[%s1 + $0xb0] sm:$0xf]
      %v282 = vld [vmem:[%s1 + $0xb4] sm:$0xf]
      %v283 = vld [vmem:[%s1 + $0xb8] sm:$0xf]
      %v284 = vld [vmem:[%s1 + $0xbc] sm:$0xf]
      %v285 = vld [vmem:[%s1 + $0xc0] sm:$0xf]
      %v287 = vlaneseq
      %v288 = vshrl.u32 %v287, 7
      %v289 = vsub.s32 0, %v288
      %v290 = vrot.slane %v172, %v289
      %v356 = vunpack.c.l.b16 %v173
      %v357 = vunpack.c.h.b16 %v173
      %v358 = vunpack.c.l.b16 %v174
      %v359 = vunpack.c.h.b16 %v174
      %v360 = vunpack.c.l.b16 %v175
      %v361 = vunpack.c.h.b16 %v175
      %v362 = vunpack.c.l.b16 %v176
      %v363 = vunpack.c.h.b16 %v176
      %v364 = vunpack.c.l.b16 %v177
      %v365 = vunpack.c.h.b16 %v177
      %v366 = vunpack.c.l.b16 %v178
      %v367 = vunpack.c.h.b16 %v178
      %v368 = vunpack.c.l.b16 %v179
      %v369 = vunpack.c.h.b16 %v179
      %v370 = vunpack.c.l.b16 %v180
      %v371 = vunpack.c.h.b16 %v180
      %v372 = vunpack.c.l.b16 %v181
      %v373 = vunpack.c.h.b16 %v181
      %v374 = vunpack.c.l.b16 %v182
      %v375 = vunpack.c.h.b16 %v182
      %v376 = vunpack.c.l.b16 %v183
      %v377 = vunpack.c.h.b16 %v183
      %v378 = vunpack.c.l.b16 %v184
      %v379 = vunpack.c.h.b16 %v184
      %v380 = vunpack.c.l.b16 %v185
      %v381 = vunpack.c.h.b16 %v185
      %v382 = vunpack.c.l.b16 %v186
      %v383 = vunpack.c.h.b16 %v186
      %v384 = vunpack.c.l.b16 %v187
      %v385 = vunpack.c.h.b16 %v187
      %v386 = vunpack.c.l.b16 %v188
      %v387 = vunpack.c.h.b16 %v188
      %v388 = vunpack.c.l.b16 %v189
      %v389 = vunpack.c.h.b16 %v189
      %v390 = vunpack.c.l.b16 %v190
      %v391 = vunpack.c.h.b16 %v190
      %v392 = vunpack.c.l.b16 %v191
      %v393 = vunpack.c.h.b16 %v191
      %v394 = vunpack.c.l.b16 %v192
      %v395 = vunpack.c.h.b16 %v192
      %v396 = vunpack.c.l.b16 %v193
      %v397 = vunpack.c.h.b16 %v193
      %v398 = vunpack.c.l.b16 %v194
      %v399 = vunpack.c.h.b16 %v194
      %v400 = vunpack.c.l.b16 %v195
      %v401 = vunpack.c.h.b16 %v195
      %v402 = vunpack.c.l.b16 %v196
      %v403 = vunpack.c.h.b16 %v196
      %v404 = vunpack.c.l.b16 %v197
      %v405 = vunpack.c.h.b16 %v197
      %v406 = vunpack.c.l.b16 %v198
      %v407 = vunpack.c.h.b16 %v198
      %v408 = vunpack.c.l.b16 %v199
      %v409 = vunpack.c.h.b16 %v199
      %v410 = vunpack.c.l.b16 %v200
      %v411 = vunpack.c.h.b16 %v200
      %v412 = vunpack.c.l.b16 %v201
      %v413 = vunpack.c.h.b16 %v201
      %v414 = vunpack.c.l.b16 %v202
      %v415 = vunpack.c.h.b16 %v202
      %v416 = vunpack.c.l.b16 %v203
      %v417 = vunpack.c.h.b16 %v203
      %v418 = vunpack.c.l.b16 %v204
      %v419 = vunpack.c.h.b16 %v204
      %v420 = vunpack.c.l.b16 %v205
      %v421 = vunpack.c.h.b16 %v205
      %v422 = vunpack.c.l.b16 %v206
      %v423 = vunpack.c.h.b16 %v206
      %v424 = vunpack.c.l.b16 %v207
      %v425 = vunpack.c.h.b16 %v207
      %v426 = vunpack.c.l.b16 %v208
      %v427 = vunpack.c.h.b16 %v208
      %v428 = vunpack.c.l.b16 %v209
      %v429 = vunpack.c.h.b16 %v209
      %v430 = vunpack.c.l.b16 %v210
      %v431 = vunpack.c.h.b16 %v210
      %v432 = vunpack.c.l.b16 %v211
      %v433 = vunpack.c.h.b16 %v211
      %v434 = vunpack.c.l.b16 %v212
      %v435 = vunpack.c.h.b16 %v212
      %v436 = vunpack.c.l.b16 %v213
      %v437 = vunpack.c.h.b16 %v213
      %v438 = vunpack.c.l.b16 %v214
      %v439 = vunpack.c.h.b16 %v214
      %v440 = vunpack.c.l.b16 %v215
      %v441 = vunpack.c.h.b16 %v215
      %v442 = vunpack.c.l.b16 %v216
      %v443 = vunpack.c.h.b16 %v216
      %v444 = vunpack.c.l.b16 %v217
      %v445 = vunpack.c.h.b16 %v217
      %v446 = vunpack.c.l.b16 %v218
      %v447 = vunpack.c.h.b16 %v218
      %v448 = vunpack.c.l.b16 %v219
      %v449 = vunpack.c.h.b16 %v219
      %v450 = vunpack.c.l.b16 %v220
      %v451 = vunpack.c.h.b16 %v220
      %v452 = vunpack.c.l.b16 %v221
      %v453 = vunpack.c.h.b16 %v221
      %v454 = vunpack.c.l.b16 %v222
      %v455 = vunpack.c.h.b16 %v222
      %v456 = vunpack.c.l.b16 %v223
      %v457 = vunpack.c.h.b16 %v223
      %v458 = vunpack.c.l.b16 %v224
      %v459 = vunpack.c.h.b16 %v224
      %v460 = vunpack.c.l.b16 %v225
      %v461 = vunpack.c.h.b16 %v225
      %v462 = vunpack.c.l.b16 %v226
      %v463 = vunpack.c.h.b16 %v226
      %v464 = vunpack.c.l.b16 %v227
      %v465 = vunpack.c.h.b16 %v227
      %v466 = vunpack.c.l.b16 %v228
      %v467 = vunpack.c.h.b16 %v228
      %v468 = vunpack.c.l.b16 %v229
      %v469 = vunpack.c.h.b16 %v229
      %v470 = vunpack.c.l.b16 %v230
      %v471 = vunpack.c.h.b16 %v230
      %v472 = vunpack.c.l.b16 %v231
      %v473 = vunpack.c.h.b16 %v231
      %v474 = vunpack.c.l.b16 %v232
      %v475 = vunpack.c.h.b16 %v232
      %v476 = vunpack.c.l.b16 %v233
      %v477 = vunpack.c.h.b16 %v233
      %v478 = vunpack.c.l.b16 %v234
      %v479 = vunpack.c.h.b16 %v234
      %v480 = vunpack.c.l.b16 %v235
      %v481 = vunpack.c.h.b16 %v235
      %v482 = vunpack.c.l.b16 %v236
      %v483 = vunpack.c.h.b16 %v236
      %v484 = vpack.c.b16 %v360, %v356
      %v485 = vpack.c.b16 %v361, %v357
      %v486 = vpack.c.b16 %v362, %v358
      %v487 = vpack.c.b16 %v363, %v359
      %v488 = vpack.c.b16 %v368, %v364
      %v489 = vpack.c.b16 %v369, %v365
      %v490 = vpack.c.b16 %v370, %v366
      %v491 = vpack.c.b16 %v371, %v367
      %v492 = vpack.c.b16 %v376, %v372
      %v493 = vpack.c.b16 %v377, %v373
      %v494 = vpack.c.b16 %v378, %v374
      %v495 = vpack.c.b16 %v379, %v375
      %v496 = vpack.c.b16 %v384, %v380
      %v497 = vpack.c.b16 %v385, %v381
      %v498 = vpack.c.b16 %v386, %v382
      %v499 = vpack.c.b16 %v387, %v383
      %v500 = vpack.c.b16 %v392, %v388
      %v501 = vpack.c.b16 %v393, %v389
      %v502 = vpack.c.b16 %v394, %v390
      %v503 = vpack.c.b16 %v395, %v391
      %v504 = vpack.c.b16 %v400, %v396
      %v505 = vpack.c.b16 %v401, %v397
      %v506 = vpack.c.b16 %v402, %v398
      %v507 = vpack.c.b16 %v403, %v399
      %v508 = vpack.c.b16 %v408, %v404
      %v509 = vpack.c.b16 %v409, %v405
      %v510 = vpack.c.b16 %v410, %v406
      %v511 = vpack.c.b16 %v411, %v407
      %v512 = vpack.c.b16 %v416, %v412
      %v513 = vpack.c.b16 %v417, %v413
      %v514 = vpack.c.b16 %v418, %v414
      %v515 = vpack.c.b16 %v419, %v415
      %v516 = vpack.c.b16 %v424, %v420
      %v517 = vpack.c.b16 %v425, %v421
      %v518 = vpack.c.b16 %v426, %v422
      %v519 = vpack.c.b16 %v427, %v423
      %v520 = vpack.c.b16 %v432, %v428
      %v521 = vpack.c.b16 %v433, %v429
      %v522 = vpack.c.b16 %v434, %v430
      %v523 = vpack.c.b16 %v435, %v431
      %v524 = vpack.c.b16 %v440, %v436
      %v525 = vpack.c.b16 %v441, %v437
      %v526 = vpack.c.b16 %v442, %v438
      %v527 = vpack.c.b16 %v443, %v439
      %v528 = vpack.c.b16 %v448, %v444
      %v529 = vpack.c.b16 %v449, %v445
      %v530 = vpack.c.b16 %v450, %v446
      %v531 = vpack.c.b16 %v451, %v447
      %v532 = vpack.c.b16 %v456, %v452
      %v533 = vpack.c.b16 %v457, %v453
      %v534 = vpack.c.b16 %v458, %v454
      %v535 = vpack.c.b16 %v459, %v455
      %v536 = vpack.c.b16 %v464, %v460
      %v537 = vpack.c.b16 %v465, %v461
      %v538 = vpack.c.b16 %v466, %v462
      %v539 = vpack.c.b16 %v467, %v463
      %v540 = vpack.c.b16 %v472, %v468
      %v541 = vpack.c.b16 %v473, %v469
      %v542 = vpack.c.b16 %v474, %v470
      %v543 = vpack.c.b16 %v475, %v471
      %v544 = vpack.c.b16 %v480, %v476
      %v545 = vpack.c.b16 %v481, %v477
      %v546 = vpack.c.b16 %v482, %v478
      %v547 = vpack.c.b16 %v483, %v479
      %v645 = vunpack.c.l.b16 %v237
      %v646 = vunpack.c.l.b16 %v238
      %v647 = vunpack.c.l.b16 %v239
      %v648 = vunpack.c.l.b16 %v240
      %v649 = vunpack.c.l.b16 %v241
      %v650 = vunpack.c.l.b16 %v242
      %v651 = vunpack.c.l.b16 %v243
      %v652 = vunpack.c.l.b16 %v244
      %v653 = vunpack.c.l.b16 %v245
      %v654 = vunpack.c.l.b16 %v246
      %v655 = vunpack.c.l.b16 %v247
      %v656 = vunpack.c.l.b16 %v248
      %v657 = vunpack.c.l.b16 %v249
      %v658 = vunpack.c.l.b16 %v250
      %v659 = vunpack.c.l.b16 %v251
      %v660 = vunpack.c.l.b16 %v252
      %v661 = vunpack.c.l.b16 %v253
      %v662 = vunpack.c.l.b16 %v254
      %v663 = vunpack.c.l.b16 %v255
      %v664 = vunpack.c.l.b16 %v256
      %v665 = vunpack.c.l.b16 %v257
      %v666 = vunpack.c.l.b16 %v258
      %v667 = vunpack.c.l.b16 %v259
      %v668 = vunpack.c.l.b16 %v260
      %v669 = vunpack.c.l.b16 %v261
      %v670 = vunpack.c.l.b16 %v262
      %v671 = vunpack.c.l.b16 %v263
      %v672 = vunpack.c.l.b16 %v264
      %v673 = vunpack.c.l.b16 %v265
      %v674 = vunpack.c.l.b16 %v266
      %v675 = vunpack.c.l.b16 %v267
      %v676 = vunpack.c.l.b16 %v268
      %v677 = vunpack.c.l.b16 %v269
      %v678 = vunpack.c.l.b16 %v270
      %v679 = vunpack.c.l.b16 %v271
      %v680 = vunpack.c.l.b16 %v272
      %v681 = vunpack.c.l.b16 %v273
      %v682 = vunpack.c.l.b16 %v274
      %v683 = vunpack.c.l.b16 %v275
      %v684 = vunpack.c.l.b16 %v276
      %v685 = vunpack.c.l.b16 %v277
      %v686 = vunpack.c.l.b16 %v278
      %v687 = vunpack.c.l.b16 %v279
      %v688 = vunpack.c.l.b16 %v280
      %v689 = vunpack.c.l.b16 %v281
      %v690 = vunpack.c.l.b16 %v282
      %v691 = vunpack.c.l.b16 %v283
      %v692 = vunpack.c.l.b16 %v284
      %v693 = vunpack.c.l.b16 %v285
      %v694 = vpack.c.b16 %v646, %v645
      %v695 = vpack.c.b16 %v648, %v647
      %v696 = vpack.c.b16 %v650, %v649
      %v697 = vpack.c.b16 %v652, %v651
      %v698 = vpack.c.b16 %v654, %v653
      %v699 = vpack.c.b16 %v656, %v655
      %v700 = vpack.c.b16 %v658, %v657
      %v701 = vpack.c.b16 %v660, %v659
      %v702 = vpack.c.b16 %v662, %v661
      %v703 = vpack.c.b16 %v664, %v663
      %v704 = vpack.c.b16 %v666, %v665
      %v705 = vpack.c.b16 %v668, %v667
      %v706 = vpack.c.b16 %v670, %v669
      %v707 = vpack.c.b16 %v672, %v671
      %v708 = vpack.c.b16 %v674, %v673
      %v709 = vpack.c.b16 %v676, %v675
      %v710 = vpack.c.b16 %v678, %v677
      %v711 = vpack.c.b16 %v680, %v679
      %v712 = vpack.c.b16 %v682, %v681
      %v713 = vpack.c.b16 %v684, %v683
      %v714 = vpack.c.b16 %v686, %v685
      %v715 = vpack.c.b16 %v688, %v687
      %v716 = vpack.c.b16 %v690, %v689
      %v717 = vpack.c.b16 %v692, %v691
      %v718 = vpack.c.b16 %v693, %v693
      %vm743 = vcmask 64512
      %v745 = vsel %vm743, %v487, 0
      %v748 = vsel %vm743, %v491, 0
      %v751 = vsel %vm743, %v495, 0
      %v754 = vsel %vm743, %v499, 0
      %v757 = vsel %vm743, %v503, 0
      %v760 = vsel %vm743, %v507, 0
      %v763 = vsel %vm743, %v511, 0
      %v766 = vsel %vm743, %v515, 0
      %v769 = vsel %vm743, %v519, 0
      %v772 = vsel %vm743, %v523, 0
      %v775 = vsel %vm743, %v527, 0
      %v778 = vsel %vm743, %v531, 0
      %v781 = vsel %vm743, %v535, 0
      %v784 = vsel %vm743, %v539, 0
      %v787 = vsel %vm743, %v543, 0
      %v790 = vsel %vm743, %v547, 0
      %vm792 = vcmask 1043456
      %v794 = vsel %vm792, %v718, 0
      %796 = vmatprep.subr.bf16.mxu0 0
      %797 = vmatpush1.bf16.msra.mxu0 %v701
      %798 = vmatprep.subr.bf16.mxu0 0
      %799 = vmatpush1.bf16.msra.mxu0 %v700
      %800 = vmatprep.subr.bf16.mxu0 0
      %801 = vmatpush1.bf16.msra.mxu0 %v699
      %802 = vmatprep.subr.bf16.mxu0 0
      %803 = vmatpush1.bf16.msra.mxu0 %v698
      %804 = vmatprep.subr.bf16.mxu0 0
      %805 = vmatpush1.bf16.msra.mxu0 %v697
      %806 = vmatprep.subr.bf16.mxu0 0
      %807 = vmatpush1.bf16.msra.mxu0 %v696
      %808 = vmatprep.subr.bf16.mxu0 0
      %809 = vmatpush1.bf16.msra.mxu0 %v695
      %810 = vmatprep.subr.bf16.mxu0 0
      %811 = vmatpush1.bf16.msra.mxu0 %v694
      %812 = vmatprep.subr.bf16.mxu0 0
      %813 = vmatpush2.bf16.msra.mxu0 %v709
      %814 = vmatprep.subr.bf16.mxu0 0
      %815 = vmatpush2.bf16.msra.mxu0 %v708
      %816 = vmatprep.subr.bf16.mxu0 0
      %817 = vmatpush2.bf16.msra.mxu0 %v707
      %818 = vmatprep.subr.bf16.mxu0 0
      %819 = vmatpush2.bf16.msra.mxu0 %v706
      %820 = vmatprep.subr.bf16.mxu0 0
      %821 = vmatpush2.bf16.msra.mxu0 %v705
      %822 = vmatprep.subr.bf16.mxu0 0
      %823 = vmatpush2.bf16.msra.mxu0 %v704
      %824 = vmatprep.subr.bf16.mxu0 0
      %825 = vmatpush2.bf16.msra.mxu0 %v703
      %826 = vmatprep.subr.bf16.mxu0 0
      %827 = vmatpush2.bf16.msra.mxu0 %v702
      %828 = vmatprep.mubr.bf16.mxu0 %v485
      %829 = vmatmul.mubr.bf16.gmra.mxu0 %v484
      %v830 = vpop.f32.mrf.mxu0
      %v831 = vadd.f32 %v290, %v830
      %v832 = vpop.f32.mrf.mxu0
      %v833 = vpop.f32.mrf.mxu0
      %v834 = vadd.f32 %v290, %v833
      %v835 = vpop.f32.mrf.mxu0
      %836 = vmatprep.mubr.bf16.mxu0 %v489
      %837 = vmatmul.mubr.bf16.gmra.mxu0 %v488
      %v838 = vpop.f32.mrf.mxu0
      %v839 = vadd.f32 %v290, %v838
      %v840 = vpop.f32.mrf.mxu0
      %v841 = vpop.f32.mrf.mxu0
      %v842 = vadd.f32 %v290, %v841
      %v843 = vpop.f32.mrf.mxu0
      %844 = vmatprep.mubr.bf16.mxu0 %v493
      %845 = vmatmul.mubr.bf16.gmra.mxu0 %v492
      %v846 = vpop.f32.mrf.mxu0
      %v847 = vadd.f32 %v290, %v846
      %v848 = vpop.f32.mrf.mxu0
      %v849 = vpop.f32.mrf.mxu0
      %v850 = vadd.f32 %v290, %v849
      %v851 = vpop.f32.mrf.mxu0
      %852 = vmatprep.mubr.bf16.mxu0 %v497
      %853 = vmatmul.mubr.bf16.gmra.mxu0 %v496
      %v854 = vpop.f32.mrf.mxu0
      %v855 = vadd.f32 %v290, %v854
      %v856 = vpop.f32.mrf.mxu0
      %v857 = vpop.f32.mrf.mxu0
      %v858 = vadd.f32 %v290, %v857
      %v859 = vpop.f32.mrf.mxu0
      %860 = vmatprep.mubr.bf16.mxu0 %v501
      %861 = vmatmul.mubr.bf16.gmra.mxu0 %v500
      %v862 = vpop.f32.mrf.mxu0
      %v863 = vadd.f32 %v290, %v862
      %v864 = vpop.f32.mrf.mxu0
      %v865 = vpop.f32.mrf.mxu0
      %v866 = vadd.f32 %v290, %v865
      %v867 = vpop.f32.mrf.mxu0
      %868 = vmatprep.mubr.bf16.mxu0 %v505
      %869 = vmatmul.mubr.bf16.gmra.mxu0 %v504
      %v870 = vpop.f32.mrf.mxu0
      %v871 = vadd.f32 %v290, %v870
      %v872 = vpop.f32.mrf.mxu0
      %v873 = vpop.f32.mrf.mxu0
      %v874 = vadd.f32 %v290, %v873
      %v875 = vpop.f32.mrf.mxu0
      %876 = vmatprep.mubr.bf16.mxu0 %v509
      %877 = vmatmul.mubr.bf16.gmra.mxu0 %v508
      %v878 = vpop.f32.mrf.mxu0
      %v879 = vadd.f32 %v290, %v878
      %v880 = vpop.f32.mrf.mxu0
      %v881 = vpop.f32.mrf.mxu0
      %v882 = vadd.f32 %v290, %v881
      %v883 = vpop.f32.mrf.mxu0
      %884 = vmatprep.mubr.bf16.mxu0 %v513
      %885 = vmatmul.mubr.bf16.gmra.mxu0 %v512
      %v886 = vpop.f32.mrf.mxu0
      %v887 = vadd.f32 %v290, %v886
      %v888 = vpop.f32.mrf.mxu0
      %v889 = vpop.f32.mrf.mxu0
      %v890 = vadd.f32 %v290, %v889
      %v891 = vpop.f32.mrf.mxu0
      %892 = vmatprep.mubr.bf16.mxu0 %v517
      %893 = vmatmul.mubr.bf16.gmra.mxu0 %v516
      %v894 = vpop.f32.mrf.mxu0
      %v895 = vadd.f32 %v290, %v894
      %v896 = vpop.f32.mrf.mxu0
      %v897 = vpop.f32.mrf.mxu0
      %v898 = vadd.f32 %v290, %v897
      %v899 = vpop.f32.mrf.mxu0
      %900 = vmatprep.mubr.bf16.mxu0 %v521
      %901 = vmatmul.mubr.bf16.gmra.mxu0 %v520
      %v902 = vpop.f32.mrf.mxu0
      %v903 = vadd.f32 %v290, %v902
      %v904 = vpop.f32.mrf.mxu0
      %v905 = vpop.f32.mrf.mxu0
      %v906 = vadd.f32 %v290, %v905
      %v907 = vpop.f32.mrf.mxu0
      %908 = vmatprep.mubr.bf16.mxu0 %v525
      %909 = vmatmul.mubr.bf16.gmra.mxu0 %v524
      %v910 = vpop.f32.mrf.mxu0
      %v911 = vadd.f32 %v290, %v910
      %v912 = vpop.f32.mrf.mxu0
      %v913 = vpop.f32.mrf.mxu0
      %v914 = vadd.f32 %v290, %v913
      %v915 = vpop.f32.mrf.mxu0
      %916 = vmatprep.mubr.bf16.mxu0 %v529
      %917 = vmatmul.mubr.bf16.gmra.mxu0 %v528
      %v918 = vpop.f32.mrf.mxu0
      %v919 = vadd.f32 %v290, %v918
      %v920 = vpop.f32.mrf.mxu0
      %v921 = vpop.f32.mrf.mxu0
      %v922 = vadd.f32 %v290, %v921
      %v923 = vpop.f32.mrf.mxu0
      %924 = vmatprep.mubr.bf16.mxu0 %v533
      %925 = vmatmul.mubr.bf16.gmra.mxu0 %v532
      %v926 = vpop.f32.mrf.mxu0
      %v927 = vadd.f32 %v290, %v926
      %v928 = vpop.f32.mrf.mxu0
      %v929 = vpop.f32.mrf.mxu0
      %v930 = vadd.f32 %v290, %v929
      %v931 = vpop.f32.mrf.mxu0
      %932 = vmatprep.mubr.bf16.mxu0 %v537
      %933 = vmatmul.mubr.bf16.gmra.mxu0 %v536
      %v934 = vpop.f32.mrf.mxu0
      %v935 = vadd.f32 %v290, %v934
      %v936 = vpop.f32.mrf.mxu0
      %v937 = vpop.f32.mrf.mxu0
      %v938 = vadd.f32 %v290, %v937
      %v939 = vpop.f32.mrf.mxu0
      %940 = vmatprep.mubr.bf16.mxu0 %v541
      %941 = vmatmul.mubr.bf16.gmra.mxu0 %v540
      %v942 = vpop.f32.mrf.mxu0
      %v943 = vadd.f32 %v290, %v942
      %v944 = vpop.f32.mrf.mxu0
      %v945 = vpop.f32.mrf.mxu0
      %v946 = vadd.f32 %v290, %v945
      %v947 = vpop.f32.mrf.mxu0
      %948 = vmatprep.mubr.bf16.mxu0 %v545
      %949 = vmatmul.mubr.bf16.gmra.mxu0 %v544
      %v950 = vpop.f32.mrf.mxu0
      %v951 = vadd.f32 %v290, %v950
      %v952 = vpop.f32.mrf.mxu0
      %v953 = vpop.f32.mrf.mxu0
      %v954 = vadd.f32 %v290, %v953
      %v955 = vpop.f32.mrf.mxu0
      %956 = vdwg.mxu0
      %957 = vmatprep.subr.bf16.mxu0 0
      %958 = vmatpush1.bf16.msra.mxu0 %v717
      %959 = vmatprep.subr.bf16.mxu0 0
      %960 = vmatpush1.bf16.msra.mxu0 %v716
      %961 = vmatprep.subr.bf16.mxu0 0
      %962 = vmatpush1.bf16.msra.mxu0 %v715
      %963 = vmatprep.subr.bf16.mxu0 0
      %964 = vmatpush1.bf16.msra.mxu0 %v714
      %965 = vmatprep.subr.bf16.mxu0 0
      %966 = vmatpush1.bf16.msra.mxu0 %v713
      %967 = vmatprep.subr.bf16.mxu0 0
      %968 = vmatpush1.bf16.msra.mxu0 %v712
      %969 = vmatprep.subr.bf16.mxu0 0
      %970 = vmatpush1.bf16.msra.mxu0 %v711
      %971 = vmatprep.subr.bf16.mxu0 0
      %972 = vmatpush1.bf16.msra.mxu0 %v710
      %973 = vmatprep.subr.bf16.mxu0 0
      %974 = vmatpush2.bf16.msra.mxu0 0
      %975 = vmatprep.subr.bf16.mxu0 0
      %976 = vmatpush2.bf16.msra.mxu0 0
      %977 = vmatprep.subr.bf16.mxu0 0
      %978 = vmatpush2.bf16.msra.mxu0 0
      %979 = vmatprep.subr.bf16.mxu0 0
      %980 = vmatpush2.bf16.msra.mxu0 0
      %981 = vmatprep.subr.bf16.mxu0 0
      %982 = vmatpush2.bf16.msra.mxu0 0
      %983 = vmatprep.subr.bf16.mxu0 0
      %984 = vmatpush2.bf16.msra.mxu0 0
      %985 = vmatprep.subr.bf16.mxu0 0
      %986 = vmatpush2.bf16.msra.mxu0 0
      %987 = vmatprep.subr.bf16.mxu0 0
      %988 = vmatpush2.bf16.msra.mxu0 %v794
      %989 = vmatprep.mubr.bf16.mxu0 %v745
      %990 = vmatmul.mubr.bf16.gmra.mxu0 %v486
      %v991 = vpop.f32.mrf.mxu0
      %v992 = vadd.f32 %v831, %v991
      %v993 = vpop.f32.mrf.mxu0
      %v994 = vpop.f32.mrf.mxu0
      %v995 = vadd.f32 %v834, %v994
      %v996 = vpop.f32.mrf.mxu0
      %997 = vmatprep.mubr.bf16.mxu0 %v748
      %998 = vmatmul.mubr.bf16.gmra.mxu0 %v490
      %v999 = vpop.f32.mrf.mxu0
      %v1000 = vadd.f32 %v839, %v999
      %v1001 = vpop.f32.mrf.mxu0
      %v1002 = vpop.f32.mrf.mxu0
      %v1003 = vadd.f32 %v842, %v1002
      %v1004 = vpop.f32.mrf.mxu0
      %1005 = vmatprep.mubr.bf16.mxu0 %v751
      %1006 = vmatmul.mubr.bf16.gmra.mxu0 %v494
      %v1007 = vpop.f32.mrf.mxu0
      %v1008 = vadd.f32 %v847, %v1007
      %v1009 = vpop.f32.mrf.mxu0
      %v1010 = vpop.f32.mrf.mxu0
      %v1011 = vadd.f32 %v850, %v1010
      %v1012 = vpop.f32.mrf.mxu0
      %1013 = vmatprep.mubr.bf16.mxu0 %v754
      %1014 = vmatmul.mubr.bf16.gmra.mxu0 %v498
      %v1015 = vpop.f32.mrf.mxu0
      %v1016 = vadd.f32 %v855, %v1015
      %v1017 = vpop.f32.mrf.mxu0
      %v1018 = vpop.f32.mrf.mxu0
      %v1019 = vadd.f32 %v858, %v1018
      %v1020 = vpop.f32.mrf.mxu0
      %1021 = vmatprep.mubr.bf16.mxu0 %v757
      %1022 = vmatmul.mubr.bf16.gmra.mxu0 %v502
      %v1023 = vpop.f32.mrf.mxu0
      %v1024 = vadd.f32 %v863, %v1023
      %v1025 = vpop.f32.mrf.mxu0
      %v1026 = vpop.f32.mrf.mxu0
      %v1027 = vadd.f32 %v866, %v1026
      %v1028 = vpop.f32.mrf.mxu0
      %1029 = vmatprep.mubr.bf16.mxu0 %v760
      %1030 = vmatmul.mubr.bf16.gmra.mxu0 %v506
      %v1031 = vpop.f32.mrf.mxu0
      %v1032 = vadd.f32 %v871, %v1031
      %v1033 = vpop.f32.mrf.mxu0
      %v1034 = vpop.f32.mrf.mxu0
      %v1035 = vadd.f32 %v874, %v1034
      %v1036 = vpop.f32.mrf.mxu0
      %1037 = vmatprep.mubr.bf16.mxu0 %v763
      %1038 = vmatmul.mubr.bf16.gmra.mxu0 %v510
      %v1039 = vpop.f32.mrf.mxu0
      %v1040 = vadd.f32 %v879, %v1039
      %v1041 = vpop.f32.mrf.mxu0
      %v1042 = vpop.f32.mrf.mxu0
      %v1043 = vadd.f32 %v882, %v1042
      %v1044 = vpop.f32.mrf.mxu0
      %1045 = vmatprep.mubr.bf16.mxu0 %v766
      %1046 = vmatmul.mubr.bf16.gmra.mxu0 %v514
      %v1047 = vpop.f32.mrf.mxu0
      %v1048 = vadd.f32 %v887, %v1047
      %v1049 = vpop.f32.mrf.mxu0
      %v1050 = vpop.f32.mrf.mxu0
      %v1051 = vadd.f32 %v890, %v1050
      %v1052 = vpop.f32.mrf.mxu0
      %1053 = vmatprep.mubr.bf16.mxu0 %v769
      %1054 = vmatmul.mubr.bf16.gmra.mxu0 %v518
      %v1055 = vpop.f32.mrf.mxu0
      %v1056 = vadd.f32 %v895, %v1055
      %v1057 = vpop.f32.mrf.mxu0
      %v1058 = vpop.f32.mrf.mxu0
      %v1059 = vadd.f32 %v898, %v1058
      %v1060 = vpop.f32.mrf.mxu0
      %1061 = vmatprep.mubr.bf16.mxu0 %v772
      %1062 = vmatmul.mubr.bf16.gmra.mxu0 %v522
      %v1063 = vpop.f32.mrf.mxu0
      %v1064 = vadd.f32 %v903, %v1063
      %v1065 = vpop.f32.mrf.mxu0
      %v1066 = vpop.f32.mrf.mxu0
      %v1067 = vadd.f32 %v906, %v1066
      %v1068 = vpop.f32.mrf.mxu0
      %1069 = vmatprep.mubr.bf16.mxu0 %v775
      %1070 = vmatmul.mubr.bf16.gmra.mxu0 %v526
      %v1071 = vpop.f32.mrf.mxu0
      %v1072 = vadd.f32 %v911, %v1071
      %v1073 = vpop.f32.mrf.mxu0
      %v1074 = vpop.f32.mrf.mxu0
      %v1075 = vadd.f32 %v914, %v1074
      %v1076 = vpop.f32.mrf.mxu0
      %1077 = vmatprep.mubr.bf16.mxu0 %v778
      %1078 = vmatmul.mubr.bf16.gmra.mxu0 %v530
      %v1079 = vpop.f32.mrf.mxu0
      %v1080 = vadd.f32 %v919, %v1079
      %v1081 = vpop.f32.mrf.mxu0
      %v1082 = vpop.f32.mrf.mxu0
      %v1083 = vadd.f32 %v922, %v1082
      %v1084 = vpop.f32.mrf.mxu0
      %1085 = vmatprep.mubr.bf16.mxu0 %v781
      %1086 = vmatmul.mubr.bf16.gmra.mxu0 %v534
      %v1087 = vpop.f32.mrf.mxu0
      %v1088 = vadd.f32 %v927, %v1087
      %v1089 = vpop.f32.mrf.mxu0
      %v1090 = vpop.f32.mrf.mxu0
      %v1091 = vadd.f32 %v930, %v1090
      %v1092 = vpop.f32.mrf.mxu0
      %1093 = vmatprep.mubr.bf16.mxu0 %v784
      %1094 = vmatmul.mubr.bf16.gmra.mxu0 %v538
      %v1095 = vpop.f32.mrf.mxu0
      %v1096 = vadd.f32 %v935, %v1095
      %v1097 = vpop.f32.mrf.mxu0
      %v1098 = vpop.f32.mrf.mxu0
      %v1099 = vadd.f32 %v938, %v1098
      %v1100 = vpop.f32.mrf.mxu0
      %1101 = vmatprep.mubr.bf16.mxu0 %v787
      %1102 = vmatmul.mubr.bf16.gmra.mxu0 %v542
      %v1103 = vpop.f32.mrf.mxu0
      %v1104 = vadd.f32 %v943, %v1103
      %v1105 = vpop.f32.mrf.mxu0
      %v1106 = vpop.f32.mrf.mxu0
      %v1107 = vadd.f32 %v946, %v1106
      %v1108 = vpop.f32.mrf.mxu0
      %1109 = vmatprep.mubr.bf16.mxu0 %v790
      %1110 = vmatmul.mubr.bf16.gmra.mxu0 %v546
      %v1111 = vpop.f32.mrf.mxu0
      %v1112 = vadd.f32 %v951, %v1111
      %v1113 = vpop.f32.mrf.mxu0
      %v1114 = vpop.f32.mrf.mxu0
      %v1115 = vadd.f32 %v954, %v1114
      %v1116 = vpop.f32.mrf.mxu0
      %1117 = vdwg.mxu0
      %v1118 = vtanh.pop %v992
      %v1119 = vtanh.pop %v995
      %v1120 = vtanh.pop %v1000
      %v1121 = vtanh.pop %v1003
      %v1122 = vtanh.pop %v1008
      %v1123 = vtanh.pop %v1011
      %v1124 = vtanh.pop %v1016
      %v1125 = vtanh.pop %v1019
      %v1126 = vtanh.pop %v1024
      %v1127 = vtanh.pop %v1027
      %v1128 = vtanh.pop %v1032
      %v1129 = vtanh.pop %v1035
      %v1130 = vtanh.pop %v1040
      %v1131 = vtanh.pop %v1043
      %v1132 = vtanh.pop %v1048
      %v1133 = vtanh.pop %v1051
      %v1134 = vtanh.pop %v1056
      %v1135 = vtanh.pop %v1059
      %v1136 = vtanh.pop %v1064
      %v1137 = vtanh.pop %v1067
      %v1138 = vtanh.pop %v1072
      %v1139 = vtanh.pop %v1075
      %v1140 = vtanh.pop %v1080
      %v1141 = vtanh.pop %v1083
      %v1142 = vtanh.pop %v1088
      %v1143 = vtanh.pop %v1091
      %v1144 = vtanh.pop %v1096
      %v1145 = vtanh.pop %v1099
      %v1146 = vtanh.pop %v1104
      %v1147 = vtanh.pop %v1107
      %v1148 = vtanh.pop %v1112
      %v1149 = vtanh.pop %v1115
      %vm1150 = vcmask 31744
      %1151 = vst.msk [vmem:[%s170] sm:$0xff] %vm1150, %v1118
      %1152 = vst.msk [vmem:[%s170 + $0x8] sm:$0xff] %vm1150, %v1119
      %1153 = vst.msk [vmem:[%s170 + $0x10] sm:$0xff] %vm1150, %v1120
      %1154 = vst.msk [vmem:[%s170 + $0x18] sm:$0xff] %vm1150, %v1121
      %1155 = vst.msk [vmem:[%s170 + $0x20] sm:$0xff] %vm1150, %v1122
      %1156 = vst.msk [vmem:[%s170 + $0x28] sm:$0xff] %vm1150, %v1123
      %1157 = vst.msk [vmem:[%s170 + $0x30] sm:$0xff] %vm1150, %v1124
      %1158 = vst.msk [vmem:[%s170 + $0x38] sm:$0xff] %vm1150, %v1125
      %1159 = vst.msk [vmem:[%s170 + $0x40] sm:$0xff] %vm1150, %v1126
      %1160 = vst.msk [vmem:[%s170 + $0x48] sm:$0xff] %vm1150, %v1127
      %1161 = vst.msk [vmem:[%s170 + $0x50] sm:$0xff] %vm1150, %v1128
      %1162 = vst.msk [vmem:[%s170 + $0x58] sm:$0xff] %vm1150, %v1129
      %1163 = vst.msk [vmem:[%s170 + $0x60] sm:$0xff] %vm1150, %v1130
      %1164 = vst.msk [vmem:[%s170 + $0x68] sm:$0xff] %vm1150, %v1131
      %1165 = vst.msk [vmem:[%s170 + $0x70] sm:$0xff] %vm1150, %v1132
      %1166 = vst.msk [vmem:[%s170 + $0x78] sm:$0xff] %vm1150, %v1133
      %1167 = vst.msk [vmem:[%s170 + $0x80] sm:$0xff] %vm1150, %v1134
      %1168 = vst.msk [vmem:[%s170 + $0x88] sm:$0xff] %vm1150, %v1135
      %1169 = vst.msk [vmem:[%s170 + $0x90] sm:$0xff] %vm1150, %v1136
      %1170 = vst.msk [vmem:[%s170 + $0x98] sm:$0xff] %vm1150, %v1137
      %1171 = vst.msk [vmem:[%s170 + $0xa0] sm:$0xff] %vm1150, %v1138
      %1172 = vst.msk [vmem:[%s170 + $0xa8] sm:$0xff] %vm1150, %v1139
      %1173 = vst.msk [vmem:[%s170 + $0xb0] sm:$0xff] %vm1150, %v1140
      %1174 = vst.msk [vmem:[%s170 + $0xb8] sm:$0xff] %vm1150, %v1141
      %1175 = vst.msk [vmem:[%s170 + $0xc0] sm:$0xff] %vm1150, %v1142
      %1176 = vst.msk [vmem:[%s170 + $0xc8] sm:$0xff] %vm1150, %v1143
      %1177 = vst.msk [vmem:[%s170 + $0xd0] sm:$0xff] %vm1150, %v1144
      %1178 = vst.msk [vmem:[%s170 + $0xd8] sm:$0xff] %vm1150, %v1145
      %1179 = vst.msk [vmem:[%s170 + $0xe0] sm:$0xff] %vm1150, %v1146
      %1180 = vst.msk [vmem:[%s170 + $0xe8] sm:$0xff] %vm1150, %v1147
      %1181 = vst.msk [vmem:[%s170 + $0xf0] sm:$0xff] %vm1150, %v1148
      %1182 = vst.msk [vmem:[%s170 + $0xf8] sm:$0xff] %vm1150, %v1149
      %p1183 = scmp.lt.s32.totalorder %s14, 1
      %s1184 = scalar_select %p1183, %s14, 1
      %s1185 = smul.addr %s1184, 32
      %s1186 = smul.addr %s1185, 8
      %s1187 = scalar_lea.vmem %s3, %s1186
      // Predicated region
      $region33: #{generator_forward.13} parent=31 // pred_check
        %p1188 = pneg %p100
      $region34: #{generator_forward.13} parent=31 // pred_check_branch
        %1190 = sbr.rel (%p1188) target = $region36
      $region35: #{generator_forward.13} parent=31 // pred_region
        _
      $region36: #{generator_forward.13} parent=31 // pred_fallthru
        _
    $region32: #{generator_forward.13} parent=5 // pred_fallthru
      _
    %p1191 = scmp.le.s32.totalorder 2, %s9
    // Predicated region
    $region37: #{generator_forward.13} parent=5 // pred_check
      %p1192 = pneg %p1191
    $region38: #{generator_forward.13} parent=5 // pred_check_branch
      %1194 = sbr.rel (%p1192) target = $region40
    $region39: #{generator_forward.13} parent=5 // pred_region
      %s1195 = ssub.s32 %s9, 2
      // Predicated region
      $region41: #{generator_forward.13} parent=39 // pred_check
        %p1196 = pneg %p106
      $region42: #{generator_forward.13} parent=39 // pred_check_branch
        %1198 = sbr.rel (%p1196) target = $region44
      $region43: #{generator_forward.13} parent=39 // pred_region
        %p1199 = scmp.lt.s32.totalorder %s15, 1
        %s1200 = scalar_select %p1199, %s15, 1
        %s1201 = smul.addr %s1200, 32
        %s1202 = smul.addr %s1201, 8
        %s1203 = scalar_lea.vmem %s3, %s1202
      $region44: #{generator_forward.13} parent=39 // pred_fallthru
        _
    $region40: #{generator_forward.13} parent=5 // pred_fallthru
      _
  $region6: #{generator_forward.13} parent=0 // loop_footer
    %s13 = sadd.s32 1, %s9
  $region7: #{generator_forward.13} parent=0 // loop_footer_branch
    %8 = sbr.rel target = $region3
  $region8: #{generator_forward.13} parent=0 // loop_exit
    _

</llo_original>
